<compile_context>
chip_gen: v5e
topology: v5e:2x2
jax: 0.10.0
libtpu: 0.0.40
codegen_flags: <defaults>
</compile_context>

<pallas_src>
import functools

import numpy as np

import jax
import jax.numpy as jnp
from jax.experimental import pallas as pl
from jax.experimental.pallas import tpu as pltpu


# Image rows start at this sublane-aligned offset inside the halo buffers so
# the big (H, W*C) interior store is unshifted; halos sit at TOP-1 and TOP+H.
_TOP = 8


def _banded_conv_weights(w_hwio, width):
    """HWIO (3,3,Ci,Co) conv weights -> (3, width*Ci, width*Co) block-banded
    matmul weights, one slab per kernel row dy.

    Row index = wp*Ci + ci (input column wp, input channel ci); column index =
    w*Co + co (output column w).  Band clipping at w=0 / w=width-1 implements
    the SAME padding along W, so no W-direction padding buffer is needed.
    """
    kh, kw, ci, co = w_hwio.shape
    w_np = np.asarray(w_hwio, dtype=np.float32)
    banded = np.zeros((kh, width * ci, width * co), np.float32)
    for dy in range(kh):
        for w in range(width):
            for dx in range(kw):
                wp = w + dx - (kw // 2)
                if 0 <= wp < width:
                    banded[dy, wp * ci:(wp + 1) * ci,
                           w * co:(w + 1) * co] = w_np[dy, dx]
    return jnp.asarray(banded)


def cnn_block_kernel(x_ref, w1_ref, b1_ref, w2_ref, b2_ref, o_ref,
                     xbuf, ybuf, *, H, W, Cin, C1, C2):
    # x_ref : (1, H, W*Cin)            f32   one image, lane-dense
    # w1_ref: (3, W*Cin, W*C1)         bf16  banded layer-1 weights (per dy)
    # b1_ref: (1, W*C1)                f32   bias tiled along W
    # w2_ref: (3, W*C1, W*C2)          bf16  banded layer-2 weights (per dy)
    # b2_ref: (1, W*C2)                f32
    # o_ref : (1, H, W*C2)             f32   lane-dense output slab
    # xbuf  : VMEM (_TOP+H+1, W*Cin)   f32   layer-1 input + 2 halo rows
    # ybuf  : VMEM (_TOP+H+1, W*C1)    f32   fused intermediate + 2 halo rows

    # Zero ONLY the two halo rows; the W-direction padding is already folded
    # into the banded weights.  Re-done every step (cheap) so correctness does
    # not depend on scratch persistence across megacore-sharded grid steps.
    xbuf[pl.ds(_TOP - 1, 1), :] = jnp.zeros((1, W * Cin), xbuf.dtype)
    xbuf[pl.ds(_TOP + H, 1), :] = jnp.zeros((1, W * Cin), xbuf.dtype)
    ybuf[pl.ds(_TOP - 1, 1), :] = jnp.zeros((1, W * C1), ybuf.dtype)
    ybuf[pl.ds(_TOP + H, 1), :] = jnp.zeros((1, W * C1), ybuf.dtype)

    # ---- layer 1: Conv3x3(pad=1) + ReLU -------------------------------------
    xbuf[pl.ds(_TOP, H), :] = x_ref[0]                       # aligned dense store

    y1 = b1_ref[...]                                         # (1, W*C1) broadcasts
    for dy in range(3):                                      # static unroll
        lhs = xbuf[pl.ds(_TOP - 1 + dy, H), :].astype(jnp.bfloat16)
        y1 = y1 + jnp.dot(lhs, w1_ref[dy],
                          preferred_element_type=jnp.float32)
    y1 = jnp.maximum(y1, 0.0)                                # (H, W*C1) f32

    # ---- layer 2: Conv3x3(pad=1) + ReLU -------------------------------------
    ybuf[pl.ds(_TOP, H), :] = y1                             # f32, VMEM-only

    y2 = b2_ref[...]
    for dy in range(3):
        lhs = ybuf[pl.ds(_TOP - 1 + dy, H), :].astype(jnp.bfloat16)
        y2 = y2 + jnp.dot(lhs, w2_ref[dy],
                          preferred_element_type=jnp.float32)
    y2 = jnp.maximum(y2, 0.0)                                # (H, W*C2) f32

    o_ref[0] = y2.astype(o_ref.dtype)                        # lane-dense store


def cnn_block_forward(x_nhwc, w1_hwio, b1, w2_hwio, b2):
    """Fused Conv3x3(pad=1)+ReLU -> Conv3x3(pad=1)+ReLU.

    x_nhwc: (N,H,W,Cin) f32; weights HWIO f32; returns (N,H,W,C2) f32.
    """
    N, H, W, Cin = x_nhwc.shape
    C1 = w1_hwio.shape[-1]
    C2 = w2_hwio.shape[-1]

    # Banded (conv-along-W as matmul) weights, bf16 for the MXU; biases tiled
    # to the lane-dense layout.  Built once per call on the host.
    w1b = _banded_conv_weights(w1_hwio, W).astype(jnp.bfloat16)   # (3, W*Cin, W*C1)
    w2b = _banded_conv_weights(w2_hwio, W).astype(jnp.bfloat16)   # (3, W*C1, W*C2)
    b1t = jnp.tile(b1.astype(jnp.float32), W).reshape(1, W * C1)
    b2t = jnp.tile(b2.astype(jnp.float32), W).reshape(1, W * C2)

    x_lane = x_nhwc.astype(jnp.float32).reshape(N, H, W * Cin)

    kernel = functools.partial(cnn_block_kernel,
                               H=H, W=W, Cin=Cin, C1=C1, C2=C2)

    out = pl.pallas_call(
        kernel,
        out_shape=jax.ShapeDtypeStruct((N, H, W * C2), jnp.float32),
        grid=(N,),
        in_specs=[
            pl.BlockSpec((1, H, W * Cin), lambda n: (n, 0, 0)),
            pl.BlockSpec((3, W * Cin, W * C1), lambda n: (0, 0, 0)),
            pl.BlockSpec((1, W * C1), lambda n: (0, 0)),
            pl.BlockSpec((3, W * C1, W * C2), lambda n: (0, 0, 0)),
            pl.BlockSpec((1, W * C2), lambda n: (0, 0)),
        ],
        out_specs=pl.BlockSpec((1, H, W * C2), lambda n: (n, 0, 0)),
        scratch_shapes=[
            pltpu.VMEM((_TOP + H + 1, W * Cin), jnp.float32),
            pltpu.VMEM((_TOP + H + 1, W * C1), jnp.float32),
        ],
        compiler_params=pltpu.CompilerParams(
            dimension_semantics=("parallel",),
            vmem_limit_bytes=32 * 1024 * 1024),
    )(x_lane, w1b, b1t, w2b, b2t)

    return out.reshape(N, H, W, C2)


class CNNBlockPallas:
    """Pallas equivalent of CNNBlock: Conv2d(3x3, pad=1) -> ReLU, twice."""

    def __init__(self, in_channels=1, out_channels=64, key=None):
        if key is None:
            key = jax.random.PRNGKey(0)
        k1, k2, k3, k4 = jax.random.split(key, 4)
        # Deterministic init (Kaiming-uniform-ish scale); HWIO layout, f32.
        fan_in1 = in_channels * 9
        fan_in2 = out_channels * 9
        bound1 = 1.0 / float(np.sqrt(fan_in1))
        bound2 = 1.0 / float(np.sqrt(fan_in2))
        self.w1 = jax.random.uniform(k1, (3, 3, in_channels, out_channels),
                                     jnp.float32, -bound1, bound1)
        self.b1 = jax.random.uniform(k2, (out_channels,), jnp.float32,
                                     -bound1, bound1)
        self.w2 = jax.random.uniform(k3, (3, 3, out_channels, out_channels),
                                     jnp.float32, -bound2, bound2)
        self.b2 = jax.random.uniform(k4, (out_channels,), jnp.float32,
                                     -bound2, bound2)

    def __call__(self, x_nchw):
        # NCHW (PyTorch) -> NHWC (kernel layout)
        x = jnp.transpose(x_nchw, (0, 2, 3, 1))
        y = cnn_block_forward(x, self.w1, self.b1, self.w2, self.b2)
        # back to NCHW to match PyTorch output convention
        return jnp.transpose(y, (0, 3, 1, 2))


def _reference_forward(x_nchw, block):
    """Plain-JAX reference (lax.conv, f32) to sanity-check the Pallas kernel."""
    def conv(x, w, b):
        y = jax.lax.conv_general_dilated(
            x, w, window_strides=(1, 1), padding="SAME",
            dimension_numbers=("NCHW", "HWIO", "NCHW"))
        return jax.nn.relu(y + b[None, :, None, None])
    y = conv(x_nchw, block.w1, block.b1)
    y = conv(y, block.w2, block.b2)
    return y


if __name__ == "__main__":
    key = jax.random.PRNGKey(0)
    kx, kp = jax.random.split(key)

    # Small shapes consistent with CNNBlock(in_channels=1, out_channels=64).
    N, Cin, H, W = 2, 1, 16, 16
    x = jax.random.normal(kx, (N, Cin, H, W), jnp.float32)

    block = CNNBlockPallas(in_channels=Cin, out_channels=64, key=kp)

    out = jax.block_until_ready(block(x))
    assert out.shape == (N, 64, H, W), out.shape

    ref = jax.block_until_ready(_reference_forward(x, block))
    max_err = float(jnp.max(jnp.abs(out - ref)))
    assert jnp.allclose(out, ref, atol=2e-2, rtol=2e-2), max_err

    print("KERNEL_OK")
</pallas_src>

<mosaic_0001>
module attributes {stable_mosaic.version = 11 : i64} {
  func.func @cnn_block_kernel(%arg0: i32, %arg1: memref<1x16x16xf32, #tpu.memory_space<vmem>>, %arg2: memref<3x16x1024xbf16, #tpu.memory_space<vmem>>, %arg3: memref<1x1024xf32, #tpu.memory_space<vmem>>, %arg4: memref<3x1024x1024xbf16, #tpu.memory_space<vmem>>, %arg5: memref<1x1024xf32, #tpu.memory_space<vmem>>, %arg6: memref<1x16x1024xf32, #tpu.memory_space<vmem>>, %arg7: memref<25x16xf32, #tpu.memory_space<vmem>>, %arg8: memref<25x1024xf32, #tpu.memory_space<vmem>>) attributes {dimension_semantics = [#tpu.dimension_semantics<parallel>], iteration_bounds = array<i64: 2>, scalar_prefetch = 0 : i64, scratch_operands = 2 : i64, tpu.core_type = #tpu.core_type<tc>, window_params = [{transform_indices = @transform_0, window_bounds = array<i64: 1, 16, 16>}, {pipeline_mode = #tpu.pipeline_mode<synchronous>, transform_indices = @transform_1, window_bounds = array<i64: 3, 16, 1024>}, {pipeline_mode = #tpu.pipeline_mode<synchronous>, transform_indices = @transform_2, window_bounds = array<i64: 1, 1024>}, {pipeline_mode = #tpu.pipeline_mode<synchronous>, transform_indices = @transform_3, window_bounds = array<i64: 3, 1024, 1024>}, {pipeline_mode = #tpu.pipeline_mode<synchronous>, transform_indices = @transform_4, window_bounds = array<i64: 1, 1024>}, {transform_indices = @transform_5, window_bounds = array<i64: 1, 16, 1024>}]} {
    %cst = arith.constant 0.000000e+00 : f32
    %0 = vector.broadcast %cst : f32 to vector<1x16xf32>
    %c7 = arith.constant 7 : index
    %c0 = arith.constant 0 : index
    %1 = vector.load %arg7[%c7, %c0] : memref<25x16xf32, #tpu.memory_space<vmem>>, vector<1x16xf32>
    tpu.vector_store %arg7[%c7, %c0], %0 {strides = array<i32>} : memref<25x16xf32, #tpu.memory_space<vmem>>, vector<1x16xf32>,
    %cst_0 = arith.constant 0.000000e+00 : f32
    %2 = vector.broadcast %cst_0 : f32 to vector<1x16xf32>
    %c24 = arith.constant 24 : index
    %c0_1 = arith.constant 0 : index
    %3 = vector.load %arg7[%c24, %c0_1] : memref<25x16xf32, #tpu.memory_space<vmem>>, vector<1x16xf32>
    tpu.vector_store %arg7[%c24, %c0_1], %2 {strides = array<i32>} : memref<25x16xf32, #tpu.memory_space<vmem>>, vector<1x16xf32>,
    %cst_2 = arith.constant 0.000000e+00 : f32
    %4 = vector.broadcast %cst_2 : f32 to vector<1x1024xf32>
    %c7_3 = arith.constant 7 : index
    %c0_4 = arith.constant 0 : index
    %5 = vector.load %arg8[%c7_3, %c0_4] : memref<25x1024xf32, #tpu.memory_space<vmem>>, vector<1x1024xf32>
    tpu.vector_store %arg8[%c7_3, %c0_4], %4 {strides = array<i32>} : memref<25x1024xf32, #tpu.memory_space<vmem>>, vector<1x1024xf32>,
    %cst_5 = arith.constant 0.000000e+00 : f32
    %6 = vector.broadcast %cst_5 : f32 to vector<1x1024xf32>
    %c24_6 = arith.constant 24 : index
    %c0_7 = arith.constant 0 : index
    %7 = vector.load %arg8[%c24_6, %c0_7] : memref<25x1024xf32, #tpu.memory_space<vmem>>, vector<1x1024xf32>
    tpu.vector_store %arg8[%c24_6, %c0_7], %6 {strides = array<i32>} : memref<25x1024xf32, #tpu.memory_space<vmem>>, vector<1x1024xf32>,
    %c0_8 = arith.constant 0 : index
    %c0_9 = arith.constant 0 : index
    %c0_10 = arith.constant 0 : index
    %8 = vector.load %arg1[%c0_8, %c0_9, %c0_10] : memref<1x16x16xf32, #tpu.memory_space<vmem>>, vector<1x16x16xf32>
    %9 = vector.shape_cast %8 : vector<1x16x16xf32> to vector<16x16xf32>
    %c8 = arith.constant 8 : index
    %c0_11 = arith.constant 0 : index
    %10 = vector.load %arg7[%c8, %c0_11] : memref<25x16xf32, #tpu.memory_space<vmem>>, vector<16x16xf32>
    tpu.vector_store %arg7[%c8, %c0_11], %9 {strides = array<i32>} : memref<25x16xf32, #tpu.memory_space<vmem>>, vector<16x16xf32>,
    %c0_12 = arith.constant 0 : index
    %c0_13 = arith.constant 0 : index
    %11 = vector.load %arg3[%c0_12, %c0_13] : memref<1x1024xf32, #tpu.memory_space<vmem>>, vector<1x1024xf32>
    %c7_14 = arith.constant 7 : index
    %c0_15 = arith.constant 0 : index
    %12 = vector.load %arg7[%c7_14, %c0_15] : memref<25x16xf32, #tpu.memory_space<vmem>>, vector<16x16xf32>
    %13 = arith.truncf %12 : vector<16x16xf32> to vector<16x16xbf16>
    %c0_16 = arith.constant 0 : index
    %c0_17 = arith.constant 0 : index
    %c0_18 = arith.constant 0 : index
    %14 = vector.load %arg2[%c0_16, %c0_17, %c0_18] : memref<3x16x1024xbf16, #tpu.memory_space<vmem>>, vector<1x16x1024xbf16>
    %15 = vector.shape_cast %14 : vector<1x16x1024xbf16> to vector<16x1024xbf16>
    %cst_19 = arith.constant dense<0.000000e+00> : vector<16x1024xf32>
    %16 = tpu.matmul %13, %15, %cst_19 {dimension_numbers = #tpu.dot_dimension_numbers<[1], [0], [0], [1], [0, 0, 1, 1], [], []>} : vector<16x16xbf16>, vector<16x1024xbf16>, vector<16x1024xf32> -> vector<16x1024xf32>
    %17 = vector.broadcast %11 : vector<1x1024xf32> to vector<16x1024xf32>
    %18 = arith.addf %17, %16 : vector<16x1024xf32>
    %c8_20 = arith.constant 8 : index
    %c0_21 = arith.constant 0 : index
    %19 = vector.load %arg7[%c8_20, %c0_21] : memref<25x16xf32, #tpu.memory_space<vmem>>, vector<16x16xf32>
    %20 = arith.truncf %19 : vector<16x16xf32> to vector<16x16xbf16>
    %c1 = arith.constant 1 : index
    %c0_22 = arith.constant 0 : index
    %c0_23 = arith.constant 0 : index
    %21 = vector.load %arg2[%c1, %c0_22, %c0_23] : memref<3x16x1024xbf16, #tpu.memory_space<vmem>>, vector<1x16x1024xbf16>
    %22 = vector.shape_cast %21 : vector<1x16x1024xbf16> to vector<16x1024xbf16>
    %cst_24 = arith.constant dense<0.000000e+00> : vector<16x1024xf32>
    %23 = tpu.matmul %20, %22, %cst_24 {dimension_numbers = #tpu.dot_dimension_numbers<[1], [0], [0], [1], [0, 0, 1, 1], [], []>} : vector<16x16xbf16>, vector<16x1024xbf16>, vector<16x1024xf32> -> vector<16x1024xf32>
    %24 = arith.addf %18, %23 : vector<16x1024xf32>
    %c9 = arith.constant 9 : index
    %c0_25 = arith.constant 0 : index
    %25 = vector.load %arg7[%c9, %c0_25] : memref<25x16xf32, #tpu.memory_space<vmem>>, vector<16x16xf32>
    %26 = arith.truncf %25 : vector<16x16xf32> to vector<16x16xbf16>
    %c2 = arith.constant 2 : index
    %c0_26 = arith.constant 0 : index
    %c0_27 = arith.constant 0 : index
    %27 = vector.load %arg2[%c2, %c0_26, %c0_27] : memref<3x16x1024xbf16, #tpu.memory_space<vmem>>, vector<1x16x1024xbf16>
    %28 = vector.shape_cast %27 : vector<1x16x1024xbf16> to vector<16x1024xbf16>
    %cst_28 = arith.constant dense<0.000000e+00> : vector<16x1024xf32>
    %29 = tpu.matmul %26, %28, %cst_28 {dimension_numbers = #tpu.dot_dimension_numbers<[1], [0], [0], [1], [0, 0, 1, 1], [], []>} : vector<16x16xbf16>, vector<16x1024xbf16>, vector<16x1024xf32> -> vector<16x1024xf32>
    %30 = arith.addf %24, %29 : vector<16x1024xf32>
    %cst_29 = arith.constant 0.000000e+00 : f32
    %31 = vector.broadcast %cst_29 : f32 to vector<16x1024xf32>
    %32 = arith.maximumf %30, %31 : vector<16x1024xf32>
    %c8_30 = arith.constant 8 : index
    %c0_31 = arith.constant 0 : index
    %33 = vector.load %arg8[%c8_30, %c0_31] : memref<25x1024xf32, #tpu.memory_space<vmem>>, vector<16x1024xf32>
    tpu.vector_store %arg8[%c8_30, %c0_31], %32 {strides = array<i32>} : memref<25x1024xf32, #tpu.memory_space<vmem>>, vector<16x1024xf32>,
    %c0_32 = arith.constant 0 : index
    %c0_33 = arith.constant 0 : index
    %34 = vector.load %arg5[%c0_32, %c0_33] : memref<1x1024xf32, #tpu.memory_space<vmem>>, vector<1x1024xf32>
    %c7_34 = arith.constant 7 : index
    %c0_35 = arith.constant 0 : index
    %35 = vector.load %arg8[%c7_34, %c0_35] : memref<25x1024xf32, #tpu.memory_space<vmem>>, vector<16x1024xf32>
    %36 = arith.truncf %35 : vector<16x1024xf32> to vector<16x1024xbf16>
    %c0_36 = arith.constant 0 : index
    %c0_37 = arith.constant 0 : index
    %c0_38 = arith.constant 0 : index
    %37 = vector.load %arg4[%c0_36, %c0_37, %c0_38] : memref<3x1024x1024xbf16, #tpu.memory_space<vmem>>, vector<1x1024x1024xbf16>
    %38 = vector.shape_cast %37 : vector<1x1024x1024xbf16> to vector<1024x1024xbf16>
    %cst_39 = arith.constant dense<0.000000e+00> : vector<16x1024xf32>
    %39 = tpu.matmul %36, %38, %cst_39 {dimension_numbers = #tpu.dot_dimension_numbers<[1], [0], [0], [1], [0, 0, 1, 1], [], []>} : vector<16x1024xbf16>, vector<1024x1024xbf16>, vector<16x1024xf32> -> vector<16x1024xf32>
    %40 = vector.broadcast %34 : vector<1x1024xf32> to vector<16x1024xf32>
    %41 = arith.addf %40, %39 : vector<16x1024xf32>
    %c8_40 = arith.constant 8 : index
    %c0_41 = arith.constant 0 : index
    %42 = vector.load %arg8[%c8_40, %c0_41] : memref<25x1024xf32, #tpu.memory_space<vmem>>, vector<16x1024xf32>
    %43 = arith.truncf %42 : vector<16x1024xf32> to vector<16x1024xbf16>
    %c1_42 = arith.constant 1 : index
    %c0_43 = arith.constant 0 : index
    %c0_44 = arith.constant 0 : index
    %44 = vector.load %arg4[%c1_42, %c0_43, %c0_44] : memref<3x1024x1024xbf16, #tpu.memory_space<vmem>>, vector<1x1024x1024xbf16>
    %45 = vector.shape_cast %44 : vector<1x1024x1024xbf16> to vector<1024x1024xbf16>
    %cst_45 = arith.constant dense<0.000000e+00> : vector<16x1024xf32>
    %46 = tpu.matmul %43, %45, %cst_45 {dimension_numbers = #tpu.dot_dimension_numbers<[1], [0], [0], [1], [0, 0, 1, 1], [], []>} : vector<16x1024xbf16>, vector<1024x1024xbf16>, vector<16x1024xf32> -> vector<16x1024xf32>
    %47 = arith.addf %41, %46 : vector<16x1024xf32>
    %c9_46 = arith.constant 9 : index
    %c0_47 = arith.constant 0 : index
    %48 = vector.load %arg8[%c9_46, %c0_47] : memref<25x1024xf32, #tpu.memory_space<vmem>>, vector<16x1024xf32>
    %49 = arith.truncf %48 : vector<16x1024xf32> to vector<16x1024xbf16>
    %c2_48 = arith.constant 2 : index
    %c0_49 = arith.constant 0 : index
    %c0_50 = arith.constant 0 : index
    %50 = vector.load %arg4[%c2_48, %c0_49, %c0_50] : memref<3x1024x1024xbf16, #tpu.memory_space<vmem>>, vector<1x1024x1024xbf16>
    %51 = vector.shape_cast %50 : vector<1x1024x1024xbf16> to vector<1024x1024xbf16>
    %cst_51 = arith.constant dense<0.000000e+00> : vector<16x1024xf32>
    %52 = tpu.matmul %49, %51, %cst_51 {dimension_numbers = #tpu.dot_dimension_numbers<[1], [0], [0], [1], [0, 0, 1, 1], [], []>} : vector<16x1024xbf16>, vector<1024x1024xbf16>, vector<16x1024xf32> -> vector<16x1024xf32>
    %53 = arith.addf %47, %52 : vector<16x1024xf32>
    %cst_52 = arith.constant 0.000000e+00 : f32
    %54 = vector.broadcast %cst_52 : f32 to vector<16x1024xf32>
    %55 = arith.maximumf %53, %54 : vector<16x1024xf32>
    %c0_53 = arith.constant 0 : index
    %c0_54 = arith.constant 0 : index
    %c0_55 = arith.constant 0 : index
    %56 = vector.load %arg6[%c0_53, %c0_54, %c0_55] : memref<1x16x1024xf32, #tpu.memory_space<vmem>>, vector<1x16x1024xf32>
    %57 = vector.shape_cast %56 : vector<1x16x1024xf32> to vector<16x1024xf32>
    %58 = vector.shape_cast %55 : vector<16x1024xf32> to vector<1x16x1024xf32>
    tpu.vector_store %arg6[%c0_53, %c0_54, %c0_55], %58 {strides = array<i32>} : memref<1x16x1024xf32, #tpu.memory_space<vmem>>, vector<1x16x1024xf32>,
    return
  }
  func.func @transform_0(%arg0: i32) -> (i32, i32, i32) {
    %c0_i32 = arith.constant 0 : i32
    %c0_i32_0 = arith.constant 0 : i32
    %c0_i32_1 = arith.constant 0 : i32
    return %arg0, %c0_i32, %c0_i32_0 : i32, i32, i32
  }
  func.func @transform_1(%arg0: i32) -> (i32, i32, i32) {
    %c0_i32 = arith.constant 0 : i32
    %c0_i32_0 = arith.constant 0 : i32
    %c0_i32_1 = arith.constant 0 : i32
    %c0_i32_2 = arith.constant 0 : i32
    return %c0_i32, %c0_i32_0, %c0_i32_1 : i32, i32, i32
  }
  func.func @transform_2(%arg0: i32) -> (i32, i32) {
    %c0_i32 = arith.constant 0 : i32
    %c0_i32_0 = arith.constant 0 : i32
    %c0_i32_1 = arith.constant 0 : i32
    return %c0_i32, %c0_i32_0 : i32, i32
  }
  func.func @transform_3(%arg0: i32) -> (i32, i32, i32) {
    %c0_i32 = arith.constant 0 : i32
    %c0_i32_0 = arith.constant 0 : i32
    %c0_i32_1 = arith.constant 0 : i32
    %c0_i32_2 = arith.constant 0 : i32
    return %c0_i32, %c0_i32_0, %c0_i32_1 : i32, i32, i32
  }
  func.func @transform_4(%arg0: i32) -> (i32, i32) {
    %c0_i32 = arith.constant 0 : i32
    %c0_i32_0 = arith.constant 0 : i32
    %c0_i32_1 = arith.constant 0 : i32
    return %c0_i32, %c0_i32_0 : i32, i32
  }
  func.func @transform_5(%arg0: i32) -> (i32, i32, i32) {
    %c0_i32 = arith.constant 0 : i32
    %c0_i32_0 = arith.constant 0 : i32
    %c0_i32_1 = arith.constant 0 : i32
    return %arg0, %c0_i32, %c0_i32_0 : i32, i32, i32
  }
}

</mosaic_0001>

<llo_original>
// kernel: tpu_custom_call.1
$region0: #{tpu_custom_call.1}
  #allocation0 [shape = 'u32[]', space=smem, size = 0x4, offset = 0x4, fixed_abs, tag = 'smem constant byte address 0x4 - core index']
  #allocation1 [shape = 'u32[72,128]{1,0:T(1,128)}', space=vmem, size = 0x9000, scoped, tag = 'internal scratch']
  #allocation2 [shape = 'f32[25,16]{1,0:T(8,128)}', space=vmem, size = 0x4000, scoped, tag = 'scratch operand']
  #allocation3 [shape = 'f32[25,1024]{1,0:T(8,128)}', space=vmem, size = 0x20000, scoped, tag = 'scratch operand']
  %s0 = inlined_call_operand.hbm [shape: f32[2,16,16], index: 0, kind: input, shape index: {}]
  %s1 = inlined_call_operand.hbm [shape: bf16[3,16,1024], index: 1, kind: input, shape index: {}]
  %s2 = inlined_call_operand.hbm [shape: f32[1,1024], index: 2, kind: input, shape index: {}]
  %s3 = inlined_call_operand.hbm [shape: bf16[3,1024,1024], index: 3, kind: input, shape index: {}]
  %s4 = inlined_call_operand.hbm [shape: f32[1,1024], index: 4, kind: input, shape index: {}]
  %s5 = inlined_call_operand.hbm [shape: f32[2,16,1024], index: 5, kind: output, shape index: {}]
  %s6 = sld [smem:[#allocation0]]
  $region73: #{tpu_custom_call.1} parent=0
    _
  %s8 = ssub.s32 1, %s6
  %s9 = scalar_select 0, %s8, %s6
  $region1: #{tpu_custom_call.1} parent=0
    #allocation4 [shape = 'u8[16384]{0}', space=vmem, size = 0x4000, scoped, tag = 'input window, operand 0']
    #allocation5 [shape = 's32[2]{0}', space=sflag, size = 0x8, scoped, tag = 'scoped memory for tpu_custom_call.1']
    #allocation6 [shape = 's32[2]{0}', space=sflag, size = 0x8, scoped, tag = 'scoped memory for tpu_custom_call.1']
    #allocation7 [shape = 'u8[98304]{0}', space=vmem, size = 0x18000, scoped, tag = 'input window, operand 1, single buffered']
    #allocation8 [shape = 's32[1]{0}', space=sflag, size = 0x4, scoped, tag = 'scoped memory for tpu_custom_call.1']
    #allocation9 [shape = 'u8[4096]{0}', space=vmem, size = 0x1000, scoped, tag = 'input window, operand 2, single buffered']
    #allocation10 [shape = 'u8[6291456]{0}', space=vmem, size = 0x600000, scoped, tag = 'input window, operand 3, single buffered']
    #allocation11 [shape = 's32[1]{0}', space=sflag, size = 0x4, scoped, tag = 'scoped memory for tpu_custom_call.1']
    #allocation12 [shape = 'u8[4096]{0}', space=vmem, size = 0x1000, scoped, tag = 'input window, operand 4, single buffered']
    #allocation13 [shape = 'u8[131072]{0}', space=vmem, size = 0x20000, scoped, tag = 'output window, operand 0']
    %10 = vsyncpa [#allocation5], 0
    %s11 = scalar_lea.sflag [#allocation5], 1
    %12 = vsyncpa %s11, 0
    %13 = vsyncpa [#allocation8], 0
    %14 = vsyncpa [#allocation11], 0
    %15 = vsyncpa [#allocation6], 0
    %s16 = scalar_lea.sflag [#allocation6], 1
    %17 = vsyncpa %s16, 0
    loop: start=0, step=1, limit=4
    $region2: #{tpu_custom_call.1} parent=1 // loop_pre_header
      _
    $region3: #{tpu_custom_call.1} parent=1 // loop_header
      %s19 = sphi 0, %s23
      %p20 = scmp.ge.s32.totalorder %s19, 4
      %s29 = sphi 0, %s31
      %s32 = sphi 0, %s29
      %s33 = sphi 0, %s32
      %s49 = sphi 0, %s33
      %s53 = sphi 0, %s53
      %s55 = sphi 0, %s53
      %s56 = sphi 0, %s55
      %s70 = sphi 0, %s56
      %s74 = sphi 0, %s74
      %s76 = sphi 0, %s74
      %s77 = sphi 0, %s76
      %s91 = sphi 0, %s77
      %s95 = sphi 0, %s95
      %s97 = sphi 0, %s95
      %s98 = sphi 0, %s97
      %s112 = sphi 0, %s98
      %s116 = sphi 0, %s116
      %s118 = sphi 0, %s116
      %s119 = sphi 0, %s118
      %s133 = sphi 0, %s119
      %s139 = sphi 0, %s141
      %s142 = sphi 0, %s139
      %s143 = sphi 0, %s142
      %s159 = sphi 0, %s143
    $region4: #{tpu_custom_call.1} parent=1 // loop_header_branch
      %22 = sbr.rel (%p20) target = $region8
    $region5: #{tpu_custom_call.1} parent=1 // loop_body
      %s24 = ssub.s32 %s19, 1
      %s25 = ssub.s32 %s19, 2
      %s26 = sadd.s32 %s19, 1
      %s27 = ssub.s32 %s19, %s26
      %p28 = scmp.eq.s32.totalorder %s27, 0
      %s30 = sadd.s32 %s29, 1
      %s31 = scalar_select %p28, %s29, %s30
      %p34 = pneg %p28
      %p35 = scmp.eq.s32.totalorder %s19, 1
      %p36 = por %p34, %p35
      %p37 = scmp.ne.s32.totalorder %s29, %s32
      %p38 = scmp.eq.s32.totalorder %s19, 0
      %p39 = por %p37, %p38
      %p40 = scmp.ne.s32.totalorder %s29, %s32
      %p41 = scmp.eq.s32.totalorder %s24, 1
      %p42 = por %p40, %p41
      %p43 = scmp.ne.s32.totalorder %s32, %s33
      %p44 = scmp.eq.s32.totalorder %s24, 0
      %p45 = por %p43, %p44
      %p46 = scmp.ne.s32.totalorder %s32, %s33
      %p47 = scmp.eq.s32.totalorder %s25, 1
      %p48 = por %p46, %p47
      %p50 = scmp.ne.s32.totalorder %s33, %s49
      %p51 = scmp.eq.s32.totalorder %s25, 0
      %p52 = por %p50, %p51
      %s54 = sadd.s32 %s53, 1
      %p57 = scmp.eq.s32.totalorder %s19, 1
      %p58 = scmp.ne.s32.totalorder %s53, %s55
      %p59 = scmp.eq.s32.totalorder %s19, 0
      %p60 = por %p58, %p59
      %p61 = scmp.ne.s32.totalorder %s53, %s55
      %p62 = scmp.eq.s32.totalorder %s24, 1
      %p63 = por %p61, %p62
      %p64 = scmp.ne.s32.totalorder %s55, %s56
      %p65 = scmp.eq.s32.totalorder %s24, 0
      %p66 = por %p64, %p65
      %p67 = scmp.ne.s32.totalorder %s55, %s56
      %p68 = scmp.eq.s32.totalorder %s25, 1
      %p69 = por %p67, %p68
      %p71 = scmp.ne.s32.totalorder %s56, %s70
      %p72 = scmp.eq.s32.totalorder %s25, 0
      %p73 = por %p71, %p72
      %s75 = sadd.s32 %s74, 1
      %p78 = scmp.eq.s32.totalorder %s19, 1
      %p79 = scmp.ne.s32.totalorder %s74, %s76
      %p80 = scmp.eq.s32.totalorder %s19, 0
      %p81 = por %p79, %p80
      %p82 = scmp.ne.s32.totalorder %s74, %s76
      %p83 = scmp.eq.s32.totalorder %s24, 1
      %p84 = por %p82, %p83
      %p85 = scmp.ne.s32.totalorder %s76, %s77
      %p86 = scmp.eq.s32.totalorder %s24, 0
      %p87 = por %p85, %p86
      %p88 = scmp.ne.s32.totalorder %s76, %s77
      %p89 = scmp.eq.s32.totalorder %s25, 1
      %p90 = por %p88, %p89
      %p92 = scmp.ne.s32.totalorder %s77, %s91
      %p93 = scmp.eq.s32.totalorder %s25, 0
      %p94 = por %p92, %p93
      %s96 = sadd.s32 %s95, 1
      %p99 = scmp.eq.s32.totalorder %s19, 1
      %p100 = scmp.ne.s32.totalorder %s95, %s97
      %p101 = scmp.eq.s32.totalorder %s19, 0
      %p102 = por %p100, %p101
      %p103 = scmp.ne.s32.totalorder %s95, %s97
      %p104 = scmp.eq.s32.totalorder %s24, 1
      %p105 = por %p103, %p104
      %p106 = scmp.ne.s32.totalorder %s97, %s98
      %p107 = scmp.eq.s32.totalorder %s24, 0
      %p108 = por %p106, %p107
      %p109 = scmp.ne.s32.totalorder %s97, %s98
      %p110 = scmp.eq.s32.totalorder %s25, 1
      %p111 = por %p109, %p110
      %p113 = scmp.ne.s32.totalorder %s98, %s112
      %p114 = scmp.eq.s32.totalorder %s25, 0
      %p115 = por %p113, %p114
      %s117 = sadd.s32 %s116, 1
      %p120 = scmp.eq.s32.totalorder %s19, 1
      %p121 = scmp.ne.s32.totalorder %s116, %s118
      %p122 = scmp.eq.s32.totalorder %s19, 0
      %p123 = por %p121, %p122
      %p124 = scmp.ne.s32.totalorder %s116, %s118
      %p125 = scmp.eq.s32.totalorder %s24, 1
      %p126 = por %p124, %p125
      %p127 = scmp.ne.s32.totalorder %s118, %s119
      %p128 = scmp.eq.s32.totalorder %s24, 0
      %p129 = por %p127, %p128
      %p130 = scmp.ne.s32.totalorder %s118, %s119
      %p131 = scmp.eq.s32.totalorder %s25, 1
      %p132 = por %p130, %p131
      %p134 = scmp.ne.s32.totalorder %s119, %s133
      %p135 = scmp.eq.s32.totalorder %s25, 0
      %p136 = por %p134, %p135
      %s137 = ssub.s32 %s19, %s26
      %p138 = scmp.eq.s32.totalorder %s137, 0
      %s140 = sadd.s32 %s139, 1
      %s141 = scalar_select %p138, %s139, %s140
      %p144 = pneg %p138
      %p145 = scmp.eq.s32.totalorder %s19, 1
      %p146 = por %p144, %p145
      %p147 = scmp.ne.s32.totalorder %s139, %s142
      %p148 = scmp.eq.s32.totalorder %s19, 0
      %p149 = por %p147, %p148
      %p150 = scmp.ne.s32.totalorder %s139, %s142
      %p151 = scmp.eq.s32.totalorder %s24, 1
      %p152 = por %p150, %p151
      %p153 = scmp.ne.s32.totalorder %s142, %s143
      %p154 = scmp.eq.s32.totalorder %s24, 0
      %p155 = por %p153, %p154
      %p156 = scmp.ne.s32.totalorder %s142, %s143
      %p157 = scmp.eq.s32.totalorder %s25, 1
      %p158 = por %p156, %p157
      %p160 = scmp.ne.s32.totalorder %s143, %s159
      %p161 = scmp.eq.s32.totalorder %s25, 0
      %p162 = por %p160, %p161
      %p163 = scmp.le.s32.totalorder 1, %s19
      %p164 = scmp.lt.s32.totalorder %s19, 3
      %p165 = pnand %p163, %p164
      %p166 = pneg %p165
      // Predicated region
      $region9: #{tpu_custom_call.1} parent=5 // pred_check
        _
      $region10: #{tpu_custom_call.1} parent=5 // pred_check_branch
        %168 = sbr.rel (%p165) target = $region12
      $region11: #{tpu_custom_call.1} parent=5 // pred_region
        %s169 = ssub.s32 %s19, 1
        // Predicated region
        $region13: #{tpu_custom_call.1} parent=11 // pred_check
          %p170 = pneg %p66
        $region14: #{tpu_custom_call.1} parent=11 // pred_check_branch
          %172 = sbr.rel (%p170) target = $region16
        $region15: #{tpu_custom_call.1} parent=11 // pred_region
          %174 = vsyncadd [#allocation8], 0
          %s175 = sshll.u32 %s1, 4
          %s176 = int_to_ptr.hbm [resolvable:$true] %s175
          %s177 = sshll.u32 [#allocation7], 4
          %s178 = int_to_ptr.vmem [resolvable:$true] %s177
          %183 = dma.hbm_to_vmem [thread:$0]  %s176, 3072, %s178, [#allocation8], 512, 512, 32
        $region16: #{tpu_custom_call.1} parent=11 // pred_fallthru
          _
        // Predicated region
        $region17: #{tpu_custom_call.1} parent=11 // pred_check
          %p184 = pneg %p87
        $region18: #{tpu_custom_call.1} parent=11 // pred_check_branch
          %186 = sbr.rel (%p184) target = $region20
        $region19: #{tpu_custom_call.1} parent=11 // pred_region
          %188 = vsyncadd [#allocation8], 0
          %s190 = sshll.u32 %s2, 4
          %s191 = int_to_ptr.hbm [resolvable:$true] %s190
          %s192 = sshll.u32 [#allocation9], 4
          %s193 = int_to_ptr.vmem [resolvable:$true] %s192
          %195 = dma.hbm_to_vmem [thread:$0]  %s191, 128, %s193, [#allocation8]
        $region20: #{tpu_custom_call.1} parent=11 // pred_fallthru
          _
        // Predicated region
        $region21: #{tpu_custom_call.1} parent=11 // pred_check
          %p196 = pneg %p108
        $region22: #{tpu_custom_call.1} parent=11 // pred_check_branch
          %198 = sbr.rel (%p196) target = $region24
        $region23: #{tpu_custom_call.1} parent=11 // pred_region
          %200 = vsyncadd [#allocation11], 0
          %s201 = sshll.u32 %s3, 4
          %s202 = int_to_ptr.hbm [resolvable:$true] %s201
          %s203 = sshll.u32 [#allocation10], 4
          %s204 = int_to_ptr.vmem [resolvable:$true] %s203
          %209 = dma.hbm_to_vmem [thread:$0]  %s202, 196608, %s204, [#allocation11], 512, 512, 32
        $region24: #{tpu_custom_call.1} parent=11 // pred_fallthru
          _
        // Predicated region
        $region25: #{tpu_custom_call.1} parent=11 // pred_check
          %p210 = pneg %p129
        $region26: #{tpu_custom_call.1} parent=11 // pred_check_branch
          %212 = sbr.rel (%p210) target = $region28
        $region27: #{tpu_custom_call.1} parent=11 // pred_region
          %214 = vsyncadd [#allocation11], 0
          %s216 = sshll.u32 %s4, 4
          %s217 = int_to_ptr.hbm [resolvable:$true] %s216
          %s218 = sshll.u32 [#allocation12], 4
          %s219 = int_to_ptr.vmem [resolvable:$true] %s218
          %221 = dma.hbm_to_vmem [thread:$0]  %s217, 128, %s219, [#allocation11]
        $region28: #{tpu_custom_call.1} parent=11 // pred_fallthru
          _
      $region12: #{tpu_custom_call.1} parent=5 // pred_fallthru
        _
      %p222 = scmp.lt.s32.totalorder %s19, 2
      // Predicated region
      $region29: #{tpu_custom_call.1} parent=5 // pred_check
        %p223 = pneg %p222
      $region30: #{tpu_custom_call.1} parent=5 // pred_check_branch
        %225 = sbr.rel (%p223) target = $region32
      $region31: #{tpu_custom_call.1} parent=5 // pred_region
        // Predicated region
        $region33: #{tpu_custom_call.1} parent=31 // pred_check
          %p226 = pneg %p39
        $region34: #{tpu_custom_call.1} parent=31 // pred_check_branch
          %228 = sbr.rel (%p226) target = $region36
        $region35: #{tpu_custom_call.1} parent=31 // pred_region
          %s229 = sand.u32 %s29, 1
          %s230 = scalar_lea.sflag [#allocation5], %s229
          %s231 = sand.u32 %s29, 1
          %s232 = smul.addr %s231, 16
          %s233 = scalar_lea.vmem [#allocation4], %s232
          %235 = vsyncadd %s230, 0
          %s236 = smul.addr %s19, 2
          %s237 = smul.addr %s236, 8
          %s238 = scalar_lea.hbm %s0, %s237
          %s239 = sshll.u32 %s238, 4
          %s240 = int_to_ptr.hbm [resolvable:$true] %s239
          %s241 = sshll.u32 %s233, 4
          %s242 = int_to_ptr.vmem [resolvable:$true] %s241
          %247 = dma.hbm_to_vmem [thread:$0]  %s240, 256, %s242, %s230, 128, 128, 8
        $region36: #{tpu_custom_call.1} parent=31 // pred_fallthru
          _
      $region32: #{tpu_custom_call.1} parent=5 // pred_fallthru
        _
      %p248 = scmp.le.s32.totalorder 1, %s19
      %p249 = scmp.lt.s32.totalorder %s19, 3
      %p250 = pnand %p248, %p249
      %p251 = pneg %p250
      // Predicated region
      $region37: #{tpu_custom_call.1} parent=5 // pred_check
        _
      $region38: #{tpu_custom_call.1} parent=5 // pred_check_branch
        %253 = sbr.rel (%p250) target = $region40
      $region39: #{tpu_custom_call.1} parent=5 // pred_region
        %s254 = ssub.s32 %s19, 1
        %s255 = sand.u32 %s32, 1
        %s256 = scalar_lea.sflag [#allocation5], %s255
        %s257 = sand.u32 %s32, 1
        %s258 = smul.addr %s257, 16
        %s259 = scalar_lea.vmem [#allocation4], %s258
        // Predicated region
        $region41: #{tpu_custom_call.1} parent=39 // pred_check
          %p260 = pneg %p45
        $region42: #{tpu_custom_call.1} parent=39 // pred_check_branch
          %262 = sbr.rel (%p260) target = $region44
        $region43: #{tpu_custom_call.1} parent=39 // pred_region
          %264 = dma.done %s256, 256
        $region44: #{tpu_custom_call.1} parent=39 // pred_fallthru
          _
        // Predicated region
        $region45: #{tpu_custom_call.1} parent=39 // pred_check
          %p265 = pneg %p66
        $region46: #{tpu_custom_call.1} parent=39 // pred_check_branch
          %267 = sbr.rel (%p265) target = $region48
        $region47: #{tpu_custom_call.1} parent=39 // pred_region
          %269 = dma.done [#allocation8], 3072
        $region48: #{tpu_custom_call.1} parent=39 // pred_fallthru
          _
        // Predicated region
        $region49: #{tpu_custom_call.1} parent=39 // pred_check
          %p270 = pneg %p87
        $region50: #{tpu_custom_call.1} parent=39 // pred_check_branch
          %272 = sbr.rel (%p270) target = $region52
        $region51: #{tpu_custom_call.1} parent=39 // pred_region
          %274 = dma.done [#allocation8], 128
        $region52: #{tpu_custom_call.1} parent=39 // pred_fallthru
          _
        // Predicated region
        $region53: #{tpu_custom_call.1} parent=39 // pred_check
          %p275 = pneg %p108
        $region54: #{tpu_custom_call.1} parent=39 // pred_check_branch
          %277 = sbr.rel (%p275) target = $region56
        $region55: #{tpu_custom_call.1} parent=39 // pred_region
          %279 = dma.done [#allocation11], 196608
        $region56: #{tpu_custom_call.1} parent=39 // pred_fallthru
          _
        // Predicated region
        $region57: #{tpu_custom_call.1} parent=39 // pred_check
          %p280 = pneg %p129
        $region58: #{tpu_custom_call.1} parent=39 // pred_check_branch
          %282 = sbr.rel (%p280) target = $region60
        $region59: #{tpu_custom_call.1} parent=39 // pred_region
          %284 = dma.done [#allocation11], 128
        $region60: #{tpu_custom_call.1} parent=39 // pred_fallthru
          _
        %s285 = sand.u32 %s32, 1
        %s286 = scalar_lea.sflag [#allocation5], %s285
        %s287 = sand.u32 %s32, 1
        %s288 = smul.addr %s287, 16
        %s289 = scalar_lea.vmem [#allocation4], %s288
        %p290 = pneg %p45
        %p291 = pneg %p42
        %p292 = pneg %p66
        %p293 = pneg %p63
        %p294 = pneg %p87
        %p295 = pneg %p84
        %p296 = pneg %p108
        %p297 = pneg %p105
        %p298 = pneg %p129
        %p299 = pneg %p126
        %p300 = pneg %p155
        %p301 = pneg %p152
        %s302 = sand.u32 %s142, 1
        %s303 = scalar_lea.sflag [#allocation6], %s302
        %s304 = sand.u32 %s142, 1
        %s305 = smul.addr %s304, 128
        %s306 = scalar_lea.vmem [#allocation13], %s305
        %vm308 = vcmask 122880
        %309 = vst.msk [vmem:[#allocation2 + $0x7] sm:$0x1] %vm308, 0.0
        %310 = vst.msk [vmem:[#allocation2 + $0x18] sm:$0x1] %vm308, 0.0
        %s311 = scalar_lea.vmem [#allocation3], 7
        %312 = vst [vmem:[%s311] ss:$8 sm:$0xf] 0.0
        %313 = vst [vmem:[%s311] ss:$8 sm:$0xf0] 0.0
        %s314 = scalar_lea.vmem [#allocation3], 192
        %315 = vst [vmem:[%s314] ss:$8 sm:$0xf] 0.0
        %316 = vst [vmem:[%s314] ss:$8 sm:$0xf0] 0.0
        %v317 = vld [vmem:[%s259] sm:$0xff]
        %v318 = vld [vmem:[%s259 + $0x8] sm:$0xff]
        %vm319 = vcmask 130048
        %320 = vst.msk [vmem:[#allocation2 + $0x8] sm:$0xff] %vm319, %v317
        %321 = vst.msk [vmem:[#allocation2 + $0x10] sm:$0xff] %vm319, %v318
        %v322 = vld [vmem:[#allocation9] sm:$0xff]
        %v323 = vld [vmem:[#allocation2 + $0x7] sm:$0xff]
        %v324 = vld [vmem:[#allocation2 + $0xf] sm:$0xff]
        %v325 = vpack.c.bf16 %v324, %v323
        %v326 = vld [vmem:[#allocation7] sm:$0xff]
        %v327 = vld [vmem:[#allocation7 + $0x8] sm:$0xff]
        %v328 = vld [vmem:[#allocation7 + $0x10] sm:$0xff]
        %v329 = vld [vmem:[#allocation7 + $0x18] sm:$0xff]
        %v330 = vld [vmem:[#allocation7 + $0x20] sm:$0xff]
        %v331 = vld [vmem:[#allocation7 + $0x28] sm:$0xff]
        %v332 = vld [vmem:[#allocation7 + $0x30] sm:$0xff]
        %v333 = vld [vmem:[#allocation7 + $0x38] sm:$0xff]
        %v342 = vunpack.c.l.b16 %v326
        %v343 = vunpack.c.h.b16 %v326
        %v344 = vunpack.c.l.b16 %v327
        %v345 = vunpack.c.h.b16 %v327
        %v346 = vunpack.c.l.b16 %v328
        %v347 = vunpack.c.h.b16 %v328
        %v348 = vunpack.c.l.b16 %v329
        %v349 = vunpack.c.h.b16 %v329
        %v350 = vunpack.c.l.b16 %v330
        %v351 = vunpack.c.h.b16 %v330
        %v352 = vunpack.c.l.b16 %v331
        %v353 = vunpack.c.h.b16 %v331
        %v354 = vunpack.c.l.b16 %v332
        %v355 = vunpack.c.h.b16 %v332
        %v356 = vunpack.c.l.b16 %v333
        %v357 = vunpack.c.h.b16 %v333
        %v358 = vpack.c.b16 %v350, %v342
        %v359 = vpack.c.b16 %v351, %v343
        %v360 = vpack.c.b16 %v352, %v344
        %v361 = vpack.c.b16 %v353, %v345
        %v362 = vpack.c.b16 %v354, %v346
        %v363 = vpack.c.b16 %v355, %v347
        %v364 = vpack.c.b16 %v356, %v348
        %v365 = vpack.c.b16 %v357, %v349
        %v375 = vsel %vm319, %v325, 0
        %377 = vmatpush.bf16.msra.mxu0 0
        %378 = vmatpush.bf16.msra.mxu0 0
        %379 = vmatpush.bf16.msra.mxu0 0
        %380 = vmatpush.bf16.msra.mxu0 0
        %381 = vmatpush.bf16.msra.mxu0 0
        %382 = vmatpush.bf16.msra.mxu0 0
        %383 = vmatpush.bf16.msra.mxu0 0
        %384 = vmatpush.bf16.msra.mxu0 %v358
        %385 = vmatmul.bf16.gmra.mxu0 %v375
        %v386 = vpop.f32.mrf.mxu0
        %v387 = vadd.f32 0.0, %v386
        %v388 = vpop.f32.mrf.mxu0
        %v389 = vadd.f32 0.0, %v388
        %390 = vdwg.mxu0
        %391 = vmatpush.bf16.msra.mxu0 0
        %392 = vmatpush.bf16.msra.mxu0 0
        %393 = vmatpush.bf16.msra.mxu0 0
        %394 = vmatpush.bf16.msra.mxu0 0
        %395 = vmatpush.bf16.msra.mxu0 0
        %396 = vmatpush.bf16.msra.mxu0 0
        %397 = vmatpush.bf16.msra.mxu0 0
        %398 = vmatpush.bf16.msra.mxu0 %v359
        %399 = vmatmul.bf16.gmra.mxu0 %v375
        %v400 = vpop.f32.mrf.mxu0
        %v401 = vadd.f32 0.0, %v400
        %v402 = vpop.f32.mrf.mxu0
        %v403 = vadd.f32 0.0, %v402
        %404 = vdwg.mxu0
        %405 = vmatpush.bf16.msra.mxu0 0
        %406 = vmatpush.bf16.msra.mxu0 0
        %407 = vmatpush.bf16.msra.mxu0 0
        %408 = vmatpush.bf16.msra.mxu0 0
        %409 = vmatpush.bf16.msra.mxu0 0
        %410 = vmatpush.bf16.msra.mxu0 0
        %411 = vmatpush.bf16.msra.mxu0 0
        %412 = vmatpush.bf16.msra.mxu0 %v360
        %413 = vmatmul.bf16.gmra.mxu0 %v375
        %v414 = vpop.f32.mrf.mxu0
        %v415 = vadd.f32 0.0, %v414
        %v416 = vpop.f32.mrf.mxu0
        %v417 = vadd.f32 0.0, %v416
        %418 = vdwg.mxu0
        %419 = vmatpush.bf16.msra.mxu0 0
        %420 = vmatpush.bf16.msra.mxu0 0
        %421 = vmatpush.bf16.msra.mxu0 0
        %422 = vmatpush.bf16.msra.mxu0 0
        %423 = vmatpush.bf16.msra.mxu0 0
        %424 = vmatpush.bf16.msra.mxu0 0
        %425 = vmatpush.bf16.msra.mxu0 0
        %426 = vmatpush.bf16.msra.mxu0 %v361
        %427 = vmatmul.bf16.gmra.mxu0 %v375
        %v428 = vpop.f32.mrf.mxu0
        %v429 = vadd.f32 0.0, %v428
        %v430 = vpop.f32.mrf.mxu0
        %v431 = vadd.f32 0.0, %v430
        %432 = vdwg.mxu0
        %433 = vmatpush.bf16.msra.mxu0 0
        %434 = vmatpush.bf16.msra.mxu0 0
        %435 = vmatpush.bf16.msra.mxu0 0
        %436 = vmatpush.bf16.msra.mxu0 0
        %437 = vmatpush.bf16.msra.mxu0 0
        %438 = vmatpush.bf16.msra.mxu0 0
        %439 = vmatpush.bf16.msra.mxu0 0
        %440 = vmatpush.bf16.msra.mxu0 %v362
        %441 = vmatmul.bf16.gmra.mxu0 %v375
        %v442 = vpop.f32.mrf.mxu0
        %v443 = vadd.f32 0.0, %v442
        %v444 = vpop.f32.mrf.mxu0
        %v445 = vadd.f32 0.0, %v444
        %446 = vdwg.mxu0
        %447 = vmatpush.bf16.msra.mxu0 0
        %448 = vmatpush.bf16.msra.mxu0 0
        %449 = vmatpush.bf16.msra.mxu0 0
        %450 = vmatpush.bf16.msra.mxu0 0
        %451 = vmatpush.bf16.msra.mxu0 0
        %452 = vmatpush.bf16.msra.mxu0 0
        %453 = vmatpush.bf16.msra.mxu0 0
        %454 = vmatpush.bf16.msra.mxu0 %v363
        %455 = vmatmul.bf16.gmra.mxu0 %v375
        %v456 = vpop.f32.mrf.mxu0
        %v457 = vadd.f32 0.0, %v456
        %v458 = vpop.f32.mrf.mxu0
        %v459 = vadd.f32 0.0, %v458
        %460 = vdwg.mxu0
        %461 = vmatpush.bf16.msra.mxu0 0
        %462 = vmatpush.bf16.msra.mxu0 0
        %463 = vmatpush.bf16.msra.mxu0 0
        %464 = vmatpush.bf16.msra.mxu0 0
        %465 = vmatpush.bf16.msra.mxu0 0
        %466 = vmatpush.bf16.msra.mxu0 0
        %467 = vmatpush.bf16.msra.mxu0 0
        %468 = vmatpush.bf16.msra.mxu0 %v364
        %469 = vmatmul.bf16.gmra.mxu0 %v375
        %v470 = vpop.f32.mrf.mxu0
        %v471 = vadd.f32 0.0, %v470
        %v472 = vpop.f32.mrf.mxu0
        %v473 = vadd.f32 0.0, %v472
        %474 = vdwg.mxu0
        %475 = vmatpush.bf16.msra.mxu0 0
        %476 = vmatpush.bf16.msra.mxu0 0
        %477 = vmatpush.bf16.msra.mxu0 0
        %478 = vmatpush.bf16.msra.mxu0 0
        %479 = vmatpush.bf16.msra.mxu0 0
        %480 = vmatpush.bf16.msra.mxu0 0
        %481 = vmatpush.bf16.msra.mxu0 0
        %482 = vmatpush.bf16.msra.mxu0 %v365
        %483 = vmatmul.bf16.gmra.mxu0 %v375
        %v484 = vpop.f32.mrf.mxu0
        %v485 = vadd.f32 0.0, %v484
        %v486 = vpop.f32.mrf.mxu0
        %v487 = vadd.f32 0.0, %v486
        %488 = vdwg.mxu0
        %v490 = vperm.slane %v322, 0
        %v491 = vperm.slane %v322, 1
        %v492 = vperm.slane %v322, 2
        %v493 = vperm.slane %v322, 3
        %v494 = vperm.slane %v322, 4
        %v495 = vperm.slane %v322, 5
        %v496 = vperm.slane %v322, 6
        %v497 = vperm.slane %v322, 7
        %v506 = vadd.f32 %v490, %v387
        %v507 = vadd.f32 %v491, %v401
        %v508 = vadd.f32 %v492, %v415
        %v509 = vadd.f32 %v493, %v429
        %v510 = vadd.f32 %v494, %v443
        %v511 = vadd.f32 %v495, %v457
        %v512 = vadd.f32 %v496, %v471
        %v513 = vadd.f32 %v497, %v485
        %v514 = vadd.f32 %v490, %v389
        %v515 = vadd.f32 %v491, %v403
        %v516 = vadd.f32 %v492, %v417
        %v517 = vadd.f32 %v493, %v431
        %v518 = vadd.f32 %v494, %v445
        %v519 = vadd.f32 %v495, %v459
        %v520 = vadd.f32 %v496, %v473
        %v521 = vadd.f32 %v497, %v487
        %v522 = vld [vmem:[#allocation2 + $0x8] sm:$0xff]
        %v523 = vld [vmem:[#allocation2 + $0x10] sm:$0xff]
        %v524 = vpack.c.bf16 %v523, %v522
        %s525 = scalar_lea.vmem [#allocation7], 64
        %v526 = vld [vmem:[%s525] sm:$0xff]
        %v527 = vld [vmem:[%s525 + $0x8] sm:$0xff]
        %v528 = vld [vmem:[%s525 + $0x10] sm:$0xff]
        %v529 = vld [vmem:[%s525 + $0x18] sm:$0xff]
        %v530 = vld [vmem:[%s525 + $0x20] sm:$0xff]
        %v531 = vld [vmem:[%s525 + $0x28] sm:$0xff]
        %v532 = vld [vmem:[%s525 + $0x30] sm:$0xff]
        %v533 = vld [vmem:[%s525 + $0x38] sm:$0xff]
        %v542 = vunpack.c.l.b16 %v526
        %v543 = vunpack.c.h.b16 %v526
        %v544 = vunpack.c.l.b16 %v527
        %v545 = vunpack.c.h.b16 %v527
        %v546 = vunpack.c.l.b16 %v528
        %v547 = vunpack.c.h.b16 %v528
        %v548 = vunpack.c.l.b16 %v529
        %v549 = vunpack.c.h.b16 %v529
        %v550 = vunpack.c.l.b16 %v530
        %v551 = vunpack.c.h.b16 %v530
        %v552 = vunpack.c.l.b16 %v531
        %v553 = vunpack.c.h.b16 %v531
        %v554 = vunpack.c.l.b16 %v532
        %v555 = vunpack.c.h.b16 %v532
        %v556 = vunpack.c.l.b16 %v533
        %v557 = vunpack.c.h.b16 %v533
        %v558 = vpack.c.b16 %v550, %v542
        %v559 = vpack.c.b16 %v551, %v543
        %v560 = vpack.c.b16 %v552, %v544
        %v561 = vpack.c.b16 %v553, %v545
        %v562 = vpack.c.b16 %v554, %v546
        %v563 = vpack.c.b16 %v555, %v547
        %v564 = vpack.c.b16 %v556, %v548
        %v565 = vpack.c.b16 %v557, %v549
        %v575 = vsel %vm319, %v524, 0
        %577 = vmatpush.bf16.msra.mxu0 0
        %578 = vmatpush.bf16.msra.mxu0 0
        %579 = vmatpush.bf16.msra.mxu0 0
        %580 = vmatpush.bf16.msra.mxu0 0
        %581 = vmatpush.bf16.msra.mxu0 0
        %582 = vmatpush.bf16.msra.mxu0 0
        %583 = vmatpush.bf16.msra.mxu0 0
        %584 = vmatpush.bf16.msra.mxu0 %v558
        %585 = vmatmul.bf16.gmra.mxu0 %v575
        %v586 = vpop.f32.mrf.mxu0
        %v587 = vadd.f32 0.0, %v586
        %v588 = vpop.f32.mrf.mxu0
        %v589 = vadd.f32 0.0, %v588
        %590 = vdwg.mxu0
        %591 = vmatpush.bf16.msra.mxu0 0
        %592 = vmatpush.bf16.msra.mxu0 0
        %593 = vmatpush.bf16.msra.mxu0 0
        %594 = vmatpush.bf16.msra.mxu0 0
        %595 = vmatpush.bf16.msra.mxu0 0
        %596 = vmatpush.bf16.msra.mxu0 0
        %597 = vmatpush.bf16.msra.mxu0 0
        %598 = vmatpush.bf16.msra.mxu0 %v559
        %599 = vmatmul.bf16.gmra.mxu0 %v575
        %v600 = vpop.f32.mrf.mxu0
        %v601 = vadd.f32 0.0, %v600
        %v602 = vpop.f32.mrf.mxu0
        %v603 = vadd.f32 0.0, %v602
        %604 = vdwg.mxu0
        %605 = vmatpush.bf16.msra.mxu0 0
        %606 = vmatpush.bf16.msra.mxu0 0
        %607 = vmatpush.bf16.msra.mxu0 0
        %608 = vmatpush.bf16.msra.mxu0 0
        %609 = vmatpush.bf16.msra.mxu0 0
        %610 = vmatpush.bf16.msra.mxu0 0
        %611 = vmatpush.bf16.msra.mxu0 0
        %612 = vmatpush.bf16.msra.mxu0 %v560
        %613 = vmatmul.bf16.gmra.mxu0 %v575
        %v614 = vpop.f32.mrf.mxu0
        %v615 = vadd.f32 0.0, %v614
        %v616 = vpop.f32.mrf.mxu0
        %v617 = vadd.f32 0.0, %v616
        %618 = vdwg.mxu0
        %619 = vmatpush.bf16.msra.mxu0 0
        %620 = vmatpush.bf16.msra.mxu0 0
        %621 = vmatpush.bf16.msra.mxu0 0
        %622 = vmatpush.bf16.msra.mxu0 0
        %623 = vmatpush.bf16.msra.mxu0 0
        %624 = vmatpush.bf16.msra.mxu0 0
        %625 = vmatpush.bf16.msra.mxu0 0
        %626 = vmatpush.bf16.msra.mxu0 %v561
        %627 = vmatmul.bf16.gmra.mxu0 %v575
        %v628 = vpop.f32.mrf.mxu0
        %v629 = vadd.f32 0.0, %v628
        %v630 = vpop.f32.mrf.mxu0
        %v631 = vadd.f32 0.0, %v630
        %632 = vdwg.mxu0
        %633 = vmatpush.bf16.msra.mxu0 0
        %634 = vmatpush.bf16.msra.mxu0 0
        %635 = vmatpush.bf16.msra.mxu0 0
        %636 = vmatpush.bf16.msra.mxu0 0
        %637 = vmatpush.bf16.msra.mxu0 0
        %638 = vmatpush.bf16.msra.mxu0 0
        %639 = vmatpush.bf16.msra.mxu0 0
        %640 = vmatpush.bf16.msra.mxu0 %v562
        %641 = vmatmul.bf16.gmra.mxu0 %v575
        %v642 = vpop.f32.mrf.mxu0
        %v643 = vadd.f32 0.0, %v642
        %v644 = vpop.f32.mrf.mxu0
        %v645 = vadd.f32 0.0, %v644
        %646 = vdwg.mxu0
        %647 = vmatpush.bf16.msra.mxu0 0
        %648 = vmatpush.bf16.msra.mxu0 0
        %649 = vmatpush.bf16.msra.mxu0 0
        %650 = vmatpush.bf16.msra.mxu0 0
        %651 = vmatpush.bf16.msra.mxu0 0
        %652 = vmatpush.bf16.msra.mxu0 0
        %653 = vmatpush.bf16.msra.mxu0 0
        %654 = vmatpush.bf16.msra.mxu0 %v563
        %655 = vmatmul.bf16.gmra.mxu0 %v575
        %v656 = vpop.f32.mrf.mxu0
        %v657 = vadd.f32 0.0, %v656
        %v658 = vpop.f32.mrf.mxu0
        %v659 = vadd.f32 0.0, %v658
        %660 = vdwg.mxu0
        %661 = vmatpush.bf16.msra.mxu0 0
        %662 = vmatpush.bf16.msra.mxu0 0
        %663 = vmatpush.bf16.msra.mxu0 0
        %664 = vmatpush.bf16.msra.mxu0 0
        %665 = vmatpush.bf16.msra.mxu0 0
        %666 = vmatpush.bf16.msra.mxu0 0
        %667 = vmatpush.bf16.msra.mxu0 0
        %668 = vmatpush.bf16.msra.mxu0 %v564
        %669 = vmatmul.bf16.gmra.mxu0 %v575
        %v670 = vpop.f32.mrf.mxu0
        %v671 = vadd.f32 0.0, %v670
        %v672 = vpop.f32.mrf.mxu0
        %v673 = vadd.f32 0.0, %v672
        %674 = vdwg.mxu0
        %675 = vmatpush.bf16.msra.mxu0 0
        %676 = vmatpush.bf16.msra.mxu0 0
        %677 = vmatpush.bf16.msra.mxu0 0
        %678 = vmatpush.bf16.msra.mxu0 0
        %679 = vmatpush.bf16.msra.mxu0 0
        %680 = vmatpush.bf16.msra.mxu0 0
        %681 = vmatpush.bf16.msra.mxu0 0
        %682 = vmatpush.bf16.msra.mxu0 %v565
        %683 = vmatmul.bf16.gmra.mxu0 %v575
        %v684 = vpop.f32.mrf.mxu0
        %v685 = vadd.f32 0.0, %v684
        %v686 = vpop.f32.mrf.mxu0
        %v687 = vadd.f32 0.0, %v686
        %688 = vdwg.mxu0
        %v689 = vadd.f32 %v506, %v587
        %v690 = vadd.f32 %v507, %v601
        %v691 = vadd.f32 %v508, %v615
        %v692 = vadd.f32 %v509, %v629
        %v693 = vadd.f32 %v510, %v643
        %v694 = vadd.f32 %v511, %v657
        %v695 = vadd.f32 %v512, %v671
        %v696 = vadd.f32 %v513, %v685
        %v697 = vadd.f32 %v514, %v589
        %v698 = vadd.f32 %v515, %v603
        %v699 = vadd.f32 %v516, %v617
        %v700 = vadd.f32 %v517, %v631
        %v701 = vadd.f32 %v518, %v645
        %v702 = vadd.f32 %v519, %v659
        %v703 = vadd.f32 %v520, %v673
        %v704 = vadd.f32 %v521, %v687
        %v705 = vld [vmem:[#allocation2 + $0x9] sm:$0xff]
        %v706 = vld [vmem:[#allocation2 + $0x11] sm:$0xff]
        %v707 = vpack.c.bf16 %v706, %v705
        %s708 = scalar_lea.vmem [#allocation7], 128
        %v709 = vld [vmem:[%s708] sm:$0xff]
        %v710 = vld [vmem:[%s708 + $0x8] sm:$0xff]
        %v711 = vld [vmem:[%s708 + $0x10] sm:$0xff]
        %v712 = vld [vmem:[%s708 + $0x18] sm:$0xff]
        %v713 = vld [vmem:[%s708 + $0x20] sm:$0xff]
        %v714 = vld [vmem:[%s708 + $0x28] sm:$0xff]
        %v715 = vld [vmem:[%s708 + $0x30] sm:$0xff]
        %v716 = vld [vmem:[%s708 + $0x38] sm:$0xff]
        %v725 = vunpack.c.l.b16 %v709
        %v726 = vunpack.c.h.b16 %v709
        %v727 = vunpack.c.l.b16 %v710
        %v728 = vunpack.c.h.b16 %v710
        %v729 = vunpack.c.l.b16 %v711
        %v730 = vunpack.c.h.b16 %v711
        %v731 = vunpack.c.l.b16 %v712
        %v732 = vunpack.c.h.b16 %v712
        %v733 = vunpack.c.l.b16 %v713
        %v734 = vunpack.c.h.b16 %v713
        %v735 = vunpack.c.l.b16 %v714
        %v736 = vunpack.c.h.b16 %v714
        %v737 = vunpack.c.l.b16 %v715
        %v738 = vunpack.c.h.b16 %v715
        %v739 = vunpack.c.l.b16 %v716
        %v740 = vunpack.c.h.b16 %v716
        %v741 = vpack.c.b16 %v733, %v725
        %v742 = vpack.c.b16 %v734, %v726
        %v743 = vpack.c.b16 %v735, %v727
        %v744 = vpack.c.b16 %v736, %v728
        %v745 = vpack.c.b16 %v737, %v729
        %v746 = vpack.c.b16 %v738, %v730
        %v747 = vpack.c.b16 %v739, %v731
        %v748 = vpack.c.b16 %v740, %v732
        %v758 = vsel %vm319, %v707, 0
        %760 = vmatpush.bf16.msra.mxu0 0
        %761 = vmatpush.bf16.msra.mxu0 0
        %762 = vmatpush.bf16.msra.mxu0 0
        %763 = vmatpush.bf16.msra.mxu0 0
        %764 = vmatpush.bf16.msra.mxu0 0
        %765 = vmatpush.bf16.msra.mxu0 0
        %766 = vmatpush.bf16.msra.mxu0 0
        %767 = vmatpush.bf16.msra.mxu0 %v741
        %768 = vmatmul.bf16.gmra.mxu0 %v758
        %v769 = vpop.f32.mrf.mxu0
        %v770 = vadd.f32 0.0, %v769
        %v771 = vpop.f32.mrf.mxu0
        %v772 = vadd.f32 0.0, %v771
        %773 = vdwg.mxu0
        %774 = vmatpush.bf16.msra.mxu0 0
        %775 = vmatpush.bf16.msra.mxu0 0
        %776 = vmatpush.bf16.msra.mxu0 0
        %777 = vmatpush.bf16.msra.mxu0 0
        %778 = vmatpush.bf16.msra.mxu0 0
        %779 = vmatpush.bf16.msra.mxu0 0
        %780 = vmatpush.bf16.msra.mxu0 0
        %781 = vmatpush.bf16.msra.mxu0 %v742
        %782 = vmatmul.bf16.gmra.mxu0 %v758
        %v783 = vpop.f32.mrf.mxu0
        %v784 = vadd.f32 0.0, %v783
        %v785 = vpop.f32.mrf.mxu0
        %v786 = vadd.f32 0.0, %v785
        %787 = vdwg.mxu0
        %788 = vmatpush.bf16.msra.mxu0 0
        %789 = vmatpush.bf16.msra.mxu0 0
        %790 = vmatpush.bf16.msra.mxu0 0
        %791 = vmatpush.bf16.msra.mxu0 0
        %792 = vmatpush.bf16.msra.mxu0 0
        %793 = vmatpush.bf16.msra.mxu0 0
        %794 = vmatpush.bf16.msra.mxu0 0
        %795 = vmatpush.bf16.msra.mxu0 %v743
        %796 = vmatmul.bf16.gmra.mxu0 %v758
        %v797 = vpop.f32.mrf.mxu0
        %v798 = vadd.f32 0.0, %v797
        %v799 = vpop.f32.mrf.mxu0
        %v800 = vadd.f32 0.0, %v799
        %801 = vdwg.mxu0
        %802 = vmatpush.bf16.msra.mxu0 0
        %803 = vmatpush.bf16.msra.mxu0 0
        %804 = vmatpush.bf16.msra.mxu0 0
        %805 = vmatpush.bf16.msra.mxu0 0
        %806 = vmatpush.bf16.msra.mxu0 0
        %807 = vmatpush.bf16.msra.mxu0 0
        %808 = vmatpush.bf16.msra.mxu0 0
        %809 = vmatpush.bf16.msra.mxu0 %v744
        %810 = vmatmul.bf16.gmra.mxu0 %v758
        %v811 = vpop.f32.mrf.mxu0
        %v812 = vadd.f32 0.0, %v811
        %v813 = vpop.f32.mrf.mxu0
        %v814 = vadd.f32 0.0, %v813
        %815 = vdwg.mxu0
        %816 = vmatpush.bf16.msra.mxu0 0
        %817 = vmatpush.bf16.msra.mxu0 0
        %818 = vmatpush.bf16.msra.mxu0 0
        %819 = vmatpush.bf16.msra.mxu0 0
        %820 = vmatpush.bf16.msra.mxu0 0
        %821 = vmatpush.bf16.msra.mxu0 0
        %822 = vmatpush.bf16.msra.mxu0 0
        %823 = vmatpush.bf16.msra.mxu0 %v745
        %824 = vmatmul.bf16.gmra.mxu0 %v758
        %v825 = vpop.f32.mrf.mxu0
        %v826 = vadd.f32 0.0, %v825
        %v827 = vpop.f32.mrf.mxu0
        %v828 = vadd.f32 0.0, %v827
        %829 = vdwg.mxu0
        %830 = vmatpush.bf16.msra.mxu0 0
        %831 = vmatpush.bf16.msra.mxu0 0
        %832 = vmatpush.bf16.msra.mxu0 0
        %833 = vmatpush.bf16.msra.mxu0 0
        %834 = vmatpush.bf16.msra.mxu0 0
        %835 = vmatpush.bf16.msra.mxu0 0
        %836 = vmatpush.bf16.msra.mxu0 0
        %837 = vmatpush.bf16.msra.mxu0 %v746
        %838 = vmatmul.bf16.gmra.mxu0 %v758
        %v839 = vpop.f32.mrf.mxu0
        %v840 = vadd.f32 0.0, %v839
        %v841 = vpop.f32.mrf.mxu0
        %v842 = vadd.f32 0.0, %v841
        %843 = vdwg.mxu0
        %844 = vmatpush.bf16.msra.mxu0 0
        %845 = vmatpush.bf16.msra.mxu0 0
        %846 = vmatpush.bf16.msra.mxu0 0
        %847 = vmatpush.bf16.msra.mxu0 0
        %848 = vmatpush.bf16.msra.mxu0 0
        %849 = vmatpush.bf16.msra.mxu0 0
        %850 = vmatpush.bf16.msra.mxu0 0
        %851 = vmatpush.bf16.msra.mxu0 %v747
        %852 = vmatmul.bf16.gmra.mxu0 %v758
        %v853 = vpop.f32.mrf.mxu0
        %v854 = vadd.f32 0.0, %v853
        %v855 = vpop.f32.mrf.mxu0
        %v856 = vadd.f32 0.0, %v855
        %857 = vdwg.mxu0
        %858 = vmatpush.bf16.msra.mxu0 0
        %859 = vmatpush.bf16.msra.mxu0 0
        %860 = vmatpush.bf16.msra.mxu0 0
        %861 = vmatpush.bf16.msra.mxu0 0
        %862 = vmatpush.bf16.msra.mxu0 0
        %863 = vmatpush.bf16.msra.mxu0 0
        %864 = vmatpush.bf16.msra.mxu0 0
        %865 = vmatpush.bf16.msra.mxu0 %v748
        %866 = vmatmul.bf16.gmra.mxu0 %v758
        %v867 = vpop.f32.mrf.mxu0
        %v868 = vadd.f32 0.0, %v867
        %v869 = vpop.f32.mrf.mxu0
        %v870 = vadd.f32 0.0, %v869
        %871 = vdwg.mxu0
        %v872 = vadd.f32 %v689, %v770
        %v873 = vadd.f32 %v690, %v784
        %v874 = vadd.f32 %v691, %v798
        %v875 = vadd.f32 %v692, %v812
        %v876 = vadd.f32 %v693, %v826
        %v877 = vadd.f32 %v694, %v840
        %v878 = vadd.f32 %v695, %v854
        %v879 = vadd.f32 %v696, %v868
        %v880 = vadd.f32 %v697, %v772
        %v881 = vadd.f32 %v698, %v786
        %v882 = vadd.f32 %v699, %v800
        %v883 = vadd.f32 %v700, %v814
        %v884 = vadd.f32 %v701, %v828
        %v885 = vadd.f32 %v702, %v842
        %v886 = vadd.f32 %v703, %v856
        %v887 = vadd.f32 %v704, %v870
        %v888 = vmax.f32 %v872, 0.0
        %v889 = vmax.f32 %v873, 0.0
        %v890 = vmax.f32 %v874, 0.0
        %v891 = vmax.f32 %v875, 0.0
        %v892 = vmax.f32 %v876, 0.0
        %v893 = vmax.f32 %v877, 0.0
        %v894 = vmax.f32 %v878, 0.0
        %v895 = vmax.f32 %v879, 0.0
        %v896 = vmax.f32 %v880, 0.0
        %v897 = vmax.f32 %v881, 0.0
        %v898 = vmax.f32 %v882, 0.0
        %v899 = vmax.f32 %v883, 0.0
        %v900 = vmax.f32 %v884, 0.0
        %v901 = vmax.f32 %v885, 0.0
        %v902 = vmax.f32 %v886, 0.0
        %v903 = vmax.f32 %v887, 0.0
        %904 = vst [vmem:[#allocation3 + $0x40] sm:$0xff] %v888
        %905 = vst [vmem:[#allocation3 + $0x48] sm:$0xff] %v889
        %906 = vst [vmem:[#allocation3 + $0x50] sm:$0xff] %v890
        %907 = vst [vmem:[#allocation3 + $0x58] sm:$0xff] %v891
        %908 = vst [vmem:[#allocation3 + $0x60] sm:$0xff] %v892
        %909 = vst [vmem:[#allocation3 + $0x68] sm:$0xff] %v893
        %910 = vst [vmem:[#allocation3 + $0x70] sm:$0xff] %v894
        %911 = vst [vmem:[#allocation3 + $0x78] sm:$0xff] %v895
        %912 = vst [vmem:[#allocation3 + $0x80] sm:$0xff] %v896
        %913 = vst [vmem:[#allocation3 + $0x88] sm:$0xff] %v897
        %914 = vst [vmem:[#allocation3 + $0x90] sm:$0xff] %v898
        %915 = vst [vmem:[#allocation3 + $0x98] sm:$0xff] %v899
        %916 = vst [vmem:[#allocation3 + $0xa0] sm:$0xff] %v900
        %917 = vst [vmem:[#allocation3 + $0xa8] sm:$0xff] %v901
        %918 = vst [vmem:[#allocation3 + $0xb0] sm:$0xff] %v902
        %919 = vst [vmem:[#allocation3 + $0xb8] sm:$0xff] %v903
        %v920 = vld [vmem:[#allocation12] sm:$0xff]
        %v921 = vld [vmem:[#allocation3] sm:$0x80]
        %v922 = vld [vmem:[#allocation3 + $0x8] sm:$0x80]
        %v923 = vld [vmem:[#allocation3 + $0x10] sm:$0x80]
        %v924 = vld [vmem:[#allocation3 + $0x18] sm:$0x80]
        %v925 = vld [vmem:[#allocation3 + $0x20] sm:$0x80]
        %v926 = vld [vmem:[#allocation3 + $0x28] sm:$0x80]
        %v927 = vld [vmem:[#allocation3 + $0x30] sm:$0x80]
        %v928 = vld [vmem:[#allocation3 + $0x38] sm:$0x80]
        %v929 = vld [vmem:[#allocation3 + $0x40] sm:$0xff]
        %v930 = vld [vmem:[#allocation3 + $0x48] sm:$0xff]
        %v931 = vld [vmem:[#allocation3 + $0x50] sm:$0xff]
        %v932 = vld [vmem:[#allocation3 + $0x58] sm:$0xff]
        %v933 = vld [vmem:[#allocation3 + $0x60] sm:$0xff]
        %v934 = vld [vmem:[#allocation3 + $0x68] sm:$0xff]
        %v935 = vld [vmem:[#allocation3 + $0x70] sm:$0xff]
        %v936 = vld [vmem:[#allocation3 + $0x78] sm:$0xff]
        %v937 = vld [vmem:[#allocation3 + $0x80] sm:$0x7f]
        %v938 = vld [vmem:[#allocation3 + $0x88] sm:$0x7f]
        %v939 = vld [vmem:[#allocation3 + $0x90] sm:$0x7f]
        %v940 = vld [vmem:[#allocation3 + $0x98] sm:$0x7f]
        %v941 = vld [vmem:[#allocation3 + $0xa0] sm:$0x7f]
        %v942 = vld [vmem:[#allocation3 + $0xa8] sm:$0x7f]
        %v943 = vld [vmem:[#allocation3 + $0xb0] sm:$0x7f]
        %v944 = vld [vmem:[#allocation3 + $0xb8] sm:$0x7f]
        %v945 = vpack.c.bf16 %v929, %v921
        %v946 = vpack.c.bf16 %v930, %v922
        %v947 = vpack.c.bf16 %v931, %v923
        %v948 = vpack.c.bf16 %v932, %v924
        %v949 = vpack.c.bf16 %v933, %v925
        %v950 = vpack.c.bf16 %v934, %v926
        %v951 = vpack.c.bf16 %v935, %v927
        %v952 = vpack.c.bf16 %v936, %v928
        %v953 = vpack.c.bf16 %v937, %v937
        %v954 = vpack.c.bf16 %v938, %v938
        %v955 = vpack.c.bf16 %v939, %v939
        %v956 = vpack.c.bf16 %v940, %v940
        %v957 = vpack.c.bf16 %v941, %v941
        %v958 = vpack.c.bf16 %v942, %v942
        %v959 = vpack.c.bf16 %v943, %v943
        %v960 = vpack.c.bf16 %v944, %v944
        %v961 = vld [vmem:[#allocation10] sm:$0xff]
        %v962 = vld [vmem:[#allocation10 + $0x8] sm:$0xff]
        %v963 = vld [vmem:[#allocation10 + $0x10] sm:$0xff]
        %v964 = vld [vmem:[#allocation10 + $0x18] sm:$0xff]
        %v965 = vld [vmem:[#allocation10 + $0x20] sm:$0xff]
        %v966 = vld [vmem:[#allocation10 + $0x28] sm:$0xff]
        %v967 = vld [vmem:[#allocation10 + $0x30] sm:$0xff]
        %v968 = vld [vmem:[#allocation10 + $0x38] sm:$0xff]
        %v969 = vld [vmem:[#allocation10 + $0x40] sm:$0xff]
        %v970 = vld [vmem:[#allocation10 + $0x48] sm:$0xff]
        %v971 = vld [vmem:[#allocation10 + $0x50] sm:$0xff]
        %v972 = vld [vmem:[#allocation10 + $0x58] sm:$0xff]
        %v973 = vld [vmem:[#allocation10 + $0x60] sm:$0xff]
        %v974 = vld [vmem:[#allocation10 + $0x68] sm:$0xff]
        %v975 = vld [vmem:[#allocation10 + $0x70] sm:$0xff]
        %v976 = vld [vmem:[#allocation10 + $0x78] sm:$0xff]
        %v977 = vld [vmem:[#allocation10 + $0x80] sm:$0xff]
        %v978 = vld [vmem:[#allocation10 + $0x88] sm:$0xff]
        %v979 = vld [vmem:[#allocation10 + $0x90] sm:$0xff]
        %v980 = vld [vmem:[#allocation10 + $0x98] sm:$0xff]
        %v981 = vld [vmem:[#allocation10 + $0xa0] sm:$0xff]
        %v982 = vld [vmem:[#allocation10 + $0xa8] sm:$0xff]
        %v983 = vld [vmem:[#allocation10 + $0xb0] sm:$0xff]
        %v984 = vld [vmem:[#allocation10 + $0xb8] sm:$0xff]
        %v985 = vld [vmem:[#allocation10 + $0xc0] sm:$0xff]
        %v986 = vld [vmem:[#allocation10 + $0xc8] sm:$0xff]
        %v987 = vld [vmem:[#allocation10 + $0xd0] sm:$0xff]
        %v988 = vld [vmem:[#allocation10 + $0xd8] sm:$0xff]
        %v989 = vld [vmem:[#allocation10 + $0xe0] sm:$0xff]
        %v990 = vld [vmem:[#allocation10 + $0xe8] sm:$0xff]
        %v991 = vld [vmem:[#allocation10 + $0xf0] sm:$0xff]
        %v992 = vld [vmem:[#allocation10 + $0xf8] sm:$0xff]
        %v993 = vld [vmem:[#allocation10 + $0x100] sm:$0xff]
        %v994 = vld [vmem:[#allocation10 + $0x108] sm:$0xff]
        %v995 = vld [vmem:[#allocation10 + $0x110] sm:$0xff]
        %v996 = vld [vmem:[#allocation10 + $0x118] sm:$0xff]
        %v997 = vld [vmem:[#allocation10 + $0x120] sm:$0xff]
        %v998 = vld [vmem:[#allocation10 + $0x128] sm:$0xff]
        %v999 = vld [vmem:[#allocation10 + $0x130] sm:$0xff]
        %v1000 = vld [vmem:[#allocation10 + $0x138] sm:$0xff]
        %v1001 = vld [vmem:[#allocation10 + $0x140] sm:$0xff]
        %v1002 = vld [vmem:[#allocation10 + $0x148] sm:$0xff]
        %v1003 = vld [vmem:[#allocation10 + $0x150] sm:$0xff]
        %v1004 = vld [vmem:[#allocation10 + $0x158] sm:$0xff]
        %v1005 = vld [vmem:[#allocation10 + $0x160] sm:$0xff]
        %v1006 = vld [vmem:[#allocation10 + $0x168] sm:$0xff]
        %v1007 = vld [vmem:[#allocation10 + $0x170] sm:$0xff]
        %v1008 = vld [vmem:[#allocation10 + $0x178] sm:$0xff]
        %v1009 = vld [vmem:[#allocation10 + $0x180] sm:$0xff]
        %v1010 = vld [vmem:[#allocation10 + $0x188] sm:$0xff]
        %v1011 = vld [vmem:[#allocation10 + $0x190] sm:$0xff]
        %v1012 = vld [vmem:[#allocation10 + $0x198] sm:$0xff]
        %v1013 = vld [vmem:[#allocation10 + $0x1a0] sm:$0xff]
        %v1014 = vld [vmem:[#allocation10 + $0x1a8] sm:$0xff]
        %v1015 = vld [vmem:[#allocation10 + $0x1b0] sm:$0xff]
        %v1016 = vld [vmem:[#allocation10 + $0x1b8] sm:$0xff]
        %v1017 = vld [vmem:[#allocation10 + $0x1c0] sm:$0xff]
        %v1018 = vld [vmem:[#allocation10 + $0x1c8] sm:$0xff]
        %v1019 = vld [vmem:[#allocation10 + $0x1d0] sm:$0xff]
        %v1020 = vld [vmem:[#allocation10 + $0x1d8] sm:$0xff]
        %v1021 = vld [vmem:[#allocation10 + $0x1e0] sm:$0xff]
        %v1022 = vld [vmem:[#allocation10 + $0x1e8] sm:$0xff]
        %v1023 = vld [vmem:[#allocation10 + $0x1f0] sm:$0xff]
        %v1024 = vld [vmem:[#allocation10 + $0x1f8] sm:$0xff]
        %v1025 = vld [vmem:[#allocation10 + $0x200] sm:$0xff]
        %v1026 = vld [vmem:[#allocation10 + $0x208] sm:$0xff]
        %v1027 = vld [vmem:[#allocation10 + $0x210] sm:$0xff]
        %v1028 = vld [vmem:[#allocation10 + $0x218] sm:$0xff]
        %v1029 = vld [vmem:[#allocation10 + $0x220] sm:$0xff]
        %v1030 = vld [vmem:[#allocation10 + $0x228] sm:$0xff]
        %v1031 = vld [vmem:[#allocation10 + $0x230] sm:$0xff]
        %v1032 = vld [vmem:[#allocation10 + $0x238] sm:$0xff]
        %v1033 = vld [vmem:[#allocation10 + $0x240] sm:$0xff]
        %v1034 = vld [vmem:[#allocation10 + $0x248] sm:$0xff]
        %v1035 = vld [vmem:[#allocation10 + $0x250] sm:$0xff]
        %v1036 = vld [vmem:[#allocation10 + $0x258] sm:$0xff]
        %v1037 = vld [vmem:[#allocation10 + $0x260] sm:$0xff]
        %v1038 = vld [vmem:[#allocation10 + $0x268] sm:$0xff]
        %v1039 = vld [vmem:[#allocation10 + $0x270] sm:$0xff]
        %v1040 = vld [vmem:[#allocation10 + $0x278] sm:$0xff]
        %v1041 = vld [vmem:[#allocation10 + $0x280] sm:$0xff]
        %v1042 = vld [vmem:[#allocation10 + $0x288] sm:$0xff]
        %v1043 = vld [vmem:[#allocation10 + $0x290] sm:$0xff]
        %v1044 = vld [vmem:[#allocation10 + $0x298] sm:$0xff]
        %v1045 = vld [vmem:[#allocation10 + $0x2a0] sm:$0xff]
        %v1046 = vld [vmem:[#allocation10 + $0x2a8] sm:$0xff]
        %v1047 = vld [vmem:[#allocation10 + $0x2b0] sm:$0xff]
        %v1048 = vld [vmem:[#allocation10 + $0x2b8] sm:$0xff]
        %v1049 = vld [vmem:[#allocation10 + $0x2c0] sm:$0xff]
        %v1050 = vld [vmem:[#allocation10 + $0x2c8] sm:$0xff]
        %v1051 = vld [vmem:[#allocation10 + $0x2d0] sm:$0xff]
        %v1052 = vld [vmem:[#allocation10 + $0x2d8] sm:$0xff]
        %v1053 = vld [vmem:[#allocation10 + $0x2e0] sm:$0xff]
        %v1054 = vld [vmem:[#allocation10 + $0x2e8] sm:$0xff]
        %v1055 = vld [vmem:[#allocation10 + $0x2f0] sm:$0xff]
        %v1056 = vld [vmem:[#allocation10 + $0x2f8] sm:$0xff]
        %v1057 = vld [vmem:[#allocation10 + $0x300] sm:$0xff]
        %v1058 = vld [vmem:[#allocation10 + $0x308] sm:$0xff]
        %v1059 = vld [vmem:[#allocation10 + $0x310] sm:$0xff]
        %v1060 = vld [vmem:[#allocation10 + $0x318] sm:$0xff]
        %v1061 = vld [vmem:[#allocation10 + $0x320] sm:$0xff]
        %v1062 = vld [vmem:[#allocation10 + $0x328] sm:$0xff]
        %v1063 = vld [vmem:[#allocation10 + $0x330] sm:$0xff]
        %v1064 = vld [vmem:[#allocation10 + $0x338] sm:$0xff]
        %v1065 = vld [vmem:[#allocation10 + $0x340] sm:$0xff]
        %v1066 = vld [vmem:[#allocation10 + $0x348] sm:$0xff]
        %v1067 = vld [vmem:[#allocation10 + $0x350] sm:$0xff]
        %v1068 = vld [vmem:[#allocation10 + $0x358] sm:$0xff]
        %v1069 = vld [vmem:[#allocation10 + $0x360] sm:$0xff]
        %v1070 = vld [vmem:[#allocation10 + $0x368] sm:$0xff]
        %v1071 = vld [vmem:[#allocation10 + $0x370] sm:$0xff]
        %v1072 = vld [vmem:[#allocation10 + $0x378] sm:$0xff]
        %v1073 = vld [vmem:[#allocation10 + $0x380] sm:$0xff]
        %v1074 = vld [vmem:[#allocation10 + $0x388] sm:$0xff]
        %v1075 = vld [vmem:[#allocation10 + $0x390] sm:$0xff]
        %v1076 = vld [vmem:[#allocation10 + $0x398] sm:$0xff]
        %v1077 = vld [vmem:[#allocation10 + $0x3a0] sm:$0xff]
        %v1078 = vld [vmem:[#allocation10 + $0x3a8] sm:$0xff]
        %v1079 = vld [vmem:[#allocation10 + $0x3b0] sm:$0xff]
        %v1080 = vld [vmem:[#allocation10 + $0x3b8] sm:$0xff]
        %v1081 = vld [vmem:[#allocation10 + $0x3c0] sm:$0xff]
        %v1082 = vld [vmem:[#allocation10 + $0x3c8] sm:$0xff]
        %v1083 = vld [vmem:[#allocation10 + $0x3d0] sm:$0xff]
        %v1084 = vld [vmem:[#allocation10 + $0x3d8] sm:$0xff]
        %v1085 = vld [vmem:[#allocation10 + $0x3e0] sm:$0xff]
        %v1086 = vld [vmem:[#allocation10 + $0x3e8] sm:$0xff]
        %v1087 = vld [vmem:[#allocation10 + $0x3f0] sm:$0xff]
        %v1088 = vld [vmem:[#allocation10 + $0x3f8] sm:$0xff]
        %v1089 = vld [vmem:[#allocation10 + $0x400] sm:$0xff]
        %v1090 = vld [vmem:[#allocation10 + $0x408] sm:$0xff]
        %v1091 = vld [vmem:[#allocation10 + $0x410] sm:$0xff]
        %v1092 = vld [vmem:[#allocation10 + $0x418] sm:$0xff]
        %v1093 = vld [vmem:[#allocation10 + $0x420] sm:$0xff]
        %v1094 = vld [vmem:[#allocation10 + $0x428] sm:$0xff]
        %v1095 = vld [vmem:[#allocation10 + $0x430] sm:$0xff]
        %v1096 = vld [vmem:[#allocation10 + $0x438] sm:$0xff]
        %v1097 = vld [vmem:[#allocation10 + $0x440] sm:$0xff]
        %v1098 = vld [vmem:[#allocation10 + $0x448] sm:$0xff]
        %v1099 = vld [vmem:[#allocation10 + $0x450] sm:$0xff]
        %v1100 = vld [vmem:[#allocation10 + $0x458] sm:$0xff]
        %v1101 = vld [vmem:[#allocation10 + $0x460] sm:$0xff]
        %v1102 = vld [vmem:[#allocation10 + $0x468] sm:$0xff]
        %v1103 = vld [vmem:[#allocation10 + $0x470] sm:$0xff]
        %v1104 = vld [vmem:[#allocation10 + $0x478] sm:$0xff]
        %v1105 = vld [vmem:[#allocation10 + $0x480] sm:$0xff]
        %v1106 = vld [vmem:[#allocation10 + $0x488] sm:$0xff]
        %v1107 = vld [vmem:[#allocation10 + $0x490] sm:$0xff]
        %v1108 = vld [vmem:[#allocation10 + $0x498] sm:$0xff]
        %v1109 = vld [vmem:[#allocation10 + $0x4a0] sm:$0xff]
        %v1110 = vld [vmem:[#allocation10 + $0x4a8] sm:$0xff]
        %v1111 = vld [vmem:[#allocation10 + $0x4b0] sm:$0xff]
        %v1112 = vld [vmem:[#allocation10 + $0x4b8] sm:$0xff]
        %v1113 = vld [vmem:[#allocation10 + $0x4c0] sm:$0xff]
        %v1114 = vld [vmem:[#allocation10 + $0x4c8] sm:$0xff]
        %v1115 = vld [vmem:[#allocation10 + $0x4d0] sm:$0xff]
        %v1116 = vld [vmem:[#allocation10 + $0x4d8] sm:$0xff]
        %v1117 = vld [vmem:[#allocation10 + $0x4e0] sm:$0xff]
        %v1118 = vld [vmem:[#allocation10 + $0x4e8] sm:$0xff]
        %v1119 = vld [vmem:[#allocation10 + $0x4f0] sm:$0xff]
        %v1120 = vld [vmem:[#allocation10 + $0x4f8] sm:$0xff]
        %v1121 = vld [vmem:[#allocation10 + $0x500] sm:$0xff]
        %v1122 = vld [vmem:[#allocation10 + $0x508] sm:$0xff]
        %v1123 = vld [vmem:[#allocation10 + $0x510] sm:$0xff]
        %v1124 = vld [vmem:[#allocation10 + $0x518] sm:$0xff]
        %v1125 = vld [vmem:[#allocation10 + $0x520] sm:$0xff]
        %v1126 = vld [vmem:[#allocation10 + $0x528] sm:$0xff]
        %v1127 = vld [vmem:[#allocation10 + $0x530] sm:$0xff]
        %v1128 = vld [vmem:[#allocation10 + $0x538] sm:$0xff]
        %v1129 = vld [vmem:[#allocation10 + $0x540] sm:$0xff]
        %v1130 = vld [vmem:[#allocation10 + $0x548] sm:$0xff]
        %v1131 = vld [vmem:[#allocation10 + $0x550] sm:$0xff]
        %v1132 = vld [vmem:[#allocation10 + $0x558] sm:$0xff]
        %v1133 = vld [vmem:[#allocation10 + $0x560] sm:$0xff]
        %v1134 = vld [vmem:[#allocation10 + $0x568] sm:$0xff]
        %v1135 = vld [vmem:[#allocation10 + $0x570] sm:$0xff]
        %v1136 = vld [vmem:[#allocation10 + $0x578] sm:$0xff]
        %v1137 = vld [vmem:[#allocation10 + $0x580] sm:$0xff]
        %v1138 = vld [vmem:[#allocation10 + $0x588] sm:$0xff]
        %v1139 = vld [vmem:[#allocation10 + $0x590] sm:$0xff]
        %v1140 = vld [vmem:[#allocation10 + $0x598] sm:$0xff]
        %v1141 = vld [vmem:[#allocation10 + $0x5a0] sm:$0xff]
        %v1142 = vld [vmem:[#allocation10 + $0x5a8] sm:$0xff]
        %v1143 = vld [vmem:[#allocation10 + $0x5b0] sm:$0xff]
        %v1144 = vld [vmem:[#allocation10 + $0x5b8] sm:$0xff]
        %v1145 = vld [vmem:[#allocation10 + $0x5c0] sm:$0xff]
        %v1146 = vld [vmem:[#allocation10 + $0x5c8] sm:$0xff]
        %v1147 = vld [vmem:[#allocation10 + $0x5d0] sm:$0xff]
        %v1148 = vld [vmem:[#allocation10 + $0x5d8] sm:$0xff]
        %v1149 = vld [vmem:[#allocation10 + $0x5e0] sm:$0xff]
        %v1150 = vld [vmem:[#allocation10 + $0x5e8] sm:$0xff]
        %v1151 = vld [vmem:[#allocation10 + $0x5f0] sm:$0xff]
        %v1152 = vld [vmem:[#allocation10 + $0x5f8] sm:$0xff]
        %v1153 = vld [vmem:[#allocation10 + $0x600] sm:$0xff]
        %v1154 = vld [vmem:[#allocation10 + $0x608] sm:$0xff]
        %v1155 = vld [vmem:[#allocation10 + $0x610] sm:$0xff]
        %v1156 = vld [vmem:[#allocation10 + $0x618] sm:$0xff]
        %v1157 = vld [vmem:[#allocation10 + $0x620] sm:$0xff]
        %v1158 = vld [vmem:[#allocation10 + $0x628] sm:$0xff]
        %v1159 = vld [vmem:[#allocation10 + $0x630] sm:$0xff]
        %v1160 = vld [vmem:[#allocation10 + $0x638] sm:$0xff]
        %v1161 = vld [vmem:[#allocation10 + $0x640] sm:$0xff]
        %v1162 = vld [vmem:[#allocation10 + $0x648] sm:$0xff]
        %v1163 = vld [vmem:[#allocation10 + $0x650] sm:$0xff]
        %v1164 = vld [vmem:[#allocation10 + $0x658] sm:$0xff]
        %v1165 = vld [vmem:[#allocation10 + $0x660] sm:$0xff]
        %v1166 = vld [vmem:[#allocation10 + $0x668] sm:$0xff]
        %v1167 = vld [vmem:[#allocation10 + $0x670] sm:$0xff]
        %v1168 = vld [vmem:[#allocation10 + $0x678] sm:$0xff]
        %v1169 = vld [vmem:[#allocation10 + $0x680] sm:$0xff]
        %v1170 = vld [vmem:[#allocation10 + $0x688] sm:$0xff]
        %v1171 = vld [vmem:[#allocation10 + $0x690] sm:$0xff]
        %v1172 = vld [vmem:[#allocation10 + $0x698] sm:$0xff]
        %v1173 = vld [vmem:[#allocation10 + $0x6a0] sm:$0xff]
        %v1174 = vld [vmem:[#allocation10 + $0x6a8] sm:$0xff]
        %v1175 = vld [vmem:[#allocation10 + $0x6b0] sm:$0xff]
        %v1176 = vld [vmem:[#allocation10 + $0x6b8] sm:$0xff]
        %v1177 = vld [vmem:[#allocation10 + $0x6c0] sm:$0xff]
        %v1178 = vld [vmem:[#allocation10 + $0x6c8] sm:$0xff]
        %v1179 = vld [vmem:[#allocation10 + $0x6d0] sm:$0xff]
        %v1180 = vld [vmem:[#allocation10 + $0x6d8] sm:$0xff]
        %v1181 = vld [vmem:[#allocation10 + $0x6e0] sm:$0xff]
        %v1182 = vld [vmem:[#allocation10 + $0x6e8] sm:$0xff]
        %v1183 = vld [vmem:[#allocation10 + $0x6f0] sm:$0xff]
        %v1184 = vld [vmem:[#allocation10 + $0x6f8] sm:$0xff]
        %v1185 = vld [vmem:[#allocation10 + $0x700] sm:$0xff]
        %v1186 = vld [vmem:[#allocation10 + $0x708] sm:$0xff]
        %v1187 = vld [vmem:[#allocation10 + $0x710] sm:$0xff]
        %v1188 = vld [vmem:[#allocation10 + $0x718] sm:$0xff]
        %v1189 = vld [vmem:[#allocation10 + $0x720] sm:$0xff]
        %v1190 = vld [vmem:[#allocation10 + $0x728] sm:$0xff]
        %v1191 = vld [vmem:[#allocation10 + $0x730] sm:$0xff]
        %v1192 = vld [vmem:[#allocation10 + $0x738] sm:$0xff]
        %v1193 = vld [vmem:[#allocation10 + $0x740] sm:$0xff]
        %v1194 = vld [vmem:[#allocation10 + $0x748] sm:$0xff]
        %v1195 = vld [vmem:[#allocation10 + $0x750] sm:$0xff]
        %v1196 = vld [vmem:[#allocation10 + $0x758] sm:$0xff]
        %v1197 = vld [vmem:[#allocation10 + $0x760] sm:$0xff]
        %v1198 = vld [vmem:[#allocation10 + $0x768] sm:$0xff]
        %v1199 = vld [vmem:[#allocation10 + $0x770] sm:$0xff]
        %v1200 = vld [vmem:[#allocation10 + $0x778] sm:$0xff]
        %v1201 = vld [vmem:[#allocation10 + $0x780] sm:$0xff]
        %v1202 = vld [vmem:[#allocation10 + $0x788] sm:$0xff]
        %v1203 = vld [vmem:[#allocation10 + $0x790] sm:$0xff]
        %v1204 = vld [vmem:[#allocation10 + $0x798] sm:$0xff]
        %v1205 = vld [vmem:[#allocation10 + $0x7a0] sm:$0xff]
        %v1206 = vld [vmem:[#allocation10 + $0x7a8] sm:$0xff]
        %v1207 = vld [vmem:[#allocation10 + $0x7b0] sm:$0xff]
        %v1208 = vld [vmem:[#allocation10 + $0x7b8] sm:$0xff]
        %v1209 = vld [vmem:[#allocation10 + $0x7c0] sm:$0xff]
        %v1210 = vld [vmem:[#allocation10 + $0x7c8] sm:$0xff]
        %v1211 = vld [vmem:[#allocation10 + $0x7d0] sm:$0xff]
        %v1212 = vld [vmem:[#allocation10 + $0x7d8] sm:$0xff]
        %v1213 = vld [vmem:[#allocation10 + $0x7e0] sm:$0xff]
        %v1214 = vld [vmem:[#allocation10 + $0x7e8] sm:$0xff]
        %v1215 = vld [vmem:[#allocation10 + $0x7f0] sm:$0xff]
        %v1216 = vld [vmem:[#allocation10 + $0x7f8] sm:$0xff]
        %v1217 = vld [vmem:[#allocation10 + $0x800] sm:$0xff]
        %v1218 = vld [vmem:[#allocation10 + $0x808] sm:$0xff]
        %v1219 = vld [vmem:[#allocation10 + $0x810] sm:$0xff]
        %v1220 = vld [vmem:[#allocation10 + $0x818] sm:$0xff]
        %v1221 = vld [vmem:[#allocation10 + $0x820] sm:$0xff]
        %v1222 = vld [vmem:[#allocation10 + $0x828] sm:$0xff]
        %v1223 = vld [vmem:[#allocation10 + $0x830] sm:$0xff]
        %v1224 = vld [vmem:[#allocation10 + $0x838] sm:$0xff]
        %v1225 = vld [vmem:[#allocation10 + $0x840] sm:$0xff]
        %v1226 = vld [vmem:[#allocation10 + $0x848] sm:$0xff]
        %v1227 = vld [vmem:[#allocation10 + $0x850] sm:$0xff]
        %v1228 = vld [vmem:[#allocation10 + $0x858] sm:$0xff]
        %v1229 = vld [vmem:[#allocation10 + $0x860] sm:$0xff]
        %v1230 = vld [vmem:[#allocation10 + $0x868] sm:$0xff]
        %v1231 = vld [vmem:[#allocation10 + $0x870] sm:$0xff]
        %v1232 = vld [vmem:[#allocation10 + $0x878] sm:$0xff]
        %v1233 = vld [vmem:[#allocation10 + $0x880] sm:$0xff]
        %v1234 = vld [vmem:[#allocation10 + $0x888] sm:$0xff]
        %v1235 = vld [vmem:[#allocation10 + $0x890] sm:$0xff]
        %v1236 = vld [vmem:[#allocation10 + $0x898] sm:$0xff]
        %v1237 = vld [vmem:[#allocation10 + $0x8a0] sm:$0xff]
        %v1238 = vld [vmem:[#allocation10 + $0x8a8] sm:$0xff]
        %v1239 = vld [vmem:[#allocation10 + $0x8b0] sm:$0xff]
        %v1240 = vld [vmem:[#allocation10 + $0x8b8] sm:$0xff]
        %v1241 = vld [vmem:[#allocation10 + $0x8c0] sm:$0xff]
        %v1242 = vld [vmem:[#allocation10 + $0x8c8] sm:$0xff]
        %v1243 = vld [vmem:[#allocation10 + $0x8d0] sm:$0xff]
        %v1244 = vld [vmem:[#allocation10 + $0x8d8] sm:$0xff]
        %v1245 = vld [vmem:[#allocation10 + $0x8e0] sm:$0xff]
        %v1246 = vld [vmem:[#allocation10 + $0x8e8] sm:$0xff]
        %v1247 = vld [vmem:[#allocation10 + $0x8f0] sm:$0xff]
        %v1248 = vld [vmem:[#allocation10 + $0x8f8] sm:$0xff]
        %v1249 = vld [vmem:[#allocation10 + $0x900] sm:$0xff]
        %v1250 = vld [vmem:[#allocation10 + $0x908] sm:$0xff]
        %v1251 = vld [vmem:[#allocation10 + $0x910] sm:$0xff]
        %v1252 = vld [vmem:[#allocation10 + $0x918] sm:$0xff]
        %v1253 = vld [vmem:[#allocation10 + $0x920] sm:$0xff]
        %v1254 = vld [vmem:[#allocation10 + $0x928] sm:$0xff]
        %v1255 = vld [vmem:[#allocation10 + $0x930] sm:$0xff]
        %v1256 = vld [vmem:[#allocation10 + $0x938] sm:$0xff]
        %v1257 = vld [vmem:[#allocation10 + $0x940] sm:$0xff]
        %v1258 = vld [vmem:[#allocation10 + $0x948] sm:$0xff]
        %v1259 = vld [vmem:[#allocation10 + $0x950] sm:$0xff]
        %v1260 = vld [vmem:[#allocation10 + $0x958] sm:$0xff]
        %v1261 = vld [vmem:[#allocation10 + $0x960] sm:$0xff]
        %v1262 = vld [vmem:[#allocation10 + $0x968] sm:$0xff]
        %v1263 = vld [vmem:[#allocation10 + $0x970] sm:$0xff]
        %v1264 = vld [vmem:[#allocation10 + $0x978] sm:$0xff]
        %v1265 = vld [vmem:[#allocation10 + $0x980] sm:$0xff]
        %v1266 = vld [vmem:[#allocation10 + $0x988] sm:$0xff]
        %v1267 = vld [vmem:[#allocation10 + $0x990] sm:$0xff]
        %v1268 = vld [vmem:[#allocation10 + $0x998] sm:$0xff]
        %v1269 = vld [vmem:[#allocation10 + $0x9a0] sm:$0xff]
        %v1270 = vld [vmem:[#allocation10 + $0x9a8] sm:$0xff]
        %v1271 = vld [vmem:[#allocation10 + $0x9b0] sm:$0xff]
        %v1272 = vld [vmem:[#allocation10 + $0x9b8] sm:$0xff]
        %v1273 = vld [vmem:[#allocation10 + $0x9c0] sm:$0xff]
        %v1274 = vld [vmem:[#allocation10 + $0x9c8] sm:$0xff]
        %v1275 = vld [vmem:[#allocation10 + $0x9d0] sm:$0xff]
        %v1276 = vld [vmem:[#allocation10 + $0x9d8] sm:$0xff]
        %v1277 = vld [vmem:[#allocation10 + $0x9e0] sm:$0xff]
        %v1278 = vld [vmem:[#allocation10 + $0x9e8] sm:$0xff]
        %v1279 = vld [vmem:[#allocation10 + $0x9f0] sm:$0xff]
        %v1280 = vld [vmem:[#allocation10 + $0x9f8] sm:$0xff]
        %v1281 = vld [vmem:[#allocation10 + $0xa00] sm:$0xff]
        %v1282 = vld [vmem:[#allocation10 + $0xa08] sm:$0xff]
        %v1283 = vld [vmem:[#allocation10 + $0xa10] sm:$0xff]
        %v1284 = vld [vmem:[#allocation10 + $0xa18] sm:$0xff]
        %v1285 = vld [vmem:[#allocation10 + $0xa20] sm:$0xff]
        %v1286 = vld [vmem:[#allocation10 + $0xa28] sm:$0xff]
        %v1287 = vld [vmem:[#allocation10 + $0xa30] sm:$0xff]
        %v1288 = vld [vmem:[#allocation10 + $0xa38] sm:$0xff]
        %v1289 = vld [vmem:[#allocation10 + $0xa40] sm:$0xff]
        %v1290 = vld [vmem:[#allocation10 + $0xa48] sm:$0xff]
        %v1291 = vld [vmem:[#allocation10 + $0xa50] sm:$0xff]
        %v1292 = vld [vmem:[#allocation10 + $0xa58] sm:$0xff]
        %v1293 = vld [vmem:[#allocation10 + $0xa60] sm:$0xff]
        %v1294 = vld [vmem:[#allocation10 + $0xa68] sm:$0xff]
        %v1295 = vld [vmem:[#allocation10 + $0xa70] sm:$0xff]
        %v1296 = vld [vmem:[#allocation10 + $0xa78] sm:$0xff]
        %v1297 = vld [vmem:[#allocation10 + $0xa80] sm:$0xff]
        %v1298 = vld [vmem:[#allocation10 + $0xa88] sm:$0xff]
        %v1299 = vld [vmem:[#allocation10 + $0xa90] sm:$0xff]
        %v1300 = vld [vmem:[#allocation10 + $0xa98] sm:$0xff]
        %v1301 = vld [vmem:[#allocation10 + $0xaa0] sm:$0xff]
        %v1302 = vld [vmem:[#allocation10 + $0xaa8] sm:$0xff]
        %v1303 = vld [vmem:[#allocation10 + $0xab0] sm:$0xff]
        %v1304 = vld [vmem:[#allocation10 + $0xab8] sm:$0xff]
        %v1305 = vld [vmem:[#allocation10 + $0xac0] sm:$0xff]
        %v1306 = vld [vmem:[#allocation10 + $0xac8] sm:$0xff]
        %v1307 = vld [vmem:[#allocation10 + $0xad0] sm:$0xff]
        %v1308 = vld [vmem:[#allocation10 + $0xad8] sm:$0xff]
        %v1309 = vld [vmem:[#allocation10 + $0xae0] sm:$0xff]
        %v1310 = vld [vmem:[#allocation10 + $0xae8] sm:$0xff]
        %v1311 = vld [vmem:[#allocation10 + $0xaf0] sm:$0xff]
        %v1312 = vld [vmem:[#allocation10 + $0xaf8] sm:$0xff]
        %v1313 = vld [vmem:[#allocation10 + $0xb00] sm:$0xff]
        %v1314 = vld [vmem:[#allocation10 + $0xb08] sm:$0xff]
        %v1315 = vld [vmem:[#allocation10 + $0xb10] sm:$0xff]
        %v1316 = vld [vmem:[#allocation10 + $0xb18] sm:$0xff]
        %v1317 = vld [vmem:[#allocation10 + $0xb20] sm:$0xff]
        %v1318 = vld [vmem:[#allocation10 + $0xb28] sm:$0xff]
        %v1319 = vld [vmem:[#allocation10 + $0xb30] sm:$0xff]
        %v1320 = vld [vmem:[#allocation10 + $0xb38] sm:$0xff]
        %v1321 = vld [vmem:[#allocation10 + $0xb40] sm:$0xff]
        %v1322 = vld [vmem:[#allocation10 + $0xb48] sm:$0xff]
        %v1323 = vld [vmem:[#allocation10 + $0xb50] sm:$0xff]
        %v1324 = vld [vmem:[#allocation10 + $0xb58] sm:$0xff]
        %v1325 = vld [vmem:[#allocation10 + $0xb60] sm:$0xff]
        %v1326 = vld [vmem:[#allocation10 + $0xb68] sm:$0xff]
        %v1327 = vld [vmem:[#allocation10 + $0xb70] sm:$0xff]
        %v1328 = vld [vmem:[#allocation10 + $0xb78] sm:$0xff]
        %v1329 = vld [vmem:[#allocation10 + $0xb80] sm:$0xff]
        %v1330 = vld [vmem:[#allocation10 + $0xb88] sm:$0xff]
        %v1331 = vld [vmem:[#allocation10 + $0xb90] sm:$0xff]
        %v1332 = vld [vmem:[#allocation10 + $0xb98] sm:$0xff]
        %v1333 = vld [vmem:[#allocation10 + $0xba0] sm:$0xff]
        %v1334 = vld [vmem:[#allocation10 + $0xba8] sm:$0xff]
        %v1335 = vld [vmem:[#allocation10 + $0xbb0] sm:$0xff]
        %v1336 = vld [vmem:[#allocation10 + $0xbb8] sm:$0xff]
        %v1337 = vld [vmem:[#allocation10 + $0xbc0] sm:$0xff]
        %v1338 = vld [vmem:[#allocation10 + $0xbc8] sm:$0xff]
        %v1339 = vld [vmem:[#allocation10 + $0xbd0] sm:$0xff]
        %v1340 = vld [vmem:[#allocation10 + $0xbd8] sm:$0xff]
        %v1341 = vld [vmem:[#allocation10 + $0xbe0] sm:$0xff]
        %v1342 = vld [vmem:[#allocation10 + $0xbe8] sm:$0xff]
        %v1343 = vld [vmem:[#allocation10 + $0xbf0] sm:$0xff]
        %v1344 = vld [vmem:[#allocation10 + $0xbf8] sm:$0xff]
        %v1345 = vld [vmem:[#allocation10 + $0xc00] sm:$0xff]
        %v1346 = vld [vmem:[#allocation10 + $0xc08] sm:$0xff]
        %v1347 = vld [vmem:[#allocation10 + $0xc10] sm:$0xff]
        %v1348 = vld [vmem:[#allocation10 + $0xc18] sm:$0xff]
        %v1349 = vld [vmem:[#allocation10 + $0xc20] sm:$0xff]
        %v1350 = vld [vmem:[#allocation10 + $0xc28] sm:$0xff]
        %v1351 = vld [vmem:[#allocation10 + $0xc30] sm:$0xff]
        %v1352 = vld [vmem:[#allocation10 + $0xc38] sm:$0xff]
        %v1353 = vld [vmem:[#allocation10 + $0xc40] sm:$0xff]
        %v1354 = vld [vmem:[#allocation10 + $0xc48] sm:$0xff]
        %v1355 = vld [vmem:[#allocation10 + $0xc50] sm:$0xff]
        %v1356 = vld [vmem:[#allocation10 + $0xc58] sm:$0xff]
        %v1357 = vld [vmem:[#allocation10 + $0xc60] sm:$0xff]
        %v1358 = vld [vmem:[#allocation10 + $0xc68] sm:$0xff]
        %v1359 = vld [vmem:[#allocation10 + $0xc70] sm:$0xff]
        %v1360 = vld [vmem:[#allocation10 + $0xc78] sm:$0xff]
        %v1361 = vld [vmem:[#allocation10 + $0xc80] sm:$0xff]
        %v1362 = vld [vmem:[#allocation10 + $0xc88] sm:$0xff]
        %v1363 = vld [vmem:[#allocation10 + $0xc90] sm:$0xff]
        %v1364 = vld [vmem:[#allocation10 + $0xc98] sm:$0xff]
        %v1365 = vld [vmem:[#allocation10 + $0xca0] sm:$0xff]
        %v1366 = vld [vmem:[#allocation10 + $0xca8] sm:$0xff]
        %v1367 = vld [vmem:[#allocation10 + $0xcb0] sm:$0xff]
        %v1368 = vld [vmem:[#allocation10 + $0xcb8] sm:$0xff]
        %v1369 = vld [vmem:[#allocation10 + $0xcc0] sm:$0xff]
        %v1370 = vld [vmem:[#allocation10 + $0xcc8] sm:$0xff]
        %v1371 = vld [vmem:[#allocation10 + $0xcd0] sm:$0xff]
        %v1372 = vld [vmem:[#allocation10 + $0xcd8] sm:$0xff]
        %v1373 = vld [vmem:[#allocation10 + $0xce0] sm:$0xff]
        %v1374 = vld [vmem:[#allocation10 + $0xce8] sm:$0xff]
        %v1375 = vld [vmem:[#allocation10 + $0xcf0] sm:$0xff]
        %v1376 = vld [vmem:[#allocation10 + $0xcf8] sm:$0xff]
        %v1377 = vld [vmem:[#allocation10 + $0xd00] sm:$0xff]
        %v1378 = vld [vmem:[#allocation10 + $0xd08] sm:$0xff]
        %v1379 = vld [vmem:[#allocation10 + $0xd10] sm:$0xff]
        %v1380 = vld [vmem:[#allocation10 + $0xd18] sm:$0xff]
        %v1381 = vld [vmem:[#allocation10 + $0xd20] sm:$0xff]
        %v1382 = vld [vmem:[#allocation10 + $0xd28] sm:$0xff]
        %v1383 = vld [vmem:[#allocation10 + $0xd30] sm:$0xff]
        %v1384 = vld [vmem:[#allocation10 + $0xd38] sm:$0xff]
        %v1385 = vld [vmem:[#allocation10 + $0xd40] sm:$0xff]
        %v1386 = vld [vmem:[#allocation10 + $0xd48] sm:$0xff]
        %v1387 = vld [vmem:[#allocation10 + $0xd50] sm:$0xff]
        %v1388 = vld [vmem:[#allocation10 + $0xd58] sm:$0xff]
        %v1389 = vld [vmem:[#allocation10 + $0xd60] sm:$0xff]
        %v1390 = vld [vmem:[#allocation10 + $0xd68] sm:$0xff]
        %v1391 = vld [vmem:[#allocation10 + $0xd70] sm:$0xff]
        %v1392 = vld [vmem:[#allocation10 + $0xd78] sm:$0xff]
        %v1393 = vld [vmem:[#allocation10 + $0xd80] sm:$0xff]
        %v1394 = vld [vmem:[#allocation10 + $0xd88] sm:$0xff]
        %v1395 = vld [vmem:[#allocation10 + $0xd90] sm:$0xff]
        %v1396 = vld [vmem:[#allocation10 + $0xd98] sm:$0xff]
        %v1397 = vld [vmem:[#allocation10 + $0xda0] sm:$0xff]
        %v1398 = vld [vmem:[#allocation10 + $0xda8] sm:$0xff]
        %v1399 = vld [vmem:[#allocation10 + $0xdb0] sm:$0xff]
        %v1400 = vld [vmem:[#allocation10 + $0xdb8] sm:$0xff]
        %v1401 = vld [vmem:[#allocation10 + $0xdc0] sm:$0xff]
        %v1402 = vld [vmem:[#allocation10 + $0xdc8] sm:$0xff]
        %v1403 = vld [vmem:[#allocation10 + $0xdd0] sm:$0xff]
        %v1404 = vld [vmem:[#allocation10 + $0xdd8] sm:$0xff]
        %v1405 = vld [vmem:[#allocation10 + $0xde0] sm:$0xff]
        %v1406 = vld [vmem:[#allocation10 + $0xde8] sm:$0xff]
        %v1407 = vld [vmem:[#allocation10 + $0xdf0] sm:$0xff]
        %v1408 = vld [vmem:[#allocation10 + $0xdf8] sm:$0xff]
        %v1409 = vld [vmem:[#allocation10 + $0xe00] sm:$0xff]
        %v1410 = vld [vmem:[#allocation10 + $0xe08] sm:$0xff]
        %v1411 = vld [vmem:[#allocation10 + $0xe10] sm:$0xff]
        %v1412 = vld [vmem:[#allocation10 + $0xe18] sm:$0xff]
        %v1413 = vld [vmem:[#allocation10 + $0xe20] sm:$0xff]
        %v1414 = vld [vmem:[#allocation10 + $0xe28] sm:$0xff]
        %v1415 = vld [vmem:[#allocation10 + $0xe30] sm:$0xff]
        %v1416 = vld [vmem:[#allocation10 + $0xe38] sm:$0xff]
        %v1417 = vld [vmem:[#allocation10 + $0xe40] sm:$0xff]
        %v1418 = vld [vmem:[#allocation10 + $0xe48] sm:$0xff]
        %v1419 = vld [vmem:[#allocation10 + $0xe50] sm:$0xff]
        %v1420 = vld [vmem:[#allocation10 + $0xe58] sm:$0xff]
        %v1421 = vld [vmem:[#allocation10 + $0xe60] sm:$0xff]
        %v1422 = vld [vmem:[#allocation10 + $0xe68] sm:$0xff]
        %v1423 = vld [vmem:[#allocation10 + $0xe70] sm:$0xff]
        %v1424 = vld [vmem:[#allocation10 + $0xe78] sm:$0xff]
        %v1425 = vld [vmem:[#allocation10 + $0xe80] sm:$0xff]
        %v1426 = vld [vmem:[#allocation10 + $0xe88] sm:$0xff]
        %v1427 = vld [vmem:[#allocation10 + $0xe90] sm:$0xff]
        %v1428 = vld [vmem:[#allocation10 + $0xe98] sm:$0xff]
        %v1429 = vld [vmem:[#allocation10 + $0xea0] sm:$0xff]
        %v1430 = vld [vmem:[#allocation10 + $0xea8] sm:$0xff]
        %v1431 = vld [vmem:[#allocation10 + $0xeb0] sm:$0xff]
        %v1432 = vld [vmem:[#allocation10 + $0xeb8] sm:$0xff]
        %v1433 = vld [vmem:[#allocation10 + $0xec0] sm:$0xff]
        %v1434 = vld [vmem:[#allocation10 + $0xec8] sm:$0xff]
        %v1435 = vld [vmem:[#allocation10 + $0xed0] sm:$0xff]
        %v1436 = vld [vmem:[#allocation10 + $0xed8] sm:$0xff]
        %v1437 = vld [vmem:[#allocation10 + $0xee0] sm:$0xff]
        %v1438 = vld [vmem:[#allocation10 + $0xee8] sm:$0xff]
        %v1439 = vld [vmem:[#allocation10 + $0xef0] sm:$0xff]
        %v1440 = vld [vmem:[#allocation10 + $0xef8] sm:$0xff]
        %v1441 = vld [vmem:[#allocation10 + $0xf00] sm:$0xff]
        %v1442 = vld [vmem:[#allocation10 + $0xf08] sm:$0xff]
        %v1443 = vld [vmem:[#allocation10 + $0xf10] sm:$0xff]
        %v1444 = vld [vmem:[#allocation10 + $0xf18] sm:$0xff]
        %v1445 = vld [vmem:[#allocation10 + $0xf20] sm:$0xff]
        %v1446 = vld [vmem:[#allocation10 + $0xf28] sm:$0xff]
        %v1447 = vld [vmem:[#allocation10 + $0xf30] sm:$0xff]
        %v1448 = vld [vmem:[#allocation10 + $0xf38] sm:$0xff]
        %v1449 = vld [vmem:[#allocation10 + $0xf40] sm:$0xff]
        %v1450 = vld [vmem:[#allocation10 + $0xf48] sm:$0xff]
        %v1451 = vld [vmem:[#allocation10 + $0xf50] sm:$0xff]
        %v1452 = vld [vmem:[#allocation10 + $0xf58] sm:$0xff]
        %v1453 = vld [vmem:[#allocation10 + $0xf60] sm:$0xff]
        %v1454 = vld [vmem:[#allocation10 + $0xf68] sm:$0xff]
        %v1455 = vld [vmem:[#allocation10 + $0xf70] sm:$0xff]
        %v1456 = vld [vmem:[#allocation10 + $0xf78] sm:$0xff]
        %v1457 = vld [vmem:[#allocation10 + $0xf80] sm:$0xff]
        %v1458 = vld [vmem:[#allocation10 + $0xf88] sm:$0xff]
        %v1459 = vld [vmem:[#allocation10 + $0xf90] sm:$0xff]
        %v1460 = vld [vmem:[#allocation10 + $0xf98] sm:$0xff]
        %v1461 = vld [vmem:[#allocation10 + $0xfa0] sm:$0xff]
        %v1462 = vld [vmem:[#allocation10 + $0xfa8] sm:$0xff]
        %v1463 = vld [vmem:[#allocation10 + $0xfb0] sm:$0xff]
        %v1464 = vld [vmem:[#allocation10 + $0xfb8] sm:$0xff]
        %v1465 = vld [vmem:[#allocation10 + $0xfc0] sm:$0xff]
        %v1466 = vld [vmem:[#allocation10 + $0xfc8] sm:$0xff]
        %v1467 = vld [vmem:[#allocation10 + $0xfd0] sm:$0xff]
        %v1468 = vld [vmem:[#allocation10 + $0xfd8] sm:$0xff]
        %v1469 = vld [vmem:[#allocation10 + $0xfe0] sm:$0xff]
        %v1470 = vld [vmem:[#allocation10 + $0xfe8] sm:$0xff]
        %v1471 = vld [vmem:[#allocation10 + $0xff0] sm:$0xff]
        %v1472 = vld [vmem:[#allocation10 + $0xff8] sm:$0xff]
        %vm1473 = vsmask.f32 4352
        %v1475 = vshrl.u32 %v945, 16
        %v1477 = vrot.slane %v1475, 3
        %v1478 = vshll.u32 %v945, 16
        %v1480 = vrot.slane %v1478, 4
        %v1481 = vor.u32 %v1477, %v1480
        %v1483 = vshrl.u32 %v953, 16
        %v1485 = vrot.slane %v1483, 3
        %v1486 = vshll.u32 %v953, 16
        %v1488 = vrot.slane %v1486, 4
        %v1489 = vor.u32 %v1485, %v1488
        %v1490 = vsel %vm1473, %v1481, %v1489
        %v1492 = vshrl.u32 %v946, 16
        %v1494 = vrot.slane %v1492, 3
        %v1495 = vshll.u32 %v946, 16
        %v1497 = vrot.slane %v1495, 4
        %v1498 = vor.u32 %v1494, %v1497
        %v1500 = vshrl.u32 %v954, 16
        %v1502 = vrot.slane %v1500, 3
        %v1503 = vshll.u32 %v954, 16
        %v1505 = vrot.slane %v1503, 4
        %v1506 = vor.u32 %v1502, %v1505
        %v1507 = vsel %vm1473, %v1498, %v1506
        %v1509 = vshrl.u32 %v947, 16
        %v1511 = vrot.slane %v1509, 3
        %v1512 = vshll.u32 %v947, 16
        %v1514 = vrot.slane %v1512, 4
        %v1515 = vor.u32 %v1511, %v1514
        %v1517 = vshrl.u32 %v955, 16
        %v1519 = vrot.slane %v1517, 3
        %v1520 = vshll.u32 %v955, 16
        %v1522 = vrot.slane %v1520, 4
        %v1523 = vor.u32 %v1519, %v1522
        %v1524 = vsel %vm1473, %v1515, %v1523
        %v1526 = vshrl.u32 %v948, 16
        %v1528 = vrot.slane %v1526, 3
        %v1529 = vshll.u32 %v948, 16
        %v1531 = vrot.slane %v1529, 4
        %v1532 = vor.u32 %v1528, %v1531
        %v1534 = vshrl.u32 %v956, 16
        %v1536 = vrot.slane %v1534, 3
        %v1537 = vshll.u32 %v956, 16
        %v1539 = vrot.slane %v1537, 4
        %v1540 = vor.u32 %v1536, %v1539
        %v1541 = vsel %vm1473, %v1532, %v1540
        %v1543 = vshrl.u32 %v949, 16
        %v1545 = vrot.slane %v1543, 3
        %v1546 = vshll.u32 %v949, 16
        %v1548 = vrot.slane %v1546, 4
        %v1549 = vor.u32 %v1545, %v1548
        %v1551 = vshrl.u32 %v957, 16
        %v1553 = vrot.slane %v1551, 3
        %v1554 = vshll.u32 %v957, 16
        %v1556 = vrot.slane %v1554, 4
        %v1557 = vor.u32 %v1553, %v1556
        %v1558 = vsel %vm1473, %v1549, %v1557
        %v1560 = vshrl.u32 %v950, 16
        %v1562 = vrot.slane %v1560, 3
        %v1563 = vshll.u32 %v950, 16
        %v1565 = vrot.slane %v1563, 4
        %v1566 = vor.u32 %v1562, %v1565
        %v1568 = vshrl.u32 %v958, 16
        %v1570 = vrot.slane %v1568, 3
        %v1571 = vshll.u32 %v958, 16
        %v1573 = vrot.slane %v1571, 4
        %v1574 = vor.u32 %v1570, %v1573
        %v1575 = vsel %vm1473, %v1566, %v1574
        %v1577 = vshrl.u32 %v951, 16
        %v1579 = vrot.slane %v1577, 3
        %v1580 = vshll.u32 %v951, 16
        %v1582 = vrot.slane %v1580, 4
        %v1583 = vor.u32 %v1579, %v1582
        %v1585 = vshrl.u32 %v959, 16
        %v1587 = vrot.slane %v1585, 3
        %v1588 = vshll.u32 %v959, 16
        %v1590 = vrot.slane %v1588, 4
        %v1591 = vor.u32 %v1587, %v1590
        %v1592 = vsel %vm1473, %v1583, %v1591
        %v1594 = vshrl.u32 %v952, 16
        %v1596 = vrot.slane %v1594, 3
        %v1597 = vshll.u32 %v952, 16
        %v1599 = vrot.slane %v1597, 4
        %v1600 = vor.u32 %v1596, %v1599
        %v1602 = vshrl.u32 %v960, 16
        %v1604 = vrot.slane %v1602, 3
        %v1605 = vshll.u32 %v960, 16
        %v1607 = vrot.slane %v1605, 4
        %v1608 = vor.u32 %v1604, %v1607
        %v1609 = vsel %vm1473, %v1600, %v1608
        %v2130 = vunpack.c.l.b16 %v961
        %v2131 = vunpack.c.h.b16 %v961
        %v2132 = vunpack.c.l.b16 %v962
        %v2133 = vunpack.c.h.b16 %v962
        %v2134 = vunpack.c.l.b16 %v963
        %v2135 = vunpack.c.h.b16 %v963
        %v2136 = vunpack.c.l.b16 %v964
        %v2137 = vunpack.c.h.b16 %v964
        %v2138 = vunpack.c.l.b16 %v965
        %v2139 = vunpack.c.h.b16 %v965
        %v2140 = vunpack.c.l.b16 %v966
        %v2141 = vunpack.c.h.b16 %v966
        %v2142 = vunpack.c.l.b16 %v967
        %v2143 = vunpack.c.h.b16 %v967
        %v2144 = vunpack.c.l.b16 %v968
        %v2145 = vunpack.c.h.b16 %v968
        %v2146 = vunpack.c.l.b16 %v969
        %v2147 = vunpack.c.h.b16 %v969
        %v2148 = vunpack.c.l.b16 %v970
        %v2149 = vunpack.c.h.b16 %v970
        %v2150 = vunpack.c.l.b16 %v971
        %v2151 = vunpack.c.h.b16 %v971
        %v2152 = vunpack.c.l.b16 %v972
        %v2153 = vunpack.c.h.b16 %v972
        %v2154 = vunpack.c.l.b16 %v973
        %v2155 = vunpack.c.h.b16 %v973
        %v2156 = vunpack.c.l.b16 %v974
        %v2157 = vunpack.c.h.b16 %v974
        %v2158 = vunpack.c.l.b16 %v975
        %v2159 = vunpack.c.h.b16 %v975
        %v2160 = vunpack.c.l.b16 %v976
        %v2161 = vunpack.c.h.b16 %v976
        %v2162 = vunpack.c.l.b16 %v977
        %v2163 = vunpack.c.h.b16 %v977
        %v2164 = vunpack.c.l.b16 %v978
        %v2165 = vunpack.c.h.b16 %v978
        %v2166 = vunpack.c.l.b16 %v979
        %v2167 = vunpack.c.h.b16 %v979
        %v2168 = vunpack.c.l.b16 %v980
        %v2169 = vunpack.c.h.b16 %v980
        %v2170 = vunpack.c.l.b16 %v981
        %v2171 = vunpack.c.h.b16 %v981
        %v2172 = vunpack.c.l.b16 %v982
        %v2173 = vunpack.c.h.b16 %v982
        %v2174 = vunpack.c.l.b16 %v983
        %v2175 = vunpack.c.h.b16 %v983
        %v2176 = vunpack.c.l.b16 %v984
        %v2177 = vunpack.c.h.b16 %v984
        %v2178 = vunpack.c.l.b16 %v985
        %v2179 = vunpack.c.h.b16 %v985
        %v2180 = vunpack.c.l.b16 %v986
        %v2181 = vunpack.c.h.b16 %v986
        %v2182 = vunpack.c.l.b16 %v987
        %v2183 = vunpack.c.h.b16 %v987
        %v2184 = vunpack.c.l.b16 %v988
        %v2185 = vunpack.c.h.b16 %v988
        %v2186 = vunpack.c.l.b16 %v989
        %v2187 = vunpack.c.h.b16 %v989
        %v2188 = vunpack.c.l.b16 %v990
        %v2189 = vunpack.c.h.b16 %v990
        %v2190 = vunpack.c.l.b16 %v991
        %v2191 = vunpack.c.h.b16 %v991
        %v2192 = vunpack.c.l.b16 %v992
        %v2193 = vunpack.c.h.b16 %v992
        %v2194 = vunpack.c.l.b16 %v993
        %v2195 = vunpack.c.h.b16 %v993
        %v2196 = vunpack.c.l.b16 %v994
        %v2197 = vunpack.c.h.b16 %v994
        %v2198 = vunpack.c.l.b16 %v995
        %v2199 = vunpack.c.h.b16 %v995
        %v2200 = vunpack.c.l.b16 %v996
        %v2201 = vunpack.c.h.b16 %v996
        %v2202 = vunpack.c.l.b16 %v997
        %v2203 = vunpack.c.h.b16 %v997
        %v2204 = vunpack.c.l.b16 %v998
        %v2205 = vunpack.c.h.b16 %v998
        %v2206 = vunpack.c.l.b16 %v999
        %v2207 = vunpack.c.h.b16 %v999
        %v2208 = vunpack.c.l.b16 %v1000
        %v2209 = vunpack.c.h.b16 %v1000
        %v2210 = vunpack.c.l.b16 %v1001
        %v2211 = vunpack.c.h.b16 %v1001
        %v2212 = vunpack.c.l.b16 %v1002
        %v2213 = vunpack.c.h.b16 %v1002
        %v2214 = vunpack.c.l.b16 %v1003
        %v2215 = vunpack.c.h.b16 %v1003
        %v2216 = vunpack.c.l.b16 %v1004
        %v2217 = vunpack.c.h.b16 %v1004
        %v2218 = vunpack.c.l.b16 %v1005
        %v2219 = vunpack.c.h.b16 %v1005
        %v2220 = vunpack.c.l.b16 %v1006
        %v2221 = vunpack.c.h.b16 %v1006
        %v2222 = vunpack.c.l.b16 %v1007
        %v2223 = vunpack.c.h.b16 %v1007
        %v2224 = vunpack.c.l.b16 %v1008
        %v2225 = vunpack.c.h.b16 %v1008
        %v2226 = vunpack.c.l.b16 %v1009
        %v2227 = vunpack.c.h.b16 %v1009
        %v2228 = vunpack.c.l.b16 %v1010
        %v2229 = vunpack.c.h.b16 %v1010
        %v2230 = vunpack.c.l.b16 %v1011
        %v2231 = vunpack.c.h.b16 %v1011
        %v2232 = vunpack.c.l.b16 %v1012
        %v2233 = vunpack.c.h.b16 %v1012
        %v2234 = vunpack.c.l.b16 %v1013
        %v2235 = vunpack.c.h.b16 %v1013
        %v2236 = vunpack.c.l.b16 %v1014
        %v2237 = vunpack.c.h.b16 %v1014
        %v2238 = vunpack.c.l.b16 %v1015
        %v2239 = vunpack.c.h.b16 %v1015
        %v2240 = vunpack.c.l.b16 %v1016
        %v2241 = vunpack.c.h.b16 %v1016
        %v2242 = vunpack.c.l.b16 %v1017
        %v2243 = vunpack.c.h.b16 %v1017
        %v2244 = vunpack.c.l.b16 %v1018
        %v2245 = vunpack.c.h.b16 %v1018
        %v2246 = vunpack.c.l.b16 %v1019
        %v2247 = vunpack.c.h.b16 %v1019
        %v2248 = vunpack.c.l.b16 %v1020
        %v2249 = vunpack.c.h.b16 %v1020
        %v2250 = vunpack.c.l.b16 %v1021
        %v2251 = vunpack.c.h.b16 %v1021
        %v2252 = vunpack.c.l.b16 %v1022
        %v2253 = vunpack.c.h.b16 %v1022
        %v2254 = vunpack.c.l.b16 %v1023
        %v2255 = vunpack.c.h.b16 %v1023
        %v2256 = vunpack.c.l.b16 %v1024
        %v2257 = vunpack.c.h.b16 %v1024
        %v2258 = vunpack.c.l.b16 %v1025
        %v2259 = vunpack.c.h.b16 %v1025
        %v2260 = vunpack.c.l.b16 %v1026
        %v2261 = vunpack.c.h.b16 %v1026
        %v2262 = vunpack.c.l.b16 %v1027
        %v2263 = vunpack.c.h.b16 %v1027
        %v2264 = vunpack.c.l.b16 %v1028
        %v2265 = vunpack.c.h.b16 %v1028
        %v2266 = vunpack.c.l.b16 %v1029
        %v2267 = vunpack.c.h.b16 %v1029
        %v2268 = vunpack.c.l.b16 %v1030
        %v2269 = vunpack.c.h.b16 %v1030
        %v2270 = vunpack.c.l.b16 %v1031
        %v2271 = vunpack.c.h.b16 %v1031
        %v2272 = vunpack.c.l.b16 %v1032
        %v2273 = vunpack.c.h.b16 %v1032
        %v2274 = vunpack.c.l.b16 %v1033
        %v2275 = vunpack.c.h.b16 %v1033
        %v2276 = vunpack.c.l.b16 %v1034
        %v2277 = vunpack.c.h.b16 %v1034
        %v2278 = vunpack.c.l.b16 %v1035
        %v2279 = vunpack.c.h.b16 %v1035
        %v2280 = vunpack.c.l.b16 %v1036
        %v2281 = vunpack.c.h.b16 %v1036
        %v2282 = vunpack.c.l.b16 %v1037
        %v2283 = vunpack.c.h.b16 %v1037
        %v2284 = vunpack.c.l.b16 %v1038
        %v2285 = vunpack.c.h.b16 %v1038
        %v2286 = vunpack.c.l.b16 %v1039
        %v2287 = vunpack.c.h.b16 %v1039
        %v2288 = vunpack.c.l.b16 %v1040
        %v2289 = vunpack.c.h.b16 %v1040
        %v2290 = vunpack.c.l.b16 %v1041
        %v2291 = vunpack.c.h.b16 %v1041
        %v2292 = vunpack.c.l.b16 %v1042
        %v2293 = vunpack.c.h.b16 %v1042
        %v2294 = vunpack.c.l.b16 %v1043
        %v2295 = vunpack.c.h.b16 %v1043
        %v2296 = vunpack.c.l.b16 %v1044
        %v2297 = vunpack.c.h.b16 %v1044
        %v2298 = vunpack.c.l.b16 %v1045
        %v2299 = vunpack.c.h.b16 %v1045
        %v2300 = vunpack.c.l.b16 %v1046
        %v2301 = vunpack.c.h.b16 %v1046
        %v2302 = vunpack.c.l.b16 %v1047
        %v2303 = vunpack.c.h.b16 %v1047
        %v2304 = vunpack.c.l.b16 %v1048
        %v2305 = vunpack.c.h.b16 %v1048
        %v2306 = vunpack.c.l.b16 %v1049
        %v2307 = vunpack.c.h.b16 %v1049
        %v2308 = vunpack.c.l.b16 %v1050
        %v2309 = vunpack.c.h.b16 %v1050
        %v2310 = vunpack.c.l.b16 %v1051
        %v2311 = vunpack.c.h.b16 %v1051
        %v2312 = vunpack.c.l.b16 %v1052
        %v2313 = vunpack.c.h.b16 %v1052
        %v2314 = vunpack.c.l.b16 %v1053
        %v2315 = vunpack.c.h.b16 %v1053
        %v2316 = vunpack.c.l.b16 %v1054
        %v2317 = vunpack.c.h.b16 %v1054
        %v2318 = vunpack.c.l.b16 %v1055
        %v2319 = vunpack.c.h.b16 %v1055
        %v2320 = vunpack.c.l.b16 %v1056
        %v2321 = vunpack.c.h.b16 %v1056
        %v2322 = vunpack.c.l.b16 %v1057
        %v2323 = vunpack.c.h.b16 %v1057
        %v2324 = vunpack.c.l.b16 %v1058
        %v2325 = vunpack.c.h.b16 %v1058
        %v2326 = vunpack.c.l.b16 %v1059
        %v2327 = vunpack.c.h.b16 %v1059
        %v2328 = vunpack.c.l.b16 %v1060
        %v2329 = vunpack.c.h.b16 %v1060
        %v2330 = vunpack.c.l.b16 %v1061
        %v2331 = vunpack.c.h.b16 %v1061
        %v2332 = vunpack.c.l.b16 %v1062
        %v2333 = vunpack.c.h.b16 %v1062
        %v2334 = vunpack.c.l.b16 %v1063
        %v2335 = vunpack.c.h.b16 %v1063
        %v2336 = vunpack.c.l.b16 %v1064
        %v2337 = vunpack.c.h.b16 %v1064
        %v2338 = vunpack.c.l.b16 %v1065
        %v2339 = vunpack.c.h.b16 %v1065
        %v2340 = vunpack.c.l.b16 %v1066
        %v2341 = vunpack.c.h.b16 %v1066
        %v2342 = vunpack.c.l.b16 %v1067
        %v2343 = vunpack.c.h.b16 %v1067
        %v2344 = vunpack.c.l.b16 %v1068
        %v2345 = vunpack.c.h.b16 %v1068
        %v2346 = vunpack.c.l.b16 %v1069
        %v2347 = vunpack.c.h.b16 %v1069
        %v2348 = vunpack.c.l.b16 %v1070
        %v2349 = vunpack.c.h.b16 %v1070
        %v2350 = vunpack.c.l.b16 %v1071
        %v2351 = vunpack.c.h.b16 %v1071
        %v2352 = vunpack.c.l.b16 %v1072
        %v2353 = vunpack.c.h.b16 %v1072
        %v2354 = vunpack.c.l.b16 %v1073
        %v2355 = vunpack.c.h.b16 %v1073
        %v2356 = vunpack.c.l.b16 %v1074
        %v2357 = vunpack.c.h.b16 %v1074
        %v2358 = vunpack.c.l.b16 %v1075
        %v2359 = vunpack.c.h.b16 %v1075
        %v2360 = vunpack.c.l.b16 %v1076
        %v2361 = vunpack.c.h.b16 %v1076
        %v2362 = vunpack.c.l.b16 %v1077
        %v2363 = vunpack.c.h.b16 %v1077
        %v2364 = vunpack.c.l.b16 %v1078
        %v2365 = vunpack.c.h.b16 %v1078
        %v2366 = vunpack.c.l.b16 %v1079
        %v2367 = vunpack.c.h.b16 %v1079
        %v2368 = vunpack.c.l.b16 %v1080
        %v2369 = vunpack.c.h.b16 %v1080
        %v2370 = vunpack.c.l.b16 %v1081
        %v2371 = vunpack.c.h.b16 %v1081
        %v2372 = vunpack.c.l.b16 %v1082
        %v2373 = vunpack.c.h.b16 %v1082
        %v2374 = vunpack.c.l.b16 %v1083
        %v2375 = vunpack.c.h.b16 %v1083
        %v2376 = vunpack.c.l.b16 %v1084
        %v2377 = vunpack.c.h.b16 %v1084
        %v2378 = vunpack.c.l.b16 %v1085
        %v2379 = vunpack.c.h.b16 %v1085
        %v2380 = vunpack.c.l.b16 %v1086
        %v2381 = vunpack.c.h.b16 %v1086
        %v2382 = vunpack.c.l.b16 %v1087
        %v2383 = vunpack.c.h.b16 %v1087
        %v2384 = vunpack.c.l.b16 %v1088
        %v2385 = vunpack.c.h.b16 %v1088
        %v2386 = vunpack.c.l.b16 %v1089
        %v2387 = vunpack.c.h.b16 %v1089
        %v2388 = vunpack.c.l.b16 %v1090
        %v2389 = vunpack.c.h.b16 %v1090
        %v2390 = vunpack.c.l.b16 %v1091
        %v2391 = vunpack.c.h.b16 %v1091
        %v2392 = vunpack.c.l.b16 %v1092
        %v2393 = vunpack.c.h.b16 %v1092
        %v2394 = vunpack.c.l.b16 %v1093
        %v2395 = vunpack.c.h.b16 %v1093
        %v2396 = vunpack.c.l.b16 %v1094
        %v2397 = vunpack.c.h.b16 %v1094
        %v2398 = vunpack.c.l.b16 %v1095
        %v2399 = vunpack.c.h.b16 %v1095
        %v2400 = vunpack.c.l.b16 %v1096
        %v2401 = vunpack.c.h.b16 %v1096
        %v2402 = vunpack.c.l.b16 %v1097
        %v2403 = vunpack.c.h.b16 %v1097
        %v2404 = vunpack.c.l.b16 %v1098
        %v2405 = vunpack.c.h.b16 %v1098
        %v2406 = vunpack.c.l.b16 %v1099
        %v2407 = vunpack.c.h.b16 %v1099
        %v2408 = vunpack.c.l.b16 %v1100
        %v2409 = vunpack.c.h.b16 %v1100
        %v2410 = vunpack.c.l.b16 %v1101
        %v2411 = vunpack.c.h.b16 %v1101
        %v2412 = vunpack.c.l.b16 %v1102
        %v2413 = vunpack.c.h.b16 %v1102
        %v2414 = vunpack.c.l.b16 %v1103
        %v2415 = vunpack.c.h.b16 %v1103
        %v2416 = vunpack.c.l.b16 %v1104
        %v2417 = vunpack.c.h.b16 %v1104
        %v2418 = vunpack.c.l.b16 %v1105
        %v2419 = vunpack.c.h.b16 %v1105
        %v2420 = vunpack.c.l.b16 %v1106
        %v2421 = vunpack.c.h.b16 %v1106
        %v2422 = vunpack.c.l.b16 %v1107
        %v2423 = vunpack.c.h.b16 %v1107
        %v2424 = vunpack.c.l.b16 %v1108
        %v2425 = vunpack.c.h.b16 %v1108
        %v2426 = vunpack.c.l.b16 %v1109
        %v2427 = vunpack.c.h.b16 %v1109
        %v2428 = vunpack.c.l.b16 %v1110
        %v2429 = vunpack.c.h.b16 %v1110
        %v2430 = vunpack.c.l.b16 %v1111
        %v2431 = vunpack.c.h.b16 %v1111
        %v2432 = vunpack.c.l.b16 %v1112
        %v2433 = vunpack.c.h.b16 %v1112
        %v2434 = vunpack.c.l.b16 %v1113
        %v2435 = vunpack.c.h.b16 %v1113
        %v2436 = vunpack.c.l.b16 %v1114
        %v2437 = vunpack.c.h.b16 %v1114
        %v2438 = vunpack.c.l.b16 %v1115
        %v2439 = vunpack.c.h.b16 %v1115
        %v2440 = vunpack.c.l.b16 %v1116
        %v2441 = vunpack.c.h.b16 %v1116
        %v2442 = vunpack.c.l.b16 %v1117
        %v2443 = vunpack.c.h.b16 %v1117
        %v2444 = vunpack.c.l.b16 %v1118
        %v2445 = vunpack.c.h.b16 %v1118
        %v2446 = vunpack.c.l.b16 %v1119
        %v2447 = vunpack.c.h.b16 %v1119
        %v2448 = vunpack.c.l.b16 %v1120
        %v2449 = vunpack.c.h.b16 %v1120
        %v2450 = vunpack.c.l.b16 %v1121
        %v2451 = vunpack.c.h.b16 %v1121
        %v2452 = vunpack.c.l.b16 %v1122
        %v2453 = vunpack.c.h.b16 %v1122
        %v2454 = vunpack.c.l.b16 %v1123
        %v2455 = vunpack.c.h.b16 %v1123
        %v2456 = vunpack.c.l.b16 %v1124
        %v2457 = vunpack.c.h.b16 %v1124
        %v2458 = vunpack.c.l.b16 %v1125
        %v2459 = vunpack.c.h.b16 %v1125
        %v2460 = vunpack.c.l.b16 %v1126
        %v2461 = vunpack.c.h.b16 %v1126
        %v2462 = vunpack.c.l.b16 %v1127
        %v2463 = vunpack.c.h.b16 %v1127
        %v2464 = vunpack.c.l.b16 %v1128
        %v2465 = vunpack.c.h.b16 %v1128
        %v2466 = vunpack.c.l.b16 %v1129
        %v2467 = vunpack.c.h.b16 %v1129
        %v2468 = vunpack.c.l.b16 %v1130
        %v2469 = vunpack.c.h.b16 %v1130
        %v2470 = vunpack.c.l.b16 %v1131
        %v2471 = vunpack.c.h.b16 %v1131
        %v2472 = vunpack.c.l.b16 %v1132
        %v2473 = vunpack.c.h.b16 %v1132
        %v2474 = vunpack.c.l.b16 %v1133
        %v2475 = vunpack.c.h.b16 %v1133
        %v2476 = vunpack.c.l.b16 %v1134
        %v2477 = vunpack.c.h.b16 %v1134
        %v2478 = vunpack.c.l.b16 %v1135
        %v2479 = vunpack.c.h.b16 %v1135
        %v2480 = vunpack.c.l.b16 %v1136
        %v2481 = vunpack.c.h.b16 %v1136
        %v2482 = vunpack.c.l.b16 %v1137
        %v2483 = vunpack.c.h.b16 %v1137
        %v2484 = vunpack.c.l.b16 %v1138
        %v2485 = vunpack.c.h.b16 %v1138
        %v2486 = vunpack.c.l.b16 %v1139
        %v2487 = vunpack.c.h.b16 %v1139
        %v2488 = vunpack.c.l.b16 %v1140
        %v2489 = vunpack.c.h.b16 %v1140
        %v2490 = vunpack.c.l.b16 %v1141
        %v2491 = vunpack.c.h.b16 %v1141
        %v2492 = vunpack.c.l.b16 %v1142
        %v2493 = vunpack.c.h.b16 %v1142
        %v2494 = vunpack.c.l.b16 %v1143
        %v2495 = vunpack.c.h.b16 %v1143
        %v2496 = vunpack.c.l.b16 %v1144
        %v2497 = vunpack.c.h.b16 %v1144
        %v2498 = vunpack.c.l.b16 %v1145
        %v2499 = vunpack.c.h.b16 %v1145
        %v2500 = vunpack.c.l.b16 %v1146
        %v2501 = vunpack.c.h.b16 %v1146
        %v2502 = vunpack.c.l.b16 %v1147
        %v2503 = vunpack.c.h.b16 %v1147
        %v2504 = vunpack.c.l.b16 %v1148
        %v2505 = vunpack.c.h.b16 %v1148
        %v2506 = vunpack.c.l.b16 %v1149
        %v2507 = vunpack.c.h.b16 %v1149
        %v2508 = vunpack.c.l.b16 %v1150
        %v2509 = vunpack.c.h.b16 %v1150
        %v2510 = vunpack.c.l.b16 %v1151
        %v2511 = vunpack.c.h.b16 %v1151
        %v2512 = vunpack.c.l.b16 %v1152
        %v2513 = vunpack.c.h.b16 %v1152
        %v2514 = vunpack.c.l.b16 %v1153
        %v2515 = vunpack.c.h.b16 %v1153
        %v2516 = vunpack.c.l.b16 %v1154
        %v2517 = vunpack.c.h.b16 %v1154
        %v2518 = vunpack.c.l.b16 %v1155
        %v2519 = vunpack.c.h.b16 %v1155
        %v2520 = vunpack.c.l.b16 %v1156
        %v2521 = vunpack.c.h.b16 %v1156
        %v2522 = vunpack.c.l.b16 %v1157
        %v2523 = vunpack.c.h.b16 %v1157
        %v2524 = vunpack.c.l.b16 %v1158
        %v2525 = vunpack.c.h.b16 %v1158
        %v2526 = vunpack.c.l.b16 %v1159
        %v2527 = vunpack.c.h.b16 %v1159
        %v2528 = vunpack.c.l.b16 %v1160
        %v2529 = vunpack.c.h.b16 %v1160
        %v2530 = vunpack.c.l.b16 %v1161
        %v2531 = vunpack.c.h.b16 %v1161
        %v2532 = vunpack.c.l.b16 %v1162
        %v2533 = vunpack.c.h.b16 %v1162
        %v2534 = vunpack.c.l.b16 %v1163
        %v2535 = vunpack.c.h.b16 %v1163
        %v2536 = vunpack.c.l.b16 %v1164
        %v2537 = vunpack.c.h.b16 %v1164
        %v2538 = vunpack.c.l.b16 %v1165
        %v2539 = vunpack.c.h.b16 %v1165
        %v2540 = vunpack.c.l.b16 %v1166
        %v2541 = vunpack.c.h.b16 %v1166
        %v2542 = vunpack.c.l.b16 %v1167
        %v2543 = vunpack.c.h.b16 %v1167
        %v2544 = vunpack.c.l.b16 %v1168
        %v2545 = vunpack.c.h.b16 %v1168
        %v2546 = vunpack.c.l.b16 %v1169
        %v2547 = vunpack.c.h.b16 %v1169
        %v2548 = vunpack.c.l.b16 %v1170
        %v2549 = vunpack.c.h.b16 %v1170
        %v2550 = vunpack.c.l.b16 %v1171
        %v2551 = vunpack.c.h.b16 %v1171
        %v2552 = vunpack.c.l.b16 %v1172
        %v2553 = vunpack.c.h.b16 %v1172
        %v2554 = vunpack.c.l.b16 %v1173
        %v2555 = vunpack.c.h.b16 %v1173
        %v2556 = vunpack.c.l.b16 %v1174
        %v2557 = vunpack.c.h.b16 %v1174
        %v2558 = vunpack.c.l.b16 %v1175
        %v2559 = vunpack.c.h.b16 %v1175
        %v2560 = vunpack.c.l.b16 %v1176
        %v2561 = vunpack.c.h.b16 %v1176
        %v2562 = vunpack.c.l.b16 %v1177
        %v2563 = vunpack.c.h.b16 %v1177
        %v2564 = vunpack.c.l.b16 %v1178
        %v2565 = vunpack.c.h.b16 %v1178
        %v2566 = vunpack.c.l.b16 %v1179
        %v2567 = vunpack.c.h.b16 %v1179
        %v2568 = vunpack.c.l.b16 %v1180
        %v2569 = vunpack.c.h.b16 %v1180
        %v2570 = vunpack.c.l.b16 %v1181
        %v2571 = vunpack.c.h.b16 %v1181
        %v2572 = vunpack.c.l.b16 %v1182
        %v2573 = vunpack.c.h.b16 %v1182
        %v2574 = vunpack.c.l.b16 %v1183
        %v2575 = vunpack.c.h.b16 %v1183
        %v2576 = vunpack.c.l.b16 %v1184
        %v2577 = vunpack.c.h.b16 %v1184
        %v2578 = vunpack.c.l.b16 %v1185
        %v2579 = vunpack.c.h.b16 %v1185
        %v2580 = vunpack.c.l.b16 %v1186
        %v2581 = vunpack.c.h.b16 %v1186
        %v2582 = vunpack.c.l.b16 %v1187
        %v2583 = vunpack.c.h.b16 %v1187
        %v2584 = vunpack.c.l.b16 %v1188
        %v2585 = vunpack.c.h.b16 %v1188
        %v2586 = vunpack.c.l.b16 %v1189
        %v2587 = vunpack.c.h.b16 %v1189
        %v2588 = vunpack.c.l.b16 %v1190
        %v2589 = vunpack.c.h.b16 %v1190
        %v2590 = vunpack.c.l.b16 %v1191
        %v2591 = vunpack.c.h.b16 %v1191
        %v2592 = vunpack.c.l.b16 %v1192
        %v2593 = vunpack.c.h.b16 %v1192
        %v2594 = vunpack.c.l.b16 %v1193
        %v2595 = vunpack.c.h.b16 %v1193
        %v2596 = vunpack.c.l.b16 %v1194
        %v2597 = vunpack.c.h.b16 %v1194
        %v2598 = vunpack.c.l.b16 %v1195
        %v2599 = vunpack.c.h.b16 %v1195
        %v2600 = vunpack.c.l.b16 %v1196
        %v2601 = vunpack.c.h.b16 %v1196
        %v2602 = vunpack.c.l.b16 %v1197
        %v2603 = vunpack.c.h.b16 %v1197
        %v2604 = vunpack.c.l.b16 %v1198
        %v2605 = vunpack.c.h.b16 %v1198
        %v2606 = vunpack.c.l.b16 %v1199
        %v2607 = vunpack.c.h.b16 %v1199
        %v2608 = vunpack.c.l.b16 %v1200
        %v2609 = vunpack.c.h.b16 %v1200
        %v2610 = vunpack.c.l.b16 %v1201
        %v2611 = vunpack.c.h.b16 %v1201
        %v2612 = vunpack.c.l.b16 %v1202
        %v2613 = vunpack.c.h.b16 %v1202
        %v2614 = vunpack.c.l.b16 %v1203
        %v2615 = vunpack.c.h.b16 %v1203
        %v2616 = vunpack.c.l.b16 %v1204
        %v2617 = vunpack.c.h.b16 %v1204
        %v2618 = vunpack.c.l.b16 %v1205
        %v2619 = vunpack.c.h.b16 %v1205
        %v2620 = vunpack.c.l.b16 %v1206
        %v2621 = vunpack.c.h.b16 %v1206
        %v2622 = vunpack.c.l.b16 %v1207
        %v2623 = vunpack.c.h.b16 %v1207
        %v2624 = vunpack.c.l.b16 %v1208
        %v2625 = vunpack.c.h.b16 %v1208
        %v2626 = vunpack.c.l.b16 %v1209
        %v2627 = vunpack.c.h.b16 %v1209
        %v2628 = vunpack.c.l.b16 %v1210
        %v2629 = vunpack.c.h.b16 %v1210
        %v2630 = vunpack.c.l.b16 %v1211
        %v2631 = vunpack.c.h.b16 %v1211
        %v2632 = vunpack.c.l.b16 %v1212
        %v2633 = vunpack.c.h.b16 %v1212
        %v2634 = vunpack.c.l.b16 %v1213
        %v2635 = vunpack.c.h.b16 %v1213
        %v2636 = vunpack.c.l.b16 %v1214
        %v2637 = vunpack.c.h.b16 %v1214
        %v2638 = vunpack.c.l.b16 %v1215
        %v2639 = vunpack.c.h.b16 %v1215
        %v2640 = vunpack.c.l.b16 %v1216
        %v2641 = vunpack.c.h.b16 %v1216
        %v2642 = vunpack.c.l.b16 %v1217
        %v2643 = vunpack.c.h.b16 %v1217
        %v2644 = vunpack.c.l.b16 %v1218
        %v2645 = vunpack.c.h.b16 %v1218
        %v2646 = vunpack.c.l.b16 %v1219
        %v2647 = vunpack.c.h.b16 %v1219
        %v2648 = vunpack.c.l.b16 %v1220
        %v2649 = vunpack.c.h.b16 %v1220
        %v2650 = vunpack.c.l.b16 %v1221
        %v2651 = vunpack.c.h.b16 %v1221
        %v2652 = vunpack.c.l.b16 %v1222
        %v2653 = vunpack.c.h.b16 %v1222
        %v2654 = vunpack.c.l.b16 %v1223
        %v2655 = vunpack.c.h.b16 %v1223
        %v2656 = vunpack.c.l.b16 %v1224
        %v2657 = vunpack.c.h.b16 %v1224
        %v2658 = vunpack.c.l.b16 %v1225
        %v2659 = vunpack.c.h.b16 %v1225
        %v2660 = vunpack.c.l.b16 %v1226
        %v2661 = vunpack.c.h.b16 %v1226
        %v2662 = vunpack.c.l.b16 %v1227
        %v2663 = vunpack.c.h.b16 %v1227
        %v2664 = vunpack.c.l.b16 %v1228
        %v2665 = vunpack.c.h.b16 %v1228
        %v2666 = vunpack.c.l.b16 %v1229
        %v2667 = vunpack.c.h.b16 %v1229
        %v2668 = vunpack.c.l.b16 %v1230
        %v2669 = vunpack.c.h.b16 %v1230
        %v2670 = vunpack.c.l.b16 %v1231
        %v2671 = vunpack.c.h.b16 %v1231
        %v2672 = vunpack.c.l.b16 %v1232
        %v2673 = vunpack.c.h.b16 %v1232
        %v2674 = vunpack.c.l.b16 %v1233
        %v2675 = vunpack.c.h.b16 %v1233
        %v2676 = vunpack.c.l.b16 %v1234
        %v2677 = vunpack.c.h.b16 %v1234
        %v2678 = vunpack.c.l.b16 %v1235
        %v2679 = vunpack.c.h.b16 %v1235
        %v2680 = vunpack.c.l.b16 %v1236
        %v2681 = vunpack.c.h.b16 %v1236
        %v2682 = vunpack.c.l.b16 %v1237
        %v2683 = vunpack.c.h.b16 %v1237
        %v2684 = vunpack.c.l.b16 %v1238
        %v2685 = vunpack.c.h.b16 %v1238
        %v2686 = vunpack.c.l.b16 %v1239
        %v2687 = vunpack.c.h.b16 %v1239
        %v2688 = vunpack.c.l.b16 %v1240
        %v2689 = vunpack.c.h.b16 %v1240
        %v2690 = vunpack.c.l.b16 %v1241
        %v2691 = vunpack.c.h.b16 %v1241
        %v2692 = vunpack.c.l.b16 %v1242
        %v2693 = vunpack.c.h.b16 %v1242
        %v2694 = vunpack.c.l.b16 %v1243
        %v2695 = vunpack.c.h.b16 %v1243
        %v2696 = vunpack.c.l.b16 %v1244
        %v2697 = vunpack.c.h.b16 %v1244
        %v2698 = vunpack.c.l.b16 %v1245
        %v2699 = vunpack.c.h.b16 %v1245
        %v2700 = vunpack.c.l.b16 %v1246
        %v2701 = vunpack.c.h.b16 %v1246
        %v2702 = vunpack.c.l.b16 %v1247
        %v2703 = vunpack.c.h.b16 %v1247
        %v2704 = vunpack.c.l.b16 %v1248
        %v2705 = vunpack.c.h.b16 %v1248
        %v2706 = vunpack.c.l.b16 %v1249
        %v2707 = vunpack.c.h.b16 %v1249
        %v2708 = vunpack.c.l.b16 %v1250
        %v2709 = vunpack.c.h.b16 %v1250
        %v2710 = vunpack.c.l.b16 %v1251
        %v2711 = vunpack.c.h.b16 %v1251
        %v2712 = vunpack.c.l.b16 %v1252
        %v2713 = vunpack.c.h.b16 %v1252
        %v2714 = vunpack.c.l.b16 %v1253
        %v2715 = vunpack.c.h.b16 %v1253
        %v2716 = vunpack.c.l.b16 %v1254
        %v2717 = vunpack.c.h.b16 %v1254
        %v2718 = vunpack.c.l.b16 %v1255
        %v2719 = vunpack.c.h.b16 %v1255
        %v2720 = vunpack.c.l.b16 %v1256
        %v2721 = vunpack.c.h.b16 %v1256
        %v2722 = vunpack.c.l.b16 %v1257
        %v2723 = vunpack.c.h.b16 %v1257
        %v2724 = vunpack.c.l.b16 %v1258
        %v2725 = vunpack.c.h.b16 %v1258
        %v2726 = vunpack.c.l.b16 %v1259
        %v2727 = vunpack.c.h.b16 %v1259
        %v2728 = vunpack.c.l.b16 %v1260
        %v2729 = vunpack.c.h.b16 %v1260
        %v2730 = vunpack.c.l.b16 %v1261
        %v2731 = vunpack.c.h.b16 %v1261
        %v2732 = vunpack.c.l.b16 %v1262
        %v2733 = vunpack.c.h.b16 %v1262
        %v2734 = vunpack.c.l.b16 %v1263
        %v2735 = vunpack.c.h.b16 %v1263
        %v2736 = vunpack.c.l.b16 %v1264
        %v2737 = vunpack.c.h.b16 %v1264
        %v2738 = vunpack.c.l.b16 %v1265
        %v2739 = vunpack.c.h.b16 %v1265
        %v2740 = vunpack.c.l.b16 %v1266
        %v2741 = vunpack.c.h.b16 %v1266
        %v2742 = vunpack.c.l.b16 %v1267
        %v2743 = vunpack.c.h.b16 %v1267
        %v2744 = vunpack.c.l.b16 %v1268
        %v2745 = vunpack.c.h.b16 %v1268
        %v2746 = vunpack.c.l.b16 %v1269
        %v2747 = vunpack.c.h.b16 %v1269
        %v2748 = vunpack.c.l.b16 %v1270
        %v2749 = vunpack.c.h.b16 %v1270
        %v2750 = vunpack.c.l.b16 %v1271
        %v2751 = vunpack.c.h.b16 %v1271
        %v2752 = vunpack.c.l.b16 %v1272
        %v2753 = vunpack.c.h.b16 %v1272
        %v2754 = vunpack.c.l.b16 %v1273
        %v2755 = vunpack.c.h.b16 %v1273
        %v2756 = vunpack.c.l.b16 %v1274
        %v2757 = vunpack.c.h.b16 %v1274
        %v2758 = vunpack.c.l.b16 %v1275
        %v2759 = vunpack.c.h.b16 %v1275
        %v2760 = vunpack.c.l.b16 %v1276
        %v2761 = vunpack.c.h.b16 %v1276
        %v2762 = vunpack.c.l.b16 %v1277
        %v2763 = vunpack.c.h.b16 %v1277
        %v2764 = vunpack.c.l.b16 %v1278
        %v2765 = vunpack.c.h.b16 %v1278
        %v2766 = vunpack.c.l.b16 %v1279
        %v2767 = vunpack.c.h.b16 %v1279
        %v2768 = vunpack.c.l.b16 %v1280
        %v2769 = vunpack.c.h.b16 %v1280
        %v2770 = vunpack.c.l.b16 %v1281
        %v2771 = vunpack.c.h.b16 %v1281
        %v2772 = vunpack.c.l.b16 %v1282
        %v2773 = vunpack.c.h.b16 %v1282
        %v2774 = vunpack.c.l.b16 %v1283
        %v2775 = vunpack.c.h.b16 %v1283
        %v2776 = vunpack.c.l.b16 %v1284
        %v2777 = vunpack.c.h.b16 %v1284
        %v2778 = vunpack.c.l.b16 %v1285
        %v2779 = vunpack.c.h.b16 %v1285
        %v2780 = vunpack.c.l.b16 %v1286
        %v2781 = vunpack.c.h.b16 %v1286
        %v2782 = vunpack.c.l.b16 %v1287
        %v2783 = vunpack.c.h.b16 %v1287
        %v2784 = vunpack.c.l.b16 %v1288
        %v2785 = vunpack.c.h.b16 %v1288
        %v2786 = vunpack.c.l.b16 %v1289
        %v2787 = vunpack.c.h.b16 %v1289
        %v2788 = vunpack.c.l.b16 %v1290
        %v2789 = vunpack.c.h.b16 %v1290
        %v2790 = vunpack.c.l.b16 %v1291
        %v2791 = vunpack.c.h.b16 %v1291
        %v2792 = vunpack.c.l.b16 %v1292
        %v2793 = vunpack.c.h.b16 %v1292
        %v2794 = vunpack.c.l.b16 %v1293
        %v2795 = vunpack.c.h.b16 %v1293
        %v2796 = vunpack.c.l.b16 %v1294
        %v2797 = vunpack.c.h.b16 %v1294
        %v2798 = vunpack.c.l.b16 %v1295
        %v2799 = vunpack.c.h.b16 %v1295
        %v2800 = vunpack.c.l.b16 %v1296
        %v2801 = vunpack.c.h.b16 %v1296
        %v2802 = vunpack.c.l.b16 %v1297
        %v2803 = vunpack.c.h.b16 %v1297
        %v2804 = vunpack.c.l.b16 %v1298
        %v2805 = vunpack.c.h.b16 %v1298
        %v2806 = vunpack.c.l.b16 %v1299
        %v2807 = vunpack.c.h.b16 %v1299
        %v2808 = vunpack.c.l.b16 %v1300
        %v2809 = vunpack.c.h.b16 %v1300
        %v2810 = vunpack.c.l.b16 %v1301
        %v2811 = vunpack.c.h.b16 %v1301
        %v2812 = vunpack.c.l.b16 %v1302
        %v2813 = vunpack.c.h.b16 %v1302
        %v2814 = vunpack.c.l.b16 %v1303
        %v2815 = vunpack.c.h.b16 %v1303
        %v2816 = vunpack.c.l.b16 %v1304
        %v2817 = vunpack.c.h.b16 %v1304
        %v2818 = vunpack.c.l.b16 %v1305
        %v2819 = vunpack.c.h.b16 %v1305
        %v2820 = vunpack.c.l.b16 %v1306
        %v2821 = vunpack.c.h.b16 %v1306
        %v2822 = vunpack.c.l.b16 %v1307
        %v2823 = vunpack.c.h.b16 %v1307
        %v2824 = vunpack.c.l.b16 %v1308
        %v2825 = vunpack.c.h.b16 %v1308
        %v2826 = vunpack.c.l.b16 %v1309
        %v2827 = vunpack.c.h.b16 %v1309
        %v2828 = vunpack.c.l.b16 %v1310
        %v2829 = vunpack.c.h.b16 %v1310
        %v2830 = vunpack.c.l.b16 %v1311
        %v2831 = vunpack.c.h.b16 %v1311
        %v2832 = vunpack.c.l.b16 %v1312
        %v2833 = vunpack.c.h.b16 %v1312
        %v2834 = vunpack.c.l.b16 %v1313
        %v2835 = vunpack.c.h.b16 %v1313
        %v2836 = vunpack.c.l.b16 %v1314
        %v2837 = vunpack.c.h.b16 %v1314
        %v2838 = vunpack.c.l.b16 %v1315
        %v2839 = vunpack.c.h.b16 %v1315
        %v2840 = vunpack.c.l.b16 %v1316
        %v2841 = vunpack.c.h.b16 %v1316
        %v2842 = vunpack.c.l.b16 %v1317
        %v2843 = vunpack.c.h.b16 %v1317
        %v2844 = vunpack.c.l.b16 %v1318
        %v2845 = vunpack.c.h.b16 %v1318
        %v2846 = vunpack.c.l.b16 %v1319
        %v2847 = vunpack.c.h.b16 %v1319
        %v2848 = vunpack.c.l.b16 %v1320
        %v2849 = vunpack.c.h.b16 %v1320
        %v2850 = vunpack.c.l.b16 %v1321
        %v2851 = vunpack.c.h.b16 %v1321
        %v2852 = vunpack.c.l.b16 %v1322
        %v2853 = vunpack.c.h.b16 %v1322
        %v2854 = vunpack.c.l.b16 %v1323
        %v2855 = vunpack.c.h.b16 %v1323
        %v2856 = vunpack.c.l.b16 %v1324
        %v2857 = vunpack.c.h.b16 %v1324
        %v2858 = vunpack.c.l.b16 %v1325
        %v2859 = vunpack.c.h.b16 %v1325
        %v2860 = vunpack.c.l.b16 %v1326
        %v2861 = vunpack.c.h.b16 %v1326
        %v2862 = vunpack.c.l.b16 %v1327
        %v2863 = vunpack.c.h.b16 %v1327
        %v2864 = vunpack.c.l.b16 %v1328
        %v2865 = vunpack.c.h.b16 %v1328
        %v2866 = vunpack.c.l.b16 %v1329
        %v2867 = vunpack.c.h.b16 %v1329
        %v2868 = vunpack.c.l.b16 %v1330
        %v2869 = vunpack.c.h.b16 %v1330
        %v2870 = vunpack.c.l.b16 %v1331
        %v2871 = vunpack.c.h.b16 %v1331
        %v2872 = vunpack.c.l.b16 %v1332
        %v2873 = vunpack.c.h.b16 %v1332
        %v2874 = vunpack.c.l.b16 %v1333
        %v2875 = vunpack.c.h.b16 %v1333
        %v2876 = vunpack.c.l.b16 %v1334
        %v2877 = vunpack.c.h.b16 %v1334
        %v2878 = vunpack.c.l.b16 %v1335
        %v2879 = vunpack.c.h.b16 %v1335
        %v2880 = vunpack.c.l.b16 %v1336
        %v2881 = vunpack.c.h.b16 %v1336
        %v2882 = vunpack.c.l.b16 %v1337
        %v2883 = vunpack.c.h.b16 %v1337
        %v2884 = vunpack.c.l.b16 %v1338
        %v2885 = vunpack.c.h.b16 %v1338
        %v2886 = vunpack.c.l.b16 %v1339
        %v2887 = vunpack.c.h.b16 %v1339
        %v2888 = vunpack.c.l.b16 %v1340
        %v2889 = vunpack.c.h.b16 %v1340
        %v2890 = vunpack.c.l.b16 %v1341
        %v2891 = vunpack.c.h.b16 %v1341
        %v2892 = vunpack.c.l.b16 %v1342
        %v2893 = vunpack.c.h.b16 %v1342
        %v2894 = vunpack.c.l.b16 %v1343
        %v2895 = vunpack.c.h.b16 %v1343
        %v2896 = vunpack.c.l.b16 %v1344
        %v2897 = vunpack.c.h.b16 %v1344
        %v2898 = vunpack.c.l.b16 %v1345
        %v2899 = vunpack.c.h.b16 %v1345
        %v2900 = vunpack.c.l.b16 %v1346
        %v2901 = vunpack.c.h.b16 %v1346
        %v2902 = vunpack.c.l.b16 %v1347
        %v2903 = vunpack.c.h.b16 %v1347
        %v2904 = vunpack.c.l.b16 %v1348
        %v2905 = vunpack.c.h.b16 %v1348
        %v2906 = vunpack.c.l.b16 %v1349
        %v2907 = vunpack.c.h.b16 %v1349
        %v2908 = vunpack.c.l.b16 %v1350
        %v2909 = vunpack.c.h.b16 %v1350
        %v2910 = vunpack.c.l.b16 %v1351
        %v2911 = vunpack.c.h.b16 %v1351
        %v2912 = vunpack.c.l.b16 %v1352
        %v2913 = vunpack.c.h.b16 %v1352
        %v2914 = vunpack.c.l.b16 %v1353
        %v2915 = vunpack.c.h.b16 %v1353
        %v2916 = vunpack.c.l.b16 %v1354
        %v2917 = vunpack.c.h.b16 %v1354
        %v2918 = vunpack.c.l.b16 %v1355
        %v2919 = vunpack.c.h.b16 %v1355
        %v2920 = vunpack.c.l.b16 %v1356
        %v2921 = vunpack.c.h.b16 %v1356
        %v2922 = vunpack.c.l.b16 %v1357
        %v2923 = vunpack.c.h.b16 %v1357
        %v2924 = vunpack.c.l.b16 %v1358
        %v2925 = vunpack.c.h.b16 %v1358
        %v2926 = vunpack.c.l.b16 %v1359
        %v2927 = vunpack.c.h.b16 %v1359
        %v2928 = vunpack.c.l.b16 %v1360
        %v2929 = vunpack.c.h.b16 %v1360
        %v2930 = vunpack.c.l.b16 %v1361
        %v2931 = vunpack.c.h.b16 %v1361
        %v2932 = vunpack.c.l.b16 %v1362
        %v2933 = vunpack.c.h.b16 %v1362
        %v2934 = vunpack.c.l.b16 %v1363
        %v2935 = vunpack.c.h.b16 %v1363
        %v2936 = vunpack.c.l.b16 %v1364
        %v2937 = vunpack.c.h.b16 %v1364
        %v2938 = vunpack.c.l.b16 %v1365
        %v2939 = vunpack.c.h.b16 %v1365
        %v2940 = vunpack.c.l.b16 %v1366
        %v2941 = vunpack.c.h.b16 %v1366
        %v2942 = vunpack.c.l.b16 %v1367
        %v2943 = vunpack.c.h.b16 %v1367
        %v2944 = vunpack.c.l.b16 %v1368
        %v2945 = vunpack.c.h.b16 %v1368
        %v2946 = vunpack.c.l.b16 %v1369
        %v2947 = vunpack.c.h.b16 %v1369
        %v2948 = vunpack.c.l.b16 %v1370
        %v2949 = vunpack.c.h.b16 %v1370
        %v2950 = vunpack.c.l.b16 %v1371
        %v2951 = vunpack.c.h.b16 %v1371
        %v2952 = vunpack.c.l.b16 %v1372
        %v2953 = vunpack.c.h.b16 %v1372
        %v2954 = vunpack.c.l.b16 %v1373
        %v2955 = vunpack.c.h.b16 %v1373
        %v2956 = vunpack.c.l.b16 %v1374
        %v2957 = vunpack.c.h.b16 %v1374
        %v2958 = vunpack.c.l.b16 %v1375
        %v2959 = vunpack.c.h.b16 %v1375
        %v2960 = vunpack.c.l.b16 %v1376
        %v2961 = vunpack.c.h.b16 %v1376
        %v2962 = vunpack.c.l.b16 %v1377
        %v2963 = vunpack.c.h.b16 %v1377
        %v2964 = vunpack.c.l.b16 %v1378
        %v2965 = vunpack.c.h.b16 %v1378
        %v2966 = vunpack.c.l.b16 %v1379
        %v2967 = vunpack.c.h.b16 %v1379
        %v2968 = vunpack.c.l.b16 %v1380
        %v2969 = vunpack.c.h.b16 %v1380
        %v2970 = vunpack.c.l.b16 %v1381
        %v2971 = vunpack.c.h.b16 %v1381
        %v2972 = vunpack.c.l.b16 %v1382
        %v2973 = vunpack.c.h.b16 %v1382
        %v2974 = vunpack.c.l.b16 %v1383
        %v2975 = vunpack.c.h.b16 %v1383
        %v2976 = vunpack.c.l.b16 %v1384
        %v2977 = vunpack.c.h.b16 %v1384
        %v2978 = vunpack.c.l.b16 %v1385
        %v2979 = vunpack.c.h.b16 %v1385
        %v2980 = vunpack.c.l.b16 %v1386
        %v2981 = vunpack.c.h.b16 %v1386
        %v2982 = vunpack.c.l.b16 %v1387
        %v2983 = vunpack.c.h.b16 %v1387
        %v2984 = vunpack.c.l.b16 %v1388
        %v2985 = vunpack.c.h.b16 %v1388
        %v2986 = vunpack.c.l.b16 %v1389
        %v2987 = vunpack.c.h.b16 %v1389
        %v2988 = vunpack.c.l.b16 %v1390
        %v2989 = vunpack.c.h.b16 %v1390
        %v2990 = vunpack.c.l.b16 %v1391
        %v2991 = vunpack.c.h.b16 %v1391
        %v2992 = vunpack.c.l.b16 %v1392
        %v2993 = vunpack.c.h.b16 %v1392
        %v2994 = vunpack.c.l.b16 %v1393
        %v2995 = vunpack.c.h.b16 %v1393
        %v2996 = vunpack.c.l.b16 %v1394
        %v2997 = vunpack.c.h.b16 %v1394
        %v2998 = vunpack.c.l.b16 %v1395
        %v2999 = vunpack.c.h.b16 %v1395
        %v3000 = vunpack.c.l.b16 %v1396
        %v3001 = vunpack.c.h.b16 %v1396
        %v3002 = vunpack.c.l.b16 %v1397
        %v3003 = vunpack.c.h.b16 %v1397
        %v3004 = vunpack.c.l.b16 %v1398
        %v3005 = vunpack.c.h.b16 %v1398
        %v3006 = vunpack.c.l.b16 %v1399
        %v3007 = vunpack.c.h.b16 %v1399
        %v3008 = vunpack.c.l.b16 %v1400
        %v3009 = vunpack.c.h.b16 %v1400
        %v3010 = vunpack.c.l.b16 %v1401
        %v3011 = vunpack.c.h.b16 %v1401
        %v3012 = vunpack.c.l.b16 %v1402
        %v3013 = vunpack.c.h.b16 %v1402
        %v3014 = vunpack.c.l.b16 %v1403
        %v3015 = vunpack.c.h.b16 %v1403
        %v3016 = vunpack.c.l.b16 %v1404
        %v3017 = vunpack.c.h.b16 %v1404
        %v3018 = vunpack.c.l.b16 %v1405
        %v3019 = vunpack.c.h.b16 %v1405
        %v3020 = vunpack.c.l.b16 %v1406
        %v3021 = vunpack.c.h.b16 %v1406
        %v3022 = vunpack.c.l.b16 %v1407
        %v3023 = vunpack.c.h.b16 %v1407
        %v3024 = vunpack.c.l.b16 %v1408
        %v3025 = vunpack.c.h.b16 %v1408
        %v3026 = vunpack.c.l.b16 %v1409
        %v3027 = vunpack.c.h.b16 %v1409
        %v3028 = vunpack.c.l.b16 %v1410
        %v3029 = vunpack.c.h.b16 %v1410
        %v3030 = vunpack.c.l.b16 %v1411
        %v3031 = vunpack.c.h.b16 %v1411
        %v3032 = vunpack.c.l.b16 %v1412
        %v3033 = vunpack.c.h.b16 %v1412
        %v3034 = vunpack.c.l.b16 %v1413
        %v3035 = vunpack.c.h.b16 %v1413
        %v3036 = vunpack.c.l.b16 %v1414
        %v3037 = vunpack.c.h.b16 %v1414
        %v3038 = vunpack.c.l.b16 %v1415
        %v3039 = vunpack.c.h.b16 %v1415
        %v3040 = vunpack.c.l.b16 %v1416
        %v3041 = vunpack.c.h.b16 %v1416
        %v3042 = vunpack.c.l.b16 %v1417
        %v3043 = vunpack.c.h.b16 %v1417
        %v3044 = vunpack.c.l.b16 %v1418
        %v3045 = vunpack.c.h.b16 %v1418
        %v3046 = vunpack.c.l.b16 %v1419
        %v3047 = vunpack.c.h.b16 %v1419
        %v3048 = vunpack.c.l.b16 %v1420
        %v3049 = vunpack.c.h.b16 %v1420
        %v3050 = vunpack.c.l.b16 %v1421
        %v3051 = vunpack.c.h.b16 %v1421
        %v3052 = vunpack.c.l.b16 %v1422
        %v3053 = vunpack.c.h.b16 %v1422
        %v3054 = vunpack.c.l.b16 %v1423
        %v3055 = vunpack.c.h.b16 %v1423
        %v3056 = vunpack.c.l.b16 %v1424
        %v3057 = vunpack.c.h.b16 %v1424
        %v3058 = vunpack.c.l.b16 %v1425
        %v3059 = vunpack.c.h.b16 %v1425
        %v3060 = vunpack.c.l.b16 %v1426
        %v3061 = vunpack.c.h.b16 %v1426
        %v3062 = vunpack.c.l.b16 %v1427
        %v3063 = vunpack.c.h.b16 %v1427
        %v3064 = vunpack.c.l.b16 %v1428
        %v3065 = vunpack.c.h.b16 %v1428
        %v3066 = vunpack.c.l.b16 %v1429
        %v3067 = vunpack.c.h.b16 %v1429
        %v3068 = vunpack.c.l.b16 %v1430
        %v3069 = vunpack.c.h.b16 %v1430
        %v3070 = vunpack.c.l.b16 %v1431
        %v3071 = vunpack.c.h.b16 %v1431
        %v3072 = vunpack.c.l.b16 %v1432
        %v3073 = vunpack.c.h.b16 %v1432
        %v3074 = vunpack.c.l.b16 %v1433
        %v3075 = vunpack.c.h.b16 %v1433
        %v3076 = vunpack.c.l.b16 %v1434
        %v3077 = vunpack.c.h.b16 %v1434
        %v3078 = vunpack.c.l.b16 %v1435
        %v3079 = vunpack.c.h.b16 %v1435
        %v3080 = vunpack.c.l.b16 %v1436
        %v3081 = vunpack.c.h.b16 %v1436
        %v3082 = vunpack.c.l.b16 %v1437
        %v3083 = vunpack.c.h.b16 %v1437
        %v3084 = vunpack.c.l.b16 %v1438
        %v3085 = vunpack.c.h.b16 %v1438
        %v3086 = vunpack.c.l.b16 %v1439
        %v3087 = vunpack.c.h.b16 %v1439
        %v3088 = vunpack.c.l.b16 %v1440
        %v3089 = vunpack.c.h.b16 %v1440
        %v3090 = vunpack.c.l.b16 %v1441
        %v3091 = vunpack.c.h.b16 %v1441
        %v3092 = vunpack.c.l.b16 %v1442
        %v3093 = vunpack.c.h.b16 %v1442
        %v3094 = vunpack.c.l.b16 %v1443
        %v3095 = vunpack.c.h.b16 %v1443
        %v3096 = vunpack.c.l.b16 %v1444
        %v3097 = vunpack.c.h.b16 %v1444
        %v3098 = vunpack.c.l.b16 %v1445
        %v3099 = vunpack.c.h.b16 %v1445
        %v3100 = vunpack.c.l.b16 %v1446
        %v3101 = vunpack.c.h.b16 %v1446
        %v3102 = vunpack.c.l.b16 %v1447
        %v3103 = vunpack.c.h.b16 %v1447
        %v3104 = vunpack.c.l.b16 %v1448
        %v3105 = vunpack.c.h.b16 %v1448
        %v3106 = vunpack.c.l.b16 %v1449
        %v3107 = vunpack.c.h.b16 %v1449
        %v3108 = vunpack.c.l.b16 %v1450
        %v3109 = vunpack.c.h.b16 %v1450
        %v3110 = vunpack.c.l.b16 %v1451
        %v3111 = vunpack.c.h.b16 %v1451
        %v3112 = vunpack.c.l.b16 %v1452
        %v3113 = vunpack.c.h.b16 %v1452
        %v3114 = vunpack.c.l.b16 %v1453
        %v3115 = vunpack.c.h.b16 %v1453
        %v3116 = vunpack.c.l.b16 %v1454
        %v3117 = vunpack.c.h.b16 %v1454
        %v3118 = vunpack.c.l.b16 %v1455
        %v3119 = vunpack.c.h.b16 %v1455
        %v3120 = vunpack.c.l.b16 %v1456
        %v3121 = vunpack.c.h.b16 %v1456
        %v3122 = vunpack.c.l.b16 %v1457
        %v3123 = vunpack.c.h.b16 %v1457
        %v3124 = vunpack.c.l.b16 %v1458
        %v3125 = vunpack.c.h.b16 %v1458
        %v3126 = vunpack.c.l.b16 %v1459
        %v3127 = vunpack.c.h.b16 %v1459
        %v3128 = vunpack.c.l.b16 %v1460
        %v3129 = vunpack.c.h.b16 %v1460
        %v3130 = vunpack.c.l.b16 %v1461
        %v3131 = vunpack.c.h.b16 %v1461
        %v3132 = vunpack.c.l.b16 %v1462
        %v3133 = vunpack.c.h.b16 %v1462
        %v3134 = vunpack.c.l.b16 %v1463
        %v3135 = vunpack.c.h.b16 %v1463
        %v3136 = vunpack.c.l.b16 %v1464
        %v3137 = vunpack.c.h.b16 %v1464
        %v3138 = vunpack.c.l.b16 %v1465
        %v3139 = vunpack.c.h.b16 %v1465
        %v3140 = vunpack.c.l.b16 %v1466
        %v3141 = vunpack.c.h.b16 %v1466
        %v3142 = vunpack.c.l.b16 %v1467
        %v3143 = vunpack.c.h.b16 %v1467
        %v3144 = vunpack.c.l.b16 %v1468
        %v3145 = vunpack.c.h.b16 %v1468
        %v3146 = vunpack.c.l.b16 %v1469
        %v3147 = vunpack.c.h.b16 %v1469
        %v3148 = vunpack.c.l.b16 %v1470
        %v3149 = vunpack.c.h.b16 %v1470
        %v3150 = vunpack.c.l.b16 %v1471
        %v3151 = vunpack.c.h.b16 %v1471
        %v3152 = vunpack.c.l.b16 %v1472
        %v3153 = vunpack.c.h.b16 %v1472
        %v3154 = vpack.c.b16 %v2138, %v2130
        %v3155 = vpack.c.b16 %v2139, %v2131
        %v3156 = vpack.c.b16 %v2140, %v2132
        %v3157 = vpack.c.b16 %v2141, %v2133
        %v3158 = vpack.c.b16 %v2142, %v2134
        %v3159 = vpack.c.b16 %v2143, %v2135
        %v3160 = vpack.c.b16 %v2144, %v2136
        %v3161 = vpack.c.b16 %v2145, %v2137
        %v3162 = vpack.c.b16 %v2154, %v2146
        %v3163 = vpack.c.b16 %v2155, %v2147
        %v3164 = vpack.c.b16 %v2156, %v2148
        %v3165 = vpack.c.b16 %v2157, %v2149
        %v3166 = vpack.c.b16 %v2158, %v2150
        %v3167 = vpack.c.b16 %v2159, %v2151
        %v3168 = vpack.c.b16 %v2160, %v2152
        %v3169 = vpack.c.b16 %v2161, %v2153
        %v3170 = vpack.c.b16 %v2170, %v2162
        %v3171 = vpack.c.b16 %v2171, %v2163
        %v3172 = vpack.c.b16 %v2172, %v2164
        %v3173 = vpack.c.b16 %v2173, %v2165
        %v3174 = vpack.c.b16 %v2174, %v2166
        %v3175 = vpack.c.b16 %v2175, %v2167
        %v3176 = vpack.c.b16 %v2176, %v2168
        %v3177 = vpack.c.b16 %v2177, %v2169
        %v3178 = vpack.c.b16 %v2186, %v2178
        %v3179 = vpack.c.b16 %v2187, %v2179
        %v3180 = vpack.c.b16 %v2188, %v2180
        %v3181 = vpack.c.b16 %v2189, %v2181
        %v3182 = vpack.c.b16 %v2190, %v2182
        %v3183 = vpack.c.b16 %v2191, %v2183
        %v3184 = vpack.c.b16 %v2192, %v2184
        %v3185 = vpack.c.b16 %v2193, %v2185
        %v3186 = vpack.c.b16 %v2202, %v2194
        %v3187 = vpack.c.b16 %v2203, %v2195
        %v3188 = vpack.c.b16 %v2204, %v2196
        %v3189 = vpack.c.b16 %v2205, %v2197
        %v3190 = vpack.c.b16 %v2206, %v2198
        %v3191 = vpack.c.b16 %v2207, %v2199
        %v3192 = vpack.c.b16 %v2208, %v2200
        %v3193 = vpack.c.b16 %v2209, %v2201
        %v3194 = vpack.c.b16 %v2218, %v2210
        %v3195 = vpack.c.b16 %v2219, %v2211
        %v3196 = vpack.c.b16 %v2220, %v2212
        %v3197 = vpack.c.b16 %v2221, %v2213
        %v3198 = vpack.c.b16 %v2222, %v2214
        %v3199 = vpack.c.b16 %v2223, %v2215
        %v3200 = vpack.c.b16 %v2224, %v2216
        %v3201 = vpack.c.b16 %v2225, %v2217
        %v3202 = vpack.c.b16 %v2234, %v2226
        %v3203 = vpack.c.b16 %v2235, %v2227
        %v3204 = vpack.c.b16 %v2236, %v2228
        %v3205 = vpack.c.b16 %v2237, %v2229
        %v3206 = vpack.c.b16 %v2238, %v2230
        %v3207 = vpack.c.b16 %v2239, %v2231
        %v3208 = vpack.c.b16 %v2240, %v2232
        %v3209 = vpack.c.b16 %v2241, %v2233
        %v3210 = vpack.c.b16 %v2250, %v2242
        %v3211 = vpack.c.b16 %v2251, %v2243
        %v3212 = vpack.c.b16 %v2252, %v2244
        %v3213 = vpack.c.b16 %v2253, %v2245
        %v3214 = vpack.c.b16 %v2254, %v2246
        %v3215 = vpack.c.b16 %v2255, %v2247
        %v3216 = vpack.c.b16 %v2256, %v2248
        %v3217 = vpack.c.b16 %v2257, %v2249
        %v3218 = vpack.c.b16 %v2266, %v2258
        %v3219 = vpack.c.b16 %v2267, %v2259
        %v3220 = vpack.c.b16 %v2268, %v2260
        %v3221 = vpack.c.b16 %v2269, %v2261
        %v3222 = vpack.c.b16 %v2270, %v2262
        %v3223 = vpack.c.b16 %v2271, %v2263
        %v3224 = vpack.c.b16 %v2272, %v2264
        %v3225 = vpack.c.b16 %v2273, %v2265
        %v3226 = vpack.c.b16 %v2282, %v2274
        %v3227 = vpack.c.b16 %v2283, %v2275
        %v3228 = vpack.c.b16 %v2284, %v2276
        %v3229 = vpack.c.b16 %v2285, %v2277
        %v3230 = vpack.c.b16 %v2286, %v2278
        %v3231 = vpack.c.b16 %v2287, %v2279
        %v3232 = vpack.c.b16 %v2288, %v2280
        %v3233 = vpack.c.b16 %v2289, %v2281
        %v3234 = vpack.c.b16 %v2298, %v2290
        %v3235 = vpack.c.b16 %v2299, %v2291
        %v3236 = vpack.c.b16 %v2300, %v2292
        %v3237 = vpack.c.b16 %v2301, %v2293
        %v3238 = vpack.c.b16 %v2302, %v2294
        %v3239 = vpack.c.b16 %v2303, %v2295
        %v3240 = vpack.c.b16 %v2304, %v2296
        %v3241 = vpack.c.b16 %v2305, %v2297
        %v3242 = vpack.c.b16 %v2314, %v2306
        %v3243 = vpack.c.b16 %v2315, %v2307
        %v3244 = vpack.c.b16 %v2316, %v2308
        %v3245 = vpack.c.b16 %v2317, %v2309
        %v3246 = vpack.c.b16 %v2318, %v2310
        %v3247 = vpack.c.b16 %v2319, %v2311
        %v3248 = vpack.c.b16 %v2320, %v2312
        %v3249 = vpack.c.b16 %v2321, %v2313
        %v3250 = vpack.c.b16 %v2330, %v2322
        %v3251 = vpack.c.b16 %v2331, %v2323
        %v3252 = vpack.c.b16 %v2332, %v2324
        %v3253 = vpack.c.b16 %v2333, %v2325
        %v3254 = vpack.c.b16 %v2334, %v2326
        %v3255 = vpack.c.b16 %v2335, %v2327
        %v3256 = vpack.c.b16 %v2336, %v2328
        %v3257 = vpack.c.b16 %v2337, %v2329
        %v3258 = vpack.c.b16 %v2346, %v2338
        %v3259 = vpack.c.b16 %v2347, %v2339
        %v3260 = vpack.c.b16 %v2348, %v2340
        %v3261 = vpack.c.b16 %v2349, %v2341
        %v3262 = vpack.c.b16 %v2350, %v2342
        %v3263 = vpack.c.b16 %v2351, %v2343
        %v3264 = vpack.c.b16 %v2352, %v2344
        %v3265 = vpack.c.b16 %v2353, %v2345
        %v3266 = vpack.c.b16 %v2362, %v2354
        %v3267 = vpack.c.b16 %v2363, %v2355
        %v3268 = vpack.c.b16 %v2364, %v2356
        %v3269 = vpack.c.b16 %v2365, %v2357
        %v3270 = vpack.c.b16 %v2366, %v2358
        %v3271 = vpack.c.b16 %v2367, %v2359
        %v3272 = vpack.c.b16 %v2368, %v2360
        %v3273 = vpack.c.b16 %v2369, %v2361
        %v3274 = vpack.c.b16 %v2378, %v2370
        %v3275 = vpack.c.b16 %v2379, %v2371
        %v3276 = vpack.c.b16 %v2380, %v2372
        %v3277 = vpack.c.b16 %v2381, %v2373
        %v3278 = vpack.c.b16 %v2382, %v2374
        %v3279 = vpack.c.b16 %v2383, %v2375
        %v3280 = vpack.c.b16 %v2384, %v2376
        %v3281 = vpack.c.b16 %v2385, %v2377
        %v3282 = vpack.c.b16 %v2394, %v2386
        %v3283 = vpack.c.b16 %v2395, %v2387
        %v3284 = vpack.c.b16 %v2396, %v2388
        %v3285 = vpack.c.b16 %v2397, %v2389
        %v3286 = vpack.c.b16 %v2398, %v2390
        %v3287 = vpack.c.b16 %v2399, %v2391
        %v3288 = vpack.c.b16 %v2400, %v2392
        %v3289 = vpack.c.b16 %v2401, %v2393
        %v3290 = vpack.c.b16 %v2410, %v2402
        %v3291 = vpack.c.b16 %v2411, %v2403
        %v3292 = vpack.c.b16 %v2412, %v2404
        %v3293 = vpack.c.b16 %v2413, %v2405
        %v3294 = vpack.c.b16 %v2414, %v2406
        %v3295 = vpack.c.b16 %v2415, %v2407
        %v3296 = vpack.c.b16 %v2416, %v2408
        %v3297 = vpack.c.b16 %v2417, %v2409
        %v3298 = vpack.c.b16 %v2426, %v2418
        %v3299 = vpack.c.b16 %v2427, %v2419
        %v3300 = vpack.c.b16 %v2428, %v2420
        %v3301 = vpack.c.b16 %v2429, %v2421
        %v3302 = vpack.c.b16 %v2430, %v2422
        %v3303 = vpack.c.b16 %v2431, %v2423
        %v3304 = vpack.c.b16 %v2432, %v2424
        %v3305 = vpack.c.b16 %v2433, %v2425
        %v3306 = vpack.c.b16 %v2442, %v2434
        %v3307 = vpack.c.b16 %v2443, %v2435
        %v3308 = vpack.c.b16 %v2444, %v2436
        %v3309 = vpack.c.b16 %v2445, %v2437
        %v3310 = vpack.c.b16 %v2446, %v2438
        %v3311 = vpack.c.b16 %v2447, %v2439
        %v3312 = vpack.c.b16 %v2448, %v2440
        %v3313 = vpack.c.b16 %v2449, %v2441
        %v3314 = vpack.c.b16 %v2458, %v2450
        %v3315 = vpack.c.b16 %v2459, %v2451
        %v3316 = vpack.c.b16 %v2460, %v2452
        %v3317 = vpack.c.b16 %v2461, %v2453
        %v3318 = vpack.c.b16 %v2462, %v2454
        %v3319 = vpack.c.b16 %v2463, %v2455
        %v3320 = vpack.c.b16 %v2464, %v2456
        %v3321 = vpack.c.b16 %v2465, %v2457
        %v3322 = vpack.c.b16 %v2474, %v2466
        %v3323 = vpack.c.b16 %v2475, %v2467
        %v3324 = vpack.c.b16 %v2476, %v2468
        %v3325 = vpack.c.b16 %v2477, %v2469
        %v3326 = vpack.c.b16 %v2478, %v2470
        %v3327 = vpack.c.b16 %v2479, %v2471
        %v3328 = vpack.c.b16 %v2480, %v2472
        %v3329 = vpack.c.b16 %v2481, %v2473
        %v3330 = vpack.c.b16 %v2490, %v2482
        %v3331 = vpack.c.b16 %v2491, %v2483
        %v3332 = vpack.c.b16 %v2492, %v2484
        %v3333 = vpack.c.b16 %v2493, %v2485
        %v3334 = vpack.c.b16 %v2494, %v2486
        %v3335 = vpack.c.b16 %v2495, %v2487
        %v3336 = vpack.c.b16 %v2496, %v2488
        %v3337 = vpack.c.b16 %v2497, %v2489
        %v3338 = vpack.c.b16 %v2506, %v2498
        %v3339 = vpack.c.b16 %v2507, %v2499
        %v3340 = vpack.c.b16 %v2508, %v2500
        %v3341 = vpack.c.b16 %v2509, %v2501
        %v3342 = vpack.c.b16 %v2510, %v2502
        %v3343 = vpack.c.b16 %v2511, %v2503
        %v3344 = vpack.c.b16 %v2512, %v2504
        %v3345 = vpack.c.b16 %v2513, %v2505
        %v3346 = vpack.c.b16 %v2522, %v2514
        %v3347 = vpack.c.b16 %v2523, %v2515
        %v3348 = vpack.c.b16 %v2524, %v2516
        %v3349 = vpack.c.b16 %v2525, %v2517
        %v3350 = vpack.c.b16 %v2526, %v2518
        %v3351 = vpack.c.b16 %v2527, %v2519
        %v3352 = vpack.c.b16 %v2528, %v2520
        %v3353 = vpack.c.b16 %v2529, %v2521
        %v3354 = vpack.c.b16 %v2538, %v2530
        %v3355 = vpack.c.b16 %v2539, %v2531
        %v3356 = vpack.c.b16 %v2540, %v2532
        %v3357 = vpack.c.b16 %v2541, %v2533
        %v3358 = vpack.c.b16 %v2542, %v2534
        %v3359 = vpack.c.b16 %v2543, %v2535
        %v3360 = vpack.c.b16 %v2544, %v2536
        %v3361 = vpack.c.b16 %v2545, %v2537
        %v3362 = vpack.c.b16 %v2554, %v2546
        %v3363 = vpack.c.b16 %v2555, %v2547
        %v3364 = vpack.c.b16 %v2556, %v2548
        %v3365 = vpack.c.b16 %v2557, %v2549
        %v3366 = vpack.c.b16 %v2558, %v2550
        %v3367 = vpack.c.b16 %v2559, %v2551
        %v3368 = vpack.c.b16 %v2560, %v2552
        %v3369 = vpack.c.b16 %v2561, %v2553
        %v3370 = vpack.c.b16 %v2570, %v2562
        %v3371 = vpack.c.b16 %v2571, %v2563
        %v3372 = vpack.c.b16 %v2572, %v2564
        %v3373 = vpack.c.b16 %v2573, %v2565
        %v3374 = vpack.c.b16 %v2574, %v2566
        %v3375 = vpack.c.b16 %v2575, %v2567
        %v3376 = vpack.c.b16 %v2576, %v2568
        %v3377 = vpack.c.b16 %v2577, %v2569
        %v3378 = vpack.c.b16 %v2586, %v2578
        %v3379 = vpack.c.b16 %v2587, %v2579
        %v3380 = vpack.c.b16 %v2588, %v2580
        %v3381 = vpack.c.b16 %v2589, %v2581
        %v3382 = vpack.c.b16 %v2590, %v2582
        %v3383 = vpack.c.b16 %v2591, %v2583
        %v3384 = vpack.c.b16 %v2592, %v2584
        %v3385 = vpack.c.b16 %v2593, %v2585
        %v3386 = vpack.c.b16 %v2602, %v2594
        %v3387 = vpack.c.b16 %v2603, %v2595
        %v3388 = vpack.c.b16 %v2604, %v2596
        %v3389 = vpack.c.b16 %v2605, %v2597
        %v3390 = vpack.c.b16 %v2606, %v2598
        %v3391 = vpack.c.b16 %v2607, %v2599
        %v3392 = vpack.c.b16 %v2608, %v2600
        %v3393 = vpack.c.b16 %v2609, %v2601
        %v3394 = vpack.c.b16 %v2618, %v2610
        %v3395 = vpack.c.b16 %v2619, %v2611
        %v3396 = vpack.c.b16 %v2620, %v2612
        %v3397 = vpack.c.b16 %v2621, %v2613
        %v3398 = vpack.c.b16 %v2622, %v2614
        %v3399 = vpack.c.b16 %v2623, %v2615
        %v3400 = vpack.c.b16 %v2624, %v2616
        %v3401 = vpack.c.b16 %v2625, %v2617
        %v3402 = vpack.c.b16 %v2634, %v2626
        %v3403 = vpack.c.b16 %v2635, %v2627
        %v3404 = vpack.c.b16 %v2636, %v2628
        %v3405 = vpack.c.b16 %v2637, %v2629
        %v3406 = vpack.c.b16 %v2638, %v2630
        %v3407 = vpack.c.b16 %v2639, %v2631
        %v3408 = vpack.c.b16 %v2640, %v2632
        %v3409 = vpack.c.b16 %v2641, %v2633
        %v3410 = vpack.c.b16 %v2650, %v2642
        %v3411 = vpack.c.b16 %v2651, %v2643
        %v3412 = vpack.c.b16 %v2652, %v2644
        %v3413 = vpack.c.b16 %v2653, %v2645
        %v3414 = vpack.c.b16 %v2654, %v2646
        %v3415 = vpack.c.b16 %v2655, %v2647
        %v3416 = vpack.c.b16 %v2656, %v2648
        %v3417 = vpack.c.b16 %v2657, %v2649
        %v3418 = vpack.c.b16 %v2666, %v2658
        %v3419 = vpack.c.b16 %v2667, %v2659
        %v3420 = vpack.c.b16 %v2668, %v2660
        %v3421 = vpack.c.b16 %v2669, %v2661
        %v3422 = vpack.c.b16 %v2670, %v2662
        %v3423 = vpack.c.b16 %v2671, %v2663
        %v3424 = vpack.c.b16 %v2672, %v2664
        %v3425 = vpack.c.b16 %v2673, %v2665
        %v3426 = vpack.c.b16 %v2682, %v2674
        %v3427 = vpack.c.b16 %v2683, %v2675
        %v3428 = vpack.c.b16 %v2684, %v2676
        %v3429 = vpack.c.b16 %v2685, %v2677
        %v3430 = vpack.c.b16 %v2686, %v2678
        %v3431 = vpack.c.b16 %v2687, %v2679
        %v3432 = vpack.c.b16 %v2688, %v2680
        %v3433 = vpack.c.b16 %v2689, %v2681
        %v3434 = vpack.c.b16 %v2698, %v2690
        %v3435 = vpack.c.b16 %v2699, %v2691
        %v3436 = vpack.c.b16 %v2700, %v2692
        %v3437 = vpack.c.b16 %v2701, %v2693
        %v3438 = vpack.c.b16 %v2702, %v2694
        %v3439 = vpack.c.b16 %v2703, %v2695
        %v3440 = vpack.c.b16 %v2704, %v2696
        %v3441 = vpack.c.b16 %v2705, %v2697
        %v3442 = vpack.c.b16 %v2714, %v2706
        %v3443 = vpack.c.b16 %v2715, %v2707
        %v3444 = vpack.c.b16 %v2716, %v2708
        %v3445 = vpack.c.b16 %v2717, %v2709
        %v3446 = vpack.c.b16 %v2718, %v2710
        %v3447 = vpack.c.b16 %v2719, %v2711
        %v3448 = vpack.c.b16 %v2720, %v2712
        %v3449 = vpack.c.b16 %v2721, %v2713
        %v3450 = vpack.c.b16 %v2730, %v2722
        %v3451 = vpack.c.b16 %v2731, %v2723
        %v3452 = vpack.c.b16 %v2732, %v2724
        %v3453 = vpack.c.b16 %v2733, %v2725
        %v3454 = vpack.c.b16 %v2734, %v2726
        %v3455 = vpack.c.b16 %v2735, %v2727
        %v3456 = vpack.c.b16 %v2736, %v2728
        %v3457 = vpack.c.b16 %v2737, %v2729
        %v3458 = vpack.c.b16 %v2746, %v2738
        %v3459 = vpack.c.b16 %v2747, %v2739
        %v3460 = vpack.c.b16 %v2748, %v2740
        %v3461 = vpack.c.b16 %v2749, %v2741
        %v3462 = vpack.c.b16 %v2750, %v2742
        %v3463 = vpack.c.b16 %v2751, %v2743
        %v3464 = vpack.c.b16 %v2752, %v2744
        %v3465 = vpack.c.b16 %v2753, %v2745
        %v3466 = vpack.c.b16 %v2762, %v2754
        %v3467 = vpack.c.b16 %v2763, %v2755
        %v3468 = vpack.c.b16 %v2764, %v2756
        %v3469 = vpack.c.b16 %v2765, %v2757
        %v3470 = vpack.c.b16 %v2766, %v2758
        %v3471 = vpack.c.b16 %v2767, %v2759
        %v3472 = vpack.c.b16 %v2768, %v2760
        %v3473 = vpack.c.b16 %v2769, %v2761
        %v3474 = vpack.c.b16 %v2778, %v2770
        %v3475 = vpack.c.b16 %v2779, %v2771
        %v3476 = vpack.c.b16 %v2780, %v2772
        %v3477 = vpack.c.b16 %v2781, %v2773
        %v3478 = vpack.c.b16 %v2782, %v2774
        %v3479 = vpack.c.b16 %v2783, %v2775
        %v3480 = vpack.c.b16 %v2784, %v2776
        %v3481 = vpack.c.b16 %v2785, %v2777
        %v3482 = vpack.c.b16 %v2794, %v2786
        %v3483 = vpack.c.b16 %v2795, %v2787
        %v3484 = vpack.c.b16 %v2796, %v2788
        %v3485 = vpack.c.b16 %v2797, %v2789
        %v3486 = vpack.c.b16 %v2798, %v2790
        %v3487 = vpack.c.b16 %v2799, %v2791
        %v3488 = vpack.c.b16 %v2800, %v2792
        %v3489 = vpack.c.b16 %v2801, %v2793
        %v3490 = vpack.c.b16 %v2810, %v2802
        %v3491 = vpack.c.b16 %v2811, %v2803
        %v3492 = vpack.c.b16 %v2812, %v2804
        %v3493 = vpack.c.b16 %v2813, %v2805
        %v3494 = vpack.c.b16 %v2814, %v2806
        %v3495 = vpack.c.b16 %v2815, %v2807
        %v3496 = vpack.c.b16 %v2816, %v2808
        %v3497 = vpack.c.b16 %v2817, %v2809
        %v3498 = vpack.c.b16 %v2826, %v2818
        %v3499 = vpack.c.b16 %v2827, %v2819
        %v3500 = vpack.c.b16 %v2828, %v2820
        %v3501 = vpack.c.b16 %v2829, %v2821
        %v3502 = vpack.c.b16 %v2830, %v2822
        %v3503 = vpack.c.b16 %v2831, %v2823
        %v3504 = vpack.c.b16 %v2832, %v2824
        %v3505 = vpack.c.b16 %v2833, %v2825
        %v3506 = vpack.c.b16 %v2842, %v2834
        %v3507 = vpack.c.b16 %v2843, %v2835
        %v3508 = vpack.c.b16 %v2844, %v2836
        %v3509 = vpack.c.b16 %v2845, %v2837
        %v3510 = vpack.c.b16 %v2846, %v2838
        %v3511 = vpack.c.b16 %v2847, %v2839
        %v3512 = vpack.c.b16 %v2848, %v2840
        %v3513 = vpack.c.b16 %v2849, %v2841
        %v3514 = vpack.c.b16 %v2858, %v2850
        %v3515 = vpack.c.b16 %v2859, %v2851
        %v3516 = vpack.c.b16 %v2860, %v2852
        %v3517 = vpack.c.b16 %v2861, %v2853
        %v3518 = vpack.c.b16 %v2862, %v2854
        %v3519 = vpack.c.b16 %v2863, %v2855
        %v3520 = vpack.c.b16 %v2864, %v2856
        %v3521 = vpack.c.b16 %v2865, %v2857
        %v3522 = vpack.c.b16 %v2874, %v2866
        %v3523 = vpack.c.b16 %v2875, %v2867
        %v3524 = vpack.c.b16 %v2876, %v2868
        %v3525 = vpack.c.b16 %v2877, %v2869
        %v3526 = vpack.c.b16 %v2878, %v2870
        %v3527 = vpack.c.b16 %v2879, %v2871
        %v3528 = vpack.c.b16 %v2880, %v2872
        %v3529 = vpack.c.b16 %v2881, %v2873
        %v3530 = vpack.c.b16 %v2890, %v2882
        %v3531 = vpack.c.b16 %v2891, %v2883
        %v3532 = vpack.c.b16 %v2892, %v2884
        %v3533 = vpack.c.b16 %v2893, %v2885
        %v3534 = vpack.c.b16 %v2894, %v2886
        %v3535 = vpack.c.b16 %v2895, %v2887
        %v3536 = vpack.c.b16 %v2896, %v2888
        %v3537 = vpack.c.b16 %v2897, %v2889
        %v3538 = vpack.c.b16 %v2906, %v2898
        %v3539 = vpack.c.b16 %v2907, %v2899
        %v3540 = vpack.c.b16 %v2908, %v2900
        %v3541 = vpack.c.b16 %v2909, %v2901
        %v3542 = vpack.c.b16 %v2910, %v2902
        %v3543 = vpack.c.b16 %v2911, %v2903
        %v3544 = vpack.c.b16 %v2912, %v2904
        %v3545 = vpack.c.b16 %v2913, %v2905
        %v3546 = vpack.c.b16 %v2922, %v2914
        %v3547 = vpack.c.b16 %v2923, %v2915
        %v3548 = vpack.c.b16 %v2924, %v2916
        %v3549 = vpack.c.b16 %v2925, %v2917
        %v3550 = vpack.c.b16 %v2926, %v2918
        %v3551 = vpack.c.b16 %v2927, %v2919
        %v3552 = vpack.c.b16 %v2928, %v2920
        %v3553 = vpack.c.b16 %v2929, %v2921
        %v3554 = vpack.c.b16 %v2938, %v2930
        %v3555 = vpack.c.b16 %v2939, %v2931
        %v3556 = vpack.c.b16 %v2940, %v2932
        %v3557 = vpack.c.b16 %v2941, %v2933
        %v3558 = vpack.c.b16 %v2942, %v2934
        %v3559 = vpack.c.b16 %v2943, %v2935
        %v3560 = vpack.c.b16 %v2944, %v2936
        %v3561 = vpack.c.b16 %v2945, %v2937
        %v3562 = vpack.c.b16 %v2954, %v2946
        %v3563 = vpack.c.b16 %v2955, %v2947
        %v3564 = vpack.c.b16 %v2956, %v2948
        %v3565 = vpack.c.b16 %v2957, %v2949
        %v3566 = vpack.c.b16 %v2958, %v2950
        %v3567 = vpack.c.b16 %v2959, %v2951
        %v3568 = vpack.c.b16 %v2960, %v2952
        %v3569 = vpack.c.b16 %v2961, %v2953
        %v3570 = vpack.c.b16 %v2970, %v2962
        %v3571 = vpack.c.b16 %v2971, %v2963
        %v3572 = vpack.c.b16 %v2972, %v2964
        %v3573 = vpack.c.b16 %v2973, %v2965
        %v3574 = vpack.c.b16 %v2974, %v2966
        %v3575 = vpack.c.b16 %v2975, %v2967
        %v3576 = vpack.c.b16 %v2976, %v2968
        %v3577 = vpack.c.b16 %v2977, %v2969
        %v3578 = vpack.c.b16 %v2986, %v2978
        %v3579 = vpack.c.b16 %v2987, %v2979
        %v3580 = vpack.c.b16 %v2988, %v2980
        %v3581 = vpack.c.b16 %v2989, %v2981
        %v3582 = vpack.c.b16 %v2990, %v2982
        %v3583 = vpack.c.b16 %v2991, %v2983
        %v3584 = vpack.c.b16 %v2992, %v2984
        %v3585 = vpack.c.b16 %v2993, %v2985
        %v3586 = vpack.c.b16 %v3002, %v2994
        %v3587 = vpack.c.b16 %v3003, %v2995
        %v3588 = vpack.c.b16 %v3004, %v2996
        %v3589 = vpack.c.b16 %v3005, %v2997
        %v3590 = vpack.c.b16 %v3006, %v2998
        %v3591 = vpack.c.b16 %v3007, %v2999
        %v3592 = vpack.c.b16 %v3008, %v3000
        %v3593 = vpack.c.b16 %v3009, %v3001
        %v3594 = vpack.c.b16 %v3018, %v3010
        %v3595 = vpack.c.b16 %v3019, %v3011
        %v3596 = vpack.c.b16 %v3020, %v3012
        %v3597 = vpack.c.b16 %v3021, %v3013
        %v3598 = vpack.c.b16 %v3022, %v3014
        %v3599 = vpack.c.b16 %v3023, %v3015
        %v3600 = vpack.c.b16 %v3024, %v3016
        %v3601 = vpack.c.b16 %v3025, %v3017
        %v3602 = vpack.c.b16 %v3034, %v3026
        %v3603 = vpack.c.b16 %v3035, %v3027
        %v3604 = vpack.c.b16 %v3036, %v3028
        %v3605 = vpack.c.b16 %v3037, %v3029
        %v3606 = vpack.c.b16 %v3038, %v3030
        %v3607 = vpack.c.b16 %v3039, %v3031
        %v3608 = vpack.c.b16 %v3040, %v3032
        %v3609 = vpack.c.b16 %v3041, %v3033
        %v3610 = vpack.c.b16 %v3050, %v3042
        %v3611 = vpack.c.b16 %v3051, %v3043
        %v3612 = vpack.c.b16 %v3052, %v3044
        %v3613 = vpack.c.b16 %v3053, %v3045
        %v3614 = vpack.c.b16 %v3054, %v3046
        %v3615 = vpack.c.b16 %v3055, %v3047
        %v3616 = vpack.c.b16 %v3056, %v3048
        %v3617 = vpack.c.b16 %v3057, %v3049
        %v3618 = vpack.c.b16 %v3066, %v3058
        %v3619 = vpack.c.b16 %v3067, %v3059
        %v3620 = vpack.c.b16 %v3068, %v3060
        %v3621 = vpack.c.b16 %v3069, %v3061
        %v3622 = vpack.c.b16 %v3070, %v3062
        %v3623 = vpack.c.b16 %v3071, %v3063
        %v3624 = vpack.c.b16 %v3072, %v3064
        %v3625 = vpack.c.b16 %v3073, %v3065
        %v3626 = vpack.c.b16 %v3082, %v3074
        %v3627 = vpack.c.b16 %v3083, %v3075
        %v3628 = vpack.c.b16 %v3084, %v3076
        %v3629 = vpack.c.b16 %v3085, %v3077
        %v3630 = vpack.c.b16 %v3086, %v3078
        %v3631 = vpack.c.b16 %v3087, %v3079
        %v3632 = vpack.c.b16 %v3088, %v3080
        %v3633 = vpack.c.b16 %v3089, %v3081
        %v3634 = vpack.c.b16 %v3098, %v3090
        %v3635 = vpack.c.b16 %v3099, %v3091
        %v3636 = vpack.c.b16 %v3100, %v3092
        %v3637 = vpack.c.b16 %v3101, %v3093
        %v3638 = vpack.c.b16 %v3102, %v3094
        %v3639 = vpack.c.b16 %v3103, %v3095
        %v3640 = vpack.c.b16 %v3104, %v3096
        %v3641 = vpack.c.b16 %v3105, %v3097
        %v3642 = vpack.c.b16 %v3114, %v3106
        %v3643 = vpack.c.b16 %v3115, %v3107
        %v3644 = vpack.c.b16 %v3116, %v3108
        %v3645 = vpack.c.b16 %v3117, %v3109
        %v3646 = vpack.c.b16 %v3118, %v3110
        %v3647 = vpack.c.b16 %v3119, %v3111
        %v3648 = vpack.c.b16 %v3120, %v3112
        %v3649 = vpack.c.b16 %v3121, %v3113
        %v3650 = vpack.c.b16 %v3130, %v3122
        %v3651 = vpack.c.b16 %v3131, %v3123
        %v3652 = vpack.c.b16 %v3132, %v3124
        %v3653 = vpack.c.b16 %v3133, %v3125
        %v3654 = vpack.c.b16 %v3134, %v3126
        %v3655 = vpack.c.b16 %v3135, %v3127
        %v3656 = vpack.c.b16 %v3136, %v3128
        %v3657 = vpack.c.b16 %v3137, %v3129
        %v3658 = vpack.c.b16 %v3146, %v3138
        %v3659 = vpack.c.b16 %v3147, %v3139
        %v3660 = vpack.c.b16 %v3148, %v3140
        %v3661 = vpack.c.b16 %v3149, %v3141
        %v3662 = vpack.c.b16 %v3150, %v3142
        %v3663 = vpack.c.b16 %v3151, %v3143
        %v3664 = vpack.c.b16 %v3152, %v3144
        %v3665 = vpack.c.b16 %v3153, %v3145
        %4178 = vmatpush.bf16.msra.mxu0 %v3210
        %4179 = vmatpush.bf16.msra.mxu0 %v3202
        %4180 = vmatpush.bf16.msra.mxu0 %v3194
        %4181 = vmatpush.bf16.msra.mxu0 %v3186
        %4182 = vmatpush.bf16.msra.mxu0 %v3178
        %4183 = vmatpush.bf16.msra.mxu0 %v3170
        %4184 = vmatpush.bf16.msra.mxu0 %v3162
        %4185 = vmatpush.bf16.msra.mxu0 %v3154
        %4186 = vmatmul.bf16.gmra.mxu0 %v1490
        %v4187 = vpop.f32.mrf.mxu0
        %v4188 = vadd.f32 0.0, %v4187
        %v4189 = vpop.f32.mrf.mxu0
        %v4190 = vadd.f32 0.0, %v4189
        %4191 = vdwg.mxu0
        %4192 = vmatpush.bf16.msra.mxu0 %v3274
        %4193 = vmatpush.bf16.msra.mxu0 %v3266
        %4194 = vmatpush.bf16.msra.mxu0 %v3258
        %4195 = vmatpush.bf16.msra.mxu0 %v3250
        %4196 = vmatpush.bf16.msra.mxu0 %v3242
        %4197 = vmatpush.bf16.msra.mxu0 %v3234
        %4198 = vmatpush.bf16.msra.mxu0 %v3226
        %4199 = vmatpush.bf16.msra.mxu0 %v3218
        %4200 = vmatmul.bf16.gmra.mxu0 %v1507
        %v4201 = vpop.f32.mrf.mxu0
        %v4202 = vadd.f32 %v4188, %v4201
        %v4203 = vpop.f32.mrf.mxu0
        %v4204 = vadd.f32 %v4190, %v4203
        %4205 = vdwg.mxu0
        %4206 = vmatpush.bf16.msra.mxu0 %v3338
        %4207 = vmatpush.bf16.msra.mxu0 %v3330
        %4208 = vmatpush.bf16.msra.mxu0 %v3322
        %4209 = vmatpush.bf16.msra.mxu0 %v3314
        %4210 = vmatpush.bf16.msra.mxu0 %v3306
        %4211 = vmatpush.bf16.msra.mxu0 %v3298
        %4212 = vmatpush.bf16.msra.mxu0 %v3290
        %4213 = vmatpush.bf16.msra.mxu0 %v3282
        %4214 = vmatmul.bf16.gmra.mxu0 %v1524
        %v4215 = vpop.f32.mrf.mxu0
        %v4216 = vadd.f32 %v4202, %v4215
        %v4217 = vpop.f32.mrf.mxu0
        %v4218 = vadd.f32 %v4204, %v4217
        %4219 = vdwg.mxu0
        %4220 = vmatpush.bf16.msra.mxu0 %v3402
        %4221 = vmatpush.bf16.msra.mxu0 %v3394
        %4222 = vmatpush.bf16.msra.mxu0 %v3386
        %4223 = vmatpush.bf16.msra.mxu0 %v3378
        %4224 = vmatpush.bf16.msra.mxu0 %v3370
        %4225 = vmatpush.bf16.msra.mxu0 %v3362
        %4226 = vmatpush.bf16.msra.mxu0 %v3354
        %4227 = vmatpush.bf16.msra.mxu0 %v3346
        %4228 = vmatmul.bf16.gmra.mxu0 %v1541
        %v4229 = vpop.f32.mrf.mxu0
        %v4230 = vadd.f32 %v4216, %v4229
        %v4231 = vpop.f32.mrf.mxu0
        %v4232 = vadd.f32 %v4218, %v4231
        %4233 = vdwg.mxu0
        %4234 = vmatpush.bf16.msra.mxu0 %v3466
        %4235 = vmatpush.bf16.msra.mxu0 %v3458
        %4236 = vmatpush.bf16.msra.mxu0 %v3450
        %4237 = vmatpush.bf16.msra.mxu0 %v3442
        %4238 = vmatpush.bf16.msra.mxu0 %v3434
        %4239 = vmatpush.bf16.msra.mxu0 %v3426
        %4240 = vmatpush.bf16.msra.mxu0 %v3418
        %4241 = vmatpush.bf16.msra.mxu0 %v3410
        %4242 = vmatmul.bf16.gmra.mxu0 %v1558
        %v4243 = vpop.f32.mrf.mxu0
        %v4244 = vadd.f32 %v4230, %v4243
        %v4245 = vpop.f32.mrf.mxu0
        %v4246 = vadd.f32 %v4232, %v4245
        %4247 = vdwg.mxu0
        %4248 = vmatpush.bf16.msra.mxu0 %v3530
        %4249 = vmatpush.bf16.msra.mxu0 %v3522
        %4250 = vmatpush.bf16.msra.mxu0 %v3514
        %4251 = vmatpush.bf16.msra.mxu0 %v3506
        %4252 = vmatpush.bf16.msra.mxu0 %v3498
        %4253 = vmatpush.bf16.msra.mxu0 %v3490
        %4254 = vmatpush.bf16.msra.mxu0 %v3482
        %4255 = vmatpush.bf16.msra.mxu0 %v3474
        %4256 = vmatmul.bf16.gmra.mxu0 %v1575
        %v4257 = vpop.f32.mrf.mxu0
        %v4258 = vadd.f32 %v4244, %v4257
        %v4259 = vpop.f32.mrf.mxu0
        %v4260 = vadd.f32 %v4246, %v4259
        %4261 = vdwg.mxu0
        %4262 = vmatpush.bf16.msra.mxu0 %v3594
        %4263 = vmatpush.bf16.msra.mxu0 %v3586
        %4264 = vmatpush.bf16.msra.mxu0 %v3578
        %4265 = vmatpush.bf16.msra.mxu0 %v3570
        %4266 = vmatpush.bf16.msra.mxu0 %v3562
        %4267 = vmatpush.bf16.msra.mxu0 %v3554
        %4268 = vmatpush.bf16.msra.mxu0 %v3546
        %4269 = vmatpush.bf16.msra.mxu0 %v3538
        %4270 = vmatmul.bf16.gmra.mxu0 %v1592
        %v4271 = vpop.f32.mrf.mxu0
        %v4272 = vadd.f32 %v4258, %v4271
        %v4273 = vpop.f32.mrf.mxu0
        %v4274 = vadd.f32 %v4260, %v4273
        %4275 = vdwg.mxu0
        %4276 = vmatpush.bf16.msra.mxu0 %v3658
        %4277 = vmatpush.bf16.msra.mxu0 %v3650
        %4278 = vmatpush.bf16.msra.mxu0 %v3642
        %4279 = vmatpush.bf16.msra.mxu0 %v3634
        %4280 = vmatpush.bf16.msra.mxu0 %v3626
        %4281 = vmatpush.bf16.msra.mxu0 %v3618
        %4282 = vmatpush.bf16.msra.mxu0 %v3610
        %4283 = vmatpush.bf16.msra.mxu0 %v3602
        %4284 = vmatmul.bf16.gmra.mxu0 %v1609
        %v4285 = vpop.f32.mrf.mxu0
        %v4286 = vadd.f32 %v4272, %v4285
        %v4287 = vpop.f32.mrf.mxu0
        %v4288 = vadd.f32 %v4274, %v4287
        %4289 = vdwg.mxu0
        %4290 = vmatpush.bf16.msra.mxu0 %v3211
        %4291 = vmatpush.bf16.msra.mxu0 %v3203
        %4292 = vmatpush.bf16.msra.mxu0 %v3195
        %4293 = vmatpush.bf16.msra.mxu0 %v3187
        %4294 = vmatpush.bf16.msra.mxu0 %v3179
        %4295 = vmatpush.bf16.msra.mxu0 %v3171
        %4296 = vmatpush.bf16.msra.mxu0 %v3163
        %4297 = vmatpush.bf16.msra.mxu0 %v3155
        %4298 = vmatmul.bf16.gmra.mxu0 %v1490
        %v4299 = vpop.f32.mrf.mxu0
        %v4300 = vadd.f32 0.0, %v4299
        %v4301 = vpop.f32.mrf.mxu0
        %v4302 = vadd.f32 0.0, %v4301
        %4303 = vdwg.mxu0
        %4304 = vmatpush.bf16.msra.mxu0 %v3275
        %4305 = vmatpush.bf16.msra.mxu0 %v3267
        %4306 = vmatpush.bf16.msra.mxu0 %v3259
        %4307 = vmatpush.bf16.msra.mxu0 %v3251
        %4308 = vmatpush.bf16.msra.mxu0 %v3243
        %4309 = vmatpush.bf16.msra.mxu0 %v3235
        %4310 = vmatpush.bf16.msra.mxu0 %v3227
        %4311 = vmatpush.bf16.msra.mxu0 %v3219
        %4312 = vmatmul.bf16.gmra.mxu0 %v1507
        %v4313 = vpop.f32.mrf.mxu0
        %v4314 = vadd.f32 %v4300, %v4313
        %v4315 = vpop.f32.mrf.mxu0
        %v4316 = vadd.f32 %v4302, %v4315
        %4317 = vdwg.mxu0
        %4318 = vmatpush.bf16.msra.mxu0 %v3339
        %4319 = vmatpush.bf16.msra.mxu0 %v3331
        %4320 = vmatpush.bf16.msra.mxu0 %v3323
        %4321 = vmatpush.bf16.msra.mxu0 %v3315
        %4322 = vmatpush.bf16.msra.mxu0 %v3307
        %4323 = vmatpush.bf16.msra.mxu0 %v3299
        %4324 = vmatpush.bf16.msra.mxu0 %v3291
        %4325 = vmatpush.bf16.msra.mxu0 %v3283
        %4326 = vmatmul.bf16.gmra.mxu0 %v1524
        %v4327 = vpop.f32.mrf.mxu0
        %v4328 = vadd.f32 %v4314, %v4327
        %v4329 = vpop.f32.mrf.mxu0
        %v4330 = vadd.f32 %v4316, %v4329
        %4331 = vdwg.mxu0
        %4332 = vmatpush.bf16.msra.mxu0 %v3403
        %4333 = vmatpush.bf16.msra.mxu0 %v3395
        %4334 = vmatpush.bf16.msra.mxu0 %v3387
        %4335 = vmatpush.bf16.msra.mxu0 %v3379
        %4336 = vmatpush.bf16.msra.mxu0 %v3371
        %4337 = vmatpush.bf16.msra.mxu0 %v3363
        %4338 = vmatpush.bf16.msra.mxu0 %v3355
        %4339 = vmatpush.bf16.msra.mxu0 %v3347
        %4340 = vmatmul.bf16.gmra.mxu0 %v1541
        %v4341 = vpop.f32.mrf.mxu0
        %v4342 = vadd.f32 %v4328, %v4341
        %v4343 = vpop.f32.mrf.mxu0
        %v4344 = vadd.f32 %v4330, %v4343
        %4345 = vdwg.mxu0
        %4346 = vmatpush.bf16.msra.mxu0 %v3467
        %4347 = vmatpush.bf16.msra.mxu0 %v3459
        %4348 = vmatpush.bf16.msra.mxu0 %v3451
        %4349 = vmatpush.bf16.msra.mxu0 %v3443
        %4350 = vmatpush.bf16.msra.mxu0 %v3435
        %4351 = vmatpush.bf16.msra.mxu0 %v3427
        %4352 = vmatpush.bf16.msra.mxu0 %v3419
        %4353 = vmatpush.bf16.msra.mxu0 %v3411
        %4354 = vmatmul.bf16.gmra.mxu0 %v1558
        %v4355 = vpop.f32.mrf.mxu0
        %v4356 = vadd.f32 %v4342, %v4355
        %v4357 = vpop.f32.mrf.mxu0
        %v4358 = vadd.f32 %v4344, %v4357
        %4359 = vdwg.mxu0
        %4360 = vmatpush.bf16.msra.mxu0 %v3531
        %4361 = vmatpush.bf16.msra.mxu0 %v3523
        %4362 = vmatpush.bf16.msra.mxu0 %v3515
        %4363 = vmatpush.bf16.msra.mxu0 %v3507
        %4364 = vmatpush.bf16.msra.mxu0 %v3499
        %4365 = vmatpush.bf16.msra.mxu0 %v3491
        %4366 = vmatpush.bf16.msra.mxu0 %v3483
        %4367 = vmatpush.bf16.msra.mxu0 %v3475
        %4368 = vmatmul.bf16.gmra.mxu0 %v1575
        %v4369 = vpop.f32.mrf.mxu0
        %v4370 = vadd.f32 %v4356, %v4369
        %v4371 = vpop.f32.mrf.mxu0
        %v4372 = vadd.f32 %v4358, %v4371
        %4373 = vdwg.mxu0
        %4374 = vmatpush.bf16.msra.mxu0 %v3595
        %4375 = vmatpush.bf16.msra.mxu0 %v3587
        %4376 = vmatpush.bf16.msra.mxu0 %v3579
        %4377 = vmatpush.bf16.msra.mxu0 %v3571
        %4378 = vmatpush.bf16.msra.mxu0 %v3563
        %4379 = vmatpush.bf16.msra.mxu0 %v3555
        %4380 = vmatpush.bf16.msra.mxu0 %v3547
        %4381 = vmatpush.bf16.msra.mxu0 %v3539
        %4382 = vmatmul.bf16.gmra.mxu0 %v1592
        %v4383 = vpop.f32.mrf.mxu0
        %v4384 = vadd.f32 %v4370, %v4383
        %v4385 = vpop.f32.mrf.mxu0
        %v4386 = vadd.f32 %v4372, %v4385
        %4387 = vdwg.mxu0
        %4388 = vmatpush.bf16.msra.mxu0 %v3659
        %4389 = vmatpush.bf16.msra.mxu0 %v3651
        %4390 = vmatpush.bf16.msra.mxu0 %v3643
        %4391 = vmatpush.bf16.msra.mxu0 %v3635
        %4392 = vmatpush.bf16.msra.mxu0 %v3627
        %4393 = vmatpush.bf16.msra.mxu0 %v3619
        %4394 = vmatpush.bf16.msra.mxu0 %v3611
        %4395 = vmatpush.bf16.msra.mxu0 %v3603
        %4396 = vmatmul.bf16.gmra.mxu0 %v1609
        %v4397 = vpop.f32.mrf.mxu0
        %v4398 = vadd.f32 %v4384, %v4397
        %v4399 = vpop.f32.mrf.mxu0
        %v4400 = vadd.f32 %v4386, %v4399
        %4401 = vdwg.mxu0
        %4402 = vmatpush.bf16.msra.mxu0 %v3212
        %4403 = vmatpush.bf16.msra.mxu0 %v3204
        %4404 = vmatpush.bf16.msra.mxu0 %v3196
        %4405 = vmatpush.bf16.msra.mxu0 %v3188
        %4406 = vmatpush.bf16.msra.mxu0 %v3180
        %4407 = vmatpush.bf16.msra.mxu0 %v3172
        %4408 = vmatpush.bf16.msra.mxu0 %v3164
        %4409 = vmatpush.bf16.msra.mxu0 %v3156
        %4410 = vmatmul.bf16.gmra.mxu0 %v1490
        %v4411 = vpop.f32.mrf.mxu0
        %v4412 = vadd.f32 0.0, %v4411
        %v4413 = vpop.f32.mrf.mxu0
        %v4414 = vadd.f32 0.0, %v4413
        %4415 = vdwg.mxu0
        %4416 = vmatpush.bf16.msra.mxu0 %v3276
        %4417 = vmatpush.bf16.msra.mxu0 %v3268
        %4418 = vmatpush.bf16.msra.mxu0 %v3260
        %4419 = vmatpush.bf16.msra.mxu0 %v3252
        %4420 = vmatpush.bf16.msra.mxu0 %v3244
        %4421 = vmatpush.bf16.msra.mxu0 %v3236
        %4422 = vmatpush.bf16.msra.mxu0 %v3228
        %4423 = vmatpush.bf16.msra.mxu0 %v3220
        %4424 = vmatmul.bf16.gmra.mxu0 %v1507
        %v4425 = vpop.f32.mrf.mxu0
        %v4426 = vadd.f32 %v4412, %v4425
        %v4427 = vpop.f32.mrf.mxu0
        %v4428 = vadd.f32 %v4414, %v4427
        %4429 = vdwg.mxu0
        %4430 = vmatpush.bf16.msra.mxu0 %v3340
        %4431 = vmatpush.bf16.msra.mxu0 %v3332
        %4432 = vmatpush.bf16.msra.mxu0 %v3324
        %4433 = vmatpush.bf16.msra.mxu0 %v3316
        %4434 = vmatpush.bf16.msra.mxu0 %v3308
        %4435 = vmatpush.bf16.msra.mxu0 %v3300
        %4436 = vmatpush.bf16.msra.mxu0 %v3292
        %4437 = vmatpush.bf16.msra.mxu0 %v3284
        %4438 = vmatmul.bf16.gmra.mxu0 %v1524
        %v4439 = vpop.f32.mrf.mxu0
        %v4440 = vadd.f32 %v4426, %v4439
        %v4441 = vpop.f32.mrf.mxu0
        %v4442 = vadd.f32 %v4428, %v4441
        %4443 = vdwg.mxu0
        %4444 = vmatpush.bf16.msra.mxu0 %v3404
        %4445 = vmatpush.bf16.msra.mxu0 %v3396
        %4446 = vmatpush.bf16.msra.mxu0 %v3388
        %4447 = vmatpush.bf16.msra.mxu0 %v3380
        %4448 = vmatpush.bf16.msra.mxu0 %v3372
        %4449 = vmatpush.bf16.msra.mxu0 %v3364
        %4450 = vmatpush.bf16.msra.mxu0 %v3356
        %4451 = vmatpush.bf16.msra.mxu0 %v3348
        %4452 = vmatmul.bf16.gmra.mxu0 %v1541
        %v4453 = vpop.f32.mrf.mxu0
        %v4454 = vadd.f32 %v4440, %v4453
        %v4455 = vpop.f32.mrf.mxu0
        %v4456 = vadd.f32 %v4442, %v4455
        %4457 = vdwg.mxu0
        %4458 = vmatpush.bf16.msra.mxu0 %v3468
        %4459 = vmatpush.bf16.msra.mxu0 %v3460
        %4460 = vmatpush.bf16.msra.mxu0 %v3452
        %4461 = vmatpush.bf16.msra.mxu0 %v3444
        %4462 = vmatpush.bf16.msra.mxu0 %v3436
        %4463 = vmatpush.bf16.msra.mxu0 %v3428
        %4464 = vmatpush.bf16.msra.mxu0 %v3420
        %4465 = vmatpush.bf16.msra.mxu0 %v3412
        %4466 = vmatmul.bf16.gmra.mxu0 %v1558
        %v4467 = vpop.f32.mrf.mxu0
        %v4468 = vadd.f32 %v4454, %v4467
        %v4469 = vpop.f32.mrf.mxu0
        %v4470 = vadd.f32 %v4456, %v4469
        %4471 = vdwg.mxu0
        %4472 = vmatpush.bf16.msra.mxu0 %v3532
        %4473 = vmatpush.bf16.msra.mxu0 %v3524
        %4474 = vmatpush.bf16.msra.mxu0 %v3516
        %4475 = vmatpush.bf16.msra.mxu0 %v3508
        %4476 = vmatpush.bf16.msra.mxu0 %v3500
        %4477 = vmatpush.bf16.msra.mxu0 %v3492
        %4478 = vmatpush.bf16.msra.mxu0 %v3484
        %4479 = vmatpush.bf16.msra.mxu0 %v3476
        %4480 = vmatmul.bf16.gmra.mxu0 %v1575
        %v4481 = vpop.f32.mrf.mxu0
        %v4482 = vadd.f32 %v4468, %v4481
        %v4483 = vpop.f32.mrf.mxu0
        %v4484 = vadd.f32 %v4470, %v4483
        %4485 = vdwg.mxu0
        %4486 = vmatpush.bf16.msra.mxu0 %v3596
        %4487 = vmatpush.bf16.msra.mxu0 %v3588
        %4488 = vmatpush.bf16.msra.mxu0 %v3580
        %4489 = vmatpush.bf16.msra.mxu0 %v3572
        %4490 = vmatpush.bf16.msra.mxu0 %v3564
        %4491 = vmatpush.bf16.msra.mxu0 %v3556
        %4492 = vmatpush.bf16.msra.mxu0 %v3548
        %4493 = vmatpush.bf16.msra.mxu0 %v3540
        %4494 = vmatmul.bf16.gmra.mxu0 %v1592
        %v4495 = vpop.f32.mrf.mxu0
        %v4496 = vadd.f32 %v4482, %v4495
        %v4497 = vpop.f32.mrf.mxu0
        %v4498 = vadd.f32 %v4484, %v4497
        %4499 = vdwg.mxu0
        %4500 = vmatpush.bf16.msra.mxu0 %v3660
        %4501 = vmatpush.bf16.msra.mxu0 %v3652
        %4502 = vmatpush.bf16.msra.mxu0 %v3644
        %4503 = vmatpush.bf16.msra.mxu0 %v3636
        %4504 = vmatpush.bf16.msra.mxu0 %v3628
        %4505 = vmatpush.bf16.msra.mxu0 %v3620
        %4506 = vmatpush.bf16.msra.mxu0 %v3612
        %4507 = vmatpush.bf16.msra.mxu0 %v3604
        %4508 = vmatmul.bf16.gmra.mxu0 %v1609
        %v4509 = vpop.f32.mrf.mxu0
        %v4510 = vadd.f32 %v4496, %v4509
        %v4511 = vpop.f32.mrf.mxu0
        %v4512 = vadd.f32 %v4498, %v4511
        %4513 = vdwg.mxu0
        %4514 = vmatpush.bf16.msra.mxu0 %v3213
        %4515 = vmatpush.bf16.msra.mxu0 %v3205
        %4516 = vmatpush.bf16.msra.mxu0 %v3197
        %4517 = vmatpush.bf16.msra.mxu0 %v3189
        %4518 = vmatpush.bf16.msra.mxu0 %v3181
        %4519 = vmatpush.bf16.msra.mxu0 %v3173
        %4520 = vmatpush.bf16.msra.mxu0 %v3165
        %4521 = vmatpush.bf16.msra.mxu0 %v3157
        %4522 = vmatmul.bf16.gmra.mxu0 %v1490
        %v4523 = vpop.f32.mrf.mxu0
        %v4524 = vadd.f32 0.0, %v4523
        %v4525 = vpop.f32.mrf.mxu0
        %v4526 = vadd.f32 0.0, %v4525
        %4527 = vdwg.mxu0
        %4528 = vmatpush.bf16.msra.mxu0 %v3277
        %4529 = vmatpush.bf16.msra.mxu0 %v3269
        %4530 = vmatpush.bf16.msra.mxu0 %v3261
        %4531 = vmatpush.bf16.msra.mxu0 %v3253
        %4532 = vmatpush.bf16.msra.mxu0 %v3245
        %4533 = vmatpush.bf16.msra.mxu0 %v3237
        %4534 = vmatpush.bf16.msra.mxu0 %v3229
        %4535 = vmatpush.bf16.msra.mxu0 %v3221
        %4536 = vmatmul.bf16.gmra.mxu0 %v1507
        %v4537 = vpop.f32.mrf.mxu0
        %v4538 = vadd.f32 %v4524, %v4537
        %v4539 = vpop.f32.mrf.mxu0
        %v4540 = vadd.f32 %v4526, %v4539
        %4541 = vdwg.mxu0
        %4542 = vmatpush.bf16.msra.mxu0 %v3341
        %4543 = vmatpush.bf16.msra.mxu0 %v3333
        %4544 = vmatpush.bf16.msra.mxu0 %v3325
        %4545 = vmatpush.bf16.msra.mxu0 %v3317
        %4546 = vmatpush.bf16.msra.mxu0 %v3309
        %4547 = vmatpush.bf16.msra.mxu0 %v3301
        %4548 = vmatpush.bf16.msra.mxu0 %v3293
        %4549 = vmatpush.bf16.msra.mxu0 %v3285
        %4550 = vmatmul.bf16.gmra.mxu0 %v1524
        %v4551 = vpop.f32.mrf.mxu0
        %v4552 = vadd.f32 %v4538, %v4551
        %v4553 = vpop.f32.mrf.mxu0
        %v4554 = vadd.f32 %v4540, %v4553
        %4555 = vdwg.mxu0
        %4556 = vmatpush.bf16.msra.mxu0 %v3405
        %4557 = vmatpush.bf16.msra.mxu0 %v3397
        %4558 = vmatpush.bf16.msra.mxu0 %v3389
        %4559 = vmatpush.bf16.msra.mxu0 %v3381
        %4560 = vmatpush.bf16.msra.mxu0 %v3373
        %4561 = vmatpush.bf16.msra.mxu0 %v3365
        %4562 = vmatpush.bf16.msra.mxu0 %v3357
        %4563 = vmatpush.bf16.msra.mxu0 %v3349
        %4564 = vmatmul.bf16.gmra.mxu0 %v1541
        %v4565 = vpop.f32.mrf.mxu0
        %v4566 = vadd.f32 %v4552, %v4565
        %v4567 = vpop.f32.mrf.mxu0
        %v4568 = vadd.f32 %v4554, %v4567
        %4569 = vdwg.mxu0
        %4570 = vmatpush.bf16.msra.mxu0 %v3469
        %4571 = vmatpush.bf16.msra.mxu0 %v3461
        %4572 = vmatpush.bf16.msra.mxu0 %v3453
        %4573 = vmatpush.bf16.msra.mxu0 %v3445
        %4574 = vmatpush.bf16.msra.mxu0 %v3437
        %4575 = vmatpush.bf16.msra.mxu0 %v3429
        %4576 = vmatpush.bf16.msra.mxu0 %v3421
        %4577 = vmatpush.bf16.msra.mxu0 %v3413
        %4578 = vmatmul.bf16.gmra.mxu0 %v1558
        %v4579 = vpop.f32.mrf.mxu0
        %v4580 = vadd.f32 %v4566, %v4579
        %v4581 = vpop.f32.mrf.mxu0
        %v4582 = vadd.f32 %v4568, %v4581
        %4583 = vdwg.mxu0
        %4584 = vmatpush.bf16.msra.mxu0 %v3533
        %4585 = vmatpush.bf16.msra.mxu0 %v3525
        %4586 = vmatpush.bf16.msra.mxu0 %v3517
        %4587 = vmatpush.bf16.msra.mxu0 %v3509
        %4588 = vmatpush.bf16.msra.mxu0 %v3501
        %4589 = vmatpush.bf16.msra.mxu0 %v3493
        %4590 = vmatpush.bf16.msra.mxu0 %v3485
        %4591 = vmatpush.bf16.msra.mxu0 %v3477
        %4592 = vmatmul.bf16.gmra.mxu0 %v1575
        %v4593 = vpop.f32.mrf.mxu0
        %v4594 = vadd.f32 %v4580, %v4593
        %v4595 = vpop.f32.mrf.mxu0
        %v4596 = vadd.f32 %v4582, %v4595
        %4597 = vdwg.mxu0
        %4598 = vmatpush.bf16.msra.mxu0 %v3597
        %4599 = vmatpush.bf16.msra.mxu0 %v3589
        %4600 = vmatpush.bf16.msra.mxu0 %v3581
        %4601 = vmatpush.bf16.msra.mxu0 %v3573
        %4602 = vmatpush.bf16.msra.mxu0 %v3565
        %4603 = vmatpush.bf16.msra.mxu0 %v3557
        %4604 = vmatpush.bf16.msra.mxu0 %v3549
        %4605 = vmatpush.bf16.msra.mxu0 %v3541
        %4606 = vmatmul.bf16.gmra.mxu0 %v1592
        %v4607 = vpop.f32.mrf.mxu0
        %v4608 = vadd.f32 %v4594, %v4607
        %v4609 = vpop.f32.mrf.mxu0
        %v4610 = vadd.f32 %v4596, %v4609
        %4611 = vdwg.mxu0
        %4612 = vmatpush.bf16.msra.mxu0 %v3661
        %4613 = vmatpush.bf16.msra.mxu0 %v3653
        %4614 = vmatpush.bf16.msra.mxu0 %v3645
        %4615 = vmatpush.bf16.msra.mxu0 %v3637
        %4616 = vmatpush.bf16.msra.mxu0 %v3629
        %4617 = vmatpush.bf16.msra.mxu0 %v3621
        %4618 = vmatpush.bf16.msra.mxu0 %v3613
        %4619 = vmatpush.bf16.msra.mxu0 %v3605
        %4620 = vmatmul.bf16.gmra.mxu0 %v1609
        %v4621 = vpop.f32.mrf.mxu0
        %v4622 = vadd.f32 %v4608, %v4621
        %v4623 = vpop.f32.mrf.mxu0
        %v4624 = vadd.f32 %v4610, %v4623
        %4625 = vdwg.mxu0
        %4626 = vmatpush.bf16.msra.mxu0 %v3214
        %4627 = vmatpush.bf16.msra.mxu0 %v3206
        %4628 = vmatpush.bf16.msra.mxu0 %v3198
        %4629 = vmatpush.bf16.msra.mxu0 %v3190
        %4630 = vmatpush.bf16.msra.mxu0 %v3182
        %4631 = vmatpush.bf16.msra.mxu0 %v3174
        %4632 = vmatpush.bf16.msra.mxu0 %v3166
        %4633 = vmatpush.bf16.msra.mxu0 %v3158
        %4634 = vmatmul.bf16.gmra.mxu0 %v1490
        %v4635 = vpop.f32.mrf.mxu0
        %v4636 = vadd.f32 0.0, %v4635
        %v4637 = vpop.f32.mrf.mxu0
        %v4638 = vadd.f32 0.0, %v4637
        %4639 = vdwg.mxu0
        %4640 = vmatpush.bf16.msra.mxu0 %v3278
        %4641 = vmatpush.bf16.msra.mxu0 %v3270
        %4642 = vmatpush.bf16.msra.mxu0 %v3262
        %4643 = vmatpush.bf16.msra.mxu0 %v3254
        %4644 = vmatpush.bf16.msra.mxu0 %v3246
        %4645 = vmatpush.bf16.msra.mxu0 %v3238
        %4646 = vmatpush.bf16.msra.mxu0 %v3230
        %4647 = vmatpush.bf16.msra.mxu0 %v3222
        %4648 = vmatmul.bf16.gmra.mxu0 %v1507
        %v4649 = vpop.f32.mrf.mxu0
        %v4650 = vadd.f32 %v4636, %v4649
        %v4651 = vpop.f32.mrf.mxu0
        %v4652 = vadd.f32 %v4638, %v4651
        %4653 = vdwg.mxu0
        %4654 = vmatpush.bf16.msra.mxu0 %v3342
        %4655 = vmatpush.bf16.msra.mxu0 %v3334
        %4656 = vmatpush.bf16.msra.mxu0 %v3326
        %4657 = vmatpush.bf16.msra.mxu0 %v3318
        %4658 = vmatpush.bf16.msra.mxu0 %v3310
        %4659 = vmatpush.bf16.msra.mxu0 %v3302
        %4660 = vmatpush.bf16.msra.mxu0 %v3294
        %4661 = vmatpush.bf16.msra.mxu0 %v3286
        %4662 = vmatmul.bf16.gmra.mxu0 %v1524
        %v4663 = vpop.f32.mrf.mxu0
        %v4664 = vadd.f32 %v4650, %v4663
        %v4665 = vpop.f32.mrf.mxu0
        %v4666 = vadd.f32 %v4652, %v4665
        %4667 = vdwg.mxu0
        %4668 = vmatpush.bf16.msra.mxu0 %v3406
        %4669 = vmatpush.bf16.msra.mxu0 %v3398
        %4670 = vmatpush.bf16.msra.mxu0 %v3390
        %4671 = vmatpush.bf16.msra.mxu0 %v3382
        %4672 = vmatpush.bf16.msra.mxu0 %v3374
        %4673 = vmatpush.bf16.msra.mxu0 %v3366
        %4674 = vmatpush.bf16.msra.mxu0 %v3358
        %4675 = vmatpush.bf16.msra.mxu0 %v3350
        %4676 = vmatmul.bf16.gmra.mxu0 %v1541
        %v4677 = vpop.f32.mrf.mxu0
        %v4678 = vadd.f32 %v4664, %v4677
        %v4679 = vpop.f32.mrf.mxu0
        %v4680 = vadd.f32 %v4666, %v4679
        %4681 = vdwg.mxu0
        %4682 = vmatpush.bf16.msra.mxu0 %v3470
        %4683 = vmatpush.bf16.msra.mxu0 %v3462
        %4684 = vmatpush.bf16.msra.mxu0 %v3454
        %4685 = vmatpush.bf16.msra.mxu0 %v3446
        %4686 = vmatpush.bf16.msra.mxu0 %v3438
        %4687 = vmatpush.bf16.msra.mxu0 %v3430
        %4688 = vmatpush.bf16.msra.mxu0 %v3422
        %4689 = vmatpush.bf16.msra.mxu0 %v3414
        %4690 = vmatmul.bf16.gmra.mxu0 %v1558
        %v4691 = vpop.f32.mrf.mxu0
        %v4692 = vadd.f32 %v4678, %v4691
        %v4693 = vpop.f32.mrf.mxu0
        %v4694 = vadd.f32 %v4680, %v4693
        %4695 = vdwg.mxu0
        %4696 = vmatpush.bf16.msra.mxu0 %v3534
        %4697 = vmatpush.bf16.msra.mxu0 %v3526
        %4698 = vmatpush.bf16.msra.mxu0 %v3518
        %4699 = vmatpush.bf16.msra.mxu0 %v3510
        %4700 = vmatpush.bf16.msra.mxu0 %v3502
        %4701 = vmatpush.bf16.msra.mxu0 %v3494
        %4702 = vmatpush.bf16.msra.mxu0 %v3486
        %4703 = vmatpush.bf16.msra.mxu0 %v3478
        %4704 = vmatmul.bf16.gmra.mxu0 %v1575
        %v4705 = vpop.f32.mrf.mxu0
        %v4706 = vadd.f32 %v4692, %v4705
        %v4707 = vpop.f32.mrf.mxu0
        %v4708 = vadd.f32 %v4694, %v4707
        %4709 = vdwg.mxu0
        %4710 = vmatpush.bf16.msra.mxu0 %v3598
        %4711 = vmatpush.bf16.msra.mxu0 %v3590
        %4712 = vmatpush.bf16.msra.mxu0 %v3582
        %4713 = vmatpush.bf16.msra.mxu0 %v3574
        %4714 = vmatpush.bf16.msra.mxu0 %v3566
        %4715 = vmatpush.bf16.msra.mxu0 %v3558
        %4716 = vmatpush.bf16.msra.mxu0 %v3550
        %4717 = vmatpush.bf16.msra.mxu0 %v3542
        %4718 = vmatmul.bf16.gmra.mxu0 %v1592
        %v4719 = vpop.f32.mrf.mxu0
        %v4720 = vadd.f32 %v4706, %v4719
        %v4721 = vpop.f32.mrf.mxu0
        %v4722 = vadd.f32 %v4708, %v4721
        %4723 = vdwg.mxu0
        %4724 = vmatpush.bf16.msra.mxu0 %v3662
        %4725 = vmatpush.bf16.msra.mxu0 %v3654
        %4726 = vmatpush.bf16.msra.mxu0 %v3646
        %4727 = vmatpush.bf16.msra.mxu0 %v3638
        %4728 = vmatpush.bf16.msra.mxu0 %v3630
        %4729 = vmatpush.bf16.msra.mxu0 %v3622
        %4730 = vmatpush.bf16.msra.mxu0 %v3614
        %4731 = vmatpush.bf16.msra.mxu0 %v3606
        %4732 = vmatmul.bf16.gmra.mxu0 %v1609
        %v4733 = vpop.f32.mrf.mxu0
        %v4734 = vadd.f32 %v4720, %v4733
        %v4735 = vpop.f32.mrf.mxu0
        %v4736 = vadd.f32 %v4722, %v4735
        %4737 = vdwg.mxu0
        %4738 = vmatpush.bf16.msra.mxu0 %v3215
        %4739 = vmatpush.bf16.msra.mxu0 %v3207
        %4740 = vmatpush.bf16.msra.mxu0 %v3199
        %4741 = vmatpush.bf16.msra.mxu0 %v3191
        %4742 = vmatpush.bf16.msra.mxu0 %v3183
        %4743 = vmatpush.bf16.msra.mxu0 %v3175
        %4744 = vmatpush.bf16.msra.mxu0 %v3167
        %4745 = vmatpush.bf16.msra.mxu0 %v3159
        %4746 = vmatmul.bf16.gmra.mxu0 %v1490
        %v4747 = vpop.f32.mrf.mxu0
        %v4748 = vadd.f32 0.0, %v4747
        %v4749 = vpop.f32.mrf.mxu0
        %v4750 = vadd.f32 0.0, %v4749
        %4751 = vdwg.mxu0
        %4752 = vmatpush.bf16.msra.mxu0 %v3279
        %4753 = vmatpush.bf16.msra.mxu0 %v3271
        %4754 = vmatpush.bf16.msra.mxu0 %v3263
        %4755 = vmatpush.bf16.msra.mxu0 %v3255
        %4756 = vmatpush.bf16.msra.mxu0 %v3247
        %4757 = vmatpush.bf16.msra.mxu0 %v3239
        %4758 = vmatpush.bf16.msra.mxu0 %v3231
        %4759 = vmatpush.bf16.msra.mxu0 %v3223
        %4760 = vmatmul.bf16.gmra.mxu0 %v1507
        %v4761 = vpop.f32.mrf.mxu0
        %v4762 = vadd.f32 %v4748, %v4761
        %v4763 = vpop.f32.mrf.mxu0
        %v4764 = vadd.f32 %v4750, %v4763
        %4765 = vdwg.mxu0
        %4766 = vmatpush.bf16.msra.mxu0 %v3343
        %4767 = vmatpush.bf16.msra.mxu0 %v3335
        %4768 = vmatpush.bf16.msra.mxu0 %v3327
        %4769 = vmatpush.bf16.msra.mxu0 %v3319
        %4770 = vmatpush.bf16.msra.mxu0 %v3311
        %4771 = vmatpush.bf16.msra.mxu0 %v3303
        %4772 = vmatpush.bf16.msra.mxu0 %v3295
        %4773 = vmatpush.bf16.msra.mxu0 %v3287
        %4774 = vmatmul.bf16.gmra.mxu0 %v1524
        %v4775 = vpop.f32.mrf.mxu0
        %v4776 = vadd.f32 %v4762, %v4775
        %v4777 = vpop.f32.mrf.mxu0
        %v4778 = vadd.f32 %v4764, %v4777
        %4779 = vdwg.mxu0
        %4780 = vmatpush.bf16.msra.mxu0 %v3407
        %4781 = vmatpush.bf16.msra.mxu0 %v3399
        %4782 = vmatpush.bf16.msra.mxu0 %v3391
        %4783 = vmatpush.bf16.msra.mxu0 %v3383
        %4784 = vmatpush.bf16.msra.mxu0 %v3375
        %4785 = vmatpush.bf16.msra.mxu0 %v3367
        %4786 = vmatpush.bf16.msra.mxu0 %v3359
        %4787 = vmatpush.bf16.msra.mxu0 %v3351
        %4788 = vmatmul.bf16.gmra.mxu0 %v1541
        %v4789 = vpop.f32.mrf.mxu0
        %v4790 = vadd.f32 %v4776, %v4789
        %v4791 = vpop.f32.mrf.mxu0
        %v4792 = vadd.f32 %v4778, %v4791
        %4793 = vdwg.mxu0
        %4794 = vmatpush.bf16.msra.mxu0 %v3471
        %4795 = vmatpush.bf16.msra.mxu0 %v3463
        %4796 = vmatpush.bf16.msra.mxu0 %v3455
        %4797 = vmatpush.bf16.msra.mxu0 %v3447
        %4798 = vmatpush.bf16.msra.mxu0 %v3439
        %4799 = vmatpush.bf16.msra.mxu0 %v3431
        %4800 = vmatpush.bf16.msra.mxu0 %v3423
        %4801 = vmatpush.bf16.msra.mxu0 %v3415
        %4802 = vmatmul.bf16.gmra.mxu0 %v1558
        %v4803 = vpop.f32.mrf.mxu0
        %v4804 = vadd.f32 %v4790, %v4803
        %v4805 = vpop.f32.mrf.mxu0
        %v4806 = vadd.f32 %v4792, %v4805
        %4807 = vdwg.mxu0
        %4808 = vmatpush.bf16.msra.mxu0 %v3535
        %4809 = vmatpush.bf16.msra.mxu0 %v3527
        %4810 = vmatpush.bf16.msra.mxu0 %v3519
        %4811 = vmatpush.bf16.msra.mxu0 %v3511
        %4812 = vmatpush.bf16.msra.mxu0 %v3503
        %4813 = vmatpush.bf16.msra.mxu0 %v3495
        %4814 = vmatpush.bf16.msra.mxu0 %v3487
        %4815 = vmatpush.bf16.msra.mxu0 %v3479
        %4816 = vmatmul.bf16.gmra.mxu0 %v1575
        %v4817 = vpop.f32.mrf.mxu0
        %v4818 = vadd.f32 %v4804, %v4817
        %v4819 = vpop.f32.mrf.mxu0
        %v4820 = vadd.f32 %v4806, %v4819
        %4821 = vdwg.mxu0
        %4822 = vmatpush.bf16.msra.mxu0 %v3599
        %4823 = vmatpush.bf16.msra.mxu0 %v3591
        %4824 = vmatpush.bf16.msra.mxu0 %v3583
        %4825 = vmatpush.bf16.msra.mxu0 %v3575
        %4826 = vmatpush.bf16.msra.mxu0 %v3567
        %4827 = vmatpush.bf16.msra.mxu0 %v3559
        %4828 = vmatpush.bf16.msra.mxu0 %v3551
        %4829 = vmatpush.bf16.msra.mxu0 %v3543
        %4830 = vmatmul.bf16.gmra.mxu0 %v1592
        %v4831 = vpop.f32.mrf.mxu0
        %v4832 = vadd.f32 %v4818, %v4831
        %v4833 = vpop.f32.mrf.mxu0
        %v4834 = vadd.f32 %v4820, %v4833
        %4835 = vdwg.mxu0
        %4836 = vmatpush.bf16.msra.mxu0 %v3663
        %4837 = vmatpush.bf16.msra.mxu0 %v3655
        %4838 = vmatpush.bf16.msra.mxu0 %v3647
        %4839 = vmatpush.bf16.msra.mxu0 %v3639
        %4840 = vmatpush.bf16.msra.mxu0 %v3631
        %4841 = vmatpush.bf16.msra.mxu0 %v3623
        %4842 = vmatpush.bf16.msra.mxu0 %v3615
        %4843 = vmatpush.bf16.msra.mxu0 %v3607
        %4844 = vmatmul.bf16.gmra.mxu0 %v1609
        %v4845 = vpop.f32.mrf.mxu0
        %v4846 = vadd.f32 %v4832, %v4845
        %v4847 = vpop.f32.mrf.mxu0
        %v4848 = vadd.f32 %v4834, %v4847
        %4849 = vdwg.mxu0
        %4850 = vmatpush.bf16.msra.mxu0 %v3216
        %4851 = vmatpush.bf16.msra.mxu0 %v3208
        %4852 = vmatpush.bf16.msra.mxu0 %v3200
        %4853 = vmatpush.bf16.msra.mxu0 %v3192
        %4854 = vmatpush.bf16.msra.mxu0 %v3184
        %4855 = vmatpush.bf16.msra.mxu0 %v3176
        %4856 = vmatpush.bf16.msra.mxu0 %v3168
        %4857 = vmatpush.bf16.msra.mxu0 %v3160
        %4858 = vmatmul.bf16.gmra.mxu0 %v1490
        %v4859 = vpop.f32.mrf.mxu0
        %v4860 = vadd.f32 0.0, %v4859
        %v4861 = vpop.f32.mrf.mxu0
        %v4862 = vadd.f32 0.0, %v4861
        %4863 = vdwg.mxu0
        %4864 = vmatpush.bf16.msra.mxu0 %v3280
        %4865 = vmatpush.bf16.msra.mxu0 %v3272
        %4866 = vmatpush.bf16.msra.mxu0 %v3264
        %4867 = vmatpush.bf16.msra.mxu0 %v3256
        %4868 = vmatpush.bf16.msra.mxu0 %v3248
        %4869 = vmatpush.bf16.msra.mxu0 %v3240
        %4870 = vmatpush.bf16.msra.mxu0 %v3232
        %4871 = vmatpush.bf16.msra.mxu0 %v3224
        %4872 = vmatmul.bf16.gmra.mxu0 %v1507
        %v4873 = vpop.f32.mrf.mxu0
        %v4874 = vadd.f32 %v4860, %v4873
        %v4875 = vpop.f32.mrf.mxu0
        %v4876 = vadd.f32 %v4862, %v4875
        %4877 = vdwg.mxu0
        %4878 = vmatpush.bf16.msra.mxu0 %v3344
        %4879 = vmatpush.bf16.msra.mxu0 %v3336
        %4880 = vmatpush.bf16.msra.mxu0 %v3328
        %4881 = vmatpush.bf16.msra.mxu0 %v3320
        %4882 = vmatpush.bf16.msra.mxu0 %v3312
        %4883 = vmatpush.bf16.msra.mxu0 %v3304
        %4884 = vmatpush.bf16.msra.mxu0 %v3296
        %4885 = vmatpush.bf16.msra.mxu0 %v3288
        %4886 = vmatmul.bf16.gmra.mxu0 %v1524
        %v4887 = vpop.f32.mrf.mxu0
        %v4888 = vadd.f32 %v4874, %v4887
        %v4889 = vpop.f32.mrf.mxu0
        %v4890 = vadd.f32 %v4876, %v4889
        %4891 = vdwg.mxu0
        %4892 = vmatpush.bf16.msra.mxu0 %v3408
        %4893 = vmatpush.bf16.msra.mxu0 %v3400
        %4894 = vmatpush.bf16.msra.mxu0 %v3392
        %4895 = vmatpush.bf16.msra.mxu0 %v3384
        %4896 = vmatpush.bf16.msra.mxu0 %v3376
        %4897 = vmatpush.bf16.msra.mxu0 %v3368
        %4898 = vmatpush.bf16.msra.mxu0 %v3360
        %4899 = vmatpush.bf16.msra.mxu0 %v3352
        %4900 = vmatmul.bf16.gmra.mxu0 %v1541
        %v4901 = vpop.f32.mrf.mxu0
        %v4902 = vadd.f32 %v4888, %v4901
        %v4903 = vpop.f32.mrf.mxu0
        %v4904 = vadd.f32 %v4890, %v4903
        %4905 = vdwg.mxu0
        %4906 = vmatpush.bf16.msra.mxu0 %v3472
        %4907 = vmatpush.bf16.msra.mxu0 %v3464
        %4908 = vmatpush.bf16.msra.mxu0 %v3456
        %4909 = vmatpush.bf16.msra.mxu0 %v3448
        %4910 = vmatpush.bf16.msra.mxu0 %v3440
        %4911 = vmatpush.bf16.msra.mxu0 %v3432
        %4912 = vmatpush.bf16.msra.mxu0 %v3424
        %4913 = vmatpush.bf16.msra.mxu0 %v3416
        %4914 = vmatmul.bf16.gmra.mxu0 %v1558
        %v4915 = vpop.f32.mrf.mxu0
        %v4916 = vadd.f32 %v4902, %v4915
        %v4917 = vpop.f32.mrf.mxu0
        %v4918 = vadd.f32 %v4904, %v4917
        %4919 = vdwg.mxu0
        %4920 = vmatpush.bf16.msra.mxu0 %v3536
        %4921 = vmatpush.bf16.msra.mxu0 %v3528
        %4922 = vmatpush.bf16.msra.mxu0 %v3520
        %4923 = vmatpush.bf16.msra.mxu0 %v3512
        %4924 = vmatpush.bf16.msra.mxu0 %v3504
        %4925 = vmatpush.bf16.msra.mxu0 %v3496
        %4926 = vmatpush.bf16.msra.mxu0 %v3488
        %4927 = vmatpush.bf16.msra.mxu0 %v3480
        %4928 = vmatmul.bf16.gmra.mxu0 %v1575
        %v4929 = vpop.f32.mrf.mxu0
        %v4930 = vadd.f32 %v4916, %v4929
        %v4931 = vpop.f32.mrf.mxu0
        %v4932 = vadd.f32 %v4918, %v4931
        %4933 = vdwg.mxu0
        %4934 = vmatpush.bf16.msra.mxu0 %v3600
        %4935 = vmatpush.bf16.msra.mxu0 %v3592
        %4936 = vmatpush.bf16.msra.mxu0 %v3584
        %4937 = vmatpush.bf16.msra.mxu0 %v3576
        %4938 = vmatpush.bf16.msra.mxu0 %v3568
        %4939 = vmatpush.bf16.msra.mxu0 %v3560
        %4940 = vmatpush.bf16.msra.mxu0 %v3552
        %4941 = vmatpush.bf16.msra.mxu0 %v3544
        %4942 = vmatmul.bf16.gmra.mxu0 %v1592
        %v4943 = vpop.f32.mrf.mxu0
        %v4944 = vadd.f32 %v4930, %v4943
        %v4945 = vpop.f32.mrf.mxu0
        %v4946 = vadd.f32 %v4932, %v4945
        %4947 = vdwg.mxu0
        %4948 = vmatpush.bf16.msra.mxu0 %v3664
        %4949 = vmatpush.bf16.msra.mxu0 %v3656
        %4950 = vmatpush.bf16.msra.mxu0 %v3648
        %4951 = vmatpush.bf16.msra.mxu0 %v3640
        %4952 = vmatpush.bf16.msra.mxu0 %v3632
        %4953 = vmatpush.bf16.msra.mxu0 %v3624
        %4954 = vmatpush.bf16.msra.mxu0 %v3616
        %4955 = vmatpush.bf16.msra.mxu0 %v3608
        %4956 = vmatmul.bf16.gmra.mxu0 %v1609
        %v4957 = vpop.f32.mrf.mxu0
        %v4958 = vadd.f32 %v4944, %v4957
        %v4959 = vpop.f32.mrf.mxu0
        %v4960 = vadd.f32 %v4946, %v4959
        %4961 = vdwg.mxu0
        %4962 = vmatpush.bf16.msra.mxu0 %v3217
        %4963 = vmatpush.bf16.msra.mxu0 %v3209
        %4964 = vmatpush.bf16.msra.mxu0 %v3201
        %4965 = vmatpush.bf16.msra.mxu0 %v3193
        %4966 = vmatpush.bf16.msra.mxu0 %v3185
        %4967 = vmatpush.bf16.msra.mxu0 %v3177
        %4968 = vmatpush.bf16.msra.mxu0 %v3169
        %4969 = vmatpush.bf16.msra.mxu0 %v3161
        %4970 = vmatmul.bf16.gmra.mxu0 %v1490
        %v4971 = vpop.f32.mrf.mxu0
        %v4972 = vadd.f32 0.0, %v4971
        %v4973 = vpop.f32.mrf.mxu0
        %v4974 = vadd.f32 0.0, %v4973
        %4975 = vdwg.mxu0
        %4976 = vmatpush.bf16.msra.mxu0 %v3281
        %4977 = vmatpush.bf16.msra.mxu0 %v3273
        %4978 = vmatpush.bf16.msra.mxu0 %v3265
        %4979 = vmatpush.bf16.msra.mxu0 %v3257
        %4980 = vmatpush.bf16.msra.mxu0 %v3249
        %4981 = vmatpush.bf16.msra.mxu0 %v3241
        %4982 = vmatpush.bf16.msra.mxu0 %v3233
        %4983 = vmatpush.bf16.msra.mxu0 %v3225
        %4984 = vmatmul.bf16.gmra.mxu0 %v1507
        %v4985 = vpop.f32.mrf.mxu0
        %v4986 = vadd.f32 %v4972, %v4985
        %v4987 = vpop.f32.mrf.mxu0
        %v4988 = vadd.f32 %v4974, %v4987
        %4989 = vdwg.mxu0
        %4990 = vmatpush.bf16.msra.mxu0 %v3345
        %4991 = vmatpush.bf16.msra.mxu0 %v3337
        %4992 = vmatpush.bf16.msra.mxu0 %v3329
        %4993 = vmatpush.bf16.msra.mxu0 %v3321
        %4994 = vmatpush.bf16.msra.mxu0 %v3313
        %4995 = vmatpush.bf16.msra.mxu0 %v3305
        %4996 = vmatpush.bf16.msra.mxu0 %v3297
        %4997 = vmatpush.bf16.msra.mxu0 %v3289
        %4998 = vmatmul.bf16.gmra.mxu0 %v1524
        %v4999 = vpop.f32.mrf.mxu0
        %v5000 = vadd.f32 %v4986, %v4999
        %v5001 = vpop.f32.mrf.mxu0
        %v5002 = vadd.f32 %v4988, %v5001
        %5003 = vdwg.mxu0
        %5004 = vmatpush.bf16.msra.mxu0 %v3409
        %5005 = vmatpush.bf16.msra.mxu0 %v3401
        %5006 = vmatpush.bf16.msra.mxu0 %v3393
        %5007 = vmatpush.bf16.msra.mxu0 %v3385
        %5008 = vmatpush.bf16.msra.mxu0 %v3377
        %5009 = vmatpush.bf16.msra.mxu0 %v3369
        %5010 = vmatpush.bf16.msra.mxu0 %v3361
        %5011 = vmatpush.bf16.msra.mxu0 %v3353
        %5012 = vmatmul.bf16.gmra.mxu0 %v1541
        %v5013 = vpop.f32.mrf.mxu0
        %v5014 = vadd.f32 %v5000, %v5013
        %v5015 = vpop.f32.mrf.mxu0
        %v5016 = vadd.f32 %v5002, %v5015
        %5017 = vdwg.mxu0
        %5018 = vmatpush.bf16.msra.mxu0 %v3473
        %5019 = vmatpush.bf16.msra.mxu0 %v3465
        %5020 = vmatpush.bf16.msra.mxu0 %v3457
        %5021 = vmatpush.bf16.msra.mxu0 %v3449
        %5022 = vmatpush.bf16.msra.mxu0 %v3441
        %5023 = vmatpush.bf16.msra.mxu0 %v3433
        %5024 = vmatpush.bf16.msra.mxu0 %v3425
        %5025 = vmatpush.bf16.msra.mxu0 %v3417
        %5026 = vmatmul.bf16.gmra.mxu0 %v1558
        %v5027 = vpop.f32.mrf.mxu0
        %v5028 = vadd.f32 %v5014, %v5027
        %v5029 = vpop.f32.mrf.mxu0
        %v5030 = vadd.f32 %v5016, %v5029
        %5031 = vdwg.mxu0
        %5032 = vmatpush.bf16.msra.mxu0 %v3537
        %5033 = vmatpush.bf16.msra.mxu0 %v3529
        %5034 = vmatpush.bf16.msra.mxu0 %v3521
        %5035 = vmatpush.bf16.msra.mxu0 %v3513
        %5036 = vmatpush.bf16.msra.mxu0 %v3505
        %5037 = vmatpush.bf16.msra.mxu0 %v3497
        %5038 = vmatpush.bf16.msra.mxu0 %v3489
        %5039 = vmatpush.bf16.msra.mxu0 %v3481
        %5040 = vmatmul.bf16.gmra.mxu0 %v1575
        %v5041 = vpop.f32.mrf.mxu0
        %v5042 = vadd.f32 %v5028, %v5041
        %v5043 = vpop.f32.mrf.mxu0
        %v5044 = vadd.f32 %v5030, %v5043
        %5045 = vdwg.mxu0
        %5046 = vmatpush.bf16.msra.mxu0 %v3601
        %5047 = vmatpush.bf16.msra.mxu0 %v3593
        %5048 = vmatpush.bf16.msra.mxu0 %v3585
        %5049 = vmatpush.bf16.msra.mxu0 %v3577
        %5050 = vmatpush.bf16.msra.mxu0 %v3569
        %5051 = vmatpush.bf16.msra.mxu0 %v3561
        %5052 = vmatpush.bf16.msra.mxu0 %v3553
        %5053 = vmatpush.bf16.msra.mxu0 %v3545
        %5054 = vmatmul.bf16.gmra.mxu0 %v1592
        %v5055 = vpop.f32.mrf.mxu0
        %v5056 = vadd.f32 %v5042, %v5055
        %v5057 = vpop.f32.mrf.mxu0
        %v5058 = vadd.f32 %v5044, %v5057
        %5059 = vdwg.mxu0
        %5060 = vmatpush.bf16.msra.mxu0 %v3665
        %5061 = vmatpush.bf16.msra.mxu0 %v3657
        %5062 = vmatpush.bf16.msra.mxu0 %v3649
        %5063 = vmatpush.bf16.msra.mxu0 %v3641
        %5064 = vmatpush.bf16.msra.mxu0 %v3633
        %5065 = vmatpush.bf16.msra.mxu0 %v3625
        %5066 = vmatpush.bf16.msra.mxu0 %v3617
        %5067 = vmatpush.bf16.msra.mxu0 %v3609
        %5068 = vmatmul.bf16.gmra.mxu0 %v1609
        %v5069 = vpop.f32.mrf.mxu0
        %v5070 = vadd.f32 %v5056, %v5069
        %v5071 = vpop.f32.mrf.mxu0
        %v5072 = vadd.f32 %v5058, %v5071
        %5073 = vdwg.mxu0
        %v5075 = vperm.slane %v920, 0
        %v5076 = vperm.slane %v920, 1
        %v5077 = vperm.slane %v920, 2
        %v5078 = vperm.slane %v920, 3
        %v5079 = vperm.slane %v920, 4
        %v5080 = vperm.slane %v920, 5
        %v5081 = vperm.slane %v920, 6
        %v5082 = vperm.slane %v920, 7
        %v5091 = vadd.f32 %v5075, %v4286
        %v5092 = vadd.f32 %v5076, %v4398
        %v5093 = vadd.f32 %v5077, %v4510
        %v5094 = vadd.f32 %v5078, %v4622
        %v5095 = vadd.f32 %v5079, %v4734
        %v5096 = vadd.f32 %v5080, %v4846
        %v5097 = vadd.f32 %v5081, %v4958
        %v5098 = vadd.f32 %v5082, %v5070
        %v5099 = vadd.f32 %v5075, %v4288
        %v5100 = vadd.f32 %v5076, %v4400
        %v5101 = vadd.f32 %v5077, %v4512
        %v5102 = vadd.f32 %v5078, %v4624
        %v5103 = vadd.f32 %v5079, %v4736
        %v5104 = vadd.f32 %v5080, %v4848
        %v5105 = vadd.f32 %v5081, %v4960
        %v5106 = vadd.f32 %v5082, %v5072
        %v5107 = vld [vmem:[#allocation3 + $0x80] sm:$0xff]
        %v5108 = vld [vmem:[#allocation3 + $0x88] sm:$0xff]
        %v5109 = vld [vmem:[#allocation3 + $0x90] sm:$0xff]
        %v5110 = vld [vmem:[#allocation3 + $0x98] sm:$0xff]
        %v5111 = vld [vmem:[#allocation3 + $0xa0] sm:$0xff]
        %v5112 = vld [vmem:[#allocation3 + $0xa8] sm:$0xff]
        %v5113 = vld [vmem:[#allocation3 + $0xb0] sm:$0xff]
        %v5114 = vld [vmem:[#allocation3 + $0xb8] sm:$0xff]
        %v5115 = vpack.c.bf16 %v5107, %v929
        %v5116 = vpack.c.bf16 %v5108, %v930
        %v5117 = vpack.c.bf16 %v5109, %v931
        %v5118 = vpack.c.bf16 %v5110, %v932
        %v5119 = vpack.c.bf16 %v5111, %v933
        %v5120 = vpack.c.bf16 %v5112, %v934
        %v5121 = vpack.c.bf16 %v5113, %v935
        %v5122 = vpack.c.bf16 %v5114, %v936
        %s5123 = scalar_lea.vmem [#allocation10], 4096
        %v5124 = vld [vmem:[%s5123] sm:$0xff]
        %v5125 = vld [vmem:[%s5123 + $0x8] sm:$0xff]
        %v5126 = vld [vmem:[%s5123 + $0x10] sm:$0xff]
        %v5127 = vld [vmem:[%s5123 + $0x18] sm:$0xff]
        %v5128 = vld [vmem:[%s5123 + $0x20] sm:$0xff]
        %v5129 = vld [vmem:[%s5123 + $0x28] sm:$0xff]
        %v5130 = vld [vmem:[%s5123 + $0x30] sm:$0xff]
        %v5131 = vld [vmem:[%s5123 + $0x38] sm:$0xff]
        %v5132 = vld [vmem:[%s5123 + $0x40] sm:$0xff]
        %v5133 = vld [vmem:[%s5123 + $0x48] sm:$0xff]
        %v5134 = vld [vmem:[%s5123 + $0x50] sm:$0xff]
        %v5135 = vld [vmem:[%s5123 + $0x58] sm:$0xff]
        %v5136 = vld [vmem:[%s5123 + $0x60] sm:$0xff]
        %v5137 = vld [vmem:[%s5123 + $0x68] sm:$0xff]
        %v5138 = vld [vmem:[%s5123 + $0x70] sm:$0xff]
        %v5139 = vld [vmem:[%s5123 + $0x78] sm:$0xff]
        %v5140 = vld [vmem:[%s5123 + $0x80] sm:$0xff]
        %v5141 = vld [vmem:[%s5123 + $0x88] sm:$0xff]
        %v5142 = vld [vmem:[%s5123 + $0x90] sm:$0xff]
        %v5143 = vld [vmem:[%s5123 + $0x98] sm:$0xff]
        %v5144 = vld [vmem:[%s5123 + $0xa0] sm:$0xff]
        %v5145 = vld [vmem:[%s5123 + $0xa8] sm:$0xff]
        %v5146 = vld [vmem:[%s5123 + $0xb0] sm:$0xff]
        %v5147 = vld [vmem:[%s5123 + $0xb8] sm:$0xff]
        %v5148 = vld [vmem:[%s5123 + $0xc0] sm:$0xff]
        %v5149 = vld [vmem:[%s5123 + $0xc8] sm:$0xff]
        %v5150 = vld [vmem:[%s5123 + $0xd0] sm:$0xff]
        %v5151 = vld [vmem:[%s5123 + $0xd8] sm:$0xff]
        %v5152 = vld [vmem:[%s5123 + $0xe0] sm:$0xff]
        %v5153 = vld [vmem:[%s5123 + $0xe8] sm:$0xff]
        %v5154 = vld [vmem:[%s5123 + $0xf0] sm:$0xff]
        %v5155 = vld [vmem:[%s5123 + $0xf8] sm:$0xff]
        %v5156 = vld [vmem:[%s5123 + $0x100] sm:$0xff]
        %v5157 = vld [vmem:[%s5123 + $0x108] sm:$0xff]
        %v5158 = vld [vmem:[%s5123 + $0x110] sm:$0xff]
        %v5159 = vld [vmem:[%s5123 + $0x118] sm:$0xff]
        %v5160 = vld [vmem:[%s5123 + $0x120] sm:$0xff]
        %v5161 = vld [vmem:[%s5123 + $0x128] sm:$0xff]
        %v5162 = vld [vmem:[%s5123 + $0x130] sm:$0xff]
        %v5163 = vld [vmem:[%s5123 + $0x138] sm:$0xff]
        %v5164 = vld [vmem:[%s5123 + $0x140] sm:$0xff]
        %v5165 = vld [vmem:[%s5123 + $0x148] sm:$0xff]
        %v5166 = vld [vmem:[%s5123 + $0x150] sm:$0xff]
        %v5167 = vld [vmem:[%s5123 + $0x158] sm:$0xff]
        %v5168 = vld [vmem:[%s5123 + $0x160] sm:$0xff]
        %v5169 = vld [vmem:[%s5123 + $0x168] sm:$0xff]
        %v5170 = vld [vmem:[%s5123 + $0x170] sm:$0xff]
        %v5171 = vld [vmem:[%s5123 + $0x178] sm:$0xff]
        %v5172 = vld [vmem:[%s5123 + $0x180] sm:$0xff]
        %v5173 = vld [vmem:[%s5123 + $0x188] sm:$0xff]
        %v5174 = vld [vmem:[%s5123 + $0x190] sm:$0xff]
        %v5175 = vld [vmem:[%s5123 + $0x198] sm:$0xff]
        %v5176 = vld [vmem:[%s5123 + $0x1a0] sm:$0xff]
        %v5177 = vld [vmem:[%s5123 + $0x1a8] sm:$0xff]
        %v5178 = vld [vmem:[%s5123 + $0x1b0] sm:$0xff]
        %v5179 = vld [vmem:[%s5123 + $0x1b8] sm:$0xff]
        %v5180 = vld [vmem:[%s5123 + $0x1c0] sm:$0xff]
        %v5181 = vld [vmem:[%s5123 + $0x1c8] sm:$0xff]
        %v5182 = vld [vmem:[%s5123 + $0x1d0] sm:$0xff]
        %v5183 = vld [vmem:[%s5123 + $0x1d8] sm:$0xff]
        %v5184 = vld [vmem:[%s5123 + $0x1e0] sm:$0xff]
        %v5185 = vld [vmem:[%s5123 + $0x1e8] sm:$0xff]
        %v5186 = vld [vmem:[%s5123 + $0x1f0] sm:$0xff]
        %v5187 = vld [vmem:[%s5123 + $0x1f8] sm:$0xff]
        %v5188 = vld [vmem:[%s5123 + $0x200] sm:$0xff]
        %v5189 = vld [vmem:[%s5123 + $0x208] sm:$0xff]
        %v5190 = vld [vmem:[%s5123 + $0x210] sm:$0xff]
        %v5191 = vld [vmem:[%s5123 + $0x218] sm:$0xff]
        %v5192 = vld [vmem:[%s5123 + $0x220] sm:$0xff]
        %v5193 = vld [vmem:[%s5123 + $0x228] sm:$0xff]
        %v5194 = vld [vmem:[%s5123 + $0x230] sm:$0xff]
        %v5195 = vld [vmem:[%s5123 + $0x238] sm:$0xff]
        %v5196 = vld [vmem:[%s5123 + $0x240] sm:$0xff]
        %v5197 = vld [vmem:[%s5123 + $0x248] sm:$0xff]
        %v5198 = vld [vmem:[%s5123 + $0x250] sm:$0xff]
        %v5199 = vld [vmem:[%s5123 + $0x258] sm:$0xff]
        %v5200 = vld [vmem:[%s5123 + $0x260] sm:$0xff]
        %v5201 = vld [vmem:[%s5123 + $0x268] sm:$0xff]
        %v5202 = vld [vmem:[%s5123 + $0x270] sm:$0xff]
        %v5203 = vld [vmem:[%s5123 + $0x278] sm:$0xff]
        %v5204 = vld [vmem:[%s5123 + $0x280] sm:$0xff]
        %v5205 = vld [vmem:[%s5123 + $0x288] sm:$0xff]
        %v5206 = vld [vmem:[%s5123 + $0x290] sm:$0xff]
        %v5207 = vld [vmem:[%s5123 + $0x298] sm:$0xff]
        %v5208 = vld [vmem:[%s5123 + $0x2a0] sm:$0xff]
        %v5209 = vld [vmem:[%s5123 + $0x2a8] sm:$0xff]
        %v5210 = vld [vmem:[%s5123 + $0x2b0] sm:$0xff]
        %v5211 = vld [vmem:[%s5123 + $0x2b8] sm:$0xff]
        %v5212 = vld [vmem:[%s5123 + $0x2c0] sm:$0xff]
        %v5213 = vld [vmem:[%s5123 + $0x2c8] sm:$0xff]
        %v5214 = vld [vmem:[%s5123 + $0x2d0] sm:$0xff]
        %v5215 = vld [vmem:[%s5123 + $0x2d8] sm:$0xff]
        %v5216 = vld [vmem:[%s5123 + $0x2e0] sm:$0xff]
        %v5217 = vld [vmem:[%s5123 + $0x2e8] sm:$0xff]
        %v5218 = vld [vmem:[%s5123 + $0x2f0] sm:$0xff]
        %v5219 = vld [vmem:[%s5123 + $0x2f8] sm:$0xff]
        %v5220 = vld [vmem:[%s5123 + $0x300] sm:$0xff]
        %v5221 = vld [vmem:[%s5123 + $0x308] sm:$0xff]
        %v5222 = vld [vmem:[%s5123 + $0x310] sm:$0xff]
        %v5223 = vld [vmem:[%s5123 + $0x318] sm:$0xff]
        %v5224 = vld [vmem:[%s5123 + $0x320] sm:$0xff]
        %v5225 = vld [vmem:[%s5123 + $0x328] sm:$0xff]
        %v5226 = vld [vmem:[%s5123 + $0x330] sm:$0xff]
        %v5227 = vld [vmem:[%s5123 + $0x338] sm:$0xff]
        %v5228 = vld [vmem:[%s5123 + $0x340] sm:$0xff]
        %v5229 = vld [vmem:[%s5123 + $0x348] sm:$0xff]
        %v5230 = vld [vmem:[%s5123 + $0x350] sm:$0xff]
        %v5231 = vld [vmem:[%s5123 + $0x358] sm:$0xff]
        %v5232 = vld [vmem:[%s5123 + $0x360] sm:$0xff]
        %v5233 = vld [vmem:[%s5123 + $0x368] sm:$0xff]
        %v5234 = vld [vmem:[%s5123 + $0x370] sm:$0xff]
        %v5235 = vld [vmem:[%s5123 + $0x378] sm:$0xff]
        %v5236 = vld [vmem:[%s5123 + $0x380] sm:$0xff]
        %v5237 = vld [vmem:[%s5123 + $0x388] sm:$0xff]
        %v5238 = vld [vmem:[%s5123 + $0x390] sm:$0xff]
        %v5239 = vld [vmem:[%s5123 + $0x398] sm:$0xff]
        %v5240 = vld [vmem:[%s5123 + $0x3a0] sm:$0xff]
        %v5241 = vld [vmem:[%s5123 + $0x3a8] sm:$0xff]
        %v5242 = vld [vmem:[%s5123 + $0x3b0] sm:$0xff]
        %v5243 = vld [vmem:[%s5123 + $0x3b8] sm:$0xff]
        %v5244 = vld [vmem:[%s5123 + $0x3c0] sm:$0xff]
        %v5245 = vld [vmem:[%s5123 + $0x3c8] sm:$0xff]
        %v5246 = vld [vmem:[%s5123 + $0x3d0] sm:$0xff]
        %v5247 = vld [vmem:[%s5123 + $0x3d8] sm:$0xff]
        %v5248 = vld [vmem:[%s5123 + $0x3e0] sm:$0xff]
        %v5249 = vld [vmem:[%s5123 + $0x3e8] sm:$0xff]
        %v5250 = vld [vmem:[%s5123 + $0x3f0] sm:$0xff]
        %v5251 = vld [vmem:[%s5123 + $0x3f8] sm:$0xff]
        %v5252 = vld [vmem:[%s5123 + $0x400] sm:$0xff]
        %v5253 = vld [vmem:[%s5123 + $0x408] sm:$0xff]
        %v5254 = vld [vmem:[%s5123 + $0x410] sm:$0xff]
        %v5255 = vld [vmem:[%s5123 + $0x418] sm:$0xff]
        %v5256 = vld [vmem:[%s5123 + $0x420] sm:$0xff]
        %v5257 = vld [vmem:[%s5123 + $0x428] sm:$0xff]
        %v5258 = vld [vmem:[%s5123 + $0x430] sm:$0xff]
        %v5259 = vld [vmem:[%s5123 + $0x438] sm:$0xff]
        %v5260 = vld [vmem:[%s5123 + $0x440] sm:$0xff]
        %v5261 = vld [vmem:[%s5123 + $0x448] sm:$0xff]
        %v5262 = vld [vmem:[%s5123 + $0x450] sm:$0xff]
        %v5263 = vld [vmem:[%s5123 + $0x458] sm:$0xff]
        %v5264 = vld [vmem:[%s5123 + $0x460] sm:$0xff]
        %v5265 = vld [vmem:[%s5123 + $0x468] sm:$0xff]
        %v5266 = vld [vmem:[%s5123 + $0x470] sm:$0xff]
        %v5267 = vld [vmem:[%s5123 + $0x478] sm:$0xff]
        %v5268 = vld [vmem:[%s5123 + $0x480] sm:$0xff]
        %v5269 = vld [vmem:[%s5123 + $0x488] sm:$0xff]
        %v5270 = vld [vmem:[%s5123 + $0x490] sm:$0xff]
        %v5271 = vld [vmem:[%s5123 + $0x498] sm:$0xff]
        %v5272 = vld [vmem:[%s5123 + $0x4a0] sm:$0xff]
        %v5273 = vld [vmem:[%s5123 + $0x4a8] sm:$0xff]
        %v5274 = vld [vmem:[%s5123 + $0x4b0] sm:$0xff]
        %v5275 = vld [vmem:[%s5123 + $0x4b8] sm:$0xff]
        %v5276 = vld [vmem:[%s5123 + $0x4c0] sm:$0xff]
        %v5277 = vld [vmem:[%s5123 + $0x4c8] sm:$0xff]
        %v5278 = vld [vmem:[%s5123 + $0x4d0] sm:$0xff]
        %v5279 = vld [vmem:[%s5123 + $0x4d8] sm:$0xff]
        %v5280 = vld [vmem:[%s5123 + $0x4e0] sm:$0xff]
        %v5281 = vld [vmem:[%s5123 + $0x4e8] sm:$0xff]
        %v5282 = vld [vmem:[%s5123 + $0x4f0] sm:$0xff]
        %v5283 = vld [vmem:[%s5123 + $0x4f8] sm:$0xff]
        %v5284 = vld [vmem:[%s5123 + $0x500] sm:$0xff]
        %v5285 = vld [vmem:[%s5123 + $0x508] sm:$0xff]
        %v5286 = vld [vmem:[%s5123 + $0x510] sm:$0xff]
        %v5287 = vld [vmem:[%s5123 + $0x518] sm:$0xff]
        %v5288 = vld [vmem:[%s5123 + $0x520] sm:$0xff]
        %v5289 = vld [vmem:[%s5123 + $0x528] sm:$0xff]
        %v5290 = vld [vmem:[%s5123 + $0x530] sm:$0xff]
        %v5291 = vld [vmem:[%s5123 + $0x538] sm:$0xff]
        %v5292 = vld [vmem:[%s5123 + $0x540] sm:$0xff]
        %v5293 = vld [vmem:[%s5123 + $0x548] sm:$0xff]
        %v5294 = vld [vmem:[%s5123 + $0x550] sm:$0xff]
        %v5295 = vld [vmem:[%s5123 + $0x558] sm:$0xff]
        %v5296 = vld [vmem:[%s5123 + $0x560] sm:$0xff]
        %v5297 = vld [vmem:[%s5123 + $0x568] sm:$0xff]
        %v5298 = vld [vmem:[%s5123 + $0x570] sm:$0xff]
        %v5299 = vld [vmem:[%s5123 + $0x578] sm:$0xff]
        %v5300 = vld [vmem:[%s5123 + $0x580] sm:$0xff]
        %v5301 = vld [vmem:[%s5123 + $0x588] sm:$0xff]
        %v5302 = vld [vmem:[%s5123 + $0x590] sm:$0xff]
        %v5303 = vld [vmem:[%s5123 + $0x598] sm:$0xff]
        %v5304 = vld [vmem:[%s5123 + $0x5a0] sm:$0xff]
        %v5305 = vld [vmem:[%s5123 + $0x5a8] sm:$0xff]
        %v5306 = vld [vmem:[%s5123 + $0x5b0] sm:$0xff]
        %v5307 = vld [vmem:[%s5123 + $0x5b8] sm:$0xff]
        %v5308 = vld [vmem:[%s5123 + $0x5c0] sm:$0xff]
        %v5309 = vld [vmem:[%s5123 + $0x5c8] sm:$0xff]
        %v5310 = vld [vmem:[%s5123 + $0x5d0] sm:$0xff]
        %v5311 = vld [vmem:[%s5123 + $0x5d8] sm:$0xff]
        %v5312 = vld [vmem:[%s5123 + $0x5e0] sm:$0xff]
        %v5313 = vld [vmem:[%s5123 + $0x5e8] sm:$0xff]
        %v5314 = vld [vmem:[%s5123 + $0x5f0] sm:$0xff]
        %v5315 = vld [vmem:[%s5123 + $0x5f8] sm:$0xff]
        %v5316 = vld [vmem:[%s5123 + $0x600] sm:$0xff]
        %v5317 = vld [vmem:[%s5123 + $0x608] sm:$0xff]
        %v5318 = vld [vmem:[%s5123 + $0x610] sm:$0xff]
        %v5319 = vld [vmem:[%s5123 + $0x618] sm:$0xff]
        %v5320 = vld [vmem:[%s5123 + $0x620] sm:$0xff]
        %v5321 = vld [vmem:[%s5123 + $0x628] sm:$0xff]
        %v5322 = vld [vmem:[%s5123 + $0x630] sm:$0xff]
        %v5323 = vld [vmem:[%s5123 + $0x638] sm:$0xff]
        %v5324 = vld [vmem:[%s5123 + $0x640] sm:$0xff]
        %v5325 = vld [vmem:[%s5123 + $0x648] sm:$0xff]
        %v5326 = vld [vmem:[%s5123 + $0x650] sm:$0xff]
        %v5327 = vld [vmem:[%s5123 + $0x658] sm:$0xff]
        %v5328 = vld [vmem:[%s5123 + $0x660] sm:$0xff]
        %v5329 = vld [vmem:[%s5123 + $0x668] sm:$0xff]
        %v5330 = vld [vmem:[%s5123 + $0x670] sm:$0xff]
        %v5331 = vld [vmem:[%s5123 + $0x678] sm:$0xff]
        %v5332 = vld [vmem:[%s5123 + $0x680] sm:$0xff]
        %v5333 = vld [vmem:[%s5123 + $0x688] sm:$0xff]
        %v5334 = vld [vmem:[%s5123 + $0x690] sm:$0xff]
        %v5335 = vld [vmem:[%s5123 + $0x698] sm:$0xff]
        %v5336 = vld [vmem:[%s5123 + $0x6a0] sm:$0xff]
        %v5337 = vld [vmem:[%s5123 + $0x6a8] sm:$0xff]
        %v5338 = vld [vmem:[%s5123 + $0x6b0] sm:$0xff]
        %v5339 = vld [vmem:[%s5123 + $0x6b8] sm:$0xff]
        %v5340 = vld [vmem:[%s5123 + $0x6c0] sm:$0xff]
        %v5341 = vld [vmem:[%s5123 + $0x6c8] sm:$0xff]
        %v5342 = vld [vmem:[%s5123 + $0x6d0] sm:$0xff]
        %v5343 = vld [vmem:[%s5123 + $0x6d8] sm:$0xff]
        %v5344 = vld [vmem:[%s5123 + $0x6e0] sm:$0xff]
        %v5345 = vld [vmem:[%s5123 + $0x6e8] sm:$0xff]
        %v5346 = vld [vmem:[%s5123 + $0x6f0] sm:$0xff]
        %v5347 = vld [vmem:[%s5123 + $0x6f8] sm:$0xff]
        %v5348 = vld [vmem:[%s5123 + $0x700] sm:$0xff]
        %v5349 = vld [vmem:[%s5123 + $0x708] sm:$0xff]
        %v5350 = vld [vmem:[%s5123 + $0x710] sm:$0xff]
        %v5351 = vld [vmem:[%s5123 + $0x718] sm:$0xff]
        %v5352 = vld [vmem:[%s5123 + $0x720] sm:$0xff]
        %v5353 = vld [vmem:[%s5123 + $0x728] sm:$0xff]
        %v5354 = vld [vmem:[%s5123 + $0x730] sm:$0xff]
        %v5355 = vld [vmem:[%s5123 + $0x738] sm:$0xff]
        %v5356 = vld [vmem:[%s5123 + $0x740] sm:$0xff]
        %v5357 = vld [vmem:[%s5123 + $0x748] sm:$0xff]
        %v5358 = vld [vmem:[%s5123 + $0x750] sm:$0xff]
        %v5359 = vld [vmem:[%s5123 + $0x758] sm:$0xff]
        %v5360 = vld [vmem:[%s5123 + $0x760] sm:$0xff]
        %v5361 = vld [vmem:[%s5123 + $0x768] sm:$0xff]
        %v5362 = vld [vmem:[%s5123 + $0x770] sm:$0xff]
        %v5363 = vld [vmem:[%s5123 + $0x778] sm:$0xff]
        %v5364 = vld [vmem:[%s5123 + $0x780] sm:$0xff]
        %v5365 = vld [vmem:[%s5123 + $0x788] sm:$0xff]
        %v5366 = vld [vmem:[%s5123 + $0x790] sm:$0xff]
        %v5367 = vld [vmem:[%s5123 + $0x798] sm:$0xff]
        %v5368 = vld [vmem:[%s5123 + $0x7a0] sm:$0xff]
        %v5369 = vld [vmem:[%s5123 + $0x7a8] sm:$0xff]
        %v5370 = vld [vmem:[%s5123 + $0x7b0] sm:$0xff]
        %v5371 = vld [vmem:[%s5123 + $0x7b8] sm:$0xff]
        %v5372 = vld [vmem:[%s5123 + $0x7c0] sm:$0xff]
        %v5373 = vld [vmem:[%s5123 + $0x7c8] sm:$0xff]
        %v5374 = vld [vmem:[%s5123 + $0x7d0] sm:$0xff]
        %v5375 = vld [vmem:[%s5123 + $0x7d8] sm:$0xff]
        %v5376 = vld [vmem:[%s5123 + $0x7e0] sm:$0xff]
        %v5377 = vld [vmem:[%s5123 + $0x7e8] sm:$0xff]
        %v5378 = vld [vmem:[%s5123 + $0x7f0] sm:$0xff]
        %v5379 = vld [vmem:[%s5123 + $0x7f8] sm:$0xff]
        %v5380 = vld [vmem:[%s5123 + $0x800] sm:$0xff]
        %v5381 = vld [vmem:[%s5123 + $0x808] sm:$0xff]
        %v5382 = vld [vmem:[%s5123 + $0x810] sm:$0xff]
        %v5383 = vld [vmem:[%s5123 + $0x818] sm:$0xff]
        %v5384 = vld [vmem:[%s5123 + $0x820] sm:$0xff]
        %v5385 = vld [vmem:[%s5123 + $0x828] sm:$0xff]
        %v5386 = vld [vmem:[%s5123 + $0x830] sm:$0xff]
        %v5387 = vld [vmem:[%s5123 + $0x838] sm:$0xff]
        %v5388 = vld [vmem:[%s5123 + $0x840] sm:$0xff]
        %v5389 = vld [vmem:[%s5123 + $0x848] sm:$0xff]
        %v5390 = vld [vmem:[%s5123 + $0x850] sm:$0xff]
        %v5391 = vld [vmem:[%s5123 + $0x858] sm:$0xff]
        %v5392 = vld [vmem:[%s5123 + $0x860] sm:$0xff]
        %v5393 = vld [vmem:[%s5123 + $0x868] sm:$0xff]
        %v5394 = vld [vmem:[%s5123 + $0x870] sm:$0xff]
        %v5395 = vld [vmem:[%s5123 + $0x878] sm:$0xff]
        %v5396 = vld [vmem:[%s5123 + $0x880] sm:$0xff]
        %v5397 = vld [vmem:[%s5123 + $0x888] sm:$0xff]
        %v5398 = vld [vmem:[%s5123 + $0x890] sm:$0xff]
        %v5399 = vld [vmem:[%s5123 + $0x898] sm:$0xff]
        %v5400 = vld [vmem:[%s5123 + $0x8a0] sm:$0xff]
        %v5401 = vld [vmem:[%s5123 + $0x8a8] sm:$0xff]
        %v5402 = vld [vmem:[%s5123 + $0x8b0] sm:$0xff]
        %v5403 = vld [vmem:[%s5123 + $0x8b8] sm:$0xff]
        %v5404 = vld [vmem:[%s5123 + $0x8c0] sm:$0xff]
        %v5405 = vld [vmem:[%s5123 + $0x8c8] sm:$0xff]
        %v5406 = vld [vmem:[%s5123 + $0x8d0] sm:$0xff]
        %v5407 = vld [vmem:[%s5123 + $0x8d8] sm:$0xff]
        %v5408 = vld [vmem:[%s5123 + $0x8e0] sm:$0xff]
        %v5409 = vld [vmem:[%s5123 + $0x8e8] sm:$0xff]
        %v5410 = vld [vmem:[%s5123 + $0x8f0] sm:$0xff]
        %v5411 = vld [vmem:[%s5123 + $0x8f8] sm:$0xff]
        %v5412 = vld [vmem:[%s5123 + $0x900] sm:$0xff]
        %v5413 = vld [vmem:[%s5123 + $0x908] sm:$0xff]
        %v5414 = vld [vmem:[%s5123 + $0x910] sm:$0xff]
        %v5415 = vld [vmem:[%s5123 + $0x918] sm:$0xff]
        %v5416 = vld [vmem:[%s5123 + $0x920] sm:$0xff]
        %v5417 = vld [vmem:[%s5123 + $0x928] sm:$0xff]
        %v5418 = vld [vmem:[%s5123 + $0x930] sm:$0xff]
        %v5419 = vld [vmem:[%s5123 + $0x938] sm:$0xff]
        %v5420 = vld [vmem:[%s5123 + $0x940] sm:$0xff]
        %v5421 = vld [vmem:[%s5123 + $0x948] sm:$0xff]
        %v5422 = vld [vmem:[%s5123 + $0x950] sm:$0xff]
        %v5423 = vld [vmem:[%s5123 + $0x958] sm:$0xff]
        %v5424 = vld [vmem:[%s5123 + $0x960] sm:$0xff]
        %v5425 = vld [vmem:[%s5123 + $0x968] sm:$0xff]
        %v5426 = vld [vmem:[%s5123 + $0x970] sm:$0xff]
        %v5427 = vld [vmem:[%s5123 + $0x978] sm:$0xff]
        %v5428 = vld [vmem:[%s5123 + $0x980] sm:$0xff]
        %v5429 = vld [vmem:[%s5123 + $0x988] sm:$0xff]
        %v5430 = vld [vmem:[%s5123 + $0x990] sm:$0xff]
        %v5431 = vld [vmem:[%s5123 + $0x998] sm:$0xff]
        %v5432 = vld [vmem:[%s5123 + $0x9a0] sm:$0xff]
        %v5433 = vld [vmem:[%s5123 + $0x9a8] sm:$0xff]
        %v5434 = vld [vmem:[%s5123 + $0x9b0] sm:$0xff]
        %v5435 = vld [vmem:[%s5123 + $0x9b8] sm:$0xff]
        %v5436 = vld [vmem:[%s5123 + $0x9c0] sm:$0xff]
        %v5437 = vld [vmem:[%s5123 + $0x9c8] sm:$0xff]
        %v5438 = vld [vmem:[%s5123 + $0x9d0] sm:$0xff]
        %v5439 = vld [vmem:[%s5123 + $0x9d8] sm:$0xff]
        %v5440 = vld [vmem:[%s5123 + $0x9e0] sm:$0xff]
        %v5441 = vld [vmem:[%s5123 + $0x9e8] sm:$0xff]
        %v5442 = vld [vmem:[%s5123 + $0x9f0] sm:$0xff]
        %v5443 = vld [vmem:[%s5123 + $0x9f8] sm:$0xff]
        %v5444 = vld [vmem:[%s5123 + $0xa00] sm:$0xff]
        %v5445 = vld [vmem:[%s5123 + $0xa08] sm:$0xff]
        %v5446 = vld [vmem:[%s5123 + $0xa10] sm:$0xff]
        %v5447 = vld [vmem:[%s5123 + $0xa18] sm:$0xff]
        %v5448 = vld [vmem:[%s5123 + $0xa20] sm:$0xff]
        %v5449 = vld [vmem:[%s5123 + $0xa28] sm:$0xff]
        %v5450 = vld [vmem:[%s5123 + $0xa30] sm:$0xff]
        %v5451 = vld [vmem:[%s5123 + $0xa38] sm:$0xff]
        %v5452 = vld [vmem:[%s5123 + $0xa40] sm:$0xff]
        %v5453 = vld [vmem:[%s5123 + $0xa48] sm:$0xff]
        %v5454 = vld [vmem:[%s5123 + $0xa50] sm:$0xff]
        %v5455 = vld [vmem:[%s5123 + $0xa58] sm:$0xff]
        %v5456 = vld [vmem:[%s5123 + $0xa60] sm:$0xff]
        %v5457 = vld [vmem:[%s5123 + $0xa68] sm:$0xff]
        %v5458 = vld [vmem:[%s5123 + $0xa70] sm:$0xff]
        %v5459 = vld [vmem:[%s5123 + $0xa78] sm:$0xff]
        %v5460 = vld [vmem:[%s5123 + $0xa80] sm:$0xff]
        %v5461 = vld [vmem:[%s5123 + $0xa88] sm:$0xff]
        %v5462 = vld [vmem:[%s5123 + $0xa90] sm:$0xff]
        %v5463 = vld [vmem:[%s5123 + $0xa98] sm:$0xff]
        %v5464 = vld [vmem:[%s5123 + $0xaa0] sm:$0xff]
        %v5465 = vld [vmem:[%s5123 + $0xaa8] sm:$0xff]
        %v5466 = vld [vmem:[%s5123 + $0xab0] sm:$0xff]
        %v5467 = vld [vmem:[%s5123 + $0xab8] sm:$0xff]
        %v5468 = vld [vmem:[%s5123 + $0xac0] sm:$0xff]
        %v5469 = vld [vmem:[%s5123 + $0xac8] sm:$0xff]
        %v5470 = vld [vmem:[%s5123 + $0xad0] sm:$0xff]
        %v5471 = vld [vmem:[%s5123 + $0xad8] sm:$0xff]
        %v5472 = vld [vmem:[%s5123 + $0xae0] sm:$0xff]
        %v5473 = vld [vmem:[%s5123 + $0xae8] sm:$0xff]
        %v5474 = vld [vmem:[%s5123 + $0xaf0] sm:$0xff]
        %v5475 = vld [vmem:[%s5123 + $0xaf8] sm:$0xff]
        %v5476 = vld [vmem:[%s5123 + $0xb00] sm:$0xff]
        %v5477 = vld [vmem:[%s5123 + $0xb08] sm:$0xff]
        %v5478 = vld [vmem:[%s5123 + $0xb10] sm:$0xff]
        %v5479 = vld [vmem:[%s5123 + $0xb18] sm:$0xff]
        %v5480 = vld [vmem:[%s5123 + $0xb20] sm:$0xff]
        %v5481 = vld [vmem:[%s5123 + $0xb28] sm:$0xff]
        %v5482 = vld [vmem:[%s5123 + $0xb30] sm:$0xff]
        %v5483 = vld [vmem:[%s5123 + $0xb38] sm:$0xff]
        %v5484 = vld [vmem:[%s5123 + $0xb40] sm:$0xff]
        %v5485 = vld [vmem:[%s5123 + $0xb48] sm:$0xff]
        %v5486 = vld [vmem:[%s5123 + $0xb50] sm:$0xff]
        %v5487 = vld [vmem:[%s5123 + $0xb58] sm:$0xff]
        %v5488 = vld [vmem:[%s5123 + $0xb60] sm:$0xff]
        %v5489 = vld [vmem:[%s5123 + $0xb68] sm:$0xff]
        %v5490 = vld [vmem:[%s5123 + $0xb70] sm:$0xff]
        %v5491 = vld [vmem:[%s5123 + $0xb78] sm:$0xff]
        %v5492 = vld [vmem:[%s5123 + $0xb80] sm:$0xff]
        %v5493 = vld [vmem:[%s5123 + $0xb88] sm:$0xff]
        %v5494 = vld [vmem:[%s5123 + $0xb90] sm:$0xff]
        %v5495 = vld [vmem:[%s5123 + $0xb98] sm:$0xff]
        %v5496 = vld [vmem:[%s5123 + $0xba0] sm:$0xff]
        %v5497 = vld [vmem:[%s5123 + $0xba8] sm:$0xff]
        %v5498 = vld [vmem:[%s5123 + $0xbb0] sm:$0xff]
        %v5499 = vld [vmem:[%s5123 + $0xbb8] sm:$0xff]
        %v5500 = vld [vmem:[%s5123 + $0xbc0] sm:$0xff]
        %v5501 = vld [vmem:[%s5123 + $0xbc8] sm:$0xff]
        %v5502 = vld [vmem:[%s5123 + $0xbd0] sm:$0xff]
        %v5503 = vld [vmem:[%s5123 + $0xbd8] sm:$0xff]
        %v5504 = vld [vmem:[%s5123 + $0xbe0] sm:$0xff]
        %v5505 = vld [vmem:[%s5123 + $0xbe8] sm:$0xff]
        %v5506 = vld [vmem:[%s5123 + $0xbf0] sm:$0xff]
        %v5507 = vld [vmem:[%s5123 + $0xbf8] sm:$0xff]
        %v5508 = vld [vmem:[%s5123 + $0xc00] sm:$0xff]
        %v5509 = vld [vmem:[%s5123 + $0xc08] sm:$0xff]
        %v5510 = vld [vmem:[%s5123 + $0xc10] sm:$0xff]
        %v5511 = vld [vmem:[%s5123 + $0xc18] sm:$0xff]
        %v5512 = vld [vmem:[%s5123 + $0xc20] sm:$0xff]
        %v5513 = vld [vmem:[%s5123 + $0xc28] sm:$0xff]
        %v5514 = vld [vmem:[%s5123 + $0xc30] sm:$0xff]
        %v5515 = vld [vmem:[%s5123 + $0xc38] sm:$0xff]
        %v5516 = vld [vmem:[%s5123 + $0xc40] sm:$0xff]
        %v5517 = vld [vmem:[%s5123 + $0xc48] sm:$0xff]
        %v5518 = vld [vmem:[%s5123 + $0xc50] sm:$0xff]
        %v5519 = vld [vmem:[%s5123 + $0xc58] sm:$0xff]
        %v5520 = vld [vmem:[%s5123 + $0xc60] sm:$0xff]
        %v5521 = vld [vmem:[%s5123 + $0xc68] sm:$0xff]
        %v5522 = vld [vmem:[%s5123 + $0xc70] sm:$0xff]
        %v5523 = vld [vmem:[%s5123 + $0xc78] sm:$0xff]
        %v5524 = vld [vmem:[%s5123 + $0xc80] sm:$0xff]
        %v5525 = vld [vmem:[%s5123 + $0xc88] sm:$0xff]
        %v5526 = vld [vmem:[%s5123 + $0xc90] sm:$0xff]
        %v5527 = vld [vmem:[%s5123 + $0xc98] sm:$0xff]
        %v5528 = vld [vmem:[%s5123 + $0xca0] sm:$0xff]
        %v5529 = vld [vmem:[%s5123 + $0xca8] sm:$0xff]
        %v5530 = vld [vmem:[%s5123 + $0xcb0] sm:$0xff]
        %v5531 = vld [vmem:[%s5123 + $0xcb8] sm:$0xff]
        %v5532 = vld [vmem:[%s5123 + $0xcc0] sm:$0xff]
        %v5533 = vld [vmem:[%s5123 + $0xcc8] sm:$0xff]
        %v5534 = vld [vmem:[%s5123 + $0xcd0] sm:$0xff]
        %v5535 = vld [vmem:[%s5123 + $0xcd8] sm:$0xff]
        %v5536 = vld [vmem:[%s5123 + $0xce0] sm:$0xff]
        %v5537 = vld [vmem:[%s5123 + $0xce8] sm:$0xff]
        %v5538 = vld [vmem:[%s5123 + $0xcf0] sm:$0xff]
        %v5539 = vld [vmem:[%s5123 + $0xcf8] sm:$0xff]
        %v5540 = vld [vmem:[%s5123 + $0xd00] sm:$0xff]
        %v5541 = vld [vmem:[%s5123 + $0xd08] sm:$0xff]
        %v5542 = vld [vmem:[%s5123 + $0xd10] sm:$0xff]
        %v5543 = vld [vmem:[%s5123 + $0xd18] sm:$0xff]
        %v5544 = vld [vmem:[%s5123 + $0xd20] sm:$0xff]
        %v5545 = vld [vmem:[%s5123 + $0xd28] sm:$0xff]
        %v5546 = vld [vmem:[%s5123 + $0xd30] sm:$0xff]
        %v5547 = vld [vmem:[%s5123 + $0xd38] sm:$0xff]
        %v5548 = vld [vmem:[%s5123 + $0xd40] sm:$0xff]
        %v5549 = vld [vmem:[%s5123 + $0xd48] sm:$0xff]
        %v5550 = vld [vmem:[%s5123 + $0xd50] sm:$0xff]
        %v5551 = vld [vmem:[%s5123 + $0xd58] sm:$0xff]
        %v5552 = vld [vmem:[%s5123 + $0xd60] sm:$0xff]
        %v5553 = vld [vmem:[%s5123 + $0xd68] sm:$0xff]
        %v5554 = vld [vmem:[%s5123 + $0xd70] sm:$0xff]
        %v5555 = vld [vmem:[%s5123 + $0xd78] sm:$0xff]
        %v5556 = vld [vmem:[%s5123 + $0xd80] sm:$0xff]
        %v5557 = vld [vmem:[%s5123 + $0xd88] sm:$0xff]
        %v5558 = vld [vmem:[%s5123 + $0xd90] sm:$0xff]
        %v5559 = vld [vmem:[%s5123 + $0xd98] sm:$0xff]
        %v5560 = vld [vmem:[%s5123 + $0xda0] sm:$0xff]
        %v5561 = vld [vmem:[%s5123 + $0xda8] sm:$0xff]
        %v5562 = vld [vmem:[%s5123 + $0xdb0] sm:$0xff]
        %v5563 = vld [vmem:[%s5123 + $0xdb8] sm:$0xff]
        %v5564 = vld [vmem:[%s5123 + $0xdc0] sm:$0xff]
        %v5565 = vld [vmem:[%s5123 + $0xdc8] sm:$0xff]
        %v5566 = vld [vmem:[%s5123 + $0xdd0] sm:$0xff]
        %v5567 = vld [vmem:[%s5123 + $0xdd8] sm:$0xff]
        %v5568 = vld [vmem:[%s5123 + $0xde0] sm:$0xff]
        %v5569 = vld [vmem:[%s5123 + $0xde8] sm:$0xff]
        %v5570 = vld [vmem:[%s5123 + $0xdf0] sm:$0xff]
        %v5571 = vld [vmem:[%s5123 + $0xdf8] sm:$0xff]
        %v5572 = vld [vmem:[%s5123 + $0xe00] sm:$0xff]
        %v5573 = vld [vmem:[%s5123 + $0xe08] sm:$0xff]
        %v5574 = vld [vmem:[%s5123 + $0xe10] sm:$0xff]
        %v5575 = vld [vmem:[%s5123 + $0xe18] sm:$0xff]
        %v5576 = vld [vmem:[%s5123 + $0xe20] sm:$0xff]
        %v5577 = vld [vmem:[%s5123 + $0xe28] sm:$0xff]
        %v5578 = vld [vmem:[%s5123 + $0xe30] sm:$0xff]
        %v5579 = vld [vmem:[%s5123 + $0xe38] sm:$0xff]
        %v5580 = vld [vmem:[%s5123 + $0xe40] sm:$0xff]
        %v5581 = vld [vmem:[%s5123 + $0xe48] sm:$0xff]
        %v5582 = vld [vmem:[%s5123 + $0xe50] sm:$0xff]
        %v5583 = vld [vmem:[%s5123 + $0xe58] sm:$0xff]
        %v5584 = vld [vmem:[%s5123 + $0xe60] sm:$0xff]
        %v5585 = vld [vmem:[%s5123 + $0xe68] sm:$0xff]
        %v5586 = vld [vmem:[%s5123 + $0xe70] sm:$0xff]
        %v5587 = vld [vmem:[%s5123 + $0xe78] sm:$0xff]
        %v5588 = vld [vmem:[%s5123 + $0xe80] sm:$0xff]
        %v5589 = vld [vmem:[%s5123 + $0xe88] sm:$0xff]
        %v5590 = vld [vmem:[%s5123 + $0xe90] sm:$0xff]
        %v5591 = vld [vmem:[%s5123 + $0xe98] sm:$0xff]
        %v5592 = vld [vmem:[%s5123 + $0xea0] sm:$0xff]
        %v5593 = vld [vmem:[%s5123 + $0xea8] sm:$0xff]
        %v5594 = vld [vmem:[%s5123 + $0xeb0] sm:$0xff]
        %v5595 = vld [vmem:[%s5123 + $0xeb8] sm:$0xff]
        %v5596 = vld [vmem:[%s5123 + $0xec0] sm:$0xff]
        %v5597 = vld [vmem:[%s5123 + $0xec8] sm:$0xff]
        %v5598 = vld [vmem:[%s5123 + $0xed0] sm:$0xff]
        %v5599 = vld [vmem:[%s5123 + $0xed8] sm:$0xff]
        %v5600 = vld [vmem:[%s5123 + $0xee0] sm:$0xff]
        %v5601 = vld [vmem:[%s5123 + $0xee8] sm:$0xff]
        %v5602 = vld [vmem:[%s5123 + $0xef0] sm:$0xff]
        %v5603 = vld [vmem:[%s5123 + $0xef8] sm:$0xff]
        %v5604 = vld [vmem:[%s5123 + $0xf00] sm:$0xff]
        %v5605 = vld [vmem:[%s5123 + $0xf08] sm:$0xff]
        %v5606 = vld [vmem:[%s5123 + $0xf10] sm:$0xff]
        %v5607 = vld [vmem:[%s5123 + $0xf18] sm:$0xff]
        %v5608 = vld [vmem:[%s5123 + $0xf20] sm:$0xff]
        %v5609 = vld [vmem:[%s5123 + $0xf28] sm:$0xff]
        %v5610 = vld [vmem:[%s5123 + $0xf30] sm:$0xff]
        %v5611 = vld [vmem:[%s5123 + $0xf38] sm:$0xff]
        %v5612 = vld [vmem:[%s5123 + $0xf40] sm:$0xff]
        %v5613 = vld [vmem:[%s5123 + $0xf48] sm:$0xff]
        %v5614 = vld [vmem:[%s5123 + $0xf50] sm:$0xff]
        %v5615 = vld [vmem:[%s5123 + $0xf58] sm:$0xff]
        %v5616 = vld [vmem:[%s5123 + $0xf60] sm:$0xff]
        %v5617 = vld [vmem:[%s5123 + $0xf68] sm:$0xff]
        %v5618 = vld [vmem:[%s5123 + $0xf70] sm:$0xff]
        %v5619 = vld [vmem:[%s5123 + $0xf78] sm:$0xff]
        %v5620 = vld [vmem:[%s5123 + $0xf80] sm:$0xff]
        %v5621 = vld [vmem:[%s5123 + $0xf88] sm:$0xff]
        %v5622 = vld [vmem:[%s5123 + $0xf90] sm:$0xff]
        %v5623 = vld [vmem:[%s5123 + $0xf98] sm:$0xff]
        %v5624 = vld [vmem:[%s5123 + $0xfa0] sm:$0xff]
        %v5625 = vld [vmem:[%s5123 + $0xfa8] sm:$0xff]
        %v5626 = vld [vmem:[%s5123 + $0xfb0] sm:$0xff]
        %v5627 = vld [vmem:[%s5123 + $0xfb8] sm:$0xff]
        %v5628 = vld [vmem:[%s5123 + $0xfc0] sm:$0xff]
        %v5629 = vld [vmem:[%s5123 + $0xfc8] sm:$0xff]
        %v5630 = vld [vmem:[%s5123 + $0xfd0] sm:$0xff]
        %v5631 = vld [vmem:[%s5123 + $0xfd8] sm:$0xff]
        %v5632 = vld [vmem:[%s5123 + $0xfe0] sm:$0xff]
        %v5633 = vld [vmem:[%s5123 + $0xfe8] sm:$0xff]
        %v5634 = vld [vmem:[%s5123 + $0xff0] sm:$0xff]
        %v5635 = vld [vmem:[%s5123 + $0xff8] sm:$0xff]
        %v6148 = vunpack.c.l.b16 %v5124
        %v6149 = vunpack.c.h.b16 %v5124
        %v6150 = vunpack.c.l.b16 %v5125
        %v6151 = vunpack.c.h.b16 %v5125
        %v6152 = vunpack.c.l.b16 %v5126
        %v6153 = vunpack.c.h.b16 %v5126
        %v6154 = vunpack.c.l.b16 %v5127
        %v6155 = vunpack.c.h.b16 %v5127
        %v6156 = vunpack.c.l.b16 %v5128
        %v6157 = vunpack.c.h.b16 %v5128
        %v6158 = vunpack.c.l.b16 %v5129
        %v6159 = vunpack.c.h.b16 %v5129
        %v6160 = vunpack.c.l.b16 %v5130
        %v6161 = vunpack.c.h.b16 %v5130
        %v6162 = vunpack.c.l.b16 %v5131
        %v6163 = vunpack.c.h.b16 %v5131
        %v6164 = vunpack.c.l.b16 %v5132
        %v6165 = vunpack.c.h.b16 %v5132
        %v6166 = vunpack.c.l.b16 %v5133
        %v6167 = vunpack.c.h.b16 %v5133
        %v6168 = vunpack.c.l.b16 %v5134
        %v6169 = vunpack.c.h.b16 %v5134
        %v6170 = vunpack.c.l.b16 %v5135
        %v6171 = vunpack.c.h.b16 %v5135
        %v6172 = vunpack.c.l.b16 %v5136
        %v6173 = vunpack.c.h.b16 %v5136
        %v6174 = vunpack.c.l.b16 %v5137
        %v6175 = vunpack.c.h.b16 %v5137
        %v6176 = vunpack.c.l.b16 %v5138
        %v6177 = vunpack.c.h.b16 %v5138
        %v6178 = vunpack.c.l.b16 %v5139
        %v6179 = vunpack.c.h.b16 %v5139
        %v6180 = vunpack.c.l.b16 %v5140
        %v6181 = vunpack.c.h.b16 %v5140
        %v6182 = vunpack.c.l.b16 %v5141
        %v6183 = vunpack.c.h.b16 %v5141
        %v6184 = vunpack.c.l.b16 %v5142
        %v6185 = vunpack.c.h.b16 %v5142
        %v6186 = vunpack.c.l.b16 %v5143
        %v6187 = vunpack.c.h.b16 %v5143
        %v6188 = vunpack.c.l.b16 %v5144
        %v6189 = vunpack.c.h.b16 %v5144
        %v6190 = vunpack.c.l.b16 %v5145
        %v6191 = vunpack.c.h.b16 %v5145
        %v6192 = vunpack.c.l.b16 %v5146
        %v6193 = vunpack.c.h.b16 %v5146
        %v6194 = vunpack.c.l.b16 %v5147
        %v6195 = vunpack.c.h.b16 %v5147
        %v6196 = vunpack.c.l.b16 %v5148
        %v6197 = vunpack.c.h.b16 %v5148
        %v6198 = vunpack.c.l.b16 %v5149
        %v6199 = vunpack.c.h.b16 %v5149
        %v6200 = vunpack.c.l.b16 %v5150
        %v6201 = vunpack.c.h.b16 %v5150
        %v6202 = vunpack.c.l.b16 %v5151
        %v6203 = vunpack.c.h.b16 %v5151
        %v6204 = vunpack.c.l.b16 %v5152
        %v6205 = vunpack.c.h.b16 %v5152
        %v6206 = vunpack.c.l.b16 %v5153
        %v6207 = vunpack.c.h.b16 %v5153
        %v6208 = vunpack.c.l.b16 %v5154
        %v6209 = vunpack.c.h.b16 %v5154
        %v6210 = vunpack.c.l.b16 %v5155
        %v6211 = vunpack.c.h.b16 %v5155
        %v6212 = vunpack.c.l.b16 %v5156
        %v6213 = vunpack.c.h.b16 %v5156
        %v6214 = vunpack.c.l.b16 %v5157
        %v6215 = vunpack.c.h.b16 %v5157
        %v6216 = vunpack.c.l.b16 %v5158
        %v6217 = vunpack.c.h.b16 %v5158
        %v6218 = vunpack.c.l.b16 %v5159
        %v6219 = vunpack.c.h.b16 %v5159
        %v6220 = vunpack.c.l.b16 %v5160
        %v6221 = vunpack.c.h.b16 %v5160
        %v6222 = vunpack.c.l.b16 %v5161
        %v6223 = vunpack.c.h.b16 %v5161
        %v6224 = vunpack.c.l.b16 %v5162
        %v6225 = vunpack.c.h.b16 %v5162
        %v6226 = vunpack.c.l.b16 %v5163
        %v6227 = vunpack.c.h.b16 %v5163
        %v6228 = vunpack.c.l.b16 %v5164
        %v6229 = vunpack.c.h.b16 %v5164
        %v6230 = vunpack.c.l.b16 %v5165
        %v6231 = vunpack.c.h.b16 %v5165
        %v6232 = vunpack.c.l.b16 %v5166
        %v6233 = vunpack.c.h.b16 %v5166
        %v6234 = vunpack.c.l.b16 %v5167
        %v6235 = vunpack.c.h.b16 %v5167
        %v6236 = vunpack.c.l.b16 %v5168
        %v6237 = vunpack.c.h.b16 %v5168
        %v6238 = vunpack.c.l.b16 %v5169
        %v6239 = vunpack.c.h.b16 %v5169
        %v6240 = vunpack.c.l.b16 %v5170
        %v6241 = vunpack.c.h.b16 %v5170
        %v6242 = vunpack.c.l.b16 %v5171
        %v6243 = vunpack.c.h.b16 %v5171
        %v6244 = vunpack.c.l.b16 %v5172
        %v6245 = vunpack.c.h.b16 %v5172
        %v6246 = vunpack.c.l.b16 %v5173
        %v6247 = vunpack.c.h.b16 %v5173
        %v6248 = vunpack.c.l.b16 %v5174
        %v6249 = vunpack.c.h.b16 %v5174
        %v6250 = vunpack.c.l.b16 %v5175
        %v6251 = vunpack.c.h.b16 %v5175
        %v6252 = vunpack.c.l.b16 %v5176
        %v6253 = vunpack.c.h.b16 %v5176
        %v6254 = vunpack.c.l.b16 %v5177
        %v6255 = vunpack.c.h.b16 %v5177
        %v6256 = vunpack.c.l.b16 %v5178
        %v6257 = vunpack.c.h.b16 %v5178
        %v6258 = vunpack.c.l.b16 %v5179
        %v6259 = vunpack.c.h.b16 %v5179
        %v6260 = vunpack.c.l.b16 %v5180
        %v6261 = vunpack.c.h.b16 %v5180
        %v6262 = vunpack.c.l.b16 %v5181
        %v6263 = vunpack.c.h.b16 %v5181
        %v6264 = vunpack.c.l.b16 %v5182
        %v6265 = vunpack.c.h.b16 %v5182
        %v6266 = vunpack.c.l.b16 %v5183
        %v6267 = vunpack.c.h.b16 %v5183
        %v6268 = vunpack.c.l.b16 %v5184
        %v6269 = vunpack.c.h.b16 %v5184
        %v6270 = vunpack.c.l.b16 %v5185
        %v6271 = vunpack.c.h.b16 %v5185
        %v6272 = vunpack.c.l.b16 %v5186
        %v6273 = vunpack.c.h.b16 %v5186
        %v6274 = vunpack.c.l.b16 %v5187
        %v6275 = vunpack.c.h.b16 %v5187
        %v6276 = vunpack.c.l.b16 %v5188
        %v6277 = vunpack.c.h.b16 %v5188
        %v6278 = vunpack.c.l.b16 %v5189
        %v6279 = vunpack.c.h.b16 %v5189
        %v6280 = vunpack.c.l.b16 %v5190
        %v6281 = vunpack.c.h.b16 %v5190
        %v6282 = vunpack.c.l.b16 %v5191
        %v6283 = vunpack.c.h.b16 %v5191
        %v6284 = vunpack.c.l.b16 %v5192
        %v6285 = vunpack.c.h.b16 %v5192
        %v6286 = vunpack.c.l.b16 %v5193
        %v6287 = vunpack.c.h.b16 %v5193
        %v6288 = vunpack.c.l.b16 %v5194
        %v6289 = vunpack.c.h.b16 %v5194
        %v6290 = vunpack.c.l.b16 %v5195
        %v6291 = vunpack.c.h.b16 %v5195
        %v6292 = vunpack.c.l.b16 %v5196
        %v6293 = vunpack.c.h.b16 %v5196
        %v6294 = vunpack.c.l.b16 %v5197
        %v6295 = vunpack.c.h.b16 %v5197
        %v6296 = vunpack.c.l.b16 %v5198
        %v6297 = vunpack.c.h.b16 %v5198
        %v6298 = vunpack.c.l.b16 %v5199
        %v6299 = vunpack.c.h.b16 %v5199
        %v6300 = vunpack.c.l.b16 %v5200
        %v6301 = vunpack.c.h.b16 %v5200
        %v6302 = vunpack.c.l.b16 %v5201
        %v6303 = vunpack.c.h.b16 %v5201
        %v6304 = vunpack.c.l.b16 %v5202
        %v6305 = vunpack.c.h.b16 %v5202
        %v6306 = vunpack.c.l.b16 %v5203
        %v6307 = vunpack.c.h.b16 %v5203
        %v6308 = vunpack.c.l.b16 %v5204
        %v6309 = vunpack.c.h.b16 %v5204
        %v6310 = vunpack.c.l.b16 %v5205
        %v6311 = vunpack.c.h.b16 %v5205
        %v6312 = vunpack.c.l.b16 %v5206
        %v6313 = vunpack.c.h.b16 %v5206
        %v6314 = vunpack.c.l.b16 %v5207
        %v6315 = vunpack.c.h.b16 %v5207
        %v6316 = vunpack.c.l.b16 %v5208
        %v6317 = vunpack.c.h.b16 %v5208
        %v6318 = vunpack.c.l.b16 %v5209
        %v6319 = vunpack.c.h.b16 %v5209
        %v6320 = vunpack.c.l.b16 %v5210
        %v6321 = vunpack.c.h.b16 %v5210
        %v6322 = vunpack.c.l.b16 %v5211
        %v6323 = vunpack.c.h.b16 %v5211
        %v6324 = vunpack.c.l.b16 %v5212
        %v6325 = vunpack.c.h.b16 %v5212
        %v6326 = vunpack.c.l.b16 %v5213
        %v6327 = vunpack.c.h.b16 %v5213
        %v6328 = vunpack.c.l.b16 %v5214
        %v6329 = vunpack.c.h.b16 %v5214
        %v6330 = vunpack.c.l.b16 %v5215
        %v6331 = vunpack.c.h.b16 %v5215
        %v6332 = vunpack.c.l.b16 %v5216
        %v6333 = vunpack.c.h.b16 %v5216
        %v6334 = vunpack.c.l.b16 %v5217
        %v6335 = vunpack.c.h.b16 %v5217
        %v6336 = vunpack.c.l.b16 %v5218
        %v6337 = vunpack.c.h.b16 %v5218
        %v6338 = vunpack.c.l.b16 %v5219
        %v6339 = vunpack.c.h.b16 %v5219
        %v6340 = vunpack.c.l.b16 %v5220
        %v6341 = vunpack.c.h.b16 %v5220
        %v6342 = vunpack.c.l.b16 %v5221
        %v6343 = vunpack.c.h.b16 %v5221
        %v6344 = vunpack.c.l.b16 %v5222
        %v6345 = vunpack.c.h.b16 %v5222
        %v6346 = vunpack.c.l.b16 %v5223
        %v6347 = vunpack.c.h.b16 %v5223
        %v6348 = vunpack.c.l.b16 %v5224
        %v6349 = vunpack.c.h.b16 %v5224
        %v6350 = vunpack.c.l.b16 %v5225
        %v6351 = vunpack.c.h.b16 %v5225
        %v6352 = vunpack.c.l.b16 %v5226
        %v6353 = vunpack.c.h.b16 %v5226
        %v6354 = vunpack.c.l.b16 %v5227
        %v6355 = vunpack.c.h.b16 %v5227
        %v6356 = vunpack.c.l.b16 %v5228
        %v6357 = vunpack.c.h.b16 %v5228
        %v6358 = vunpack.c.l.b16 %v5229
        %v6359 = vunpack.c.h.b16 %v5229
        %v6360 = vunpack.c.l.b16 %v5230
        %v6361 = vunpack.c.h.b16 %v5230
        %v6362 = vunpack.c.l.b16 %v5231
        %v6363 = vunpack.c.h.b16 %v5231
        %v6364 = vunpack.c.l.b16 %v5232
        %v6365 = vunpack.c.h.b16 %v5232
        %v6366 = vunpack.c.l.b16 %v5233
        %v6367 = vunpack.c.h.b16 %v5233
        %v6368 = vunpack.c.l.b16 %v5234
        %v6369 = vunpack.c.h.b16 %v5234
        %v6370 = vunpack.c.l.b16 %v5235
        %v6371 = vunpack.c.h.b16 %v5235
        %v6372 = vunpack.c.l.b16 %v5236
        %v6373 = vunpack.c.h.b16 %v5236
        %v6374 = vunpack.c.l.b16 %v5237
        %v6375 = vunpack.c.h.b16 %v5237
        %v6376 = vunpack.c.l.b16 %v5238
        %v6377 = vunpack.c.h.b16 %v5238
        %v6378 = vunpack.c.l.b16 %v5239
        %v6379 = vunpack.c.h.b16 %v5239
        %v6380 = vunpack.c.l.b16 %v5240
        %v6381 = vunpack.c.h.b16 %v5240
        %v6382 = vunpack.c.l.b16 %v5241
        %v6383 = vunpack.c.h.b16 %v5241
        %v6384 = vunpack.c.l.b16 %v5242
        %v6385 = vunpack.c.h.b16 %v5242
        %v6386 = vunpack.c.l.b16 %v5243
        %v6387 = vunpack.c.h.b16 %v5243
        %v6388 = vunpack.c.l.b16 %v5244
        %v6389 = vunpack.c.h.b16 %v5244
        %v6390 = vunpack.c.l.b16 %v5245
        %v6391 = vunpack.c.h.b16 %v5245
        %v6392 = vunpack.c.l.b16 %v5246
        %v6393 = vunpack.c.h.b16 %v5246
        %v6394 = vunpack.c.l.b16 %v5247
        %v6395 = vunpack.c.h.b16 %v5247
        %v6396 = vunpack.c.l.b16 %v5248
        %v6397 = vunpack.c.h.b16 %v5248
        %v6398 = vunpack.c.l.b16 %v5249
        %v6399 = vunpack.c.h.b16 %v5249
        %v6400 = vunpack.c.l.b16 %v5250
        %v6401 = vunpack.c.h.b16 %v5250
        %v6402 = vunpack.c.l.b16 %v5251
        %v6403 = vunpack.c.h.b16 %v5251
        %v6404 = vunpack.c.l.b16 %v5252
        %v6405 = vunpack.c.h.b16 %v5252
        %v6406 = vunpack.c.l.b16 %v5253
        %v6407 = vunpack.c.h.b16 %v5253
        %v6408 = vunpack.c.l.b16 %v5254
        %v6409 = vunpack.c.h.b16 %v5254
        %v6410 = vunpack.c.l.b16 %v5255
        %v6411 = vunpack.c.h.b16 %v5255
        %v6412 = vunpack.c.l.b16 %v5256
        %v6413 = vunpack.c.h.b16 %v5256
        %v6414 = vunpack.c.l.b16 %v5257
        %v6415 = vunpack.c.h.b16 %v5257
        %v6416 = vunpack.c.l.b16 %v5258
        %v6417 = vunpack.c.h.b16 %v5258
        %v6418 = vunpack.c.l.b16 %v5259
        %v6419 = vunpack.c.h.b16 %v5259
        %v6420 = vunpack.c.l.b16 %v5260
        %v6421 = vunpack.c.h.b16 %v5260
        %v6422 = vunpack.c.l.b16 %v5261
        %v6423 = vunpack.c.h.b16 %v5261
        %v6424 = vunpack.c.l.b16 %v5262
        %v6425 = vunpack.c.h.b16 %v5262
        %v6426 = vunpack.c.l.b16 %v5263
        %v6427 = vunpack.c.h.b16 %v5263
        %v6428 = vunpack.c.l.b16 %v5264
        %v6429 = vunpack.c.h.b16 %v5264
        %v6430 = vunpack.c.l.b16 %v5265
        %v6431 = vunpack.c.h.b16 %v5265
        %v6432 = vunpack.c.l.b16 %v5266
        %v6433 = vunpack.c.h.b16 %v5266
        %v6434 = vunpack.c.l.b16 %v5267
        %v6435 = vunpack.c.h.b16 %v5267
        %v6436 = vunpack.c.l.b16 %v5268
        %v6437 = vunpack.c.h.b16 %v5268
        %v6438 = vunpack.c.l.b16 %v5269
        %v6439 = vunpack.c.h.b16 %v5269
        %v6440 = vunpack.c.l.b16 %v5270
        %v6441 = vunpack.c.h.b16 %v5270
        %v6442 = vunpack.c.l.b16 %v5271
        %v6443 = vunpack.c.h.b16 %v5271
        %v6444 = vunpack.c.l.b16 %v5272
        %v6445 = vunpack.c.h.b16 %v5272
        %v6446 = vunpack.c.l.b16 %v5273
        %v6447 = vunpack.c.h.b16 %v5273
        %v6448 = vunpack.c.l.b16 %v5274
        %v6449 = vunpack.c.h.b16 %v5274
        %v6450 = vunpack.c.l.b16 %v5275
        %v6451 = vunpack.c.h.b16 %v5275
        %v6452 = vunpack.c.l.b16 %v5276
        %v6453 = vunpack.c.h.b16 %v5276
        %v6454 = vunpack.c.l.b16 %v5277
        %v6455 = vunpack.c.h.b16 %v5277
        %v6456 = vunpack.c.l.b16 %v5278
        %v6457 = vunpack.c.h.b16 %v5278
        %v6458 = vunpack.c.l.b16 %v5279
        %v6459 = vunpack.c.h.b16 %v5279
        %v6460 = vunpack.c.l.b16 %v5280
        %v6461 = vunpack.c.h.b16 %v5280
        %v6462 = vunpack.c.l.b16 %v5281
        %v6463 = vunpack.c.h.b16 %v5281
        %v6464 = vunpack.c.l.b16 %v5282
        %v6465 = vunpack.c.h.b16 %v5282
        %v6466 = vunpack.c.l.b16 %v5283
        %v6467 = vunpack.c.h.b16 %v5283
        %v6468 = vunpack.c.l.b16 %v5284
        %v6469 = vunpack.c.h.b16 %v5284
        %v6470 = vunpack.c.l.b16 %v5285
        %v6471 = vunpack.c.h.b16 %v5285
        %v6472 = vunpack.c.l.b16 %v5286
        %v6473 = vunpack.c.h.b16 %v5286
        %v6474 = vunpack.c.l.b16 %v5287
        %v6475 = vunpack.c.h.b16 %v5287
        %v6476 = vunpack.c.l.b16 %v5288
        %v6477 = vunpack.c.h.b16 %v5288
        %v6478 = vunpack.c.l.b16 %v5289
        %v6479 = vunpack.c.h.b16 %v5289
        %v6480 = vunpack.c.l.b16 %v5290
        %v6481 = vunpack.c.h.b16 %v5290
        %v6482 = vunpack.c.l.b16 %v5291
        %v6483 = vunpack.c.h.b16 %v5291
        %v6484 = vunpack.c.l.b16 %v5292
        %v6485 = vunpack.c.h.b16 %v5292
        %v6486 = vunpack.c.l.b16 %v5293
        %v6487 = vunpack.c.h.b16 %v5293
        %v6488 = vunpack.c.l.b16 %v5294
        %v6489 = vunpack.c.h.b16 %v5294
        %v6490 = vunpack.c.l.b16 %v5295
        %v6491 = vunpack.c.h.b16 %v5295
        %v6492 = vunpack.c.l.b16 %v5296
        %v6493 = vunpack.c.h.b16 %v5296
        %v6494 = vunpack.c.l.b16 %v5297
        %v6495 = vunpack.c.h.b16 %v5297
        %v6496 = vunpack.c.l.b16 %v5298
        %v6497 = vunpack.c.h.b16 %v5298
        %v6498 = vunpack.c.l.b16 %v5299
        %v6499 = vunpack.c.h.b16 %v5299
        %v6500 = vunpack.c.l.b16 %v5300
        %v6501 = vunpack.c.h.b16 %v5300
        %v6502 = vunpack.c.l.b16 %v5301
        %v6503 = vunpack.c.h.b16 %v5301
        %v6504 = vunpack.c.l.b16 %v5302
        %v6505 = vunpack.c.h.b16 %v5302
        %v6506 = vunpack.c.l.b16 %v5303
        %v6507 = vunpack.c.h.b16 %v5303
        %v6508 = vunpack.c.l.b16 %v5304
        %v6509 = vunpack.c.h.b16 %v5304
        %v6510 = vunpack.c.l.b16 %v5305
        %v6511 = vunpack.c.h.b16 %v5305
        %v6512 = vunpack.c.l.b16 %v5306
        %v6513 = vunpack.c.h.b16 %v5306
        %v6514 = vunpack.c.l.b16 %v5307
        %v6515 = vunpack.c.h.b16 %v5307
        %v6516 = vunpack.c.l.b16 %v5308
        %v6517 = vunpack.c.h.b16 %v5308
        %v6518 = vunpack.c.l.b16 %v5309
        %v6519 = vunpack.c.h.b16 %v5309
        %v6520 = vunpack.c.l.b16 %v5310
        %v6521 = vunpack.c.h.b16 %v5310
        %v6522 = vunpack.c.l.b16 %v5311
        %v6523 = vunpack.c.h.b16 %v5311
        %v6524 = vunpack.c.l.b16 %v5312
        %v6525 = vunpack.c.h.b16 %v5312
        %v6526 = vunpack.c.l.b16 %v5313
        %v6527 = vunpack.c.h.b16 %v5313
        %v6528 = vunpack.c.l.b16 %v5314
        %v6529 = vunpack.c.h.b16 %v5314
        %v6530 = vunpack.c.l.b16 %v5315
        %v6531 = vunpack.c.h.b16 %v5315
        %v6532 = vunpack.c.l.b16 %v5316
        %v6533 = vunpack.c.h.b16 %v5316
        %v6534 = vunpack.c.l.b16 %v5317
        %v6535 = vunpack.c.h.b16 %v5317
        %v6536 = vunpack.c.l.b16 %v5318
        %v6537 = vunpack.c.h.b16 %v5318
        %v6538 = vunpack.c.l.b16 %v5319
        %v6539 = vunpack.c.h.b16 %v5319
        %v6540 = vunpack.c.l.b16 %v5320
        %v6541 = vunpack.c.h.b16 %v5320
        %v6542 = vunpack.c.l.b16 %v5321
        %v6543 = vunpack.c.h.b16 %v5321
        %v6544 = vunpack.c.l.b16 %v5322
        %v6545 = vunpack.c.h.b16 %v5322
        %v6546 = vunpack.c.l.b16 %v5323
        %v6547 = vunpack.c.h.b16 %v5323
        %v6548 = vunpack.c.l.b16 %v5324
        %v6549 = vunpack.c.h.b16 %v5324
        %v6550 = vunpack.c.l.b16 %v5325
        %v6551 = vunpack.c.h.b16 %v5325
        %v6552 = vunpack.c.l.b16 %v5326
        %v6553 = vunpack.c.h.b16 %v5326
        %v6554 = vunpack.c.l.b16 %v5327
        %v6555 = vunpack.c.h.b16 %v5327
        %v6556 = vunpack.c.l.b16 %v5328
        %v6557 = vunpack.c.h.b16 %v5328
        %v6558 = vunpack.c.l.b16 %v5329
        %v6559 = vunpack.c.h.b16 %v5329
        %v6560 = vunpack.c.l.b16 %v5330
        %v6561 = vunpack.c.h.b16 %v5330
        %v6562 = vunpack.c.l.b16 %v5331
        %v6563 = vunpack.c.h.b16 %v5331
        %v6564 = vunpack.c.l.b16 %v5332
        %v6565 = vunpack.c.h.b16 %v5332
        %v6566 = vunpack.c.l.b16 %v5333
        %v6567 = vunpack.c.h.b16 %v5333
        %v6568 = vunpack.c.l.b16 %v5334
        %v6569 = vunpack.c.h.b16 %v5334
        %v6570 = vunpack.c.l.b16 %v5335
        %v6571 = vunpack.c.h.b16 %v5335
        %v6572 = vunpack.c.l.b16 %v5336
        %v6573 = vunpack.c.h.b16 %v5336
        %v6574 = vunpack.c.l.b16 %v5337
        %v6575 = vunpack.c.h.b16 %v5337
        %v6576 = vunpack.c.l.b16 %v5338
        %v6577 = vunpack.c.h.b16 %v5338
        %v6578 = vunpack.c.l.b16 %v5339
        %v6579 = vunpack.c.h.b16 %v5339
        %v6580 = vunpack.c.l.b16 %v5340
        %v6581 = vunpack.c.h.b16 %v5340
        %v6582 = vunpack.c.l.b16 %v5341
        %v6583 = vunpack.c.h.b16 %v5341
        %v6584 = vunpack.c.l.b16 %v5342
        %v6585 = vunpack.c.h.b16 %v5342
        %v6586 = vunpack.c.l.b16 %v5343
        %v6587 = vunpack.c.h.b16 %v5343
        %v6588 = vunpack.c.l.b16 %v5344
        %v6589 = vunpack.c.h.b16 %v5344
        %v6590 = vunpack.c.l.b16 %v5345
        %v6591 = vunpack.c.h.b16 %v5345
        %v6592 = vunpack.c.l.b16 %v5346
        %v6593 = vunpack.c.h.b16 %v5346
        %v6594 = vunpack.c.l.b16 %v5347
        %v6595 = vunpack.c.h.b16 %v5347
        %v6596 = vunpack.c.l.b16 %v5348
        %v6597 = vunpack.c.h.b16 %v5348
        %v6598 = vunpack.c.l.b16 %v5349
        %v6599 = vunpack.c.h.b16 %v5349
        %v6600 = vunpack.c.l.b16 %v5350
        %v6601 = vunpack.c.h.b16 %v5350
        %v6602 = vunpack.c.l.b16 %v5351
        %v6603 = vunpack.c.h.b16 %v5351
        %v6604 = vunpack.c.l.b16 %v5352
        %v6605 = vunpack.c.h.b16 %v5352
        %v6606 = vunpack.c.l.b16 %v5353
        %v6607 = vunpack.c.h.b16 %v5353
        %v6608 = vunpack.c.l.b16 %v5354
        %v6609 = vunpack.c.h.b16 %v5354
        %v6610 = vunpack.c.l.b16 %v5355
        %v6611 = vunpack.c.h.b16 %v5355
        %v6612 = vunpack.c.l.b16 %v5356
        %v6613 = vunpack.c.h.b16 %v5356
        %v6614 = vunpack.c.l.b16 %v5357
        %v6615 = vunpack.c.h.b16 %v5357
        %v6616 = vunpack.c.l.b16 %v5358
        %v6617 = vunpack.c.h.b16 %v5358
        %v6618 = vunpack.c.l.b16 %v5359
        %v6619 = vunpack.c.h.b16 %v5359
        %v6620 = vunpack.c.l.b16 %v5360
        %v6621 = vunpack.c.h.b16 %v5360
        %v6622 = vunpack.c.l.b16 %v5361
        %v6623 = vunpack.c.h.b16 %v5361
        %v6624 = vunpack.c.l.b16 %v5362
        %v6625 = vunpack.c.h.b16 %v5362
        %v6626 = vunpack.c.l.b16 %v5363
        %v6627 = vunpack.c.h.b16 %v5363
        %v6628 = vunpack.c.l.b16 %v5364
        %v6629 = vunpack.c.h.b16 %v5364
        %v6630 = vunpack.c.l.b16 %v5365
        %v6631 = vunpack.c.h.b16 %v5365
        %v6632 = vunpack.c.l.b16 %v5366
        %v6633 = vunpack.c.h.b16 %v5366
        %v6634 = vunpack.c.l.b16 %v5367
        %v6635 = vunpack.c.h.b16 %v5367
        %v6636 = vunpack.c.l.b16 %v5368
        %v6637 = vunpack.c.h.b16 %v5368
        %v6638 = vunpack.c.l.b16 %v5369
        %v6639 = vunpack.c.h.b16 %v5369
        %v6640 = vunpack.c.l.b16 %v5370
        %v6641 = vunpack.c.h.b16 %v5370
        %v6642 = vunpack.c.l.b16 %v5371
        %v6643 = vunpack.c.h.b16 %v5371
        %v6644 = vunpack.c.l.b16 %v5372
        %v6645 = vunpack.c.h.b16 %v5372
        %v6646 = vunpack.c.l.b16 %v5373
        %v6647 = vunpack.c.h.b16 %v5373
        %v6648 = vunpack.c.l.b16 %v5374
        %v6649 = vunpack.c.h.b16 %v5374
        %v6650 = vunpack.c.l.b16 %v5375
        %v6651 = vunpack.c.h.b16 %v5375
        %v6652 = vunpack.c.l.b16 %v5376
        %v6653 = vunpack.c.h.b16 %v5376
        %v6654 = vunpack.c.l.b16 %v5377
        %v6655 = vunpack.c.h.b16 %v5377
        %v6656 = vunpack.c.l.b16 %v5378
        %v6657 = vunpack.c.h.b16 %v5378
        %v6658 = vunpack.c.l.b16 %v5379
        %v6659 = vunpack.c.h.b16 %v5379
        %v6660 = vunpack.c.l.b16 %v5380
        %v6661 = vunpack.c.h.b16 %v5380
        %v6662 = vunpack.c.l.b16 %v5381
        %v6663 = vunpack.c.h.b16 %v5381
        %v6664 = vunpack.c.l.b16 %v5382
        %v6665 = vunpack.c.h.b16 %v5382
        %v6666 = vunpack.c.l.b16 %v5383
        %v6667 = vunpack.c.h.b16 %v5383
        %v6668 = vunpack.c.l.b16 %v5384
        %v6669 = vunpack.c.h.b16 %v5384
        %v6670 = vunpack.c.l.b16 %v5385
        %v6671 = vunpack.c.h.b16 %v5385
        %v6672 = vunpack.c.l.b16 %v5386
        %v6673 = vunpack.c.h.b16 %v5386
        %v6674 = vunpack.c.l.b16 %v5387
        %v6675 = vunpack.c.h.b16 %v5387
        %v6676 = vunpack.c.l.b16 %v5388
        %v6677 = vunpack.c.h.b16 %v5388
        %v6678 = vunpack.c.l.b16 %v5389
        %v6679 = vunpack.c.h.b16 %v5389
        %v6680 = vunpack.c.l.b16 %v5390
        %v6681 = vunpack.c.h.b16 %v5390
        %v6682 = vunpack.c.l.b16 %v5391
        %v6683 = vunpack.c.h.b16 %v5391
        %v6684 = vunpack.c.l.b16 %v5392
        %v6685 = vunpack.c.h.b16 %v5392
        %v6686 = vunpack.c.l.b16 %v5393
        %v6687 = vunpack.c.h.b16 %v5393
        %v6688 = vunpack.c.l.b16 %v5394
        %v6689 = vunpack.c.h.b16 %v5394
        %v6690 = vunpack.c.l.b16 %v5395
        %v6691 = vunpack.c.h.b16 %v5395
        %v6692 = vunpack.c.l.b16 %v5396
        %v6693 = vunpack.c.h.b16 %v5396
        %v6694 = vunpack.c.l.b16 %v5397
        %v6695 = vunpack.c.h.b16 %v5397
        %v6696 = vunpack.c.l.b16 %v5398
        %v6697 = vunpack.c.h.b16 %v5398
        %v6698 = vunpack.c.l.b16 %v5399
        %v6699 = vunpack.c.h.b16 %v5399
        %v6700 = vunpack.c.l.b16 %v5400
        %v6701 = vunpack.c.h.b16 %v5400
        %v6702 = vunpack.c.l.b16 %v5401
        %v6703 = vunpack.c.h.b16 %v5401
        %v6704 = vunpack.c.l.b16 %v5402
        %v6705 = vunpack.c.h.b16 %v5402
        %v6706 = vunpack.c.l.b16 %v5403
        %v6707 = vunpack.c.h.b16 %v5403
        %v6708 = vunpack.c.l.b16 %v5404
        %v6709 = vunpack.c.h.b16 %v5404
        %v6710 = vunpack.c.l.b16 %v5405
        %v6711 = vunpack.c.h.b16 %v5405
        %v6712 = vunpack.c.l.b16 %v5406
        %v6713 = vunpack.c.h.b16 %v5406
        %v6714 = vunpack.c.l.b16 %v5407
        %v6715 = vunpack.c.h.b16 %v5407
        %v6716 = vunpack.c.l.b16 %v5408
        %v6717 = vunpack.c.h.b16 %v5408
        %v6718 = vunpack.c.l.b16 %v5409
        %v6719 = vunpack.c.h.b16 %v5409
        %v6720 = vunpack.c.l.b16 %v5410
        %v6721 = vunpack.c.h.b16 %v5410
        %v6722 = vunpack.c.l.b16 %v5411
        %v6723 = vunpack.c.h.b16 %v5411
        %v6724 = vunpack.c.l.b16 %v5412
        %v6725 = vunpack.c.h.b16 %v5412
        %v6726 = vunpack.c.l.b16 %v5413
        %v6727 = vunpack.c.h.b16 %v5413
        %v6728 = vunpack.c.l.b16 %v5414
        %v6729 = vunpack.c.h.b16 %v5414
        %v6730 = vunpack.c.l.b16 %v5415
        %v6731 = vunpack.c.h.b16 %v5415
        %v6732 = vunpack.c.l.b16 %v5416
        %v6733 = vunpack.c.h.b16 %v5416
        %v6734 = vunpack.c.l.b16 %v5417
        %v6735 = vunpack.c.h.b16 %v5417
        %v6736 = vunpack.c.l.b16 %v5418
        %v6737 = vunpack.c.h.b16 %v5418
        %v6738 = vunpack.c.l.b16 %v5419
        %v6739 = vunpack.c.h.b16 %v5419
        %v6740 = vunpack.c.l.b16 %v5420
        %v6741 = vunpack.c.h.b16 %v5420
        %v6742 = vunpack.c.l.b16 %v5421
        %v6743 = vunpack.c.h.b16 %v5421
        %v6744 = vunpack.c.l.b16 %v5422
        %v6745 = vunpack.c.h.b16 %v5422
        %v6746 = vunpack.c.l.b16 %v5423
        %v6747 = vunpack.c.h.b16 %v5423
        %v6748 = vunpack.c.l.b16 %v5424
        %v6749 = vunpack.c.h.b16 %v5424
        %v6750 = vunpack.c.l.b16 %v5425
        %v6751 = vunpack.c.h.b16 %v5425
        %v6752 = vunpack.c.l.b16 %v5426
        %v6753 = vunpack.c.h.b16 %v5426
        %v6754 = vunpack.c.l.b16 %v5427
        %v6755 = vunpack.c.h.b16 %v5427
        %v6756 = vunpack.c.l.b16 %v5428
        %v6757 = vunpack.c.h.b16 %v5428
        %v6758 = vunpack.c.l.b16 %v5429
        %v6759 = vunpack.c.h.b16 %v5429
        %v6760 = vunpack.c.l.b16 %v5430
        %v6761 = vunpack.c.h.b16 %v5430
        %v6762 = vunpack.c.l.b16 %v5431
        %v6763 = vunpack.c.h.b16 %v5431
        %v6764 = vunpack.c.l.b16 %v5432
        %v6765 = vunpack.c.h.b16 %v5432
        %v6766 = vunpack.c.l.b16 %v5433
        %v6767 = vunpack.c.h.b16 %v5433
        %v6768 = vunpack.c.l.b16 %v5434
        %v6769 = vunpack.c.h.b16 %v5434
        %v6770 = vunpack.c.l.b16 %v5435
        %v6771 = vunpack.c.h.b16 %v5435
        %v6772 = vunpack.c.l.b16 %v5436
        %v6773 = vunpack.c.h.b16 %v5436
        %v6774 = vunpack.c.l.b16 %v5437
        %v6775 = vunpack.c.h.b16 %v5437
        %v6776 = vunpack.c.l.b16 %v5438
        %v6777 = vunpack.c.h.b16 %v5438
        %v6778 = vunpack.c.l.b16 %v5439
        %v6779 = vunpack.c.h.b16 %v5439
        %v6780 = vunpack.c.l.b16 %v5440
        %v6781 = vunpack.c.h.b16 %v5440
        %v6782 = vunpack.c.l.b16 %v5441
        %v6783 = vunpack.c.h.b16 %v5441
        %v6784 = vunpack.c.l.b16 %v5442
        %v6785 = vunpack.c.h.b16 %v5442
        %v6786 = vunpack.c.l.b16 %v5443
        %v6787 = vunpack.c.h.b16 %v5443
        %v6788 = vunpack.c.l.b16 %v5444
        %v6789 = vunpack.c.h.b16 %v5444
        %v6790 = vunpack.c.l.b16 %v5445
        %v6791 = vunpack.c.h.b16 %v5445
        %v6792 = vunpack.c.l.b16 %v5446
        %v6793 = vunpack.c.h.b16 %v5446
        %v6794 = vunpack.c.l.b16 %v5447
        %v6795 = vunpack.c.h.b16 %v5447
        %v6796 = vunpack.c.l.b16 %v5448
        %v6797 = vunpack.c.h.b16 %v5448
        %v6798 = vunpack.c.l.b16 %v5449
        %v6799 = vunpack.c.h.b16 %v5449
        %v6800 = vunpack.c.l.b16 %v5450
        %v6801 = vunpack.c.h.b16 %v5450
        %v6802 = vunpack.c.l.b16 %v5451
        %v6803 = vunpack.c.h.b16 %v5451
        %v6804 = vunpack.c.l.b16 %v5452
        %v6805 = vunpack.c.h.b16 %v5452
        %v6806 = vunpack.c.l.b16 %v5453
        %v6807 = vunpack.c.h.b16 %v5453
        %v6808 = vunpack.c.l.b16 %v5454
        %v6809 = vunpack.c.h.b16 %v5454
        %v6810 = vunpack.c.l.b16 %v5455
        %v6811 = vunpack.c.h.b16 %v5455
        %v6812 = vunpack.c.l.b16 %v5456
        %v6813 = vunpack.c.h.b16 %v5456
        %v6814 = vunpack.c.l.b16 %v5457
        %v6815 = vunpack.c.h.b16 %v5457
        %v6816 = vunpack.c.l.b16 %v5458
        %v6817 = vunpack.c.h.b16 %v5458
        %v6818 = vunpack.c.l.b16 %v5459
        %v6819 = vunpack.c.h.b16 %v5459
        %v6820 = vunpack.c.l.b16 %v5460
        %v6821 = vunpack.c.h.b16 %v5460
        %v6822 = vunpack.c.l.b16 %v5461
        %v6823 = vunpack.c.h.b16 %v5461
        %v6824 = vunpack.c.l.b16 %v5462
        %v6825 = vunpack.c.h.b16 %v5462
        %v6826 = vunpack.c.l.b16 %v5463
        %v6827 = vunpack.c.h.b16 %v5463
        %v6828 = vunpack.c.l.b16 %v5464
        %v6829 = vunpack.c.h.b16 %v5464
        %v6830 = vunpack.c.l.b16 %v5465
        %v6831 = vunpack.c.h.b16 %v5465
        %v6832 = vunpack.c.l.b16 %v5466
        %v6833 = vunpack.c.h.b16 %v5466
        %v6834 = vunpack.c.l.b16 %v5467
        %v6835 = vunpack.c.h.b16 %v5467
        %v6836 = vunpack.c.l.b16 %v5468
        %v6837 = vunpack.c.h.b16 %v5468
        %v6838 = vunpack.c.l.b16 %v5469
        %v6839 = vunpack.c.h.b16 %v5469
        %v6840 = vunpack.c.l.b16 %v5470
        %v6841 = vunpack.c.h.b16 %v5470
        %v6842 = vunpack.c.l.b16 %v5471
        %v6843 = vunpack.c.h.b16 %v5471
        %v6844 = vunpack.c.l.b16 %v5472
        %v6845 = vunpack.c.h.b16 %v5472
        %v6846 = vunpack.c.l.b16 %v5473
        %v6847 = vunpack.c.h.b16 %v5473
        %v6848 = vunpack.c.l.b16 %v5474
        %v6849 = vunpack.c.h.b16 %v5474
        %v6850 = vunpack.c.l.b16 %v5475
        %v6851 = vunpack.c.h.b16 %v5475
        %v6852 = vunpack.c.l.b16 %v5476
        %v6853 = vunpack.c.h.b16 %v5476
        %v6854 = vunpack.c.l.b16 %v5477
        %v6855 = vunpack.c.h.b16 %v5477
        %v6856 = vunpack.c.l.b16 %v5478
        %v6857 = vunpack.c.h.b16 %v5478
        %v6858 = vunpack.c.l.b16 %v5479
        %v6859 = vunpack.c.h.b16 %v5479
        %v6860 = vunpack.c.l.b16 %v5480
        %v6861 = vunpack.c.h.b16 %v5480
        %v6862 = vunpack.c.l.b16 %v5481
        %v6863 = vunpack.c.h.b16 %v5481
        %v6864 = vunpack.c.l.b16 %v5482
        %v6865 = vunpack.c.h.b16 %v5482
        %v6866 = vunpack.c.l.b16 %v5483
        %v6867 = vunpack.c.h.b16 %v5483
        %v6868 = vunpack.c.l.b16 %v5484
        %v6869 = vunpack.c.h.b16 %v5484
        %v6870 = vunpack.c.l.b16 %v5485
        %v6871 = vunpack.c.h.b16 %v5485
        %v6872 = vunpack.c.l.b16 %v5486
        %v6873 = vunpack.c.h.b16 %v5486
        %v6874 = vunpack.c.l.b16 %v5487
        %v6875 = vunpack.c.h.b16 %v5487
        %v6876 = vunpack.c.l.b16 %v5488
        %v6877 = vunpack.c.h.b16 %v5488
        %v6878 = vunpack.c.l.b16 %v5489
        %v6879 = vunpack.c.h.b16 %v5489
        %v6880 = vunpack.c.l.b16 %v5490
        %v6881 = vunpack.c.h.b16 %v5490
        %v6882 = vunpack.c.l.b16 %v5491
        %v6883 = vunpack.c.h.b16 %v5491
        %v6884 = vunpack.c.l.b16 %v5492
        %v6885 = vunpack.c.h.b16 %v5492
        %v6886 = vunpack.c.l.b16 %v5493
        %v6887 = vunpack.c.h.b16 %v5493
        %v6888 = vunpack.c.l.b16 %v5494
        %v6889 = vunpack.c.h.b16 %v5494
        %v6890 = vunpack.c.l.b16 %v5495
        %v6891 = vunpack.c.h.b16 %v5495
        %v6892 = vunpack.c.l.b16 %v5496
        %v6893 = vunpack.c.h.b16 %v5496
        %v6894 = vunpack.c.l.b16 %v5497
        %v6895 = vunpack.c.h.b16 %v5497
        %v6896 = vunpack.c.l.b16 %v5498
        %v6897 = vunpack.c.h.b16 %v5498
        %v6898 = vunpack.c.l.b16 %v5499
        %v6899 = vunpack.c.h.b16 %v5499
        %v6900 = vunpack.c.l.b16 %v5500
        %v6901 = vunpack.c.h.b16 %v5500
        %v6902 = vunpack.c.l.b16 %v5501
        %v6903 = vunpack.c.h.b16 %v5501
        %v6904 = vunpack.c.l.b16 %v5502
        %v6905 = vunpack.c.h.b16 %v5502
        %v6906 = vunpack.c.l.b16 %v5503
        %v6907 = vunpack.c.h.b16 %v5503
        %v6908 = vunpack.c.l.b16 %v5504
        %v6909 = vunpack.c.h.b16 %v5504
        %v6910 = vunpack.c.l.b16 %v5505
        %v6911 = vunpack.c.h.b16 %v5505
        %v6912 = vunpack.c.l.b16 %v5506
        %v6913 = vunpack.c.h.b16 %v5506
        %v6914 = vunpack.c.l.b16 %v5507
        %v6915 = vunpack.c.h.b16 %v5507
        %v6916 = vunpack.c.l.b16 %v5508
        %v6917 = vunpack.c.h.b16 %v5508
        %v6918 = vunpack.c.l.b16 %v5509
        %v6919 = vunpack.c.h.b16 %v5509
        %v6920 = vunpack.c.l.b16 %v5510
        %v6921 = vunpack.c.h.b16 %v5510
        %v6922 = vunpack.c.l.b16 %v5511
        %v6923 = vunpack.c.h.b16 %v5511
        %v6924 = vunpack.c.l.b16 %v5512
        %v6925 = vunpack.c.h.b16 %v5512
        %v6926 = vunpack.c.l.b16 %v5513
        %v6927 = vunpack.c.h.b16 %v5513
        %v6928 = vunpack.c.l.b16 %v5514
        %v6929 = vunpack.c.h.b16 %v5514
        %v6930 = vunpack.c.l.b16 %v5515
        %v6931 = vunpack.c.h.b16 %v5515
        %v6932 = vunpack.c.l.b16 %v5516
        %v6933 = vunpack.c.h.b16 %v5516
        %v6934 = vunpack.c.l.b16 %v5517
        %v6935 = vunpack.c.h.b16 %v5517
        %v6936 = vunpack.c.l.b16 %v5518
        %v6937 = vunpack.c.h.b16 %v5518
        %v6938 = vunpack.c.l.b16 %v5519
        %v6939 = vunpack.c.h.b16 %v5519
        %v6940 = vunpack.c.l.b16 %v5520
        %v6941 = vunpack.c.h.b16 %v5520
        %v6942 = vunpack.c.l.b16 %v5521
        %v6943 = vunpack.c.h.b16 %v5521
        %v6944 = vunpack.c.l.b16 %v5522
        %v6945 = vunpack.c.h.b16 %v5522
        %v6946 = vunpack.c.l.b16 %v5523
        %v6947 = vunpack.c.h.b16 %v5523
        %v6948 = vunpack.c.l.b16 %v5524
        %v6949 = vunpack.c.h.b16 %v5524
        %v6950 = vunpack.c.l.b16 %v5525
        %v6951 = vunpack.c.h.b16 %v5525
        %v6952 = vunpack.c.l.b16 %v5526
        %v6953 = vunpack.c.h.b16 %v5526
        %v6954 = vunpack.c.l.b16 %v5527
        %v6955 = vunpack.c.h.b16 %v5527
        %v6956 = vunpack.c.l.b16 %v5528
        %v6957 = vunpack.c.h.b16 %v5528
        %v6958 = vunpack.c.l.b16 %v5529
        %v6959 = vunpack.c.h.b16 %v5529
        %v6960 = vunpack.c.l.b16 %v5530
        %v6961 = vunpack.c.h.b16 %v5530
        %v6962 = vunpack.c.l.b16 %v5531
        %v6963 = vunpack.c.h.b16 %v5531
        %v6964 = vunpack.c.l.b16 %v5532
        %v6965 = vunpack.c.h.b16 %v5532
        %v6966 = vunpack.c.l.b16 %v5533
        %v6967 = vunpack.c.h.b16 %v5533
        %v6968 = vunpack.c.l.b16 %v5534
        %v6969 = vunpack.c.h.b16 %v5534
        %v6970 = vunpack.c.l.b16 %v5535
        %v6971 = vunpack.c.h.b16 %v5535
        %v6972 = vunpack.c.l.b16 %v5536
        %v6973 = vunpack.c.h.b16 %v5536
        %v6974 = vunpack.c.l.b16 %v5537
        %v6975 = vunpack.c.h.b16 %v5537
        %v6976 = vunpack.c.l.b16 %v5538
        %v6977 = vunpack.c.h.b16 %v5538
        %v6978 = vunpack.c.l.b16 %v5539
        %v6979 = vunpack.c.h.b16 %v5539
        %v6980 = vunpack.c.l.b16 %v5540
        %v6981 = vunpack.c.h.b16 %v5540
        %v6982 = vunpack.c.l.b16 %v5541
        %v6983 = vunpack.c.h.b16 %v5541
        %v6984 = vunpack.c.l.b16 %v5542
        %v6985 = vunpack.c.h.b16 %v5542
        %v6986 = vunpack.c.l.b16 %v5543
        %v6987 = vunpack.c.h.b16 %v5543
        %v6988 = vunpack.c.l.b16 %v5544
        %v6989 = vunpack.c.h.b16 %v5544
        %v6990 = vunpack.c.l.b16 %v5545
        %v6991 = vunpack.c.h.b16 %v5545
        %v6992 = vunpack.c.l.b16 %v5546
        %v6993 = vunpack.c.h.b16 %v5546
        %v6994 = vunpack.c.l.b16 %v5547
        %v6995 = vunpack.c.h.b16 %v5547
        %v6996 = vunpack.c.l.b16 %v5548
        %v6997 = vunpack.c.h.b16 %v5548
        %v6998 = vunpack.c.l.b16 %v5549
        %v6999 = vunpack.c.h.b16 %v5549
        %v7000 = vunpack.c.l.b16 %v5550
        %v7001 = vunpack.c.h.b16 %v5550
        %v7002 = vunpack.c.l.b16 %v5551
        %v7003 = vunpack.c.h.b16 %v5551
        %v7004 = vunpack.c.l.b16 %v5552
        %v7005 = vunpack.c.h.b16 %v5552
        %v7006 = vunpack.c.l.b16 %v5553
        %v7007 = vunpack.c.h.b16 %v5553
        %v7008 = vunpack.c.l.b16 %v5554
        %v7009 = vunpack.c.h.b16 %v5554
        %v7010 = vunpack.c.l.b16 %v5555
        %v7011 = vunpack.c.h.b16 %v5555
        %v7012 = vunpack.c.l.b16 %v5556
        %v7013 = vunpack.c.h.b16 %v5556
        %v7014 = vunpack.c.l.b16 %v5557
        %v7015 = vunpack.c.h.b16 %v5557
        %v7016 = vunpack.c.l.b16 %v5558
        %v7017 = vunpack.c.h.b16 %v5558
        %v7018 = vunpack.c.l.b16 %v5559
        %v7019 = vunpack.c.h.b16 %v5559
        %v7020 = vunpack.c.l.b16 %v5560
        %v7021 = vunpack.c.h.b16 %v5560
        %v7022 = vunpack.c.l.b16 %v5561
        %v7023 = vunpack.c.h.b16 %v5561
        %v7024 = vunpack.c.l.b16 %v5562
        %v7025 = vunpack.c.h.b16 %v5562
        %v7026 = vunpack.c.l.b16 %v5563
        %v7027 = vunpack.c.h.b16 %v5563
        %v7028 = vunpack.c.l.b16 %v5564
        %v7029 = vunpack.c.h.b16 %v5564
        %v7030 = vunpack.c.l.b16 %v5565
        %v7031 = vunpack.c.h.b16 %v5565
        %v7032 = vunpack.c.l.b16 %v5566
        %v7033 = vunpack.c.h.b16 %v5566
        %v7034 = vunpack.c.l.b16 %v5567
        %v7035 = vunpack.c.h.b16 %v5567
        %v7036 = vunpack.c.l.b16 %v5568
        %v7037 = vunpack.c.h.b16 %v5568
        %v7038 = vunpack.c.l.b16 %v5569
        %v7039 = vunpack.c.h.b16 %v5569
        %v7040 = vunpack.c.l.b16 %v5570
        %v7041 = vunpack.c.h.b16 %v5570
        %v7042 = vunpack.c.l.b16 %v5571
        %v7043 = vunpack.c.h.b16 %v5571
        %v7044 = vunpack.c.l.b16 %v5572
        %v7045 = vunpack.c.h.b16 %v5572
        %v7046 = vunpack.c.l.b16 %v5573
        %v7047 = vunpack.c.h.b16 %v5573
        %v7048 = vunpack.c.l.b16 %v5574
        %v7049 = vunpack.c.h.b16 %v5574
        %v7050 = vunpack.c.l.b16 %v5575
        %v7051 = vunpack.c.h.b16 %v5575
        %v7052 = vunpack.c.l.b16 %v5576
        %v7053 = vunpack.c.h.b16 %v5576
        %v7054 = vunpack.c.l.b16 %v5577
        %v7055 = vunpack.c.h.b16 %v5577
        %v7056 = vunpack.c.l.b16 %v5578
        %v7057 = vunpack.c.h.b16 %v5578
        %v7058 = vunpack.c.l.b16 %v5579
        %v7059 = vunpack.c.h.b16 %v5579
        %v7060 = vunpack.c.l.b16 %v5580
        %v7061 = vunpack.c.h.b16 %v5580
        %v7062 = vunpack.c.l.b16 %v5581
        %v7063 = vunpack.c.h.b16 %v5581
        %v7064 = vunpack.c.l.b16 %v5582
        %v7065 = vunpack.c.h.b16 %v5582
        %v7066 = vunpack.c.l.b16 %v5583
        %v7067 = vunpack.c.h.b16 %v5583
        %v7068 = vunpack.c.l.b16 %v5584
        %v7069 = vunpack.c.h.b16 %v5584
        %v7070 = vunpack.c.l.b16 %v5585
        %v7071 = vunpack.c.h.b16 %v5585
        %v7072 = vunpack.c.l.b16 %v5586
        %v7073 = vunpack.c.h.b16 %v5586
        %v7074 = vunpack.c.l.b16 %v5587
        %v7075 = vunpack.c.h.b16 %v5587
        %v7076 = vunpack.c.l.b16 %v5588
        %v7077 = vunpack.c.h.b16 %v5588
        %v7078 = vunpack.c.l.b16 %v5589
        %v7079 = vunpack.c.h.b16 %v5589
        %v7080 = vunpack.c.l.b16 %v5590
        %v7081 = vunpack.c.h.b16 %v5590
        %v7082 = vunpack.c.l.b16 %v5591
        %v7083 = vunpack.c.h.b16 %v5591
        %v7084 = vunpack.c.l.b16 %v5592
        %v7085 = vunpack.c.h.b16 %v5592
        %v7086 = vunpack.c.l.b16 %v5593
        %v7087 = vunpack.c.h.b16 %v5593
        %v7088 = vunpack.c.l.b16 %v5594
        %v7089 = vunpack.c.h.b16 %v5594
        %v7090 = vunpack.c.l.b16 %v5595
        %v7091 = vunpack.c.h.b16 %v5595
        %v7092 = vunpack.c.l.b16 %v5596
        %v7093 = vunpack.c.h.b16 %v5596
        %v7094 = vunpack.c.l.b16 %v5597
        %v7095 = vunpack.c.h.b16 %v5597
        %v7096 = vunpack.c.l.b16 %v5598
        %v7097 = vunpack.c.h.b16 %v5598
        %v7098 = vunpack.c.l.b16 %v5599
        %v7099 = vunpack.c.h.b16 %v5599
        %v7100 = vunpack.c.l.b16 %v5600
        %v7101 = vunpack.c.h.b16 %v5600
        %v7102 = vunpack.c.l.b16 %v5601
        %v7103 = vunpack.c.h.b16 %v5601
        %v7104 = vunpack.c.l.b16 %v5602
        %v7105 = vunpack.c.h.b16 %v5602
        %v7106 = vunpack.c.l.b16 %v5603
        %v7107 = vunpack.c.h.b16 %v5603
        %v7108 = vunpack.c.l.b16 %v5604
        %v7109 = vunpack.c.h.b16 %v5604
        %v7110 = vunpack.c.l.b16 %v5605
        %v7111 = vunpack.c.h.b16 %v5605
        %v7112 = vunpack.c.l.b16 %v5606
        %v7113 = vunpack.c.h.b16 %v5606
        %v7114 = vunpack.c.l.b16 %v5607
        %v7115 = vunpack.c.h.b16 %v5607
        %v7116 = vunpack.c.l.b16 %v5608
        %v7117 = vunpack.c.h.b16 %v5608
        %v7118 = vunpack.c.l.b16 %v5609
        %v7119 = vunpack.c.h.b16 %v5609
        %v7120 = vunpack.c.l.b16 %v5610
        %v7121 = vunpack.c.h.b16 %v5610
        %v7122 = vunpack.c.l.b16 %v5611
        %v7123 = vunpack.c.h.b16 %v5611
        %v7124 = vunpack.c.l.b16 %v5612
        %v7125 = vunpack.c.h.b16 %v5612
        %v7126 = vunpack.c.l.b16 %v5613
        %v7127 = vunpack.c.h.b16 %v5613
        %v7128 = vunpack.c.l.b16 %v5614
        %v7129 = vunpack.c.h.b16 %v5614
        %v7130 = vunpack.c.l.b16 %v5615
        %v7131 = vunpack.c.h.b16 %v5615
        %v7132 = vunpack.c.l.b16 %v5616
        %v7133 = vunpack.c.h.b16 %v5616
        %v7134 = vunpack.c.l.b16 %v5617
        %v7135 = vunpack.c.h.b16 %v5617
        %v7136 = vunpack.c.l.b16 %v5618
        %v7137 = vunpack.c.h.b16 %v5618
        %v7138 = vunpack.c.l.b16 %v5619
        %v7139 = vunpack.c.h.b16 %v5619
        %v7140 = vunpack.c.l.b16 %v5620
        %v7141 = vunpack.c.h.b16 %v5620
        %v7142 = vunpack.c.l.b16 %v5621
        %v7143 = vunpack.c.h.b16 %v5621
        %v7144 = vunpack.c.l.b16 %v5622
        %v7145 = vunpack.c.h.b16 %v5622
        %v7146 = vunpack.c.l.b16 %v5623
        %v7147 = vunpack.c.h.b16 %v5623
        %v7148 = vunpack.c.l.b16 %v5624
        %v7149 = vunpack.c.h.b16 %v5624
        %v7150 = vunpack.c.l.b16 %v5625
        %v7151 = vunpack.c.h.b16 %v5625
        %v7152 = vunpack.c.l.b16 %v5626
        %v7153 = vunpack.c.h.b16 %v5626
        %v7154 = vunpack.c.l.b16 %v5627
        %v7155 = vunpack.c.h.b16 %v5627
        %v7156 = vunpack.c.l.b16 %v5628
        %v7157 = vunpack.c.h.b16 %v5628
        %v7158 = vunpack.c.l.b16 %v5629
        %v7159 = vunpack.c.h.b16 %v5629
        %v7160 = vunpack.c.l.b16 %v5630
        %v7161 = vunpack.c.h.b16 %v5630
        %v7162 = vunpack.c.l.b16 %v5631
        %v7163 = vunpack.c.h.b16 %v5631
        %v7164 = vunpack.c.l.b16 %v5632
        %v7165 = vunpack.c.h.b16 %v5632
        %v7166 = vunpack.c.l.b16 %v5633
        %v7167 = vunpack.c.h.b16 %v5633
        %v7168 = vunpack.c.l.b16 %v5634
        %v7169 = vunpack.c.h.b16 %v5634
        %v7170 = vunpack.c.l.b16 %v5635
        %v7171 = vunpack.c.h.b16 %v5635
        %v7172 = vpack.c.b16 %v6156, %v6148
        %v7173 = vpack.c.b16 %v6157, %v6149
        %v7174 = vpack.c.b16 %v6158, %v6150
        %v7175 = vpack.c.b16 %v6159, %v6151
        %v7176 = vpack.c.b16 %v6160, %v6152
        %v7177 = vpack.c.b16 %v6161, %v6153
        %v7178 = vpack.c.b16 %v6162, %v6154
        %v7179 = vpack.c.b16 %v6163, %v6155
        %v7180 = vpack.c.b16 %v6172, %v6164
        %v7181 = vpack.c.b16 %v6173, %v6165
        %v7182 = vpack.c.b16 %v6174, %v6166
        %v7183 = vpack.c.b16 %v6175, %v6167
        %v7184 = vpack.c.b16 %v6176, %v6168
        %v7185 = vpack.c.b16 %v6177, %v6169
        %v7186 = vpack.c.b16 %v6178, %v6170
        %v7187 = vpack.c.b16 %v6179, %v6171
        %v7188 = vpack.c.b16 %v6188, %v6180
        %v7189 = vpack.c.b16 %v6189, %v6181
        %v7190 = vpack.c.b16 %v6190, %v6182
        %v7191 = vpack.c.b16 %v6191, %v6183
        %v7192 = vpack.c.b16 %v6192, %v6184
        %v7193 = vpack.c.b16 %v6193, %v6185
        %v7194 = vpack.c.b16 %v6194, %v6186
        %v7195 = vpack.c.b16 %v6195, %v6187
        %v7196 = vpack.c.b16 %v6204, %v6196
        %v7197 = vpack.c.b16 %v6205, %v6197
        %v7198 = vpack.c.b16 %v6206, %v6198
        %v7199 = vpack.c.b16 %v6207, %v6199
        %v7200 = vpack.c.b16 %v6208, %v6200
        %v7201 = vpack.c.b16 %v6209, %v6201
        %v7202 = vpack.c.b16 %v6210, %v6202
        %v7203 = vpack.c.b16 %v6211, %v6203
        %v7204 = vpack.c.b16 %v6220, %v6212
        %v7205 = vpack.c.b16 %v6221, %v6213
        %v7206 = vpack.c.b16 %v6222, %v6214
        %v7207 = vpack.c.b16 %v6223, %v6215
        %v7208 = vpack.c.b16 %v6224, %v6216
        %v7209 = vpack.c.b16 %v6225, %v6217
        %v7210 = vpack.c.b16 %v6226, %v6218
        %v7211 = vpack.c.b16 %v6227, %v6219
        %v7212 = vpack.c.b16 %v6236, %v6228
        %v7213 = vpack.c.b16 %v6237, %v6229
        %v7214 = vpack.c.b16 %v6238, %v6230
        %v7215 = vpack.c.b16 %v6239, %v6231
        %v7216 = vpack.c.b16 %v6240, %v6232
        %v7217 = vpack.c.b16 %v6241, %v6233
        %v7218 = vpack.c.b16 %v6242, %v6234
        %v7219 = vpack.c.b16 %v6243, %v6235
        %v7220 = vpack.c.b16 %v6252, %v6244
        %v7221 = vpack.c.b16 %v6253, %v6245
        %v7222 = vpack.c.b16 %v6254, %v6246
        %v7223 = vpack.c.b16 %v6255, %v6247
        %v7224 = vpack.c.b16 %v6256, %v6248
        %v7225 = vpack.c.b16 %v6257, %v6249
        %v7226 = vpack.c.b16 %v6258, %v6250
        %v7227 = vpack.c.b16 %v6259, %v6251
        %v7228 = vpack.c.b16 %v6268, %v6260
        %v7229 = vpack.c.b16 %v6269, %v6261
        %v7230 = vpack.c.b16 %v6270, %v6262
        %v7231 = vpack.c.b16 %v6271, %v6263
        %v7232 = vpack.c.b16 %v6272, %v6264
        %v7233 = vpack.c.b16 %v6273, %v6265
        %v7234 = vpack.c.b16 %v6274, %v6266
        %v7235 = vpack.c.b16 %v6275, %v6267
        %v7236 = vpack.c.b16 %v6284, %v6276
        %v7237 = vpack.c.b16 %v6285, %v6277
        %v7238 = vpack.c.b16 %v6286, %v6278
        %v7239 = vpack.c.b16 %v6287, %v6279
        %v7240 = vpack.c.b16 %v6288, %v6280
        %v7241 = vpack.c.b16 %v6289, %v6281
        %v7242 = vpack.c.b16 %v6290, %v6282
        %v7243 = vpack.c.b16 %v6291, %v6283
        %v7244 = vpack.c.b16 %v6300, %v6292
        %v7245 = vpack.c.b16 %v6301, %v6293
        %v7246 = vpack.c.b16 %v6302, %v6294
        %v7247 = vpack.c.b16 %v6303, %v6295
        %v7248 = vpack.c.b16 %v6304, %v6296
        %v7249 = vpack.c.b16 %v6305, %v6297
        %v7250 = vpack.c.b16 %v6306, %v6298
        %v7251 = vpack.c.b16 %v6307, %v6299
        %v7252 = vpack.c.b16 %v6316, %v6308
        %v7253 = vpack.c.b16 %v6317, %v6309
        %v7254 = vpack.c.b16 %v6318, %v6310
        %v7255 = vpack.c.b16 %v6319, %v6311
        %v7256 = vpack.c.b16 %v6320, %v6312
        %v7257 = vpack.c.b16 %v6321, %v6313
        %v7258 = vpack.c.b16 %v6322, %v6314
        %v7259 = vpack.c.b16 %v6323, %v6315
        %v7260 = vpack.c.b16 %v6332, %v6324
        %v7261 = vpack.c.b16 %v6333, %v6325
        %v7262 = vpack.c.b16 %v6334, %v6326
        %v7263 = vpack.c.b16 %v6335, %v6327
        %v7264 = vpack.c.b16 %v6336, %v6328
        %v7265 = vpack.c.b16 %v6337, %v6329
        %v7266 = vpack.c.b16 %v6338, %v6330
        %v7267 = vpack.c.b16 %v6339, %v6331
        %v7268 = vpack.c.b16 %v6348, %v6340
        %v7269 = vpack.c.b16 %v6349, %v6341
        %v7270 = vpack.c.b16 %v6350, %v6342
        %v7271 = vpack.c.b16 %v6351, %v6343
        %v7272 = vpack.c.b16 %v6352, %v6344
        %v7273 = vpack.c.b16 %v6353, %v6345
        %v7274 = vpack.c.b16 %v6354, %v6346
        %v7275 = vpack.c.b16 %v6355, %v6347
        %v7276 = vpack.c.b16 %v6364, %v6356
        %v7277 = vpack.c.b16 %v6365, %v6357
        %v7278 = vpack.c.b16 %v6366, %v6358
        %v7279 = vpack.c.b16 %v6367, %v6359
        %v7280 = vpack.c.b16 %v6368, %v6360
        %v7281 = vpack.c.b16 %v6369, %v6361
        %v7282 = vpack.c.b16 %v6370, %v6362
        %v7283 = vpack.c.b16 %v6371, %v6363
        %v7284 = vpack.c.b16 %v6380, %v6372
        %v7285 = vpack.c.b16 %v6381, %v6373
        %v7286 = vpack.c.b16 %v6382, %v6374
        %v7287 = vpack.c.b16 %v6383, %v6375
        %v7288 = vpack.c.b16 %v6384, %v6376
        %v7289 = vpack.c.b16 %v6385, %v6377
        %v7290 = vpack.c.b16 %v6386, %v6378
        %v7291 = vpack.c.b16 %v6387, %v6379
        %v7292 = vpack.c.b16 %v6396, %v6388
        %v7293 = vpack.c.b16 %v6397, %v6389
        %v7294 = vpack.c.b16 %v6398, %v6390
        %v7295 = vpack.c.b16 %v6399, %v6391
        %v7296 = vpack.c.b16 %v6400, %v6392
        %v7297 = vpack.c.b16 %v6401, %v6393
        %v7298 = vpack.c.b16 %v6402, %v6394
        %v7299 = vpack.c.b16 %v6403, %v6395
        %v7300 = vpack.c.b16 %v6412, %v6404
        %v7301 = vpack.c.b16 %v6413, %v6405
        %v7302 = vpack.c.b16 %v6414, %v6406
        %v7303 = vpack.c.b16 %v6415, %v6407
        %v7304 = vpack.c.b16 %v6416, %v6408
        %v7305 = vpack.c.b16 %v6417, %v6409
        %v7306 = vpack.c.b16 %v6418, %v6410
        %v7307 = vpack.c.b16 %v6419, %v6411
        %v7308 = vpack.c.b16 %v6428, %v6420
        %v7309 = vpack.c.b16 %v6429, %v6421
        %v7310 = vpack.c.b16 %v6430, %v6422
        %v7311 = vpack.c.b16 %v6431, %v6423
        %v7312 = vpack.c.b16 %v6432, %v6424
        %v7313 = vpack.c.b16 %v6433, %v6425
        %v7314 = vpack.c.b16 %v6434, %v6426
        %v7315 = vpack.c.b16 %v6435, %v6427
        %v7316 = vpack.c.b16 %v6444, %v6436
        %v7317 = vpack.c.b16 %v6445, %v6437
        %v7318 = vpack.c.b16 %v6446, %v6438
        %v7319 = vpack.c.b16 %v6447, %v6439
        %v7320 = vpack.c.b16 %v6448, %v6440
        %v7321 = vpack.c.b16 %v6449, %v6441
        %v7322 = vpack.c.b16 %v6450, %v6442
        %v7323 = vpack.c.b16 %v6451, %v6443
        %v7324 = vpack.c.b16 %v6460, %v6452
        %v7325 = vpack.c.b16 %v6461, %v6453
        %v7326 = vpack.c.b16 %v6462, %v6454
        %v7327 = vpack.c.b16 %v6463, %v6455
        %v7328 = vpack.c.b16 %v6464, %v6456
        %v7329 = vpack.c.b16 %v6465, %v6457
        %v7330 = vpack.c.b16 %v6466, %v6458
        %v7331 = vpack.c.b16 %v6467, %v6459
        %v7332 = vpack.c.b16 %v6476, %v6468
        %v7333 = vpack.c.b16 %v6477, %v6469
        %v7334 = vpack.c.b16 %v6478, %v6470
        %v7335 = vpack.c.b16 %v6479, %v6471
        %v7336 = vpack.c.b16 %v6480, %v6472
        %v7337 = vpack.c.b16 %v6481, %v6473
        %v7338 = vpack.c.b16 %v6482, %v6474
        %v7339 = vpack.c.b16 %v6483, %v6475
        %v7340 = vpack.c.b16 %v6492, %v6484
        %v7341 = vpack.c.b16 %v6493, %v6485
        %v7342 = vpack.c.b16 %v6494, %v6486
        %v7343 = vpack.c.b16 %v6495, %v6487
        %v7344 = vpack.c.b16 %v6496, %v6488
        %v7345 = vpack.c.b16 %v6497, %v6489
        %v7346 = vpack.c.b16 %v6498, %v6490
        %v7347 = vpack.c.b16 %v6499, %v6491
        %v7348 = vpack.c.b16 %v6508, %v6500
        %v7349 = vpack.c.b16 %v6509, %v6501
        %v7350 = vpack.c.b16 %v6510, %v6502
        %v7351 = vpack.c.b16 %v6511, %v6503
        %v7352 = vpack.c.b16 %v6512, %v6504
        %v7353 = vpack.c.b16 %v6513, %v6505
        %v7354 = vpack.c.b16 %v6514, %v6506
        %v7355 = vpack.c.b16 %v6515, %v6507
        %v7356 = vpack.c.b16 %v6524, %v6516
        %v7357 = vpack.c.b16 %v6525, %v6517
        %v7358 = vpack.c.b16 %v6526, %v6518
        %v7359 = vpack.c.b16 %v6527, %v6519
        %v7360 = vpack.c.b16 %v6528, %v6520
        %v7361 = vpack.c.b16 %v6529, %v6521
        %v7362 = vpack.c.b16 %v6530, %v6522
        %v7363 = vpack.c.b16 %v6531, %v6523
        %v7364 = vpack.c.b16 %v6540, %v6532
        %v7365 = vpack.c.b16 %v6541, %v6533
        %v7366 = vpack.c.b16 %v6542, %v6534
        %v7367 = vpack.c.b16 %v6543, %v6535
        %v7368 = vpack.c.b16 %v6544, %v6536
        %v7369 = vpack.c.b16 %v6545, %v6537
        %v7370 = vpack.c.b16 %v6546, %v6538
        %v7371 = vpack.c.b16 %v6547, %v6539
        %v7372 = vpack.c.b16 %v6556, %v6548
        %v7373 = vpack.c.b16 %v6557, %v6549
        %v7374 = vpack.c.b16 %v6558, %v6550
        %v7375 = vpack.c.b16 %v6559, %v6551
        %v7376 = vpack.c.b16 %v6560, %v6552
        %v7377 = vpack.c.b16 %v6561, %v6553
        %v7378 = vpack.c.b16 %v6562, %v6554
        %v7379 = vpack.c.b16 %v6563, %v6555
        %v7380 = vpack.c.b16 %v6572, %v6564
        %v7381 = vpack.c.b16 %v6573, %v6565
        %v7382 = vpack.c.b16 %v6574, %v6566
        %v7383 = vpack.c.b16 %v6575, %v6567
        %v7384 = vpack.c.b16 %v6576, %v6568
        %v7385 = vpack.c.b16 %v6577, %v6569
        %v7386 = vpack.c.b16 %v6578, %v6570
        %v7387 = vpack.c.b16 %v6579, %v6571
        %v7388 = vpack.c.b16 %v6588, %v6580
        %v7389 = vpack.c.b16 %v6589, %v6581
        %v7390 = vpack.c.b16 %v6590, %v6582
        %v7391 = vpack.c.b16 %v6591, %v6583
        %v7392 = vpack.c.b16 %v6592, %v6584
        %v7393 = vpack.c.b16 %v6593, %v6585
        %v7394 = vpack.c.b16 %v6594, %v6586
        %v7395 = vpack.c.b16 %v6595, %v6587
        %v7396 = vpack.c.b16 %v6604, %v6596
        %v7397 = vpack.c.b16 %v6605, %v6597
        %v7398 = vpack.c.b16 %v6606, %v6598
        %v7399 = vpack.c.b16 %v6607, %v6599
        %v7400 = vpack.c.b16 %v6608, %v6600
        %v7401 = vpack.c.b16 %v6609, %v6601
        %v7402 = vpack.c.b16 %v6610, %v6602
        %v7403 = vpack.c.b16 %v6611, %v6603
        %v7404 = vpack.c.b16 %v6620, %v6612
        %v7405 = vpack.c.b16 %v6621, %v6613
        %v7406 = vpack.c.b16 %v6622, %v6614
        %v7407 = vpack.c.b16 %v6623, %v6615
        %v7408 = vpack.c.b16 %v6624, %v6616
        %v7409 = vpack.c.b16 %v6625, %v6617
        %v7410 = vpack.c.b16 %v6626, %v6618
        %v7411 = vpack.c.b16 %v6627, %v6619
        %v7412 = vpack.c.b16 %v6636, %v6628
        %v7413 = vpack.c.b16 %v6637, %v6629
        %v7414 = vpack.c.b16 %v6638, %v6630
        %v7415 = vpack.c.b16 %v6639, %v6631
        %v7416 = vpack.c.b16 %v6640, %v6632
        %v7417 = vpack.c.b16 %v6641, %v6633
        %v7418 = vpack.c.b16 %v6642, %v6634
        %v7419 = vpack.c.b16 %v6643, %v6635
        %v7420 = vpack.c.b16 %v6652, %v6644
        %v7421 = vpack.c.b16 %v6653, %v6645
        %v7422 = vpack.c.b16 %v6654, %v6646
        %v7423 = vpack.c.b16 %v6655, %v6647
        %v7424 = vpack.c.b16 %v6656, %v6648
        %v7425 = vpack.c.b16 %v6657, %v6649
        %v7426 = vpack.c.b16 %v6658, %v6650
        %v7427 = vpack.c.b16 %v6659, %v6651
        %v7428 = vpack.c.b16 %v6668, %v6660
        %v7429 = vpack.c.b16 %v6669, %v6661
        %v7430 = vpack.c.b16 %v6670, %v6662
        %v7431 = vpack.c.b16 %v6671, %v6663
        %v7432 = vpack.c.b16 %v6672, %v6664
        %v7433 = vpack.c.b16 %v6673, %v6665
        %v7434 = vpack.c.b16 %v6674, %v6666
        %v7435 = vpack.c.b16 %v6675, %v6667
        %v7436 = vpack.c.b16 %v6684, %v6676
        %v7437 = vpack.c.b16 %v6685, %v6677
        %v7438 = vpack.c.b16 %v6686, %v6678
        %v7439 = vpack.c.b16 %v6687, %v6679
        %v7440 = vpack.c.b16 %v6688, %v6680
        %v7441 = vpack.c.b16 %v6689, %v6681
        %v7442 = vpack.c.b16 %v6690, %v6682
        %v7443 = vpack.c.b16 %v6691, %v6683
        %v7444 = vpack.c.b16 %v6700, %v6692
        %v7445 = vpack.c.b16 %v6701, %v6693
        %v7446 = vpack.c.b16 %v6702, %v6694
        %v7447 = vpack.c.b16 %v6703, %v6695
        %v7448 = vpack.c.b16 %v6704, %v6696
        %v7449 = vpack.c.b16 %v6705, %v6697
        %v7450 = vpack.c.b16 %v6706, %v6698
        %v7451 = vpack.c.b16 %v6707, %v6699
        %v7452 = vpack.c.b16 %v6716, %v6708
        %v7453 = vpack.c.b16 %v6717, %v6709
        %v7454 = vpack.c.b16 %v6718, %v6710
        %v7455 = vpack.c.b16 %v6719, %v6711
        %v7456 = vpack.c.b16 %v6720, %v6712
        %v7457 = vpack.c.b16 %v6721, %v6713
        %v7458 = vpack.c.b16 %v6722, %v6714
        %v7459 = vpack.c.b16 %v6723, %v6715
        %v7460 = vpack.c.b16 %v6732, %v6724
        %v7461 = vpack.c.b16 %v6733, %v6725
        %v7462 = vpack.c.b16 %v6734, %v6726
        %v7463 = vpack.c.b16 %v6735, %v6727
        %v7464 = vpack.c.b16 %v6736, %v6728
        %v7465 = vpack.c.b16 %v6737, %v6729
        %v7466 = vpack.c.b16 %v6738, %v6730
        %v7467 = vpack.c.b16 %v6739, %v6731
        %v7468 = vpack.c.b16 %v6748, %v6740
        %v7469 = vpack.c.b16 %v6749, %v6741
        %v7470 = vpack.c.b16 %v6750, %v6742
        %v7471 = vpack.c.b16 %v6751, %v6743
        %v7472 = vpack.c.b16 %v6752, %v6744
        %v7473 = vpack.c.b16 %v6753, %v6745
        %v7474 = vpack.c.b16 %v6754, %v6746
        %v7475 = vpack.c.b16 %v6755, %v6747
        %v7476 = vpack.c.b16 %v6764, %v6756
        %v7477 = vpack.c.b16 %v6765, %v6757
        %v7478 = vpack.c.b16 %v6766, %v6758
        %v7479 = vpack.c.b16 %v6767, %v6759
        %v7480 = vpack.c.b16 %v6768, %v6760
        %v7481 = vpack.c.b16 %v6769, %v6761
        %v7482 = vpack.c.b16 %v6770, %v6762
        %v7483 = vpack.c.b16 %v6771, %v6763
        %v7484 = vpack.c.b16 %v6780, %v6772
        %v7485 = vpack.c.b16 %v6781, %v6773
        %v7486 = vpack.c.b16 %v6782, %v6774
        %v7487 = vpack.c.b16 %v6783, %v6775
        %v7488 = vpack.c.b16 %v6784, %v6776
        %v7489 = vpack.c.b16 %v6785, %v6777
        %v7490 = vpack.c.b16 %v6786, %v6778
        %v7491 = vpack.c.b16 %v6787, %v6779
        %v7492 = vpack.c.b16 %v6796, %v6788
        %v7493 = vpack.c.b16 %v6797, %v6789
        %v7494 = vpack.c.b16 %v6798, %v6790
        %v7495 = vpack.c.b16 %v6799, %v6791
        %v7496 = vpack.c.b16 %v6800, %v6792
        %v7497 = vpack.c.b16 %v6801, %v6793
        %v7498 = vpack.c.b16 %v6802, %v6794
        %v7499 = vpack.c.b16 %v6803, %v6795
        %v7500 = vpack.c.b16 %v6812, %v6804
        %v7501 = vpack.c.b16 %v6813, %v6805
        %v7502 = vpack.c.b16 %v6814, %v6806
        %v7503 = vpack.c.b16 %v6815, %v6807
        %v7504 = vpack.c.b16 %v6816, %v6808
        %v7505 = vpack.c.b16 %v6817, %v6809
        %v7506 = vpack.c.b16 %v6818, %v6810
        %v7507 = vpack.c.b16 %v6819, %v6811
        %v7508 = vpack.c.b16 %v6828, %v6820
        %v7509 = vpack.c.b16 %v6829, %v6821
        %v7510 = vpack.c.b16 %v6830, %v6822
        %v7511 = vpack.c.b16 %v6831, %v6823
        %v7512 = vpack.c.b16 %v6832, %v6824
        %v7513 = vpack.c.b16 %v6833, %v6825
        %v7514 = vpack.c.b16 %v6834, %v6826
        %v7515 = vpack.c.b16 %v6835, %v6827
        %v7516 = vpack.c.b16 %v6844, %v6836
        %v7517 = vpack.c.b16 %v6845, %v6837
        %v7518 = vpack.c.b16 %v6846, %v6838
        %v7519 = vpack.c.b16 %v6847, %v6839
        %v7520 = vpack.c.b16 %v6848, %v6840
        %v7521 = vpack.c.b16 %v6849, %v6841
        %v7522 = vpack.c.b16 %v6850, %v6842
        %v7523 = vpack.c.b16 %v6851, %v6843
        %v7524 = vpack.c.b16 %v6860, %v6852
        %v7525 = vpack.c.b16 %v6861, %v6853
        %v7526 = vpack.c.b16 %v6862, %v6854
        %v7527 = vpack.c.b16 %v6863, %v6855
        %v7528 = vpack.c.b16 %v6864, %v6856
        %v7529 = vpack.c.b16 %v6865, %v6857
        %v7530 = vpack.c.b16 %v6866, %v6858
        %v7531 = vpack.c.b16 %v6867, %v6859
        %v7532 = vpack.c.b16 %v6876, %v6868
        %v7533 = vpack.c.b16 %v6877, %v6869
        %v7534 = vpack.c.b16 %v6878, %v6870
        %v7535 = vpack.c.b16 %v6879, %v6871
        %v7536 = vpack.c.b16 %v6880, %v6872
        %v7537 = vpack.c.b16 %v6881, %v6873
        %v7538 = vpack.c.b16 %v6882, %v6874
        %v7539 = vpack.c.b16 %v6883, %v6875
        %v7540 = vpack.c.b16 %v6892, %v6884
        %v7541 = vpack.c.b16 %v6893, %v6885
        %v7542 = vpack.c.b16 %v6894, %v6886
        %v7543 = vpack.c.b16 %v6895, %v6887
        %v7544 = vpack.c.b16 %v6896, %v6888
        %v7545 = vpack.c.b16 %v6897, %v6889
        %v7546 = vpack.c.b16 %v6898, %v6890
        %v7547 = vpack.c.b16 %v6899, %v6891
        %v7548 = vpack.c.b16 %v6908, %v6900
        %v7549 = vpack.c.b16 %v6909, %v6901
        %v7550 = vpack.c.b16 %v6910, %v6902
        %v7551 = vpack.c.b16 %v6911, %v6903
        %v7552 = vpack.c.b16 %v6912, %v6904
        %v7553 = vpack.c.b16 %v6913, %v6905
        %v7554 = vpack.c.b16 %v6914, %v6906
        %v7555 = vpack.c.b16 %v6915, %v6907
        %v7556 = vpack.c.b16 %v6924, %v6916
        %v7557 = vpack.c.b16 %v6925, %v6917
        %v7558 = vpack.c.b16 %v6926, %v6918
        %v7559 = vpack.c.b16 %v6927, %v6919
        %v7560 = vpack.c.b16 %v6928, %v6920
        %v7561 = vpack.c.b16 %v6929, %v6921
        %v7562 = vpack.c.b16 %v6930, %v6922
        %v7563 = vpack.c.b16 %v6931, %v6923
        %v7564 = vpack.c.b16 %v6940, %v6932
        %v7565 = vpack.c.b16 %v6941, %v6933
        %v7566 = vpack.c.b16 %v6942, %v6934
        %v7567 = vpack.c.b16 %v6943, %v6935
        %v7568 = vpack.c.b16 %v6944, %v6936
        %v7569 = vpack.c.b16 %v6945, %v6937
        %v7570 = vpack.c.b16 %v6946, %v6938
        %v7571 = vpack.c.b16 %v6947, %v6939
        %v7572 = vpack.c.b16 %v6956, %v6948
        %v7573 = vpack.c.b16 %v6957, %v6949
        %v7574 = vpack.c.b16 %v6958, %v6950
        %v7575 = vpack.c.b16 %v6959, %v6951
        %v7576 = vpack.c.b16 %v6960, %v6952
        %v7577 = vpack.c.b16 %v6961, %v6953
        %v7578 = vpack.c.b16 %v6962, %v6954
        %v7579 = vpack.c.b16 %v6963, %v6955
        %v7580 = vpack.c.b16 %v6972, %v6964
        %v7581 = vpack.c.b16 %v6973, %v6965
        %v7582 = vpack.c.b16 %v6974, %v6966
        %v7583 = vpack.c.b16 %v6975, %v6967
        %v7584 = vpack.c.b16 %v6976, %v6968
        %v7585 = vpack.c.b16 %v6977, %v6969
        %v7586 = vpack.c.b16 %v6978, %v6970
        %v7587 = vpack.c.b16 %v6979, %v6971
        %v7588 = vpack.c.b16 %v6988, %v6980
        %v7589 = vpack.c.b16 %v6989, %v6981
        %v7590 = vpack.c.b16 %v6990, %v6982
        %v7591 = vpack.c.b16 %v6991, %v6983
        %v7592 = vpack.c.b16 %v6992, %v6984
        %v7593 = vpack.c.b16 %v6993, %v6985
        %v7594 = vpack.c.b16 %v6994, %v6986
        %v7595 = vpack.c.b16 %v6995, %v6987
        %v7596 = vpack.c.b16 %v7004, %v6996
        %v7597 = vpack.c.b16 %v7005, %v6997
        %v7598 = vpack.c.b16 %v7006, %v6998
        %v7599 = vpack.c.b16 %v7007, %v6999
        %v7600 = vpack.c.b16 %v7008, %v7000
        %v7601 = vpack.c.b16 %v7009, %v7001
        %v7602 = vpack.c.b16 %v7010, %v7002
        %v7603 = vpack.c.b16 %v7011, %v7003
        %v7604 = vpack.c.b16 %v7020, %v7012
        %v7605 = vpack.c.b16 %v7021, %v7013
        %v7606 = vpack.c.b16 %v7022, %v7014
        %v7607 = vpack.c.b16 %v7023, %v7015
        %v7608 = vpack.c.b16 %v7024, %v7016
        %v7609 = vpack.c.b16 %v7025, %v7017
        %v7610 = vpack.c.b16 %v7026, %v7018
        %v7611 = vpack.c.b16 %v7027, %v7019
        %v7612 = vpack.c.b16 %v7036, %v7028
        %v7613 = vpack.c.b16 %v7037, %v7029
        %v7614 = vpack.c.b16 %v7038, %v7030
        %v7615 = vpack.c.b16 %v7039, %v7031
        %v7616 = vpack.c.b16 %v7040, %v7032
        %v7617 = vpack.c.b16 %v7041, %v7033
        %v7618 = vpack.c.b16 %v7042, %v7034
        %v7619 = vpack.c.b16 %v7043, %v7035
        %v7620 = vpack.c.b16 %v7052, %v7044
        %v7621 = vpack.c.b16 %v7053, %v7045
        %v7622 = vpack.c.b16 %v7054, %v7046
        %v7623 = vpack.c.b16 %v7055, %v7047
        %v7624 = vpack.c.b16 %v7056, %v7048
        %v7625 = vpack.c.b16 %v7057, %v7049
        %v7626 = vpack.c.b16 %v7058, %v7050
        %v7627 = vpack.c.b16 %v7059, %v7051
        %v7628 = vpack.c.b16 %v7068, %v7060
        %v7629 = vpack.c.b16 %v7069, %v7061
        %v7630 = vpack.c.b16 %v7070, %v7062
        %v7631 = vpack.c.b16 %v7071, %v7063
        %v7632 = vpack.c.b16 %v7072, %v7064
        %v7633 = vpack.c.b16 %v7073, %v7065
        %v7634 = vpack.c.b16 %v7074, %v7066
        %v7635 = vpack.c.b16 %v7075, %v7067
        %v7636 = vpack.c.b16 %v7084, %v7076
        %v7637 = vpack.c.b16 %v7085, %v7077
        %v7638 = vpack.c.b16 %v7086, %v7078
        %v7639 = vpack.c.b16 %v7087, %v7079
        %v7640 = vpack.c.b16 %v7088, %v7080
        %v7641 = vpack.c.b16 %v7089, %v7081
        %v7642 = vpack.c.b16 %v7090, %v7082
        %v7643 = vpack.c.b16 %v7091, %v7083
        %v7644 = vpack.c.b16 %v7100, %v7092
        %v7645 = vpack.c.b16 %v7101, %v7093
        %v7646 = vpack.c.b16 %v7102, %v7094
        %v7647 = vpack.c.b16 %v7103, %v7095
        %v7648 = vpack.c.b16 %v7104, %v7096
        %v7649 = vpack.c.b16 %v7105, %v7097
        %v7650 = vpack.c.b16 %v7106, %v7098
        %v7651 = vpack.c.b16 %v7107, %v7099
        %v7652 = vpack.c.b16 %v7116, %v7108
        %v7653 = vpack.c.b16 %v7117, %v7109
        %v7654 = vpack.c.b16 %v7118, %v7110
        %v7655 = vpack.c.b16 %v7119, %v7111
        %v7656 = vpack.c.b16 %v7120, %v7112
        %v7657 = vpack.c.b16 %v7121, %v7113
        %v7658 = vpack.c.b16 %v7122, %v7114
        %v7659 = vpack.c.b16 %v7123, %v7115
        %v7660 = vpack.c.b16 %v7132, %v7124
        %v7661 = vpack.c.b16 %v7133, %v7125
        %v7662 = vpack.c.b16 %v7134, %v7126
        %v7663 = vpack.c.b16 %v7135, %v7127
        %v7664 = vpack.c.b16 %v7136, %v7128
        %v7665 = vpack.c.b16 %v7137, %v7129
        %v7666 = vpack.c.b16 %v7138, %v7130
        %v7667 = vpack.c.b16 %v7139, %v7131
        %v7668 = vpack.c.b16 %v7148, %v7140
        %v7669 = vpack.c.b16 %v7149, %v7141
        %v7670 = vpack.c.b16 %v7150, %v7142
        %v7671 = vpack.c.b16 %v7151, %v7143
        %v7672 = vpack.c.b16 %v7152, %v7144
        %v7673 = vpack.c.b16 %v7153, %v7145
        %v7674 = vpack.c.b16 %v7154, %v7146
        %v7675 = vpack.c.b16 %v7155, %v7147
        %v7676 = vpack.c.b16 %v7164, %v7156
        %v7677 = vpack.c.b16 %v7165, %v7157
        %v7678 = vpack.c.b16 %v7166, %v7158
        %v7679 = vpack.c.b16 %v7167, %v7159
        %v7680 = vpack.c.b16 %v7168, %v7160
        %v7681 = vpack.c.b16 %v7169, %v7161
        %v7682 = vpack.c.b16 %v7170, %v7162
        %v7683 = vpack.c.b16 %v7171, %v7163
        %8196 = vmatpush.bf16.msra.mxu0 %v7228
        %8197 = vmatpush.bf16.msra.mxu0 %v7220
        %8198 = vmatpush.bf16.msra.mxu0 %v7212
        %8199 = vmatpush.bf16.msra.mxu0 %v7204
        %8200 = vmatpush.bf16.msra.mxu0 %v7196
        %8201 = vmatpush.bf16.msra.mxu0 %v7188
        %8202 = vmatpush.bf16.msra.mxu0 %v7180
        %8203 = vmatpush.bf16.msra.mxu0 %v7172
        %8204 = vmatmul.bf16.gmra.mxu0 %v5115
        %v8205 = vpop.f32.mrf.mxu0
        %v8206 = vadd.f32 0.0, %v8205
        %v8207 = vpop.f32.mrf.mxu0
        %v8208 = vadd.f32 0.0, %v8207
        %8209 = vdwg.mxu0
        %8210 = vmatpush.bf16.msra.mxu0 %v7292
        %8211 = vmatpush.bf16.msra.mxu0 %v7284
        %8212 = vmatpush.bf16.msra.mxu0 %v7276
        %8213 = vmatpush.bf16.msra.mxu0 %v7268
        %8214 = vmatpush.bf16.msra.mxu0 %v7260
        %8215 = vmatpush.bf16.msra.mxu0 %v7252
        %8216 = vmatpush.bf16.msra.mxu0 %v7244
        %8217 = vmatpush.bf16.msra.mxu0 %v7236
        %8218 = vmatmul.bf16.gmra.mxu0 %v5116
        %v8219 = vpop.f32.mrf.mxu0
        %v8220 = vadd.f32 %v8206, %v8219
        %v8221 = vpop.f32.mrf.mxu0
        %v8222 = vadd.f32 %v8208, %v8221
        %8223 = vdwg.mxu0
        %8224 = vmatpush.bf16.msra.mxu0 %v7356
        %8225 = vmatpush.bf16.msra.mxu0 %v7348
        %8226 = vmatpush.bf16.msra.mxu0 %v7340
        %8227 = vmatpush.bf16.msra.mxu0 %v7332
        %8228 = vmatpush.bf16.msra.mxu0 %v7324
        %8229 = vmatpush.bf16.msra.mxu0 %v7316
        %8230 = vmatpush.bf16.msra.mxu0 %v7308
        %8231 = vmatpush.bf16.msra.mxu0 %v7300
        %8232 = vmatmul.bf16.gmra.mxu0 %v5117
        %v8233 = vpop.f32.mrf.mxu0
        %v8234 = vadd.f32 %v8220, %v8233
        %v8235 = vpop.f32.mrf.mxu0
        %v8236 = vadd.f32 %v8222, %v8235
        %8237 = vdwg.mxu0
        %8238 = vmatpush.bf16.msra.mxu0 %v7420
        %8239 = vmatpush.bf16.msra.mxu0 %v7412
        %8240 = vmatpush.bf16.msra.mxu0 %v7404
        %8241 = vmatpush.bf16.msra.mxu0 %v7396
        %8242 = vmatpush.bf16.msra.mxu0 %v7388
        %8243 = vmatpush.bf16.msra.mxu0 %v7380
        %8244 = vmatpush.bf16.msra.mxu0 %v7372
        %8245 = vmatpush.bf16.msra.mxu0 %v7364
        %8246 = vmatmul.bf16.gmra.mxu0 %v5118
        %v8247 = vpop.f32.mrf.mxu0
        %v8248 = vadd.f32 %v8234, %v8247
        %v8249 = vpop.f32.mrf.mxu0
        %v8250 = vadd.f32 %v8236, %v8249
        %8251 = vdwg.mxu0
        %8252 = vmatpush.bf16.msra.mxu0 %v7484
        %8253 = vmatpush.bf16.msra.mxu0 %v7476
        %8254 = vmatpush.bf16.msra.mxu0 %v7468
        %8255 = vmatpush.bf16.msra.mxu0 %v7460
        %8256 = vmatpush.bf16.msra.mxu0 %v7452
        %8257 = vmatpush.bf16.msra.mxu0 %v7444
        %8258 = vmatpush.bf16.msra.mxu0 %v7436
        %8259 = vmatpush.bf16.msra.mxu0 %v7428
        %8260 = vmatmul.bf16.gmra.mxu0 %v5119
        %v8261 = vpop.f32.mrf.mxu0
        %v8262 = vadd.f32 %v8248, %v8261
        %v8263 = vpop.f32.mrf.mxu0
        %v8264 = vadd.f32 %v8250, %v8263
        %8265 = vdwg.mxu0
        %8266 = vmatpush.bf16.msra.mxu0 %v7548
        %8267 = vmatpush.bf16.msra.mxu0 %v7540
        %8268 = vmatpush.bf16.msra.mxu0 %v7532
        %8269 = vmatpush.bf16.msra.mxu0 %v7524
        %8270 = vmatpush.bf16.msra.mxu0 %v7516
        %8271 = vmatpush.bf16.msra.mxu0 %v7508
        %8272 = vmatpush.bf16.msra.mxu0 %v7500
        %8273 = vmatpush.bf16.msra.mxu0 %v7492
        %8274 = vmatmul.bf16.gmra.mxu0 %v5120
        %v8275 = vpop.f32.mrf.mxu0
        %v8276 = vadd.f32 %v8262, %v8275
        %v8277 = vpop.f32.mrf.mxu0
        %v8278 = vadd.f32 %v8264, %v8277
        %8279 = vdwg.mxu0
        %8280 = vmatpush.bf16.msra.mxu0 %v7612
        %8281 = vmatpush.bf16.msra.mxu0 %v7604
        %8282 = vmatpush.bf16.msra.mxu0 %v7596
        %8283 = vmatpush.bf16.msra.mxu0 %v7588
        %8284 = vmatpush.bf16.msra.mxu0 %v7580
        %8285 = vmatpush.bf16.msra.mxu0 %v7572
        %8286 = vmatpush.bf16.msra.mxu0 %v7564
        %8287 = vmatpush.bf16.msra.mxu0 %v7556
        %8288 = vmatmul.bf16.gmra.mxu0 %v5121
        %v8289 = vpop.f32.mrf.mxu0
        %v8290 = vadd.f32 %v8276, %v8289
        %v8291 = vpop.f32.mrf.mxu0
        %v8292 = vadd.f32 %v8278, %v8291
        %8293 = vdwg.mxu0
        %8294 = vmatpush.bf16.msra.mxu0 %v7676
        %8295 = vmatpush.bf16.msra.mxu0 %v7668
        %8296 = vmatpush.bf16.msra.mxu0 %v7660
        %8297 = vmatpush.bf16.msra.mxu0 %v7652
        %8298 = vmatpush.bf16.msra.mxu0 %v7644
        %8299 = vmatpush.bf16.msra.mxu0 %v7636
        %8300 = vmatpush.bf16.msra.mxu0 %v7628
        %8301 = vmatpush.bf16.msra.mxu0 %v7620
        %8302 = vmatmul.bf16.gmra.mxu0 %v5122
        %v8303 = vpop.f32.mrf.mxu0
        %v8304 = vadd.f32 %v8290, %v8303
        %v8305 = vpop.f32.mrf.mxu0
        %v8306 = vadd.f32 %v8292, %v8305
        %8307 = vdwg.mxu0
        %8308 = vmatpush.bf16.msra.mxu0 %v7229
        %8309 = vmatpush.bf16.msra.mxu0 %v7221
        %8310 = vmatpush.bf16.msra.mxu0 %v7213
        %8311 = vmatpush.bf16.msra.mxu0 %v7205
        %8312 = vmatpush.bf16.msra.mxu0 %v7197
        %8313 = vmatpush.bf16.msra.mxu0 %v7189
        %8314 = vmatpush.bf16.msra.mxu0 %v7181
        %8315 = vmatpush.bf16.msra.mxu0 %v7173
        %8316 = vmatmul.bf16.gmra.mxu0 %v5115
        %v8317 = vpop.f32.mrf.mxu0
        %v8318 = vadd.f32 0.0, %v8317
        %v8319 = vpop.f32.mrf.mxu0
        %v8320 = vadd.f32 0.0, %v8319
        %8321 = vdwg.mxu0
        %8322 = vmatpush.bf16.msra.mxu0 %v7293
        %8323 = vmatpush.bf16.msra.mxu0 %v7285
        %8324 = vmatpush.bf16.msra.mxu0 %v7277
        %8325 = vmatpush.bf16.msra.mxu0 %v7269
        %8326 = vmatpush.bf16.msra.mxu0 %v7261
        %8327 = vmatpush.bf16.msra.mxu0 %v7253
        %8328 = vmatpush.bf16.msra.mxu0 %v7245
        %8329 = vmatpush.bf16.msra.mxu0 %v7237
        %8330 = vmatmul.bf16.gmra.mxu0 %v5116
        %v8331 = vpop.f32.mrf.mxu0
        %v8332 = vadd.f32 %v8318, %v8331
        %v8333 = vpop.f32.mrf.mxu0
        %v8334 = vadd.f32 %v8320, %v8333
        %8335 = vdwg.mxu0
        %8336 = vmatpush.bf16.msra.mxu0 %v7357
        %8337 = vmatpush.bf16.msra.mxu0 %v7349
        %8338 = vmatpush.bf16.msra.mxu0 %v7341
        %8339 = vmatpush.bf16.msra.mxu0 %v7333
        %8340 = vmatpush.bf16.msra.mxu0 %v7325
        %8341 = vmatpush.bf16.msra.mxu0 %v7317
        %8342 = vmatpush.bf16.msra.mxu0 %v7309
        %8343 = vmatpush.bf16.msra.mxu0 %v7301
        %8344 = vmatmul.bf16.gmra.mxu0 %v5117
        %v8345 = vpop.f32.mrf.mxu0
        %v8346 = vadd.f32 %v8332, %v8345
        %v8347 = vpop.f32.mrf.mxu0
        %v8348 = vadd.f32 %v8334, %v8347
        %8349 = vdwg.mxu0
        %8350 = vmatpush.bf16.msra.mxu0 %v7421
        %8351 = vmatpush.bf16.msra.mxu0 %v7413
        %8352 = vmatpush.bf16.msra.mxu0 %v7405
        %8353 = vmatpush.bf16.msra.mxu0 %v7397
        %8354 = vmatpush.bf16.msra.mxu0 %v7389
        %8355 = vmatpush.bf16.msra.mxu0 %v7381
        %8356 = vmatpush.bf16.msra.mxu0 %v7373
        %8357 = vmatpush.bf16.msra.mxu0 %v7365
        %8358 = vmatmul.bf16.gmra.mxu0 %v5118
        %v8359 = vpop.f32.mrf.mxu0
        %v8360 = vadd.f32 %v8346, %v8359
        %v8361 = vpop.f32.mrf.mxu0
        %v8362 = vadd.f32 %v8348, %v8361
        %8363 = vdwg.mxu0
        %8364 = vmatpush.bf16.msra.mxu0 %v7485
        %8365 = vmatpush.bf16.msra.mxu0 %v7477
        %8366 = vmatpush.bf16.msra.mxu0 %v7469
        %8367 = vmatpush.bf16.msra.mxu0 %v7461
        %8368 = vmatpush.bf16.msra.mxu0 %v7453
        %8369 = vmatpush.bf16.msra.mxu0 %v7445
        %8370 = vmatpush.bf16.msra.mxu0 %v7437
        %8371 = vmatpush.bf16.msra.mxu0 %v7429
        %8372 = vmatmul.bf16.gmra.mxu0 %v5119
        %v8373 = vpop.f32.mrf.mxu0
        %v8374 = vadd.f32 %v8360, %v8373
        %v8375 = vpop.f32.mrf.mxu0
        %v8376 = vadd.f32 %v8362, %v8375
        %8377 = vdwg.mxu0
        %8378 = vmatpush.bf16.msra.mxu0 %v7549
        %8379 = vmatpush.bf16.msra.mxu0 %v7541
        %8380 = vmatpush.bf16.msra.mxu0 %v7533
        %8381 = vmatpush.bf16.msra.mxu0 %v7525
        %8382 = vmatpush.bf16.msra.mxu0 %v7517
        %8383 = vmatpush.bf16.msra.mxu0 %v7509
        %8384 = vmatpush.bf16.msra.mxu0 %v7501
        %8385 = vmatpush.bf16.msra.mxu0 %v7493
        %8386 = vmatmul.bf16.gmra.mxu0 %v5120
        %v8387 = vpop.f32.mrf.mxu0
        %v8388 = vadd.f32 %v8374, %v8387
        %v8389 = vpop.f32.mrf.mxu0
        %v8390 = vadd.f32 %v8376, %v8389
        %8391 = vdwg.mxu0
        %8392 = vmatpush.bf16.msra.mxu0 %v7613
        %8393 = vmatpush.bf16.msra.mxu0 %v7605
        %8394 = vmatpush.bf16.msra.mxu0 %v7597
        %8395 = vmatpush.bf16.msra.mxu0 %v7589
        %8396 = vmatpush.bf16.msra.mxu0 %v7581
        %8397 = vmatpush.bf16.msra.mxu0 %v7573
        %8398 = vmatpush.bf16.msra.mxu0 %v7565
        %8399 = vmatpush.bf16.msra.mxu0 %v7557
        %8400 = vmatmul.bf16.gmra.mxu0 %v5121
        %v8401 = vpop.f32.mrf.mxu0
        %v8402 = vadd.f32 %v8388, %v8401
        %v8403 = vpop.f32.mrf.mxu0
        %v8404 = vadd.f32 %v8390, %v8403
        %8405 = vdwg.mxu0
        %8406 = vmatpush.bf16.msra.mxu0 %v7677
        %8407 = vmatpush.bf16.msra.mxu0 %v7669
        %8408 = vmatpush.bf16.msra.mxu0 %v7661
        %8409 = vmatpush.bf16.msra.mxu0 %v7653
        %8410 = vmatpush.bf16.msra.mxu0 %v7645
        %8411 = vmatpush.bf16.msra.mxu0 %v7637
        %8412 = vmatpush.bf16.msra.mxu0 %v7629
        %8413 = vmatpush.bf16.msra.mxu0 %v7621
        %8414 = vmatmul.bf16.gmra.mxu0 %v5122
        %v8415 = vpop.f32.mrf.mxu0
        %v8416 = vadd.f32 %v8402, %v8415
        %v8417 = vpop.f32.mrf.mxu0
        %v8418 = vadd.f32 %v8404, %v8417
        %8419 = vdwg.mxu0
        %8420 = vmatpush.bf16.msra.mxu0 %v7230
        %8421 = vmatpush.bf16.msra.mxu0 %v7222
        %8422 = vmatpush.bf16.msra.mxu0 %v7214
        %8423 = vmatpush.bf16.msra.mxu0 %v7206
        %8424 = vmatpush.bf16.msra.mxu0 %v7198
        %8425 = vmatpush.bf16.msra.mxu0 %v7190
        %8426 = vmatpush.bf16.msra.mxu0 %v7182
        %8427 = vmatpush.bf16.msra.mxu0 %v7174
        %8428 = vmatmul.bf16.gmra.mxu0 %v5115
        %v8429 = vpop.f32.mrf.mxu0
        %v8430 = vadd.f32 0.0, %v8429
        %v8431 = vpop.f32.mrf.mxu0
        %v8432 = vadd.f32 0.0, %v8431
        %8433 = vdwg.mxu0
        %8434 = vmatpush.bf16.msra.mxu0 %v7294
        %8435 = vmatpush.bf16.msra.mxu0 %v7286
        %8436 = vmatpush.bf16.msra.mxu0 %v7278
        %8437 = vmatpush.bf16.msra.mxu0 %v7270
        %8438 = vmatpush.bf16.msra.mxu0 %v7262
        %8439 = vmatpush.bf16.msra.mxu0 %v7254
        %8440 = vmatpush.bf16.msra.mxu0 %v7246
        %8441 = vmatpush.bf16.msra.mxu0 %v7238
        %8442 = vmatmul.bf16.gmra.mxu0 %v5116
        %v8443 = vpop.f32.mrf.mxu0
        %v8444 = vadd.f32 %v8430, %v8443
        %v8445 = vpop.f32.mrf.mxu0
        %v8446 = vadd.f32 %v8432, %v8445
        %8447 = vdwg.mxu0
        %8448 = vmatpush.bf16.msra.mxu0 %v7358
        %8449 = vmatpush.bf16.msra.mxu0 %v7350
        %8450 = vmatpush.bf16.msra.mxu0 %v7342
        %8451 = vmatpush.bf16.msra.mxu0 %v7334
        %8452 = vmatpush.bf16.msra.mxu0 %v7326
        %8453 = vmatpush.bf16.msra.mxu0 %v7318
        %8454 = vmatpush.bf16.msra.mxu0 %v7310
        %8455 = vmatpush.bf16.msra.mxu0 %v7302
        %8456 = vmatmul.bf16.gmra.mxu0 %v5117
        %v8457 = vpop.f32.mrf.mxu0
        %v8458 = vadd.f32 %v8444, %v8457
        %v8459 = vpop.f32.mrf.mxu0
        %v8460 = vadd.f32 %v8446, %v8459
        %8461 = vdwg.mxu0
        %8462 = vmatpush.bf16.msra.mxu0 %v7422
        %8463 = vmatpush.bf16.msra.mxu0 %v7414
        %8464 = vmatpush.bf16.msra.mxu0 %v7406
        %8465 = vmatpush.bf16.msra.mxu0 %v7398
        %8466 = vmatpush.bf16.msra.mxu0 %v7390
        %8467 = vmatpush.bf16.msra.mxu0 %v7382
        %8468 = vmatpush.bf16.msra.mxu0 %v7374
        %8469 = vmatpush.bf16.msra.mxu0 %v7366
        %8470 = vmatmul.bf16.gmra.mxu0 %v5118
        %v8471 = vpop.f32.mrf.mxu0
        %v8472 = vadd.f32 %v8458, %v8471
        %v8473 = vpop.f32.mrf.mxu0
        %v8474 = vadd.f32 %v8460, %v8473
        %8475 = vdwg.mxu0
        %8476 = vmatpush.bf16.msra.mxu0 %v7486
        %8477 = vmatpush.bf16.msra.mxu0 %v7478
        %8478 = vmatpush.bf16.msra.mxu0 %v7470
        %8479 = vmatpush.bf16.msra.mxu0 %v7462
        %8480 = vmatpush.bf16.msra.mxu0 %v7454
        %8481 = vmatpush.bf16.msra.mxu0 %v7446
        %8482 = vmatpush.bf16.msra.mxu0 %v7438
        %8483 = vmatpush.bf16.msra.mxu0 %v7430
        %8484 = vmatmul.bf16.gmra.mxu0 %v5119
        %v8485 = vpop.f32.mrf.mxu0
        %v8486 = vadd.f32 %v8472, %v8485
        %v8487 = vpop.f32.mrf.mxu0
        %v8488 = vadd.f32 %v8474, %v8487
        %8489 = vdwg.mxu0
        %8490 = vmatpush.bf16.msra.mxu0 %v7550
        %8491 = vmatpush.bf16.msra.mxu0 %v7542
        %8492 = vmatpush.bf16.msra.mxu0 %v7534
        %8493 = vmatpush.bf16.msra.mxu0 %v7526
        %8494 = vmatpush.bf16.msra.mxu0 %v7518
        %8495 = vmatpush.bf16.msra.mxu0 %v7510
        %8496 = vmatpush.bf16.msra.mxu0 %v7502
        %8497 = vmatpush.bf16.msra.mxu0 %v7494
        %8498 = vmatmul.bf16.gmra.mxu0 %v5120
        %v8499 = vpop.f32.mrf.mxu0
        %v8500 = vadd.f32 %v8486, %v8499
        %v8501 = vpop.f32.mrf.mxu0
        %v8502 = vadd.f32 %v8488, %v8501
        %8503 = vdwg.mxu0
        %8504 = vmatpush.bf16.msra.mxu0 %v7614
        %8505 = vmatpush.bf16.msra.mxu0 %v7606
        %8506 = vmatpush.bf16.msra.mxu0 %v7598
        %8507 = vmatpush.bf16.msra.mxu0 %v7590
        %8508 = vmatpush.bf16.msra.mxu0 %v7582
        %8509 = vmatpush.bf16.msra.mxu0 %v7574
        %8510 = vmatpush.bf16.msra.mxu0 %v7566
        %8511 = vmatpush.bf16.msra.mxu0 %v7558
        %8512 = vmatmul.bf16.gmra.mxu0 %v5121
        %v8513 = vpop.f32.mrf.mxu0
        %v8514 = vadd.f32 %v8500, %v8513
        %v8515 = vpop.f32.mrf.mxu0
        %v8516 = vadd.f32 %v8502, %v8515
        %8517 = vdwg.mxu0
        %8518 = vmatpush.bf16.msra.mxu0 %v7678
        %8519 = vmatpush.bf16.msra.mxu0 %v7670
        %8520 = vmatpush.bf16.msra.mxu0 %v7662
        %8521 = vmatpush.bf16.msra.mxu0 %v7654
        %8522 = vmatpush.bf16.msra.mxu0 %v7646
        %8523 = vmatpush.bf16.msra.mxu0 %v7638
        %8524 = vmatpush.bf16.msra.mxu0 %v7630
        %8525 = vmatpush.bf16.msra.mxu0 %v7622
        %8526 = vmatmul.bf16.gmra.mxu0 %v5122
        %v8527 = vpop.f32.mrf.mxu0
        %v8528 = vadd.f32 %v8514, %v8527
        %v8529 = vpop.f32.mrf.mxu0
        %v8530 = vadd.f32 %v8516, %v8529
        %8531 = vdwg.mxu0
        %8532 = vmatpush.bf16.msra.mxu0 %v7231
        %8533 = vmatpush.bf16.msra.mxu0 %v7223
        %8534 = vmatpush.bf16.msra.mxu0 %v7215
        %8535 = vmatpush.bf16.msra.mxu0 %v7207
        %8536 = vmatpush.bf16.msra.mxu0 %v7199
        %8537 = vmatpush.bf16.msra.mxu0 %v7191
        %8538 = vmatpush.bf16.msra.mxu0 %v7183
        %8539 = vmatpush.bf16.msra.mxu0 %v7175
        %8540 = vmatmul.bf16.gmra.mxu0 %v5115
        %v8541 = vpop.f32.mrf.mxu0
        %v8542 = vadd.f32 0.0, %v8541
        %v8543 = vpop.f32.mrf.mxu0
        %v8544 = vadd.f32 0.0, %v8543
        %8545 = vdwg.mxu0
        %8546 = vmatpush.bf16.msra.mxu0 %v7295
        %8547 = vmatpush.bf16.msra.mxu0 %v7287
        %8548 = vmatpush.bf16.msra.mxu0 %v7279
        %8549 = vmatpush.bf16.msra.mxu0 %v7271
        %8550 = vmatpush.bf16.msra.mxu0 %v7263
        %8551 = vmatpush.bf16.msra.mxu0 %v7255
        %8552 = vmatpush.bf16.msra.mxu0 %v7247
        %8553 = vmatpush.bf16.msra.mxu0 %v7239
        %8554 = vmatmul.bf16.gmra.mxu0 %v5116
        %v8555 = vpop.f32.mrf.mxu0
        %v8556 = vadd.f32 %v8542, %v8555
        %v8557 = vpop.f32.mrf.mxu0
        %v8558 = vadd.f32 %v8544, %v8557
        %8559 = vdwg.mxu0
        %8560 = vmatpush.bf16.msra.mxu0 %v7359
        %8561 = vmatpush.bf16.msra.mxu0 %v7351
        %8562 = vmatpush.bf16.msra.mxu0 %v7343
        %8563 = vmatpush.bf16.msra.mxu0 %v7335
        %8564 = vmatpush.bf16.msra.mxu0 %v7327
        %8565 = vmatpush.bf16.msra.mxu0 %v7319
        %8566 = vmatpush.bf16.msra.mxu0 %v7311
        %8567 = vmatpush.bf16.msra.mxu0 %v7303
        %8568 = vmatmul.bf16.gmra.mxu0 %v5117
        %v8569 = vpop.f32.mrf.mxu0
        %v8570 = vadd.f32 %v8556, %v8569
        %v8571 = vpop.f32.mrf.mxu0
        %v8572 = vadd.f32 %v8558, %v8571
        %8573 = vdwg.mxu0
        %8574 = vmatpush.bf16.msra.mxu0 %v7423
        %8575 = vmatpush.bf16.msra.mxu0 %v7415
        %8576 = vmatpush.bf16.msra.mxu0 %v7407
        %8577 = vmatpush.bf16.msra.mxu0 %v7399
        %8578 = vmatpush.bf16.msra.mxu0 %v7391
        %8579 = vmatpush.bf16.msra.mxu0 %v7383
        %8580 = vmatpush.bf16.msra.mxu0 %v7375
        %8581 = vmatpush.bf16.msra.mxu0 %v7367
        %8582 = vmatmul.bf16.gmra.mxu0 %v5118
        %v8583 = vpop.f32.mrf.mxu0
        %v8584 = vadd.f32 %v8570, %v8583
        %v8585 = vpop.f32.mrf.mxu0
        %v8586 = vadd.f32 %v8572, %v8585
        %8587 = vdwg.mxu0
        %8588 = vmatpush.bf16.msra.mxu0 %v7487
        %8589 = vmatpush.bf16.msra.mxu0 %v7479
        %8590 = vmatpush.bf16.msra.mxu0 %v7471
        %8591 = vmatpush.bf16.msra.mxu0 %v7463
        %8592 = vmatpush.bf16.msra.mxu0 %v7455
        %8593 = vmatpush.bf16.msra.mxu0 %v7447
        %8594 = vmatpush.bf16.msra.mxu0 %v7439
        %8595 = vmatpush.bf16.msra.mxu0 %v7431
        %8596 = vmatmul.bf16.gmra.mxu0 %v5119
        %v8597 = vpop.f32.mrf.mxu0
        %v8598 = vadd.f32 %v8584, %v8597
        %v8599 = vpop.f32.mrf.mxu0
        %v8600 = vadd.f32 %v8586, %v8599
        %8601 = vdwg.mxu0
        %8602 = vmatpush.bf16.msra.mxu0 %v7551
        %8603 = vmatpush.bf16.msra.mxu0 %v7543
        %8604 = vmatpush.bf16.msra.mxu0 %v7535
        %8605 = vmatpush.bf16.msra.mxu0 %v7527
        %8606 = vmatpush.bf16.msra.mxu0 %v7519
        %8607 = vmatpush.bf16.msra.mxu0 %v7511
        %8608 = vmatpush.bf16.msra.mxu0 %v7503
        %8609 = vmatpush.bf16.msra.mxu0 %v7495
        %8610 = vmatmul.bf16.gmra.mxu0 %v5120
        %v8611 = vpop.f32.mrf.mxu0
        %v8612 = vadd.f32 %v8598, %v8611
        %v8613 = vpop.f32.mrf.mxu0
        %v8614 = vadd.f32 %v8600, %v8613
        %8615 = vdwg.mxu0
        %8616 = vmatpush.bf16.msra.mxu0 %v7615
        %8617 = vmatpush.bf16.msra.mxu0 %v7607
        %8618 = vmatpush.bf16.msra.mxu0 %v7599
        %8619 = vmatpush.bf16.msra.mxu0 %v7591
        %8620 = vmatpush.bf16.msra.mxu0 %v7583
        %8621 = vmatpush.bf16.msra.mxu0 %v7575
        %8622 = vmatpush.bf16.msra.mxu0 %v7567
        %8623 = vmatpush.bf16.msra.mxu0 %v7559
        %8624 = vmatmul.bf16.gmra.mxu0 %v5121
        %v8625 = vpop.f32.mrf.mxu0
        %v8626 = vadd.f32 %v8612, %v8625
        %v8627 = vpop.f32.mrf.mxu0
        %v8628 = vadd.f32 %v8614, %v8627
        %8629 = vdwg.mxu0
        %8630 = vmatpush.bf16.msra.mxu0 %v7679
        %8631 = vmatpush.bf16.msra.mxu0 %v7671
        %8632 = vmatpush.bf16.msra.mxu0 %v7663
        %8633 = vmatpush.bf16.msra.mxu0 %v7655
        %8634 = vmatpush.bf16.msra.mxu0 %v7647
        %8635 = vmatpush.bf16.msra.mxu0 %v7639
        %8636 = vmatpush.bf16.msra.mxu0 %v7631
        %8637 = vmatpush.bf16.msra.mxu0 %v7623
        %8638 = vmatmul.bf16.gmra.mxu0 %v5122
        %v8639 = vpop.f32.mrf.mxu0
        %v8640 = vadd.f32 %v8626, %v8639
        %v8641 = vpop.f32.mrf.mxu0
        %v8642 = vadd.f32 %v8628, %v8641
        %8643 = vdwg.mxu0
        %8644 = vmatpush.bf16.msra.mxu0 %v7232
        %8645 = vmatpush.bf16.msra.mxu0 %v7224
        %8646 = vmatpush.bf16.msra.mxu0 %v7216
        %8647 = vmatpush.bf16.msra.mxu0 %v7208
        %8648 = vmatpush.bf16.msra.mxu0 %v7200
        %8649 = vmatpush.bf16.msra.mxu0 %v7192
        %8650 = vmatpush.bf16.msra.mxu0 %v7184
        %8651 = vmatpush.bf16.msra.mxu0 %v7176
        %8652 = vmatmul.bf16.gmra.mxu0 %v5115
        %v8653 = vpop.f32.mrf.mxu0
        %v8654 = vadd.f32 0.0, %v8653
        %v8655 = vpop.f32.mrf.mxu0
        %v8656 = vadd.f32 0.0, %v8655
        %8657 = vdwg.mxu0
        %8658 = vmatpush.bf16.msra.mxu0 %v7296
        %8659 = vmatpush.bf16.msra.mxu0 %v7288
        %8660 = vmatpush.bf16.msra.mxu0 %v7280
        %8661 = vmatpush.bf16.msra.mxu0 %v7272
        %8662 = vmatpush.bf16.msra.mxu0 %v7264
        %8663 = vmatpush.bf16.msra.mxu0 %v7256
        %8664 = vmatpush.bf16.msra.mxu0 %v7248
        %8665 = vmatpush.bf16.msra.mxu0 %v7240
        %8666 = vmatmul.bf16.gmra.mxu0 %v5116
        %v8667 = vpop.f32.mrf.mxu0
        %v8668 = vadd.f32 %v8654, %v8667
        %v8669 = vpop.f32.mrf.mxu0
        %v8670 = vadd.f32 %v8656, %v8669
        %8671 = vdwg.mxu0
        %8672 = vmatpush.bf16.msra.mxu0 %v7360
        %8673 = vmatpush.bf16.msra.mxu0 %v7352
        %8674 = vmatpush.bf16.msra.mxu0 %v7344
        %8675 = vmatpush.bf16.msra.mxu0 %v7336
        %8676 = vmatpush.bf16.msra.mxu0 %v7328
        %8677 = vmatpush.bf16.msra.mxu0 %v7320
        %8678 = vmatpush.bf16.msra.mxu0 %v7312
        %8679 = vmatpush.bf16.msra.mxu0 %v7304
        %8680 = vmatmul.bf16.gmra.mxu0 %v5117
        %v8681 = vpop.f32.mrf.mxu0
        %v8682 = vadd.f32 %v8668, %v8681
        %v8683 = vpop.f32.mrf.mxu0
        %v8684 = vadd.f32 %v8670, %v8683
        %8685 = vdwg.mxu0
        %8686 = vmatpush.bf16.msra.mxu0 %v7424
        %8687 = vmatpush.bf16.msra.mxu0 %v7416
        %8688 = vmatpush.bf16.msra.mxu0 %v7408
        %8689 = vmatpush.bf16.msra.mxu0 %v7400
        %8690 = vmatpush.bf16.msra.mxu0 %v7392
        %8691 = vmatpush.bf16.msra.mxu0 %v7384
        %8692 = vmatpush.bf16.msra.mxu0 %v7376
        %8693 = vmatpush.bf16.msra.mxu0 %v7368
        %8694 = vmatmul.bf16.gmra.mxu0 %v5118
        %v8695 = vpop.f32.mrf.mxu0
        %v8696 = vadd.f32 %v8682, %v8695
        %v8697 = vpop.f32.mrf.mxu0
        %v8698 = vadd.f32 %v8684, %v8697
        %8699 = vdwg.mxu0
        %8700 = vmatpush.bf16.msra.mxu0 %v7488
        %8701 = vmatpush.bf16.msra.mxu0 %v7480
        %8702 = vmatpush.bf16.msra.mxu0 %v7472
        %8703 = vmatpush.bf16.msra.mxu0 %v7464
        %8704 = vmatpush.bf16.msra.mxu0 %v7456
        %8705 = vmatpush.bf16.msra.mxu0 %v7448
        %8706 = vmatpush.bf16.msra.mxu0 %v7440
        %8707 = vmatpush.bf16.msra.mxu0 %v7432
        %8708 = vmatmul.bf16.gmra.mxu0 %v5119
        %v8709 = vpop.f32.mrf.mxu0
        %v8710 = vadd.f32 %v8696, %v8709
        %v8711 = vpop.f32.mrf.mxu0
        %v8712 = vadd.f32 %v8698, %v8711
        %8713 = vdwg.mxu0
        %8714 = vmatpush.bf16.msra.mxu0 %v7552
        %8715 = vmatpush.bf16.msra.mxu0 %v7544
        %8716 = vmatpush.bf16.msra.mxu0 %v7536
        %8717 = vmatpush.bf16.msra.mxu0 %v7528
        %8718 = vmatpush.bf16.msra.mxu0 %v7520
        %8719 = vmatpush.bf16.msra.mxu0 %v7512
        %8720 = vmatpush.bf16.msra.mxu0 %v7504
        %8721 = vmatpush.bf16.msra.mxu0 %v7496
        %8722 = vmatmul.bf16.gmra.mxu0 %v5120
        %v8723 = vpop.f32.mrf.mxu0
        %v8724 = vadd.f32 %v8710, %v8723
        %v8725 = vpop.f32.mrf.mxu0
        %v8726 = vadd.f32 %v8712, %v8725
        %8727 = vdwg.mxu0
        %8728 = vmatpush.bf16.msra.mxu0 %v7616
        %8729 = vmatpush.bf16.msra.mxu0 %v7608
        %8730 = vmatpush.bf16.msra.mxu0 %v7600
        %8731 = vmatpush.bf16.msra.mxu0 %v7592
        %8732 = vmatpush.bf16.msra.mxu0 %v7584
        %8733 = vmatpush.bf16.msra.mxu0 %v7576
        %8734 = vmatpush.bf16.msra.mxu0 %v7568
        %8735 = vmatpush.bf16.msra.mxu0 %v7560
        %8736 = vmatmul.bf16.gmra.mxu0 %v5121
        %v8737 = vpop.f32.mrf.mxu0
        %v8738 = vadd.f32 %v8724, %v8737
        %v8739 = vpop.f32.mrf.mxu0
        %v8740 = vadd.f32 %v8726, %v8739
        %8741 = vdwg.mxu0
        %8742 = vmatpush.bf16.msra.mxu0 %v7680
        %8743 = vmatpush.bf16.msra.mxu0 %v7672
        %8744 = vmatpush.bf16.msra.mxu0 %v7664
        %8745 = vmatpush.bf16.msra.mxu0 %v7656
        %8746 = vmatpush.bf16.msra.mxu0 %v7648
        %8747 = vmatpush.bf16.msra.mxu0 %v7640
        %8748 = vmatpush.bf16.msra.mxu0 %v7632
        %8749 = vmatpush.bf16.msra.mxu0 %v7624
        %8750 = vmatmul.bf16.gmra.mxu0 %v5122
        %v8751 = vpop.f32.mrf.mxu0
        %v8752 = vadd.f32 %v8738, %v8751
        %v8753 = vpop.f32.mrf.mxu0
        %v8754 = vadd.f32 %v8740, %v8753
        %8755 = vdwg.mxu0
        %8756 = vmatpush.bf16.msra.mxu0 %v7233
        %8757 = vmatpush.bf16.msra.mxu0 %v7225
        %8758 = vmatpush.bf16.msra.mxu0 %v7217
        %8759 = vmatpush.bf16.msra.mxu0 %v7209
        %8760 = vmatpush.bf16.msra.mxu0 %v7201
        %8761 = vmatpush.bf16.msra.mxu0 %v7193
        %8762 = vmatpush.bf16.msra.mxu0 %v7185
        %8763 = vmatpush.bf16.msra.mxu0 %v7177
        %8764 = vmatmul.bf16.gmra.mxu0 %v5115
        %v8765 = vpop.f32.mrf.mxu0
        %v8766 = vadd.f32 0.0, %v8765
        %v8767 = vpop.f32.mrf.mxu0
        %v8768 = vadd.f32 0.0, %v8767
        %8769 = vdwg.mxu0
        %8770 = vmatpush.bf16.msra.mxu0 %v7297
        %8771 = vmatpush.bf16.msra.mxu0 %v7289
        %8772 = vmatpush.bf16.msra.mxu0 %v7281
        %8773 = vmatpush.bf16.msra.mxu0 %v7273
        %8774 = vmatpush.bf16.msra.mxu0 %v7265
        %8775 = vmatpush.bf16.msra.mxu0 %v7257
        %8776 = vmatpush.bf16.msra.mxu0 %v7249
        %8777 = vmatpush.bf16.msra.mxu0 %v7241
        %8778 = vmatmul.bf16.gmra.mxu0 %v5116
        %v8779 = vpop.f32.mrf.mxu0
        %v8780 = vadd.f32 %v8766, %v8779
        %v8781 = vpop.f32.mrf.mxu0
        %v8782 = vadd.f32 %v8768, %v8781
        %8783 = vdwg.mxu0
        %8784 = vmatpush.bf16.msra.mxu0 %v7361
        %8785 = vmatpush.bf16.msra.mxu0 %v7353
        %8786 = vmatpush.bf16.msra.mxu0 %v7345
        %8787 = vmatpush.bf16.msra.mxu0 %v7337
        %8788 = vmatpush.bf16.msra.mxu0 %v7329
        %8789 = vmatpush.bf16.msra.mxu0 %v7321
        %8790 = vmatpush.bf16.msra.mxu0 %v7313
        %8791 = vmatpush.bf16.msra.mxu0 %v7305
        %8792 = vmatmul.bf16.gmra.mxu0 %v5117
        %v8793 = vpop.f32.mrf.mxu0
        %v8794 = vadd.f32 %v8780, %v8793
        %v8795 = vpop.f32.mrf.mxu0
        %v8796 = vadd.f32 %v8782, %v8795
        %8797 = vdwg.mxu0
        %8798 = vmatpush.bf16.msra.mxu0 %v7425
        %8799 = vmatpush.bf16.msra.mxu0 %v7417
        %8800 = vmatpush.bf16.msra.mxu0 %v7409
        %8801 = vmatpush.bf16.msra.mxu0 %v7401
        %8802 = vmatpush.bf16.msra.mxu0 %v7393
        %8803 = vmatpush.bf16.msra.mxu0 %v7385
        %8804 = vmatpush.bf16.msra.mxu0 %v7377
        %8805 = vmatpush.bf16.msra.mxu0 %v7369
        %8806 = vmatmul.bf16.gmra.mxu0 %v5118
        %v8807 = vpop.f32.mrf.mxu0
        %v8808 = vadd.f32 %v8794, %v8807
        %v8809 = vpop.f32.mrf.mxu0
        %v8810 = vadd.f32 %v8796, %v8809
        %8811 = vdwg.mxu0
        %8812 = vmatpush.bf16.msra.mxu0 %v7489
        %8813 = vmatpush.bf16.msra.mxu0 %v7481
        %8814 = vmatpush.bf16.msra.mxu0 %v7473
        %8815 = vmatpush.bf16.msra.mxu0 %v7465
        %8816 = vmatpush.bf16.msra.mxu0 %v7457
        %8817 = vmatpush.bf16.msra.mxu0 %v7449
        %8818 = vmatpush.bf16.msra.mxu0 %v7441
        %8819 = vmatpush.bf16.msra.mxu0 %v7433
        %8820 = vmatmul.bf16.gmra.mxu0 %v5119
        %v8821 = vpop.f32.mrf.mxu0
        %v8822 = vadd.f32 %v8808, %v8821
        %v8823 = vpop.f32.mrf.mxu0
        %v8824 = vadd.f32 %v8810, %v8823
        %8825 = vdwg.mxu0
        %8826 = vmatpush.bf16.msra.mxu0 %v7553
        %8827 = vmatpush.bf16.msra.mxu0 %v7545
        %8828 = vmatpush.bf16.msra.mxu0 %v7537
        %8829 = vmatpush.bf16.msra.mxu0 %v7529
        %8830 = vmatpush.bf16.msra.mxu0 %v7521
        %8831 = vmatpush.bf16.msra.mxu0 %v7513
        %8832 = vmatpush.bf16.msra.mxu0 %v7505
        %8833 = vmatpush.bf16.msra.mxu0 %v7497
        %8834 = vmatmul.bf16.gmra.mxu0 %v5120
        %v8835 = vpop.f32.mrf.mxu0
        %v8836 = vadd.f32 %v8822, %v8835
        %v8837 = vpop.f32.mrf.mxu0
        %v8838 = vadd.f32 %v8824, %v8837
        %8839 = vdwg.mxu0
        %8840 = vmatpush.bf16.msra.mxu0 %v7617
        %8841 = vmatpush.bf16.msra.mxu0 %v7609
        %8842 = vmatpush.bf16.msra.mxu0 %v7601
        %8843 = vmatpush.bf16.msra.mxu0 %v7593
        %8844 = vmatpush.bf16.msra.mxu0 %v7585
        %8845 = vmatpush.bf16.msra.mxu0 %v7577
        %8846 = vmatpush.bf16.msra.mxu0 %v7569
        %8847 = vmatpush.bf16.msra.mxu0 %v7561
        %8848 = vmatmul.bf16.gmra.mxu0 %v5121
        %v8849 = vpop.f32.mrf.mxu0
        %v8850 = vadd.f32 %v8836, %v8849
        %v8851 = vpop.f32.mrf.mxu0
        %v8852 = vadd.f32 %v8838, %v8851
        %8853 = vdwg.mxu0
        %8854 = vmatpush.bf16.msra.mxu0 %v7681
        %8855 = vmatpush.bf16.msra.mxu0 %v7673
        %8856 = vmatpush.bf16.msra.mxu0 %v7665
        %8857 = vmatpush.bf16.msra.mxu0 %v7657
        %8858 = vmatpush.bf16.msra.mxu0 %v7649
        %8859 = vmatpush.bf16.msra.mxu0 %v7641
        %8860 = vmatpush.bf16.msra.mxu0 %v7633
        %8861 = vmatpush.bf16.msra.mxu0 %v7625
        %8862 = vmatmul.bf16.gmra.mxu0 %v5122
        %v8863 = vpop.f32.mrf.mxu0
        %v8864 = vadd.f32 %v8850, %v8863
        %v8865 = vpop.f32.mrf.mxu0
        %v8866 = vadd.f32 %v8852, %v8865
        %8867 = vdwg.mxu0
        %8868 = vmatpush.bf16.msra.mxu0 %v7234
        %8869 = vmatpush.bf16.msra.mxu0 %v7226
        %8870 = vmatpush.bf16.msra.mxu0 %v7218
        %8871 = vmatpush.bf16.msra.mxu0 %v7210
        %8872 = vmatpush.bf16.msra.mxu0 %v7202
        %8873 = vmatpush.bf16.msra.mxu0 %v7194
        %8874 = vmatpush.bf16.msra.mxu0 %v7186
        %8875 = vmatpush.bf16.msra.mxu0 %v7178
        %8876 = vmatmul.bf16.gmra.mxu0 %v5115
        %v8877 = vpop.f32.mrf.mxu0
        %v8878 = vadd.f32 0.0, %v8877
        %v8879 = vpop.f32.mrf.mxu0
        %v8880 = vadd.f32 0.0, %v8879
        %8881 = vdwg.mxu0
        %8882 = vmatpush.bf16.msra.mxu0 %v7298
        %8883 = vmatpush.bf16.msra.mxu0 %v7290
        %8884 = vmatpush.bf16.msra.mxu0 %v7282
        %8885 = vmatpush.bf16.msra.mxu0 %v7274
        %8886 = vmatpush.bf16.msra.mxu0 %v7266
        %8887 = vmatpush.bf16.msra.mxu0 %v7258
        %8888 = vmatpush.bf16.msra.mxu0 %v7250
        %8889 = vmatpush.bf16.msra.mxu0 %v7242
        %8890 = vmatmul.bf16.gmra.mxu0 %v5116
        %v8891 = vpop.f32.mrf.mxu0
        %v8892 = vadd.f32 %v8878, %v8891
        %v8893 = vpop.f32.mrf.mxu0
        %v8894 = vadd.f32 %v8880, %v8893
        %8895 = vdwg.mxu0
        %8896 = vmatpush.bf16.msra.mxu0 %v7362
        %8897 = vmatpush.bf16.msra.mxu0 %v7354
        %8898 = vmatpush.bf16.msra.mxu0 %v7346
        %8899 = vmatpush.bf16.msra.mxu0 %v7338
        %8900 = vmatpush.bf16.msra.mxu0 %v7330
        %8901 = vmatpush.bf16.msra.mxu0 %v7322
        %8902 = vmatpush.bf16.msra.mxu0 %v7314
        %8903 = vmatpush.bf16.msra.mxu0 %v7306
        %8904 = vmatmul.bf16.gmra.mxu0 %v5117
        %v8905 = vpop.f32.mrf.mxu0
        %v8906 = vadd.f32 %v8892, %v8905
        %v8907 = vpop.f32.mrf.mxu0
        %v8908 = vadd.f32 %v8894, %v8907
        %8909 = vdwg.mxu0
        %8910 = vmatpush.bf16.msra.mxu0 %v7426
        %8911 = vmatpush.bf16.msra.mxu0 %v7418
        %8912 = vmatpush.bf16.msra.mxu0 %v7410
        %8913 = vmatpush.bf16.msra.mxu0 %v7402
        %8914 = vmatpush.bf16.msra.mxu0 %v7394
        %8915 = vmatpush.bf16.msra.mxu0 %v7386
        %8916 = vmatpush.bf16.msra.mxu0 %v7378
        %8917 = vmatpush.bf16.msra.mxu0 %v7370
        %8918 = vmatmul.bf16.gmra.mxu0 %v5118
        %v8919 = vpop.f32.mrf.mxu0
        %v8920 = vadd.f32 %v8906, %v8919
        %v8921 = vpop.f32.mrf.mxu0
        %v8922 = vadd.f32 %v8908, %v8921
        %8923 = vdwg.mxu0
        %8924 = vmatpush.bf16.msra.mxu0 %v7490
        %8925 = vmatpush.bf16.msra.mxu0 %v7482
        %8926 = vmatpush.bf16.msra.mxu0 %v7474
        %8927 = vmatpush.bf16.msra.mxu0 %v7466
        %8928 = vmatpush.bf16.msra.mxu0 %v7458
        %8929 = vmatpush.bf16.msra.mxu0 %v7450
        %8930 = vmatpush.bf16.msra.mxu0 %v7442
        %8931 = vmatpush.bf16.msra.mxu0 %v7434
        %8932 = vmatmul.bf16.gmra.mxu0 %v5119
        %v8933 = vpop.f32.mrf.mxu0
        %v8934 = vadd.f32 %v8920, %v8933
        %v8935 = vpop.f32.mrf.mxu0
        %v8936 = vadd.f32 %v8922, %v8935
        %8937 = vdwg.mxu0
        %8938 = vmatpush.bf16.msra.mxu0 %v7554
        %8939 = vmatpush.bf16.msra.mxu0 %v7546
        %8940 = vmatpush.bf16.msra.mxu0 %v7538
        %8941 = vmatpush.bf16.msra.mxu0 %v7530
        %8942 = vmatpush.bf16.msra.mxu0 %v7522
        %8943 = vmatpush.bf16.msra.mxu0 %v7514
        %8944 = vmatpush.bf16.msra.mxu0 %v7506
        %8945 = vmatpush.bf16.msra.mxu0 %v7498
        %8946 = vmatmul.bf16.gmra.mxu0 %v5120
        %v8947 = vpop.f32.mrf.mxu0
        %v8948 = vadd.f32 %v8934, %v8947
        %v8949 = vpop.f32.mrf.mxu0
        %v8950 = vadd.f32 %v8936, %v8949
        %8951 = vdwg.mxu0
        %8952 = vmatpush.bf16.msra.mxu0 %v7618
        %8953 = vmatpush.bf16.msra.mxu0 %v7610
        %8954 = vmatpush.bf16.msra.mxu0 %v7602
        %8955 = vmatpush.bf16.msra.mxu0 %v7594
        %8956 = vmatpush.bf16.msra.mxu0 %v7586
        %8957 = vmatpush.bf16.msra.mxu0 %v7578
        %8958 = vmatpush.bf16.msra.mxu0 %v7570
        %8959 = vmatpush.bf16.msra.mxu0 %v7562
        %8960 = vmatmul.bf16.gmra.mxu0 %v5121
        %v8961 = vpop.f32.mrf.mxu0
        %v8962 = vadd.f32 %v8948, %v8961
        %v8963 = vpop.f32.mrf.mxu0
        %v8964 = vadd.f32 %v8950, %v8963
        %8965 = vdwg.mxu0
        %8966 = vmatpush.bf16.msra.mxu0 %v7682
        %8967 = vmatpush.bf16.msra.mxu0 %v7674
        %8968 = vmatpush.bf16.msra.mxu0 %v7666
        %8969 = vmatpush.bf16.msra.mxu0 %v7658
        %8970 = vmatpush.bf16.msra.mxu0 %v7650
        %8971 = vmatpush.bf16.msra.mxu0 %v7642
        %8972 = vmatpush.bf16.msra.mxu0 %v7634
        %8973 = vmatpush.bf16.msra.mxu0 %v7626
        %8974 = vmatmul.bf16.gmra.mxu0 %v5122
        %v8975 = vpop.f32.mrf.mxu0
        %v8976 = vadd.f32 %v8962, %v8975
        %v8977 = vpop.f32.mrf.mxu0
        %v8978 = vadd.f32 %v8964, %v8977
        %8979 = vdwg.mxu0
        %8980 = vmatpush.bf16.msra.mxu0 %v7235
        %8981 = vmatpush.bf16.msra.mxu0 %v7227
        %8982 = vmatpush.bf16.msra.mxu0 %v7219
        %8983 = vmatpush.bf16.msra.mxu0 %v7211
        %8984 = vmatpush.bf16.msra.mxu0 %v7203
        %8985 = vmatpush.bf16.msra.mxu0 %v7195
        %8986 = vmatpush.bf16.msra.mxu0 %v7187
        %8987 = vmatpush.bf16.msra.mxu0 %v7179
        %8988 = vmatmul.bf16.gmra.mxu0 %v5115
        %v8989 = vpop.f32.mrf.mxu0
        %v8990 = vadd.f32 0.0, %v8989
        %v8991 = vpop.f32.mrf.mxu0
        %v8992 = vadd.f32 0.0, %v8991
        %8993 = vdwg.mxu0
        %8994 = vmatpush.bf16.msra.mxu0 %v7299
        %8995 = vmatpush.bf16.msra.mxu0 %v7291
        %8996 = vmatpush.bf16.msra.mxu0 %v7283
        %8997 = vmatpush.bf16.msra.mxu0 %v7275
        %8998 = vmatpush.bf16.msra.mxu0 %v7267
        %8999 = vmatpush.bf16.msra.mxu0 %v7259
        %9000 = vmatpush.bf16.msra.mxu0 %v7251
        %9001 = vmatpush.bf16.msra.mxu0 %v7243
        %9002 = vmatmul.bf16.gmra.mxu0 %v5116
        %v9003 = vpop.f32.mrf.mxu0
        %v9004 = vadd.f32 %v8990, %v9003
        %v9005 = vpop.f32.mrf.mxu0
        %v9006 = vadd.f32 %v8992, %v9005
        %9007 = vdwg.mxu0
        %9008 = vmatpush.bf16.msra.mxu0 %v7363
        %9009 = vmatpush.bf16.msra.mxu0 %v7355
        %9010 = vmatpush.bf16.msra.mxu0 %v7347
        %9011 = vmatpush.bf16.msra.mxu0 %v7339
        %9012 = vmatpush.bf16.msra.mxu0 %v7331
        %9013 = vmatpush.bf16.msra.mxu0 %v7323
        %9014 = vmatpush.bf16.msra.mxu0 %v7315
        %9015 = vmatpush.bf16.msra.mxu0 %v7307
        %9016 = vmatmul.bf16.gmra.mxu0 %v5117
        %v9017 = vpop.f32.mrf.mxu0
        %v9018 = vadd.f32 %v9004, %v9017
        %v9019 = vpop.f32.mrf.mxu0
        %v9020 = vadd.f32 %v9006, %v9019
        %9021 = vdwg.mxu0
        %9022 = vmatpush.bf16.msra.mxu0 %v7427
        %9023 = vmatpush.bf16.msra.mxu0 %v7419
        %9024 = vmatpush.bf16.msra.mxu0 %v7411
        %9025 = vmatpush.bf16.msra.mxu0 %v7403
        %9026 = vmatpush.bf16.msra.mxu0 %v7395
        %9027 = vmatpush.bf16.msra.mxu0 %v7387
        %9028 = vmatpush.bf16.msra.mxu0 %v7379
        %9029 = vmatpush.bf16.msra.mxu0 %v7371
        %9030 = vmatmul.bf16.gmra.mxu0 %v5118
        %v9031 = vpop.f32.mrf.mxu0
        %v9032 = vadd.f32 %v9018, %v9031
        %v9033 = vpop.f32.mrf.mxu0
        %v9034 = vadd.f32 %v9020, %v9033
        %9035 = vdwg.mxu0
        %9036 = vmatpush.bf16.msra.mxu0 %v7491
        %9037 = vmatpush.bf16.msra.mxu0 %v7483
        %9038 = vmatpush.bf16.msra.mxu0 %v7475
        %9039 = vmatpush.bf16.msra.mxu0 %v7467
        %9040 = vmatpush.bf16.msra.mxu0 %v7459
        %9041 = vmatpush.bf16.msra.mxu0 %v7451
        %9042 = vmatpush.bf16.msra.mxu0 %v7443
        %9043 = vmatpush.bf16.msra.mxu0 %v7435
        %9044 = vmatmul.bf16.gmra.mxu0 %v5119
        %v9045 = vpop.f32.mrf.mxu0
        %v9046 = vadd.f32 %v9032, %v9045
        %v9047 = vpop.f32.mrf.mxu0
        %v9048 = vadd.f32 %v9034, %v9047
        %9049 = vdwg.mxu0
        %9050 = vmatpush.bf16.msra.mxu0 %v7555
        %9051 = vmatpush.bf16.msra.mxu0 %v7547
        %9052 = vmatpush.bf16.msra.mxu0 %v7539
        %9053 = vmatpush.bf16.msra.mxu0 %v7531
        %9054 = vmatpush.bf16.msra.mxu0 %v7523
        %9055 = vmatpush.bf16.msra.mxu0 %v7515
        %9056 = vmatpush.bf16.msra.mxu0 %v7507
        %9057 = vmatpush.bf16.msra.mxu0 %v7499
        %9058 = vmatmul.bf16.gmra.mxu0 %v5120
        %v9059 = vpop.f32.mrf.mxu0
        %v9060 = vadd.f32 %v9046, %v9059
        %v9061 = vpop.f32.mrf.mxu0
        %v9062 = vadd.f32 %v9048, %v9061
        %9063 = vdwg.mxu0
        %9064 = vmatpush.bf16.msra.mxu0 %v7619
        %9065 = vmatpush.bf16.msra.mxu0 %v7611
        %9066 = vmatpush.bf16.msra.mxu0 %v7603
        %9067 = vmatpush.bf16.msra.mxu0 %v7595
        %9068 = vmatpush.bf16.msra.mxu0 %v7587
        %9069 = vmatpush.bf16.msra.mxu0 %v7579
        %9070 = vmatpush.bf16.msra.mxu0 %v7571
        %9071 = vmatpush.bf16.msra.mxu0 %v7563
        %9072 = vmatmul.bf16.gmra.mxu0 %v5121
        %v9073 = vpop.f32.mrf.mxu0
        %v9074 = vadd.f32 %v9060, %v9073
        %v9075 = vpop.f32.mrf.mxu0
        %v9076 = vadd.f32 %v9062, %v9075
        %9077 = vdwg.mxu0
        %9078 = vmatpush.bf16.msra.mxu0 %v7683
        %9079 = vmatpush.bf16.msra.mxu0 %v7675
        %9080 = vmatpush.bf16.msra.mxu0 %v7667
        %9081 = vmatpush.bf16.msra.mxu0 %v7659
        %9082 = vmatpush.bf16.msra.mxu0 %v7651
        %9083 = vmatpush.bf16.msra.mxu0 %v7643
        %9084 = vmatpush.bf16.msra.mxu0 %v7635
        %9085 = vmatpush.bf16.msra.mxu0 %v7627
        %9086 = vmatmul.bf16.gmra.mxu0 %v5122
        %v9087 = vpop.f32.mrf.mxu0
        %v9088 = vadd.f32 %v9074, %v9087
        %v9089 = vpop.f32.mrf.mxu0
        %v9090 = vadd.f32 %v9076, %v9089
        %9091 = vdwg.mxu0
        %v9092 = vadd.f32 %v5091, %v8304
        %v9093 = vadd.f32 %v5092, %v8416
        %v9094 = vadd.f32 %v5093, %v8528
        %v9095 = vadd.f32 %v5094, %v8640
        %v9096 = vadd.f32 %v5095, %v8752
        %v9097 = vadd.f32 %v5096, %v8864
        %v9098 = vadd.f32 %v5097, %v8976
        %v9099 = vadd.f32 %v5098, %v9088
        %v9100 = vadd.f32 %v5099, %v8306
        %v9101 = vadd.f32 %v5100, %v8418
        %v9102 = vadd.f32 %v5101, %v8530
        %v9103 = vadd.f32 %v5102, %v8642
        %v9104 = vadd.f32 %v5103, %v8754
        %v9105 = vadd.f32 %v5104, %v8866
        %v9106 = vadd.f32 %v5105, %v8978
        %v9107 = vadd.f32 %v5106, %v9090
        %v9108 = vld [vmem:[#allocation3 + $0x40] sm:$0xfe]
        %v9109 = vld [vmem:[#allocation3 + $0x48] sm:$0xfe]
        %v9110 = vld [vmem:[#allocation3 + $0x50] sm:$0xfe]
        %v9111 = vld [vmem:[#allocation3 + $0x58] sm:$0xfe]
        %v9112 = vld [vmem:[#allocation3 + $0x60] sm:$0xfe]
        %v9113 = vld [vmem:[#allocation3 + $0x68] sm:$0xfe]
        %v9114 = vld [vmem:[#allocation3 + $0x70] sm:$0xfe]
        %v9115 = vld [vmem:[#allocation3 + $0x78] sm:$0xfe]
        %v9116 = vld [vmem:[#allocation3 + $0x80] sm:$0xff]
        %v9117 = vld [vmem:[#allocation3 + $0x88] sm:$0xff]
        %v9118 = vld [vmem:[#allocation3 + $0x90] sm:$0xff]
        %v9119 = vld [vmem:[#allocation3 + $0x98] sm:$0xff]
        %v9120 = vld [vmem:[#allocation3 + $0xa0] sm:$0xff]
        %v9121 = vld [vmem:[#allocation3 + $0xa8] sm:$0xff]
        %v9122 = vld [vmem:[#allocation3 + $0xb0] sm:$0xff]
        %v9123 = vld [vmem:[#allocation3 + $0xb8] sm:$0xff]
        %v9124 = vld [vmem:[#allocation3 + $0xc0] sm:$0x1]
        %v9125 = vld [vmem:[#allocation3 + $0xc8] sm:$0x1]
        %v9126 = vld [vmem:[#allocation3 + $0xd0] sm:$0x1]
        %v9127 = vld [vmem:[#allocation3 + $0xd8] sm:$0x1]
        %v9128 = vld [vmem:[#allocation3 + $0xe0] sm:$0x1]
        %v9129 = vld [vmem:[#allocation3 + $0xe8] sm:$0x1]
        %v9130 = vld [vmem:[#allocation3 + $0xf0] sm:$0x1]
        %v9131 = vld [vmem:[#allocation3 + $0xf8] sm:$0x1]
        %v9132 = vpack.c.bf16 %v9116, %v9108
        %v9133 = vpack.c.bf16 %v9117, %v9109
        %v9134 = vpack.c.bf16 %v9118, %v9110
        %v9135 = vpack.c.bf16 %v9119, %v9111
        %v9136 = vpack.c.bf16 %v9120, %v9112
        %v9137 = vpack.c.bf16 %v9121, %v9113
        %v9138 = vpack.c.bf16 %v9122, %v9114
        %v9139 = vpack.c.bf16 %v9123, %v9115
        %v9140 = vpack.c.bf16 %v9124, %v9124
        %v9141 = vpack.c.bf16 %v9125, %v9125
        %v9142 = vpack.c.bf16 %v9126, %v9126
        %v9143 = vpack.c.bf16 %v9127, %v9127
        %v9144 = vpack.c.bf16 %v9128, %v9128
        %v9145 = vpack.c.bf16 %v9129, %v9129
        %v9146 = vpack.c.bf16 %v9130, %v9130
        %v9147 = vpack.c.bf16 %v9131, %v9131
        %s9148 = scalar_lea.vmem [#allocation10], 8192
        %v9149 = vld [vmem:[%s9148] sm:$0xff]
        %v9150 = vld [vmem:[%s9148 + $0x8] sm:$0xff]
        %v9151 = vld [vmem:[%s9148 + $0x10] sm:$0xff]
        %v9152 = vld [vmem:[%s9148 + $0x18] sm:$0xff]
        %v9153 = vld [vmem:[%s9148 + $0x20] sm:$0xff]
        %v9154 = vld [vmem:[%s9148 + $0x28] sm:$0xff]
        %v9155 = vld [vmem:[%s9148 + $0x30] sm:$0xff]
        %v9156 = vld [vmem:[%s9148 + $0x38] sm:$0xff]
        %v9157 = vld [vmem:[%s9148 + $0x40] sm:$0xff]
        %v9158 = vld [vmem:[%s9148 + $0x48] sm:$0xff]
        %v9159 = vld [vmem:[%s9148 + $0x50] sm:$0xff]
        %v9160 = vld [vmem:[%s9148 + $0x58] sm:$0xff]
        %v9161 = vld [vmem:[%s9148 + $0x60] sm:$0xff]
        %v9162 = vld [vmem:[%s9148 + $0x68] sm:$0xff]
        %v9163 = vld [vmem:[%s9148 + $0x70] sm:$0xff]
        %v9164 = vld [vmem:[%s9148 + $0x78] sm:$0xff]
        %v9165 = vld [vmem:[%s9148 + $0x80] sm:$0xff]
        %v9166 = vld [vmem:[%s9148 + $0x88] sm:$0xff]
        %v9167 = vld [vmem:[%s9148 + $0x90] sm:$0xff]
        %v9168 = vld [vmem:[%s9148 + $0x98] sm:$0xff]
        %v9169 = vld [vmem:[%s9148 + $0xa0] sm:$0xff]
        %v9170 = vld [vmem:[%s9148 + $0xa8] sm:$0xff]
        %v9171 = vld [vmem:[%s9148 + $0xb0] sm:$0xff]
        %v9172 = vld [vmem:[%s9148 + $0xb8] sm:$0xff]
        %v9173 = vld [vmem:[%s9148 + $0xc0] sm:$0xff]
        %v9174 = vld [vmem:[%s9148 + $0xc8] sm:$0xff]
        %v9175 = vld [vmem:[%s9148 + $0xd0] sm:$0xff]
        %v9176 = vld [vmem:[%s9148 + $0xd8] sm:$0xff]
        %v9177 = vld [vmem:[%s9148 + $0xe0] sm:$0xff]
        %v9178 = vld [vmem:[%s9148 + $0xe8] sm:$0xff]
        %v9179 = vld [vmem:[%s9148 + $0xf0] sm:$0xff]
        %v9180 = vld [vmem:[%s9148 + $0xf8] sm:$0xff]
        %v9181 = vld [vmem:[%s9148 + $0x100] sm:$0xff]
        %v9182 = vld [vmem:[%s9148 + $0x108] sm:$0xff]
        %v9183 = vld [vmem:[%s9148 + $0x110] sm:$0xff]
        %v9184 = vld [vmem:[%s9148 + $0x118] sm:$0xff]
        %v9185 = vld [vmem:[%s9148 + $0x120] sm:$0xff]
        %v9186 = vld [vmem:[%s9148 + $0x128] sm:$0xff]
        %v9187 = vld [vmem:[%s9148 + $0x130] sm:$0xff]
        %v9188 = vld [vmem:[%s9148 + $0x138] sm:$0xff]
        %v9189 = vld [vmem:[%s9148 + $0x140] sm:$0xff]
        %v9190 = vld [vmem:[%s9148 + $0x148] sm:$0xff]
        %v9191 = vld [vmem:[%s9148 + $0x150] sm:$0xff]
        %v9192 = vld [vmem:[%s9148 + $0x158] sm:$0xff]
        %v9193 = vld [vmem:[%s9148 + $0x160] sm:$0xff]
        %v9194 = vld [vmem:[%s9148 + $0x168] sm:$0xff]
        %v9195 = vld [vmem:[%s9148 + $0x170] sm:$0xff]
        %v9196 = vld [vmem:[%s9148 + $0x178] sm:$0xff]
        %v9197 = vld [vmem:[%s9148 + $0x180] sm:$0xff]
        %v9198 = vld [vmem:[%s9148 + $0x188] sm:$0xff]
        %v9199 = vld [vmem:[%s9148 + $0x190] sm:$0xff]
        %v9200 = vld [vmem:[%s9148 + $0x198] sm:$0xff]
        %v9201 = vld [vmem:[%s9148 + $0x1a0] sm:$0xff]
        %v9202 = vld [vmem:[%s9148 + $0x1a8] sm:$0xff]
        %v9203 = vld [vmem:[%s9148 + $0x1b0] sm:$0xff]
        %v9204 = vld [vmem:[%s9148 + $0x1b8] sm:$0xff]
        %v9205 = vld [vmem:[%s9148 + $0x1c0] sm:$0xff]
        %v9206 = vld [vmem:[%s9148 + $0x1c8] sm:$0xff]
        %v9207 = vld [vmem:[%s9148 + $0x1d0] sm:$0xff]
        %v9208 = vld [vmem:[%s9148 + $0x1d8] sm:$0xff]
        %v9209 = vld [vmem:[%s9148 + $0x1e0] sm:$0xff]
        %v9210 = vld [vmem:[%s9148 + $0x1e8] sm:$0xff]
        %v9211 = vld [vmem:[%s9148 + $0x1f0] sm:$0xff]
        %v9212 = vld [vmem:[%s9148 + $0x1f8] sm:$0xff]
        %v9213 = vld [vmem:[%s9148 + $0x200] sm:$0xff]
        %v9214 = vld [vmem:[%s9148 + $0x208] sm:$0xff]
        %v9215 = vld [vmem:[%s9148 + $0x210] sm:$0xff]
        %v9216 = vld [vmem:[%s9148 + $0x218] sm:$0xff]
        %v9217 = vld [vmem:[%s9148 + $0x220] sm:$0xff]
        %v9218 = vld [vmem:[%s9148 + $0x228] sm:$0xff]
        %v9219 = vld [vmem:[%s9148 + $0x230] sm:$0xff]
        %v9220 = vld [vmem:[%s9148 + $0x238] sm:$0xff]
        %v9221 = vld [vmem:[%s9148 + $0x240] sm:$0xff]
        %v9222 = vld [vmem:[%s9148 + $0x248] sm:$0xff]
        %v9223 = vld [vmem:[%s9148 + $0x250] sm:$0xff]
        %v9224 = vld [vmem:[%s9148 + $0x258] sm:$0xff]
        %v9225 = vld [vmem:[%s9148 + $0x260] sm:$0xff]
        %v9226 = vld [vmem:[%s9148 + $0x268] sm:$0xff]
        %v9227 = vld [vmem:[%s9148 + $0x270] sm:$0xff]
        %v9228 = vld [vmem:[%s9148 + $0x278] sm:$0xff]
        %v9229 = vld [vmem:[%s9148 + $0x280] sm:$0xff]
        %v9230 = vld [vmem:[%s9148 + $0x288] sm:$0xff]
        %v9231 = vld [vmem:[%s9148 + $0x290] sm:$0xff]
        %v9232 = vld [vmem:[%s9148 + $0x298] sm:$0xff]
        %v9233 = vld [vmem:[%s9148 + $0x2a0] sm:$0xff]
        %v9234 = vld [vmem:[%s9148 + $0x2a8] sm:$0xff]
        %v9235 = vld [vmem:[%s9148 + $0x2b0] sm:$0xff]
        %v9236 = vld [vmem:[%s9148 + $0x2b8] sm:$0xff]
        %v9237 = vld [vmem:[%s9148 + $0x2c0] sm:$0xff]
        %v9238 = vld [vmem:[%s9148 + $0x2c8] sm:$0xff]
        %v9239 = vld [vmem:[%s9148 + $0x2d0] sm:$0xff]
        %v9240 = vld [vmem:[%s9148 + $0x2d8] sm:$0xff]
        %v9241 = vld [vmem:[%s9148 + $0x2e0] sm:$0xff]
        %v9242 = vld [vmem:[%s9148 + $0x2e8] sm:$0xff]
        %v9243 = vld [vmem:[%s9148 + $0x2f0] sm:$0xff]
        %v9244 = vld [vmem:[%s9148 + $0x2f8] sm:$0xff]
        %v9245 = vld [vmem:[%s9148 + $0x300] sm:$0xff]
        %v9246 = vld [vmem:[%s9148 + $0x308] sm:$0xff]
        %v9247 = vld [vmem:[%s9148 + $0x310] sm:$0xff]
        %v9248 = vld [vmem:[%s9148 + $0x318] sm:$0xff]
        %v9249 = vld [vmem:[%s9148 + $0x320] sm:$0xff]
        %v9250 = vld [vmem:[%s9148 + $0x328] sm:$0xff]
        %v9251 = vld [vmem:[%s9148 + $0x330] sm:$0xff]
        %v9252 = vld [vmem:[%s9148 + $0x338] sm:$0xff]
        %v9253 = vld [vmem:[%s9148 + $0x340] sm:$0xff]
        %v9254 = vld [vmem:[%s9148 + $0x348] sm:$0xff]
        %v9255 = vld [vmem:[%s9148 + $0x350] sm:$0xff]
        %v9256 = vld [vmem:[%s9148 + $0x358] sm:$0xff]
        %v9257 = vld [vmem:[%s9148 + $0x360] sm:$0xff]
        %v9258 = vld [vmem:[%s9148 + $0x368] sm:$0xff]
        %v9259 = vld [vmem:[%s9148 + $0x370] sm:$0xff]
        %v9260 = vld [vmem:[%s9148 + $0x378] sm:$0xff]
        %v9261 = vld [vmem:[%s9148 + $0x380] sm:$0xff]
        %v9262 = vld [vmem:[%s9148 + $0x388] sm:$0xff]
        %v9263 = vld [vmem:[%s9148 + $0x390] sm:$0xff]
        %v9264 = vld [vmem:[%s9148 + $0x398] sm:$0xff]
        %v9265 = vld [vmem:[%s9148 + $0x3a0] sm:$0xff]
        %v9266 = vld [vmem:[%s9148 + $0x3a8] sm:$0xff]
        %v9267 = vld [vmem:[%s9148 + $0x3b0] sm:$0xff]
        %v9268 = vld [vmem:[%s9148 + $0x3b8] sm:$0xff]
        %v9269 = vld [vmem:[%s9148 + $0x3c0] sm:$0xff]
        %v9270 = vld [vmem:[%s9148 + $0x3c8] sm:$0xff]
        %v9271 = vld [vmem:[%s9148 + $0x3d0] sm:$0xff]
        %v9272 = vld [vmem:[%s9148 + $0x3d8] sm:$0xff]
        %v9273 = vld [vmem:[%s9148 + $0x3e0] sm:$0xff]
        %v9274 = vld [vmem:[%s9148 + $0x3e8] sm:$0xff]
        %v9275 = vld [vmem:[%s9148 + $0x3f0] sm:$0xff]
        %v9276 = vld [vmem:[%s9148 + $0x3f8] sm:$0xff]
        %v9277 = vld [vmem:[%s9148 + $0x400] sm:$0xff]
        %v9278 = vld [vmem:[%s9148 + $0x408] sm:$0xff]
        %v9279 = vld [vmem:[%s9148 + $0x410] sm:$0xff]
        %v9280 = vld [vmem:[%s9148 + $0x418] sm:$0xff]
        %v9281 = vld [vmem:[%s9148 + $0x420] sm:$0xff]
        %v9282 = vld [vmem:[%s9148 + $0x428] sm:$0xff]
        %v9283 = vld [vmem:[%s9148 + $0x430] sm:$0xff]
        %v9284 = vld [vmem:[%s9148 + $0x438] sm:$0xff]
        %v9285 = vld [vmem:[%s9148 + $0x440] sm:$0xff]
        %v9286 = vld [vmem:[%s9148 + $0x448] sm:$0xff]
        %v9287 = vld [vmem:[%s9148 + $0x450] sm:$0xff]
        %v9288 = vld [vmem:[%s9148 + $0x458] sm:$0xff]
        %v9289 = vld [vmem:[%s9148 + $0x460] sm:$0xff]
        %v9290 = vld [vmem:[%s9148 + $0x468] sm:$0xff]
        %v9291 = vld [vmem:[%s9148 + $0x470] sm:$0xff]
        %v9292 = vld [vmem:[%s9148 + $0x478] sm:$0xff]
        %v9293 = vld [vmem:[%s9148 + $0x480] sm:$0xff]
        %v9294 = vld [vmem:[%s9148 + $0x488] sm:$0xff]
        %v9295 = vld [vmem:[%s9148 + $0x490] sm:$0xff]
        %v9296 = vld [vmem:[%s9148 + $0x498] sm:$0xff]
        %v9297 = vld [vmem:[%s9148 + $0x4a0] sm:$0xff]
        %v9298 = vld [vmem:[%s9148 + $0x4a8] sm:$0xff]
        %v9299 = vld [vmem:[%s9148 + $0x4b0] sm:$0xff]
        %v9300 = vld [vmem:[%s9148 + $0x4b8] sm:$0xff]
        %v9301 = vld [vmem:[%s9148 + $0x4c0] sm:$0xff]
        %v9302 = vld [vmem:[%s9148 + $0x4c8] sm:$0xff]
        %v9303 = vld [vmem:[%s9148 + $0x4d0] sm:$0xff]
        %v9304 = vld [vmem:[%s9148 + $0x4d8] sm:$0xff]
        %v9305 = vld [vmem:[%s9148 + $0x4e0] sm:$0xff]
        %v9306 = vld [vmem:[%s9148 + $0x4e8] sm:$0xff]
        %v9307 = vld [vmem:[%s9148 + $0x4f0] sm:$0xff]
        %v9308 = vld [vmem:[%s9148 + $0x4f8] sm:$0xff]
        %v9309 = vld [vmem:[%s9148 + $0x500] sm:$0xff]
        %v9310 = vld [vmem:[%s9148 + $0x508] sm:$0xff]
        %v9311 = vld [vmem:[%s9148 + $0x510] sm:$0xff]
        %v9312 = vld [vmem:[%s9148 + $0x518] sm:$0xff]
        %v9313 = vld [vmem:[%s9148 + $0x520] sm:$0xff]
        %v9314 = vld [vmem:[%s9148 + $0x528] sm:$0xff]
        %v9315 = vld [vmem:[%s9148 + $0x530] sm:$0xff]
        %v9316 = vld [vmem:[%s9148 + $0x538] sm:$0xff]
        %v9317 = vld [vmem:[%s9148 + $0x540] sm:$0xff]
        %v9318 = vld [vmem:[%s9148 + $0x548] sm:$0xff]
        %v9319 = vld [vmem:[%s9148 + $0x550] sm:$0xff]
        %v9320 = vld [vmem:[%s9148 + $0x558] sm:$0xff]
        %v9321 = vld [vmem:[%s9148 + $0x560] sm:$0xff]
        %v9322 = vld [vmem:[%s9148 + $0x568] sm:$0xff]
        %v9323 = vld [vmem:[%s9148 + $0x570] sm:$0xff]
        %v9324 = vld [vmem:[%s9148 + $0x578] sm:$0xff]
        %v9325 = vld [vmem:[%s9148 + $0x580] sm:$0xff]
        %v9326 = vld [vmem:[%s9148 + $0x588] sm:$0xff]
        %v9327 = vld [vmem:[%s9148 + $0x590] sm:$0xff]
        %v9328 = vld [vmem:[%s9148 + $0x598] sm:$0xff]
        %v9329 = vld [vmem:[%s9148 + $0x5a0] sm:$0xff]
        %v9330 = vld [vmem:[%s9148 + $0x5a8] sm:$0xff]
        %v9331 = vld [vmem:[%s9148 + $0x5b0] sm:$0xff]
        %v9332 = vld [vmem:[%s9148 + $0x5b8] sm:$0xff]
        %v9333 = vld [vmem:[%s9148 + $0x5c0] sm:$0xff]
        %v9334 = vld [vmem:[%s9148 + $0x5c8] sm:$0xff]
        %v9335 = vld [vmem:[%s9148 + $0x5d0] sm:$0xff]
        %v9336 = vld [vmem:[%s9148 + $0x5d8] sm:$0xff]
        %v9337 = vld [vmem:[%s9148 + $0x5e0] sm:$0xff]
        %v9338 = vld [vmem:[%s9148 + $0x5e8] sm:$0xff]
        %v9339 = vld [vmem:[%s9148 + $0x5f0] sm:$0xff]
        %v9340 = vld [vmem:[%s9148 + $0x5f8] sm:$0xff]
        %v9341 = vld [vmem:[%s9148 + $0x600] sm:$0xff]
        %v9342 = vld [vmem:[%s9148 + $0x608] sm:$0xff]
        %v9343 = vld [vmem:[%s9148 + $0x610] sm:$0xff]
        %v9344 = vld [vmem:[%s9148 + $0x618] sm:$0xff]
        %v9345 = vld [vmem:[%s9148 + $0x620] sm:$0xff]
        %v9346 = vld [vmem:[%s9148 + $0x628] sm:$0xff]
        %v9347 = vld [vmem:[%s9148 + $0x630] sm:$0xff]
        %v9348 = vld [vmem:[%s9148 + $0x638] sm:$0xff]
        %v9349 = vld [vmem:[%s9148 + $0x640] sm:$0xff]
        %v9350 = vld [vmem:[%s9148 + $0x648] sm:$0xff]
        %v9351 = vld [vmem:[%s9148 + $0x650] sm:$0xff]
        %v9352 = vld [vmem:[%s9148 + $0x658] sm:$0xff]
        %v9353 = vld [vmem:[%s9148 + $0x660] sm:$0xff]
        %v9354 = vld [vmem:[%s9148 + $0x668] sm:$0xff]
        %v9355 = vld [vmem:[%s9148 + $0x670] sm:$0xff]
        %v9356 = vld [vmem:[%s9148 + $0x678] sm:$0xff]
        %v9357 = vld [vmem:[%s9148 + $0x680] sm:$0xff]
        %v9358 = vld [vmem:[%s9148 + $0x688] sm:$0xff]
        %v9359 = vld [vmem:[%s9148 + $0x690] sm:$0xff]
        %v9360 = vld [vmem:[%s9148 + $0x698] sm:$0xff]
        %v9361 = vld [vmem:[%s9148 + $0x6a0] sm:$0xff]
        %v9362 = vld [vmem:[%s9148 + $0x6a8] sm:$0xff]
        %v9363 = vld [vmem:[%s9148 + $0x6b0] sm:$0xff]
        %v9364 = vld [vmem:[%s9148 + $0x6b8] sm:$0xff]
        %v9365 = vld [vmem:[%s9148 + $0x6c0] sm:$0xff]
        %v9366 = vld [vmem:[%s9148 + $0x6c8] sm:$0xff]
        %v9367 = vld [vmem:[%s9148 + $0x6d0] sm:$0xff]
        %v9368 = vld [vmem:[%s9148 + $0x6d8] sm:$0xff]
        %v9369 = vld [vmem:[%s9148 + $0x6e0] sm:$0xff]
        %v9370 = vld [vmem:[%s9148 + $0x6e8] sm:$0xff]
        %v9371 = vld [vmem:[%s9148 + $0x6f0] sm:$0xff]
        %v9372 = vld [vmem:[%s9148 + $0x6f8] sm:$0xff]
        %v9373 = vld [vmem:[%s9148 + $0x700] sm:$0xff]
        %v9374 = vld [vmem:[%s9148 + $0x708] sm:$0xff]
        %v9375 = vld [vmem:[%s9148 + $0x710] sm:$0xff]
        %v9376 = vld [vmem:[%s9148 + $0x718] sm:$0xff]
        %v9377 = vld [vmem:[%s9148 + $0x720] sm:$0xff]
        %v9378 = vld [vmem:[%s9148 + $0x728] sm:$0xff]
        %v9379 = vld [vmem:[%s9148 + $0x730] sm:$0xff]
        %v9380 = vld [vmem:[%s9148 + $0x738] sm:$0xff]
        %v9381 = vld [vmem:[%s9148 + $0x740] sm:$0xff]
        %v9382 = vld [vmem:[%s9148 + $0x748] sm:$0xff]
        %v9383 = vld [vmem:[%s9148 + $0x750] sm:$0xff]
        %v9384 = vld [vmem:[%s9148 + $0x758] sm:$0xff]
        %v9385 = vld [vmem:[%s9148 + $0x760] sm:$0xff]
        %v9386 = vld [vmem:[%s9148 + $0x768] sm:$0xff]
        %v9387 = vld [vmem:[%s9148 + $0x770] sm:$0xff]
        %v9388 = vld [vmem:[%s9148 + $0x778] sm:$0xff]
        %v9389 = vld [vmem:[%s9148 + $0x780] sm:$0xff]
        %v9390 = vld [vmem:[%s9148 + $0x788] sm:$0xff]
        %v9391 = vld [vmem:[%s9148 + $0x790] sm:$0xff]
        %v9392 = vld [vmem:[%s9148 + $0x798] sm:$0xff]
        %v9393 = vld [vmem:[%s9148 + $0x7a0] sm:$0xff]
        %v9394 = vld [vmem:[%s9148 + $0x7a8] sm:$0xff]
        %v9395 = vld [vmem:[%s9148 + $0x7b0] sm:$0xff]
        %v9396 = vld [vmem:[%s9148 + $0x7b8] sm:$0xff]
        %v9397 = vld [vmem:[%s9148 + $0x7c0] sm:$0xff]
        %v9398 = vld [vmem:[%s9148 + $0x7c8] sm:$0xff]
        %v9399 = vld [vmem:[%s9148 + $0x7d0] sm:$0xff]
        %v9400 = vld [vmem:[%s9148 + $0x7d8] sm:$0xff]
        %v9401 = vld [vmem:[%s9148 + $0x7e0] sm:$0xff]
        %v9402 = vld [vmem:[%s9148 + $0x7e8] sm:$0xff]
        %v9403 = vld [vmem:[%s9148 + $0x7f0] sm:$0xff]
        %v9404 = vld [vmem:[%s9148 + $0x7f8] sm:$0xff]
        %v9405 = vld [vmem:[%s9148 + $0x800] sm:$0xff]
        %v9406 = vld [vmem:[%s9148 + $0x808] sm:$0xff]
        %v9407 = vld [vmem:[%s9148 + $0x810] sm:$0xff]
        %v9408 = vld [vmem:[%s9148 + $0x818] sm:$0xff]
        %v9409 = vld [vmem:[%s9148 + $0x820] sm:$0xff]
        %v9410 = vld [vmem:[%s9148 + $0x828] sm:$0xff]
        %v9411 = vld [vmem:[%s9148 + $0x830] sm:$0xff]
        %v9412 = vld [vmem:[%s9148 + $0x838] sm:$0xff]
        %v9413 = vld [vmem:[%s9148 + $0x840] sm:$0xff]
        %v9414 = vld [vmem:[%s9148 + $0x848] sm:$0xff]
        %v9415 = vld [vmem:[%s9148 + $0x850] sm:$0xff]
        %v9416 = vld [vmem:[%s9148 + $0x858] sm:$0xff]
        %v9417 = vld [vmem:[%s9148 + $0x860] sm:$0xff]
        %v9418 = vld [vmem:[%s9148 + $0x868] sm:$0xff]
        %v9419 = vld [vmem:[%s9148 + $0x870] sm:$0xff]
        %v9420 = vld [vmem:[%s9148 + $0x878] sm:$0xff]
        %v9421 = vld [vmem:[%s9148 + $0x880] sm:$0xff]
        %v9422 = vld [vmem:[%s9148 + $0x888] sm:$0xff]
        %v9423 = vld [vmem:[%s9148 + $0x890] sm:$0xff]
        %v9424 = vld [vmem:[%s9148 + $0x898] sm:$0xff]
        %v9425 = vld [vmem:[%s9148 + $0x8a0] sm:$0xff]
        %v9426 = vld [vmem:[%s9148 + $0x8a8] sm:$0xff]
        %v9427 = vld [vmem:[%s9148 + $0x8b0] sm:$0xff]
        %v9428 = vld [vmem:[%s9148 + $0x8b8] sm:$0xff]
        %v9429 = vld [vmem:[%s9148 + $0x8c0] sm:$0xff]
        %v9430 = vld [vmem:[%s9148 + $0x8c8] sm:$0xff]
        %v9431 = vld [vmem:[%s9148 + $0x8d0] sm:$0xff]
        %v9432 = vld [vmem:[%s9148 + $0x8d8] sm:$0xff]
        %v9433 = vld [vmem:[%s9148 + $0x8e0] sm:$0xff]
        %v9434 = vld [vmem:[%s9148 + $0x8e8] sm:$0xff]
        %v9435 = vld [vmem:[%s9148 + $0x8f0] sm:$0xff]
        %v9436 = vld [vmem:[%s9148 + $0x8f8] sm:$0xff]
        %v9437 = vld [vmem:[%s9148 + $0x900] sm:$0xff]
        %v9438 = vld [vmem:[%s9148 + $0x908] sm:$0xff]
        %v9439 = vld [vmem:[%s9148 + $0x910] sm:$0xff]
        %v9440 = vld [vmem:[%s9148 + $0x918] sm:$0xff]
        %v9441 = vld [vmem:[%s9148 + $0x920] sm:$0xff]
        %v9442 = vld [vmem:[%s9148 + $0x928] sm:$0xff]
        %v9443 = vld [vmem:[%s9148 + $0x930] sm:$0xff]
        %v9444 = vld [vmem:[%s9148 + $0x938] sm:$0xff]
        %v9445 = vld [vmem:[%s9148 + $0x940] sm:$0xff]
        %v9446 = vld [vmem:[%s9148 + $0x948] sm:$0xff]
        %v9447 = vld [vmem:[%s9148 + $0x950] sm:$0xff]
        %v9448 = vld [vmem:[%s9148 + $0x958] sm:$0xff]
        %v9449 = vld [vmem:[%s9148 + $0x960] sm:$0xff]
        %v9450 = vld [vmem:[%s9148 + $0x968] sm:$0xff]
        %v9451 = vld [vmem:[%s9148 + $0x970] sm:$0xff]
        %v9452 = vld [vmem:[%s9148 + $0x978] sm:$0xff]
        %v9453 = vld [vmem:[%s9148 + $0x980] sm:$0xff]
        %v9454 = vld [vmem:[%s9148 + $0x988] sm:$0xff]
        %v9455 = vld [vmem:[%s9148 + $0x990] sm:$0xff]
        %v9456 = vld [vmem:[%s9148 + $0x998] sm:$0xff]
        %v9457 = vld [vmem:[%s9148 + $0x9a0] sm:$0xff]
        %v9458 = vld [vmem:[%s9148 + $0x9a8] sm:$0xff]
        %v9459 = vld [vmem:[%s9148 + $0x9b0] sm:$0xff]
        %v9460 = vld [vmem:[%s9148 + $0x9b8] sm:$0xff]
        %v9461 = vld [vmem:[%s9148 + $0x9c0] sm:$0xff]
        %v9462 = vld [vmem:[%s9148 + $0x9c8] sm:$0xff]
        %v9463 = vld [vmem:[%s9148 + $0x9d0] sm:$0xff]
        %v9464 = vld [vmem:[%s9148 + $0x9d8] sm:$0xff]
        %v9465 = vld [vmem:[%s9148 + $0x9e0] sm:$0xff]
        %v9466 = vld [vmem:[%s9148 + $0x9e8] sm:$0xff]
        %v9467 = vld [vmem:[%s9148 + $0x9f0] sm:$0xff]
        %v9468 = vld [vmem:[%s9148 + $0x9f8] sm:$0xff]
        %v9469 = vld [vmem:[%s9148 + $0xa00] sm:$0xff]
        %v9470 = vld [vmem:[%s9148 + $0xa08] sm:$0xff]
        %v9471 = vld [vmem:[%s9148 + $0xa10] sm:$0xff]
        %v9472 = vld [vmem:[%s9148 + $0xa18] sm:$0xff]
        %v9473 = vld [vmem:[%s9148 + $0xa20] sm:$0xff]
        %v9474 = vld [vmem:[%s9148 + $0xa28] sm:$0xff]
        %v9475 = vld [vmem:[%s9148 + $0xa30] sm:$0xff]
        %v9476 = vld [vmem:[%s9148 + $0xa38] sm:$0xff]
        %v9477 = vld [vmem:[%s9148 + $0xa40] sm:$0xff]
        %v9478 = vld [vmem:[%s9148 + $0xa48] sm:$0xff]
        %v9479 = vld [vmem:[%s9148 + $0xa50] sm:$0xff]
        %v9480 = vld [vmem:[%s9148 + $0xa58] sm:$0xff]
        %v9481 = vld [vmem:[%s9148 + $0xa60] sm:$0xff]
        %v9482 = vld [vmem:[%s9148 + $0xa68] sm:$0xff]
        %v9483 = vld [vmem:[%s9148 + $0xa70] sm:$0xff]
        %v9484 = vld [vmem:[%s9148 + $0xa78] sm:$0xff]
        %v9485 = vld [vmem:[%s9148 + $0xa80] sm:$0xff]
        %v9486 = vld [vmem:[%s9148 + $0xa88] sm:$0xff]
        %v9487 = vld [vmem:[%s9148 + $0xa90] sm:$0xff]
        %v9488 = vld [vmem:[%s9148 + $0xa98] sm:$0xff]
        %v9489 = vld [vmem:[%s9148 + $0xaa0] sm:$0xff]
        %v9490 = vld [vmem:[%s9148 + $0xaa8] sm:$0xff]
        %v9491 = vld [vmem:[%s9148 + $0xab0] sm:$0xff]
        %v9492 = vld [vmem:[%s9148 + $0xab8] sm:$0xff]
        %v9493 = vld [vmem:[%s9148 + $0xac0] sm:$0xff]
        %v9494 = vld [vmem:[%s9148 + $0xac8] sm:$0xff]
        %v9495 = vld [vmem:[%s9148 + $0xad0] sm:$0xff]
        %v9496 = vld [vmem:[%s9148 + $0xad8] sm:$0xff]
        %v9497 = vld [vmem:[%s9148 + $0xae0] sm:$0xff]
        %v9498 = vld [vmem:[%s9148 + $0xae8] sm:$0xff]
        %v9499 = vld [vmem:[%s9148 + $0xaf0] sm:$0xff]
        %v9500 = vld [vmem:[%s9148 + $0xaf8] sm:$0xff]
        %v9501 = vld [vmem:[%s9148 + $0xb00] sm:$0xff]
        %v9502 = vld [vmem:[%s9148 + $0xb08] sm:$0xff]
        %v9503 = vld [vmem:[%s9148 + $0xb10] sm:$0xff]
        %v9504 = vld [vmem:[%s9148 + $0xb18] sm:$0xff]
        %v9505 = vld [vmem:[%s9148 + $0xb20] sm:$0xff]
        %v9506 = vld [vmem:[%s9148 + $0xb28] sm:$0xff]
        %v9507 = vld [vmem:[%s9148 + $0xb30] sm:$0xff]
        %v9508 = vld [vmem:[%s9148 + $0xb38] sm:$0xff]
        %v9509 = vld [vmem:[%s9148 + $0xb40] sm:$0xff]
        %v9510 = vld [vmem:[%s9148 + $0xb48] sm:$0xff]
        %v9511 = vld [vmem:[%s9148 + $0xb50] sm:$0xff]
        %v9512 = vld [vmem:[%s9148 + $0xb58] sm:$0xff]
        %v9513 = vld [vmem:[%s9148 + $0xb60] sm:$0xff]
        %v9514 = vld [vmem:[%s9148 + $0xb68] sm:$0xff]
        %v9515 = vld [vmem:[%s9148 + $0xb70] sm:$0xff]
        %v9516 = vld [vmem:[%s9148 + $0xb78] sm:$0xff]
        %v9517 = vld [vmem:[%s9148 + $0xb80] sm:$0xff]
        %v9518 = vld [vmem:[%s9148 + $0xb88] sm:$0xff]
        %v9519 = vld [vmem:[%s9148 + $0xb90] sm:$0xff]
        %v9520 = vld [vmem:[%s9148 + $0xb98] sm:$0xff]
        %v9521 = vld [vmem:[%s9148 + $0xba0] sm:$0xff]
        %v9522 = vld [vmem:[%s9148 + $0xba8] sm:$0xff]
        %v9523 = vld [vmem:[%s9148 + $0xbb0] sm:$0xff]
        %v9524 = vld [vmem:[%s9148 + $0xbb8] sm:$0xff]
        %v9525 = vld [vmem:[%s9148 + $0xbc0] sm:$0xff]
        %v9526 = vld [vmem:[%s9148 + $0xbc8] sm:$0xff]
        %v9527 = vld [vmem:[%s9148 + $0xbd0] sm:$0xff]
        %v9528 = vld [vmem:[%s9148 + $0xbd8] sm:$0xff]
        %v9529 = vld [vmem:[%s9148 + $0xbe0] sm:$0xff]
        %v9530 = vld [vmem:[%s9148 + $0xbe8] sm:$0xff]
        %v9531 = vld [vmem:[%s9148 + $0xbf0] sm:$0xff]
        %v9532 = vld [vmem:[%s9148 + $0xbf8] sm:$0xff]
        %v9533 = vld [vmem:[%s9148 + $0xc00] sm:$0xff]
        %v9534 = vld [vmem:[%s9148 + $0xc08] sm:$0xff]
        %v9535 = vld [vmem:[%s9148 + $0xc10] sm:$0xff]
        %v9536 = vld [vmem:[%s9148 + $0xc18] sm:$0xff]
        %v9537 = vld [vmem:[%s9148 + $0xc20] sm:$0xff]
        %v9538 = vld [vmem:[%s9148 + $0xc28] sm:$0xff]
        %v9539 = vld [vmem:[%s9148 + $0xc30] sm:$0xff]
        %v9540 = vld [vmem:[%s9148 + $0xc38] sm:$0xff]
        %v9541 = vld [vmem:[%s9148 + $0xc40] sm:$0xff]
        %v9542 = vld [vmem:[%s9148 + $0xc48] sm:$0xff]
        %v9543 = vld [vmem:[%s9148 + $0xc50] sm:$0xff]
        %v9544 = vld [vmem:[%s9148 + $0xc58] sm:$0xff]
        %v9545 = vld [vmem:[%s9148 + $0xc60] sm:$0xff]
        %v9546 = vld [vmem:[%s9148 + $0xc68] sm:$0xff]
        %v9547 = vld [vmem:[%s9148 + $0xc70] sm:$0xff]
        %v9548 = vld [vmem:[%s9148 + $0xc78] sm:$0xff]
        %v9549 = vld [vmem:[%s9148 + $0xc80] sm:$0xff]
        %v9550 = vld [vmem:[%s9148 + $0xc88] sm:$0xff]
        %v9551 = vld [vmem:[%s9148 + $0xc90] sm:$0xff]
        %v9552 = vld [vmem:[%s9148 + $0xc98] sm:$0xff]
        %v9553 = vld [vmem:[%s9148 + $0xca0] sm:$0xff]
        %v9554 = vld [vmem:[%s9148 + $0xca8] sm:$0xff]
        %v9555 = vld [vmem:[%s9148 + $0xcb0] sm:$0xff]
        %v9556 = vld [vmem:[%s9148 + $0xcb8] sm:$0xff]
        %v9557 = vld [vmem:[%s9148 + $0xcc0] sm:$0xff]
        %v9558 = vld [vmem:[%s9148 + $0xcc8] sm:$0xff]
        %v9559 = vld [vmem:[%s9148 + $0xcd0] sm:$0xff]
        %v9560 = vld [vmem:[%s9148 + $0xcd8] sm:$0xff]
        %v9561 = vld [vmem:[%s9148 + $0xce0] sm:$0xff]
        %v9562 = vld [vmem:[%s9148 + $0xce8] sm:$0xff]
        %v9563 = vld [vmem:[%s9148 + $0xcf0] sm:$0xff]
        %v9564 = vld [vmem:[%s9148 + $0xcf8] sm:$0xff]
        %v9565 = vld [vmem:[%s9148 + $0xd00] sm:$0xff]
        %v9566 = vld [vmem:[%s9148 + $0xd08] sm:$0xff]
        %v9567 = vld [vmem:[%s9148 + $0xd10] sm:$0xff]
        %v9568 = vld [vmem:[%s9148 + $0xd18] sm:$0xff]
        %v9569 = vld [vmem:[%s9148 + $0xd20] sm:$0xff]
        %v9570 = vld [vmem:[%s9148 + $0xd28] sm:$0xff]
        %v9571 = vld [vmem:[%s9148 + $0xd30] sm:$0xff]
        %v9572 = vld [vmem:[%s9148 + $0xd38] sm:$0xff]
        %v9573 = vld [vmem:[%s9148 + $0xd40] sm:$0xff]
        %v9574 = vld [vmem:[%s9148 + $0xd48] sm:$0xff]
        %v9575 = vld [vmem:[%s9148 + $0xd50] sm:$0xff]
        %v9576 = vld [vmem:[%s9148 + $0xd58] sm:$0xff]
        %v9577 = vld [vmem:[%s9148 + $0xd60] sm:$0xff]
        %v9578 = vld [vmem:[%s9148 + $0xd68] sm:$0xff]
        %v9579 = vld [vmem:[%s9148 + $0xd70] sm:$0xff]
        %v9580 = vld [vmem:[%s9148 + $0xd78] sm:$0xff]
        %v9581 = vld [vmem:[%s9148 + $0xd80] sm:$0xff]
        %v9582 = vld [vmem:[%s9148 + $0xd88] sm:$0xff]
        %v9583 = vld [vmem:[%s9148 + $0xd90] sm:$0xff]
        %v9584 = vld [vmem:[%s9148 + $0xd98] sm:$0xff]
        %v9585 = vld [vmem:[%s9148 + $0xda0] sm:$0xff]
        %v9586 = vld [vmem:[%s9148 + $0xda8] sm:$0xff]
        %v9587 = vld [vmem:[%s9148 + $0xdb0] sm:$0xff]
        %v9588 = vld [vmem:[%s9148 + $0xdb8] sm:$0xff]
        %v9589 = vld [vmem:[%s9148 + $0xdc0] sm:$0xff]
        %v9590 = vld [vmem:[%s9148 + $0xdc8] sm:$0xff]
        %v9591 = vld [vmem:[%s9148 + $0xdd0] sm:$0xff]
        %v9592 = vld [vmem:[%s9148 + $0xdd8] sm:$0xff]
        %v9593 = vld [vmem:[%s9148 + $0xde0] sm:$0xff]
        %v9594 = vld [vmem:[%s9148 + $0xde8] sm:$0xff]
        %v9595 = vld [vmem:[%s9148 + $0xdf0] sm:$0xff]
        %v9596 = vld [vmem:[%s9148 + $0xdf8] sm:$0xff]
        %v9597 = vld [vmem:[%s9148 + $0xe00] sm:$0xff]
        %v9598 = vld [vmem:[%s9148 + $0xe08] sm:$0xff]
        %v9599 = vld [vmem:[%s9148 + $0xe10] sm:$0xff]
        %v9600 = vld [vmem:[%s9148 + $0xe18] sm:$0xff]
        %v9601 = vld [vmem:[%s9148 + $0xe20] sm:$0xff]
        %v9602 = vld [vmem:[%s9148 + $0xe28] sm:$0xff]
        %v9603 = vld [vmem:[%s9148 + $0xe30] sm:$0xff]
        %v9604 = vld [vmem:[%s9148 + $0xe38] sm:$0xff]
        %v9605 = vld [vmem:[%s9148 + $0xe40] sm:$0xff]
        %v9606 = vld [vmem:[%s9148 + $0xe48] sm:$0xff]
        %v9607 = vld [vmem:[%s9148 + $0xe50] sm:$0xff]
        %v9608 = vld [vmem:[%s9148 + $0xe58] sm:$0xff]
        %v9609 = vld [vmem:[%s9148 + $0xe60] sm:$0xff]
        %v9610 = vld [vmem:[%s9148 + $0xe68] sm:$0xff]
        %v9611 = vld [vmem:[%s9148 + $0xe70] sm:$0xff]
        %v9612 = vld [vmem:[%s9148 + $0xe78] sm:$0xff]
        %v9613 = vld [vmem:[%s9148 + $0xe80] sm:$0xff]
        %v9614 = vld [vmem:[%s9148 + $0xe88] sm:$0xff]
        %v9615 = vld [vmem:[%s9148 + $0xe90] sm:$0xff]
        %v9616 = vld [vmem:[%s9148 + $0xe98] sm:$0xff]
        %v9617 = vld [vmem:[%s9148 + $0xea0] sm:$0xff]
        %v9618 = vld [vmem:[%s9148 + $0xea8] sm:$0xff]
        %v9619 = vld [vmem:[%s9148 + $0xeb0] sm:$0xff]
        %v9620 = vld [vmem:[%s9148 + $0xeb8] sm:$0xff]
        %v9621 = vld [vmem:[%s9148 + $0xec0] sm:$0xff]
        %v9622 = vld [vmem:[%s9148 + $0xec8] sm:$0xff]
        %v9623 = vld [vmem:[%s9148 + $0xed0] sm:$0xff]
        %v9624 = vld [vmem:[%s9148 + $0xed8] sm:$0xff]
        %v9625 = vld [vmem:[%s9148 + $0xee0] sm:$0xff]
        %v9626 = vld [vmem:[%s9148 + $0xee8] sm:$0xff]
        %v9627 = vld [vmem:[%s9148 + $0xef0] sm:$0xff]
        %v9628 = vld [vmem:[%s9148 + $0xef8] sm:$0xff]
        %v9629 = vld [vmem:[%s9148 + $0xf00] sm:$0xff]
        %v9630 = vld [vmem:[%s9148 + $0xf08] sm:$0xff]
        %v9631 = vld [vmem:[%s9148 + $0xf10] sm:$0xff]
        %v9632 = vld [vmem:[%s9148 + $0xf18] sm:$0xff]
        %v9633 = vld [vmem:[%s9148 + $0xf20] sm:$0xff]
        %v9634 = vld [vmem:[%s9148 + $0xf28] sm:$0xff]
        %v9635 = vld [vmem:[%s9148 + $0xf30] sm:$0xff]
        %v9636 = vld [vmem:[%s9148 + $0xf38] sm:$0xff]
        %v9637 = vld [vmem:[%s9148 + $0xf40] sm:$0xff]
        %v9638 = vld [vmem:[%s9148 + $0xf48] sm:$0xff]
        %v9639 = vld [vmem:[%s9148 + $0xf50] sm:$0xff]
        %v9640 = vld [vmem:[%s9148 + $0xf58] sm:$0xff]
        %v9641 = vld [vmem:[%s9148 + $0xf60] sm:$0xff]
        %v9642 = vld [vmem:[%s9148 + $0xf68] sm:$0xff]
        %v9643 = vld [vmem:[%s9148 + $0xf70] sm:$0xff]
        %v9644 = vld [vmem:[%s9148 + $0xf78] sm:$0xff]
        %v9645 = vld [vmem:[%s9148 + $0xf80] sm:$0xff]
        %v9646 = vld [vmem:[%s9148 + $0xf88] sm:$0xff]
        %v9647 = vld [vmem:[%s9148 + $0xf90] sm:$0xff]
        %v9648 = vld [vmem:[%s9148 + $0xf98] sm:$0xff]
        %v9649 = vld [vmem:[%s9148 + $0xfa0] sm:$0xff]
        %v9650 = vld [vmem:[%s9148 + $0xfa8] sm:$0xff]
        %v9651 = vld [vmem:[%s9148 + $0xfb0] sm:$0xff]
        %v9652 = vld [vmem:[%s9148 + $0xfb8] sm:$0xff]
        %v9653 = vld [vmem:[%s9148 + $0xfc0] sm:$0xff]
        %v9654 = vld [vmem:[%s9148 + $0xfc8] sm:$0xff]
        %v9655 = vld [vmem:[%s9148 + $0xfd0] sm:$0xff]
        %v9656 = vld [vmem:[%s9148 + $0xfd8] sm:$0xff]
        %v9657 = vld [vmem:[%s9148 + $0xfe0] sm:$0xff]
        %v9658 = vld [vmem:[%s9148 + $0xfe8] sm:$0xff]
        %v9659 = vld [vmem:[%s9148 + $0xff0] sm:$0xff]
        %v9660 = vld [vmem:[%s9148 + $0xff8] sm:$0xff]
        %vm9661 = vsmask.f32 7424
        %v9663 = vshrl.u32 %v9132, 16
        %v9665 = vshll.u32 %v9132, 16
        %v9667 = vrot.slane %v9665, 1
        %v9668 = vor.u32 %v9663, %v9667
        %v9670 = vshll.u32 %v9140, 16
        %v9672 = vrot.slane %v9670, 1
        %v9673 = vsel %vm9661, %v9668, %v9672
        %v9675 = vshrl.u32 %v9133, 16
        %v9677 = vshll.u32 %v9133, 16
        %v9679 = vrot.slane %v9677, 1
        %v9680 = vor.u32 %v9675, %v9679
        %v9682 = vshll.u32 %v9141, 16
        %v9684 = vrot.slane %v9682, 1
        %v9685 = vsel %vm9661, %v9680, %v9684
        %v9687 = vshrl.u32 %v9134, 16
        %v9689 = vshll.u32 %v9134, 16
        %v9691 = vrot.slane %v9689, 1
        %v9692 = vor.u32 %v9687, %v9691
        %v9694 = vshll.u32 %v9142, 16
        %v9696 = vrot.slane %v9694, 1
        %v9697 = vsel %vm9661, %v9692, %v9696
        %v9699 = vshrl.u32 %v9135, 16
        %v9701 = vshll.u32 %v9135, 16
        %v9703 = vrot.slane %v9701, 1
        %v9704 = vor.u32 %v9699, %v9703
        %v9706 = vshll.u32 %v9143, 16
        %v9708 = vrot.slane %v9706, 1
        %v9709 = vsel %vm9661, %v9704, %v9708
        %v9711 = vshrl.u32 %v9136, 16
        %v9713 = vshll.u32 %v9136, 16
        %v9715 = vrot.slane %v9713, 1
        %v9716 = vor.u32 %v9711, %v9715
        %v9718 = vshll.u32 %v9144, 16
        %v9720 = vrot.slane %v9718, 1
        %v9721 = vsel %vm9661, %v9716, %v9720
        %v9723 = vshrl.u32 %v9137, 16
        %v9725 = vshll.u32 %v9137, 16
        %v9727 = vrot.slane %v9725, 1
        %v9728 = vor.u32 %v9723, %v9727
        %v9730 = vshll.u32 %v9145, 16
        %v9732 = vrot.slane %v9730, 1
        %v9733 = vsel %vm9661, %v9728, %v9732
        %v9735 = vshrl.u32 %v9138, 16
        %v9737 = vshll.u32 %v9138, 16
        %v9739 = vrot.slane %v9737, 1
        %v9740 = vor.u32 %v9735, %v9739
        %v9742 = vshll.u32 %v9146, 16
        %v9744 = vrot.slane %v9742, 1
        %v9745 = vsel %vm9661, %v9740, %v9744
        %v9747 = vshrl.u32 %v9139, 16
        %v9749 = vshll.u32 %v9139, 16
        %v9751 = vrot.slane %v9749, 1
        %v9752 = vor.u32 %v9747, %v9751
        %v9754 = vshll.u32 %v9147, 16
        %v9756 = vrot.slane %v9754, 1
        %v9757 = vsel %vm9661, %v9752, %v9756
        %v10278 = vunpack.c.l.b16 %v9149
        %v10279 = vunpack.c.h.b16 %v9149
        %v10280 = vunpack.c.l.b16 %v9150
        %v10281 = vunpack.c.h.b16 %v9150
        %v10282 = vunpack.c.l.b16 %v9151
        %v10283 = vunpack.c.h.b16 %v9151
        %v10284 = vunpack.c.l.b16 %v9152
        %v10285 = vunpack.c.h.b16 %v9152
        %v10286 = vunpack.c.l.b16 %v9153
        %v10287 = vunpack.c.h.b16 %v9153
        %v10288 = vunpack.c.l.b16 %v9154
        %v10289 = vunpack.c.h.b16 %v9154
        %v10290 = vunpack.c.l.b16 %v9155
        %v10291 = vunpack.c.h.b16 %v9155
        %v10292 = vunpack.c.l.b16 %v9156
        %v10293 = vunpack.c.h.b16 %v9156
        %v10294 = vunpack.c.l.b16 %v9157
        %v10295 = vunpack.c.h.b16 %v9157
        %v10296 = vunpack.c.l.b16 %v9158
        %v10297 = vunpack.c.h.b16 %v9158
        %v10298 = vunpack.c.l.b16 %v9159
        %v10299 = vunpack.c.h.b16 %v9159
        %v10300 = vunpack.c.l.b16 %v9160
        %v10301 = vunpack.c.h.b16 %v9160
        %v10302 = vunpack.c.l.b16 %v9161
        %v10303 = vunpack.c.h.b16 %v9161
        %v10304 = vunpack.c.l.b16 %v9162
        %v10305 = vunpack.c.h.b16 %v9162
        %v10306 = vunpack.c.l.b16 %v9163
        %v10307 = vunpack.c.h.b16 %v9163
        %v10308 = vunpack.c.l.b16 %v9164
        %v10309 = vunpack.c.h.b16 %v9164
        %v10310 = vunpack.c.l.b16 %v9165
        %v10311 = vunpack.c.h.b16 %v9165
        %v10312 = vunpack.c.l.b16 %v9166
        %v10313 = vunpack.c.h.b16 %v9166
        %v10314 = vunpack.c.l.b16 %v9167
        %v10315 = vunpack.c.h.b16 %v9167
        %v10316 = vunpack.c.l.b16 %v9168
        %v10317 = vunpack.c.h.b16 %v9168
        %v10318 = vunpack.c.l.b16 %v9169
        %v10319 = vunpack.c.h.b16 %v9169
        %v10320 = vunpack.c.l.b16 %v9170
        %v10321 = vunpack.c.h.b16 %v9170
        %v10322 = vunpack.c.l.b16 %v9171
        %v10323 = vunpack.c.h.b16 %v9171
        %v10324 = vunpack.c.l.b16 %v9172
        %v10325 = vunpack.c.h.b16 %v9172
        %v10326 = vunpack.c.l.b16 %v9173
        %v10327 = vunpack.c.h.b16 %v9173
        %v10328 = vunpack.c.l.b16 %v9174
        %v10329 = vunpack.c.h.b16 %v9174
        %v10330 = vunpack.c.l.b16 %v9175
        %v10331 = vunpack.c.h.b16 %v9175
        %v10332 = vunpack.c.l.b16 %v9176
        %v10333 = vunpack.c.h.b16 %v9176
        %v10334 = vunpack.c.l.b16 %v9177
        %v10335 = vunpack.c.h.b16 %v9177
        %v10336 = vunpack.c.l.b16 %v9178
        %v10337 = vunpack.c.h.b16 %v9178
        %v10338 = vunpack.c.l.b16 %v9179
        %v10339 = vunpack.c.h.b16 %v9179
        %v10340 = vunpack.c.l.b16 %v9180
        %v10341 = vunpack.c.h.b16 %v9180
        %v10342 = vunpack.c.l.b16 %v9181
        %v10343 = vunpack.c.h.b16 %v9181
        %v10344 = vunpack.c.l.b16 %v9182
        %v10345 = vunpack.c.h.b16 %v9182
        %v10346 = vunpack.c.l.b16 %v9183
        %v10347 = vunpack.c.h.b16 %v9183
        %v10348 = vunpack.c.l.b16 %v9184
        %v10349 = vunpack.c.h.b16 %v9184
        %v10350 = vunpack.c.l.b16 %v9185
        %v10351 = vunpack.c.h.b16 %v9185
        %v10352 = vunpack.c.l.b16 %v9186
        %v10353 = vunpack.c.h.b16 %v9186
        %v10354 = vunpack.c.l.b16 %v9187
        %v10355 = vunpack.c.h.b16 %v9187
        %v10356 = vunpack.c.l.b16 %v9188
        %v10357 = vunpack.c.h.b16 %v9188
        %v10358 = vunpack.c.l.b16 %v9189
        %v10359 = vunpack.c.h.b16 %v9189
        %v10360 = vunpack.c.l.b16 %v9190
        %v10361 = vunpack.c.h.b16 %v9190
        %v10362 = vunpack.c.l.b16 %v9191
        %v10363 = vunpack.c.h.b16 %v9191
        %v10364 = vunpack.c.l.b16 %v9192
        %v10365 = vunpack.c.h.b16 %v9192
        %v10366 = vunpack.c.l.b16 %v9193
        %v10367 = vunpack.c.h.b16 %v9193
        %v10368 = vunpack.c.l.b16 %v9194
        %v10369 = vunpack.c.h.b16 %v9194
        %v10370 = vunpack.c.l.b16 %v9195
        %v10371 = vunpack.c.h.b16 %v9195
        %v10372 = vunpack.c.l.b16 %v9196
        %v10373 = vunpack.c.h.b16 %v9196
        %v10374 = vunpack.c.l.b16 %v9197
        %v10375 = vunpack.c.h.b16 %v9197
        %v10376 = vunpack.c.l.b16 %v9198
        %v10377 = vunpack.c.h.b16 %v9198
        %v10378 = vunpack.c.l.b16 %v9199
        %v10379 = vunpack.c.h.b16 %v9199
        %v10380 = vunpack.c.l.b16 %v9200
        %v10381 = vunpack.c.h.b16 %v9200
        %v10382 = vunpack.c.l.b16 %v9201
        %v10383 = vunpack.c.h.b16 %v9201
        %v10384 = vunpack.c.l.b16 %v9202
        %v10385 = vunpack.c.h.b16 %v9202
        %v10386 = vunpack.c.l.b16 %v9203
        %v10387 = vunpack.c.h.b16 %v9203
        %v10388 = vunpack.c.l.b16 %v9204
        %v10389 = vunpack.c.h.b16 %v9204
        %v10390 = vunpack.c.l.b16 %v9205
        %v10391 = vunpack.c.h.b16 %v9205
        %v10392 = vunpack.c.l.b16 %v9206
        %v10393 = vunpack.c.h.b16 %v9206
        %v10394 = vunpack.c.l.b16 %v9207
        %v10395 = vunpack.c.h.b16 %v9207
        %v10396 = vunpack.c.l.b16 %v9208
        %v10397 = vunpack.c.h.b16 %v9208
        %v10398 = vunpack.c.l.b16 %v9209
        %v10399 = vunpack.c.h.b16 %v9209
        %v10400 = vunpack.c.l.b16 %v9210
        %v10401 = vunpack.c.h.b16 %v9210
        %v10402 = vunpack.c.l.b16 %v9211
        %v10403 = vunpack.c.h.b16 %v9211
        %v10404 = vunpack.c.l.b16 %v9212
        %v10405 = vunpack.c.h.b16 %v9212
        %v10406 = vunpack.c.l.b16 %v9213
        %v10407 = vunpack.c.h.b16 %v9213
        %v10408 = vunpack.c.l.b16 %v9214
        %v10409 = vunpack.c.h.b16 %v9214
        %v10410 = vunpack.c.l.b16 %v9215
        %v10411 = vunpack.c.h.b16 %v9215
        %v10412 = vunpack.c.l.b16 %v9216
        %v10413 = vunpack.c.h.b16 %v9216
        %v10414 = vunpack.c.l.b16 %v9217
        %v10415 = vunpack.c.h.b16 %v9217
        %v10416 = vunpack.c.l.b16 %v9218
        %v10417 = vunpack.c.h.b16 %v9218
        %v10418 = vunpack.c.l.b16 %v9219
        %v10419 = vunpack.c.h.b16 %v9219
        %v10420 = vunpack.c.l.b16 %v9220
        %v10421 = vunpack.c.h.b16 %v9220
        %v10422 = vunpack.c.l.b16 %v9221
        %v10423 = vunpack.c.h.b16 %v9221
        %v10424 = vunpack.c.l.b16 %v9222
        %v10425 = vunpack.c.h.b16 %v9222
        %v10426 = vunpack.c.l.b16 %v9223
        %v10427 = vunpack.c.h.b16 %v9223
        %v10428 = vunpack.c.l.b16 %v9224
        %v10429 = vunpack.c.h.b16 %v9224
        %v10430 = vunpack.c.l.b16 %v9225
        %v10431 = vunpack.c.h.b16 %v9225
        %v10432 = vunpack.c.l.b16 %v9226
        %v10433 = vunpack.c.h.b16 %v9226
        %v10434 = vunpack.c.l.b16 %v9227
        %v10435 = vunpack.c.h.b16 %v9227
        %v10436 = vunpack.c.l.b16 %v9228
        %v10437 = vunpack.c.h.b16 %v9228
        %v10438 = vunpack.c.l.b16 %v9229
        %v10439 = vunpack.c.h.b16 %v9229
        %v10440 = vunpack.c.l.b16 %v9230
        %v10441 = vunpack.c.h.b16 %v9230
        %v10442 = vunpack.c.l.b16 %v9231
        %v10443 = vunpack.c.h.b16 %v9231
        %v10444 = vunpack.c.l.b16 %v9232
        %v10445 = vunpack.c.h.b16 %v9232
        %v10446 = vunpack.c.l.b16 %v9233
        %v10447 = vunpack.c.h.b16 %v9233
        %v10448 = vunpack.c.l.b16 %v9234
        %v10449 = vunpack.c.h.b16 %v9234
        %v10450 = vunpack.c.l.b16 %v9235
        %v10451 = vunpack.c.h.b16 %v9235
        %v10452 = vunpack.c.l.b16 %v9236
        %v10453 = vunpack.c.h.b16 %v9236
        %v10454 = vunpack.c.l.b16 %v9237
        %v10455 = vunpack.c.h.b16 %v9237
        %v10456 = vunpack.c.l.b16 %v9238
        %v10457 = vunpack.c.h.b16 %v9238
        %v10458 = vunpack.c.l.b16 %v9239
        %v10459 = vunpack.c.h.b16 %v9239
        %v10460 = vunpack.c.l.b16 %v9240
        %v10461 = vunpack.c.h.b16 %v9240
        %v10462 = vunpack.c.l.b16 %v9241
        %v10463 = vunpack.c.h.b16 %v9241
        %v10464 = vunpack.c.l.b16 %v9242
        %v10465 = vunpack.c.h.b16 %v9242
        %v10466 = vunpack.c.l.b16 %v9243
        %v10467 = vunpack.c.h.b16 %v9243
        %v10468 = vunpack.c.l.b16 %v9244
        %v10469 = vunpack.c.h.b16 %v9244
        %v10470 = vunpack.c.l.b16 %v9245
        %v10471 = vunpack.c.h.b16 %v9245
        %v10472 = vunpack.c.l.b16 %v9246
        %v10473 = vunpack.c.h.b16 %v9246
        %v10474 = vunpack.c.l.b16 %v9247
        %v10475 = vunpack.c.h.b16 %v9247
        %v10476 = vunpack.c.l.b16 %v9248
        %v10477 = vunpack.c.h.b16 %v9248
        %v10478 = vunpack.c.l.b16 %v9249
        %v10479 = vunpack.c.h.b16 %v9249
        %v10480 = vunpack.c.l.b16 %v9250
        %v10481 = vunpack.c.h.b16 %v9250
        %v10482 = vunpack.c.l.b16 %v9251
        %v10483 = vunpack.c.h.b16 %v9251
        %v10484 = vunpack.c.l.b16 %v9252
        %v10485 = vunpack.c.h.b16 %v9252
        %v10486 = vunpack.c.l.b16 %v9253
        %v10487 = vunpack.c.h.b16 %v9253
        %v10488 = vunpack.c.l.b16 %v9254
        %v10489 = vunpack.c.h.b16 %v9254
        %v10490 = vunpack.c.l.b16 %v9255
        %v10491 = vunpack.c.h.b16 %v9255
        %v10492 = vunpack.c.l.b16 %v9256
        %v10493 = vunpack.c.h.b16 %v9256
        %v10494 = vunpack.c.l.b16 %v9257
        %v10495 = vunpack.c.h.b16 %v9257
        %v10496 = vunpack.c.l.b16 %v9258
        %v10497 = vunpack.c.h.b16 %v9258
        %v10498 = vunpack.c.l.b16 %v9259
        %v10499 = vunpack.c.h.b16 %v9259
        %v10500 = vunpack.c.l.b16 %v9260
        %v10501 = vunpack.c.h.b16 %v9260
        %v10502 = vunpack.c.l.b16 %v9261
        %v10503 = vunpack.c.h.b16 %v9261
        %v10504 = vunpack.c.l.b16 %v9262
        %v10505 = vunpack.c.h.b16 %v9262
        %v10506 = vunpack.c.l.b16 %v9263
        %v10507 = vunpack.c.h.b16 %v9263
        %v10508 = vunpack.c.l.b16 %v9264
        %v10509 = vunpack.c.h.b16 %v9264
        %v10510 = vunpack.c.l.b16 %v9265
        %v10511 = vunpack.c.h.b16 %v9265
        %v10512 = vunpack.c.l.b16 %v9266
        %v10513 = vunpack.c.h.b16 %v9266
        %v10514 = vunpack.c.l.b16 %v9267
        %v10515 = vunpack.c.h.b16 %v9267
        %v10516 = vunpack.c.l.b16 %v9268
        %v10517 = vunpack.c.h.b16 %v9268
        %v10518 = vunpack.c.l.b16 %v9269
        %v10519 = vunpack.c.h.b16 %v9269
        %v10520 = vunpack.c.l.b16 %v9270
        %v10521 = vunpack.c.h.b16 %v9270
        %v10522 = vunpack.c.l.b16 %v9271
        %v10523 = vunpack.c.h.b16 %v9271
        %v10524 = vunpack.c.l.b16 %v9272
        %v10525 = vunpack.c.h.b16 %v9272
        %v10526 = vunpack.c.l.b16 %v9273
        %v10527 = vunpack.c.h.b16 %v9273
        %v10528 = vunpack.c.l.b16 %v9274
        %v10529 = vunpack.c.h.b16 %v9274
        %v10530 = vunpack.c.l.b16 %v9275
        %v10531 = vunpack.c.h.b16 %v9275
        %v10532 = vunpack.c.l.b16 %v9276
        %v10533 = vunpack.c.h.b16 %v9276
        %v10534 = vunpack.c.l.b16 %v9277
        %v10535 = vunpack.c.h.b16 %v9277
        %v10536 = vunpack.c.l.b16 %v9278
        %v10537 = vunpack.c.h.b16 %v9278
        %v10538 = vunpack.c.l.b16 %v9279
        %v10539 = vunpack.c.h.b16 %v9279
        %v10540 = vunpack.c.l.b16 %v9280
        %v10541 = vunpack.c.h.b16 %v9280
        %v10542 = vunpack.c.l.b16 %v9281
        %v10543 = vunpack.c.h.b16 %v9281
        %v10544 = vunpack.c.l.b16 %v9282
        %v10545 = vunpack.c.h.b16 %v9282
        %v10546 = vunpack.c.l.b16 %v9283
        %v10547 = vunpack.c.h.b16 %v9283
        %v10548 = vunpack.c.l.b16 %v9284
        %v10549 = vunpack.c.h.b16 %v9284
        %v10550 = vunpack.c.l.b16 %v9285
        %v10551 = vunpack.c.h.b16 %v9285
        %v10552 = vunpack.c.l.b16 %v9286
        %v10553 = vunpack.c.h.b16 %v9286
        %v10554 = vunpack.c.l.b16 %v9287
        %v10555 = vunpack.c.h.b16 %v9287
        %v10556 = vunpack.c.l.b16 %v9288
        %v10557 = vunpack.c.h.b16 %v9288
        %v10558 = vunpack.c.l.b16 %v9289
        %v10559 = vunpack.c.h.b16 %v9289
        %v10560 = vunpack.c.l.b16 %v9290
        %v10561 = vunpack.c.h.b16 %v9290
        %v10562 = vunpack.c.l.b16 %v9291
        %v10563 = vunpack.c.h.b16 %v9291
        %v10564 = vunpack.c.l.b16 %v9292
        %v10565 = vunpack.c.h.b16 %v9292
        %v10566 = vunpack.c.l.b16 %v9293
        %v10567 = vunpack.c.h.b16 %v9293
        %v10568 = vunpack.c.l.b16 %v9294
        %v10569 = vunpack.c.h.b16 %v9294
        %v10570 = vunpack.c.l.b16 %v9295
        %v10571 = vunpack.c.h.b16 %v9295
        %v10572 = vunpack.c.l.b16 %v9296
        %v10573 = vunpack.c.h.b16 %v9296
        %v10574 = vunpack.c.l.b16 %v9297
        %v10575 = vunpack.c.h.b16 %v9297
        %v10576 = vunpack.c.l.b16 %v9298
        %v10577 = vunpack.c.h.b16 %v9298
        %v10578 = vunpack.c.l.b16 %v9299
        %v10579 = vunpack.c.h.b16 %v9299
        %v10580 = vunpack.c.l.b16 %v9300
        %v10581 = vunpack.c.h.b16 %v9300
        %v10582 = vunpack.c.l.b16 %v9301
        %v10583 = vunpack.c.h.b16 %v9301
        %v10584 = vunpack.c.l.b16 %v9302
        %v10585 = vunpack.c.h.b16 %v9302
        %v10586 = vunpack.c.l.b16 %v9303
        %v10587 = vunpack.c.h.b16 %v9303
        %v10588 = vunpack.c.l.b16 %v9304
        %v10589 = vunpack.c.h.b16 %v9304
        %v10590 = vunpack.c.l.b16 %v9305
        %v10591 = vunpack.c.h.b16 %v9305
        %v10592 = vunpack.c.l.b16 %v9306
        %v10593 = vunpack.c.h.b16 %v9306
        %v10594 = vunpack.c.l.b16 %v9307
        %v10595 = vunpack.c.h.b16 %v9307
        %v10596 = vunpack.c.l.b16 %v9308
        %v10597 = vunpack.c.h.b16 %v9308
        %v10598 = vunpack.c.l.b16 %v9309
        %v10599 = vunpack.c.h.b16 %v9309
        %v10600 = vunpack.c.l.b16 %v9310
        %v10601 = vunpack.c.h.b16 %v9310
        %v10602 = vunpack.c.l.b16 %v9311
        %v10603 = vunpack.c.h.b16 %v9311
        %v10604 = vunpack.c.l.b16 %v9312
        %v10605 = vunpack.c.h.b16 %v9312
        %v10606 = vunpack.c.l.b16 %v9313
        %v10607 = vunpack.c.h.b16 %v9313
        %v10608 = vunpack.c.l.b16 %v9314
        %v10609 = vunpack.c.h.b16 %v9314
        %v10610 = vunpack.c.l.b16 %v9315
        %v10611 = vunpack.c.h.b16 %v9315
        %v10612 = vunpack.c.l.b16 %v9316
        %v10613 = vunpack.c.h.b16 %v9316
        %v10614 = vunpack.c.l.b16 %v9317
        %v10615 = vunpack.c.h.b16 %v9317
        %v10616 = vunpack.c.l.b16 %v9318
        %v10617 = vunpack.c.h.b16 %v9318
        %v10618 = vunpack.c.l.b16 %v9319
        %v10619 = vunpack.c.h.b16 %v9319
        %v10620 = vunpack.c.l.b16 %v9320
        %v10621 = vunpack.c.h.b16 %v9320
        %v10622 = vunpack.c.l.b16 %v9321
        %v10623 = vunpack.c.h.b16 %v9321
        %v10624 = vunpack.c.l.b16 %v9322
        %v10625 = vunpack.c.h.b16 %v9322
        %v10626 = vunpack.c.l.b16 %v9323
        %v10627 = vunpack.c.h.b16 %v9323
        %v10628 = vunpack.c.l.b16 %v9324
        %v10629 = vunpack.c.h.b16 %v9324
        %v10630 = vunpack.c.l.b16 %v9325
        %v10631 = vunpack.c.h.b16 %v9325
        %v10632 = vunpack.c.l.b16 %v9326
        %v10633 = vunpack.c.h.b16 %v9326
        %v10634 = vunpack.c.l.b16 %v9327
        %v10635 = vunpack.c.h.b16 %v9327
        %v10636 = vunpack.c.l.b16 %v9328
        %v10637 = vunpack.c.h.b16 %v9328
        %v10638 = vunpack.c.l.b16 %v9329
        %v10639 = vunpack.c.h.b16 %v9329
        %v10640 = vunpack.c.l.b16 %v9330
        %v10641 = vunpack.c.h.b16 %v9330
        %v10642 = vunpack.c.l.b16 %v9331
        %v10643 = vunpack.c.h.b16 %v9331
        %v10644 = vunpack.c.l.b16 %v9332
        %v10645 = vunpack.c.h.b16 %v9332
        %v10646 = vunpack.c.l.b16 %v9333
        %v10647 = vunpack.c.h.b16 %v9333
        %v10648 = vunpack.c.l.b16 %v9334
        %v10649 = vunpack.c.h.b16 %v9334
        %v10650 = vunpack.c.l.b16 %v9335
        %v10651 = vunpack.c.h.b16 %v9335
        %v10652 = vunpack.c.l.b16 %v9336
        %v10653 = vunpack.c.h.b16 %v9336
        %v10654 = vunpack.c.l.b16 %v9337
        %v10655 = vunpack.c.h.b16 %v9337
        %v10656 = vunpack.c.l.b16 %v9338
        %v10657 = vunpack.c.h.b16 %v9338
        %v10658 = vunpack.c.l.b16 %v9339
        %v10659 = vunpack.c.h.b16 %v9339
        %v10660 = vunpack.c.l.b16 %v9340
        %v10661 = vunpack.c.h.b16 %v9340
        %v10662 = vunpack.c.l.b16 %v9341
        %v10663 = vunpack.c.h.b16 %v9341
        %v10664 = vunpack.c.l.b16 %v9342
        %v10665 = vunpack.c.h.b16 %v9342
        %v10666 = vunpack.c.l.b16 %v9343
        %v10667 = vunpack.c.h.b16 %v9343
        %v10668 = vunpack.c.l.b16 %v9344
        %v10669 = vunpack.c.h.b16 %v9344
        %v10670 = vunpack.c.l.b16 %v9345
        %v10671 = vunpack.c.h.b16 %v9345
        %v10672 = vunpack.c.l.b16 %v9346
        %v10673 = vunpack.c.h.b16 %v9346
        %v10674 = vunpack.c.l.b16 %v9347
        %v10675 = vunpack.c.h.b16 %v9347
        %v10676 = vunpack.c.l.b16 %v9348
        %v10677 = vunpack.c.h.b16 %v9348
        %v10678 = vunpack.c.l.b16 %v9349
        %v10679 = vunpack.c.h.b16 %v9349
        %v10680 = vunpack.c.l.b16 %v9350
        %v10681 = vunpack.c.h.b16 %v9350
        %v10682 = vunpack.c.l.b16 %v9351
        %v10683 = vunpack.c.h.b16 %v9351
        %v10684 = vunpack.c.l.b16 %v9352
        %v10685 = vunpack.c.h.b16 %v9352
        %v10686 = vunpack.c.l.b16 %v9353
        %v10687 = vunpack.c.h.b16 %v9353
        %v10688 = vunpack.c.l.b16 %v9354
        %v10689 = vunpack.c.h.b16 %v9354
        %v10690 = vunpack.c.l.b16 %v9355
        %v10691 = vunpack.c.h.b16 %v9355
        %v10692 = vunpack.c.l.b16 %v9356
        %v10693 = vunpack.c.h.b16 %v9356
        %v10694 = vunpack.c.l.b16 %v9357
        %v10695 = vunpack.c.h.b16 %v9357
        %v10696 = vunpack.c.l.b16 %v9358
        %v10697 = vunpack.c.h.b16 %v9358
        %v10698 = vunpack.c.l.b16 %v9359
        %v10699 = vunpack.c.h.b16 %v9359
        %v10700 = vunpack.c.l.b16 %v9360
        %v10701 = vunpack.c.h.b16 %v9360
        %v10702 = vunpack.c.l.b16 %v9361
        %v10703 = vunpack.c.h.b16 %v9361
        %v10704 = vunpack.c.l.b16 %v9362
        %v10705 = vunpack.c.h.b16 %v9362
        %v10706 = vunpack.c.l.b16 %v9363
        %v10707 = vunpack.c.h.b16 %v9363
        %v10708 = vunpack.c.l.b16 %v9364
        %v10709 = vunpack.c.h.b16 %v9364
        %v10710 = vunpack.c.l.b16 %v9365
        %v10711 = vunpack.c.h.b16 %v9365
        %v10712 = vunpack.c.l.b16 %v9366
        %v10713 = vunpack.c.h.b16 %v9366
        %v10714 = vunpack.c.l.b16 %v9367
        %v10715 = vunpack.c.h.b16 %v9367
        %v10716 = vunpack.c.l.b16 %v9368
        %v10717 = vunpack.c.h.b16 %v9368
        %v10718 = vunpack.c.l.b16 %v9369
        %v10719 = vunpack.c.h.b16 %v9369
        %v10720 = vunpack.c.l.b16 %v9370
        %v10721 = vunpack.c.h.b16 %v9370
        %v10722 = vunpack.c.l.b16 %v9371
        %v10723 = vunpack.c.h.b16 %v9371
        %v10724 = vunpack.c.l.b16 %v9372
        %v10725 = vunpack.c.h.b16 %v9372
        %v10726 = vunpack.c.l.b16 %v9373
        %v10727 = vunpack.c.h.b16 %v9373
        %v10728 = vunpack.c.l.b16 %v9374
        %v10729 = vunpack.c.h.b16 %v9374
        %v10730 = vunpack.c.l.b16 %v9375
        %v10731 = vunpack.c.h.b16 %v9375
        %v10732 = vunpack.c.l.b16 %v9376
        %v10733 = vunpack.c.h.b16 %v9376
        %v10734 = vunpack.c.l.b16 %v9377
        %v10735 = vunpack.c.h.b16 %v9377
        %v10736 = vunpack.c.l.b16 %v9378
        %v10737 = vunpack.c.h.b16 %v9378
        %v10738 = vunpack.c.l.b16 %v9379
        %v10739 = vunpack.c.h.b16 %v9379
        %v10740 = vunpack.c.l.b16 %v9380
        %v10741 = vunpack.c.h.b16 %v9380
        %v10742 = vunpack.c.l.b16 %v9381
        %v10743 = vunpack.c.h.b16 %v9381
        %v10744 = vunpack.c.l.b16 %v9382
        %v10745 = vunpack.c.h.b16 %v9382
        %v10746 = vunpack.c.l.b16 %v9383
        %v10747 = vunpack.c.h.b16 %v9383
        %v10748 = vunpack.c.l.b16 %v9384
        %v10749 = vunpack.c.h.b16 %v9384
        %v10750 = vunpack.c.l.b16 %v9385
        %v10751 = vunpack.c.h.b16 %v9385
        %v10752 = vunpack.c.l.b16 %v9386
        %v10753 = vunpack.c.h.b16 %v9386
        %v10754 = vunpack.c.l.b16 %v9387
        %v10755 = vunpack.c.h.b16 %v9387
        %v10756 = vunpack.c.l.b16 %v9388
        %v10757 = vunpack.c.h.b16 %v9388
        %v10758 = vunpack.c.l.b16 %v9389
        %v10759 = vunpack.c.h.b16 %v9389
        %v10760 = vunpack.c.l.b16 %v9390
        %v10761 = vunpack.c.h.b16 %v9390
        %v10762 = vunpack.c.l.b16 %v9391
        %v10763 = vunpack.c.h.b16 %v9391
        %v10764 = vunpack.c.l.b16 %v9392
        %v10765 = vunpack.c.h.b16 %v9392
        %v10766 = vunpack.c.l.b16 %v9393
        %v10767 = vunpack.c.h.b16 %v9393
        %v10768 = vunpack.c.l.b16 %v9394
        %v10769 = vunpack.c.h.b16 %v9394
        %v10770 = vunpack.c.l.b16 %v9395
        %v10771 = vunpack.c.h.b16 %v9395
        %v10772 = vunpack.c.l.b16 %v9396
        %v10773 = vunpack.c.h.b16 %v9396
        %v10774 = vunpack.c.l.b16 %v9397
        %v10775 = vunpack.c.h.b16 %v9397
        %v10776 = vunpack.c.l.b16 %v9398
        %v10777 = vunpack.c.h.b16 %v9398
        %v10778 = vunpack.c.l.b16 %v9399
        %v10779 = vunpack.c.h.b16 %v9399
        %v10780 = vunpack.c.l.b16 %v9400
        %v10781 = vunpack.c.h.b16 %v9400
        %v10782 = vunpack.c.l.b16 %v9401
        %v10783 = vunpack.c.h.b16 %v9401
        %v10784 = vunpack.c.l.b16 %v9402
        %v10785 = vunpack.c.h.b16 %v9402
        %v10786 = vunpack.c.l.b16 %v9403
        %v10787 = vunpack.c.h.b16 %v9403
        %v10788 = vunpack.c.l.b16 %v9404
        %v10789 = vunpack.c.h.b16 %v9404
        %v10790 = vunpack.c.l.b16 %v9405
        %v10791 = vunpack.c.h.b16 %v9405
        %v10792 = vunpack.c.l.b16 %v9406
        %v10793 = vunpack.c.h.b16 %v9406
        %v10794 = vunpack.c.l.b16 %v9407
        %v10795 = vunpack.c.h.b16 %v9407
        %v10796 = vunpack.c.l.b16 %v9408
        %v10797 = vunpack.c.h.b16 %v9408
        %v10798 = vunpack.c.l.b16 %v9409
        %v10799 = vunpack.c.h.b16 %v9409
        %v10800 = vunpack.c.l.b16 %v9410
        %v10801 = vunpack.c.h.b16 %v9410
        %v10802 = vunpack.c.l.b16 %v9411
        %v10803 = vunpack.c.h.b16 %v9411
        %v10804 = vunpack.c.l.b16 %v9412
        %v10805 = vunpack.c.h.b16 %v9412
        %v10806 = vunpack.c.l.b16 %v9413
        %v10807 = vunpack.c.h.b16 %v9413
        %v10808 = vunpack.c.l.b16 %v9414
        %v10809 = vunpack.c.h.b16 %v9414
        %v10810 = vunpack.c.l.b16 %v9415
        %v10811 = vunpack.c.h.b16 %v9415
        %v10812 = vunpack.c.l.b16 %v9416
        %v10813 = vunpack.c.h.b16 %v9416
        %v10814 = vunpack.c.l.b16 %v9417
        %v10815 = vunpack.c.h.b16 %v9417
        %v10816 = vunpack.c.l.b16 %v9418
        %v10817 = vunpack.c.h.b16 %v9418
        %v10818 = vunpack.c.l.b16 %v9419
        %v10819 = vunpack.c.h.b16 %v9419
        %v10820 = vunpack.c.l.b16 %v9420
        %v10821 = vunpack.c.h.b16 %v9420
        %v10822 = vunpack.c.l.b16 %v9421
        %v10823 = vunpack.c.h.b16 %v9421
        %v10824 = vunpack.c.l.b16 %v9422
        %v10825 = vunpack.c.h.b16 %v9422
        %v10826 = vunpack.c.l.b16 %v9423
        %v10827 = vunpack.c.h.b16 %v9423
        %v10828 = vunpack.c.l.b16 %v9424
        %v10829 = vunpack.c.h.b16 %v9424
        %v10830 = vunpack.c.l.b16 %v9425
        %v10831 = vunpack.c.h.b16 %v9425
        %v10832 = vunpack.c.l.b16 %v9426
        %v10833 = vunpack.c.h.b16 %v9426
        %v10834 = vunpack.c.l.b16 %v9427
        %v10835 = vunpack.c.h.b16 %v9427
        %v10836 = vunpack.c.l.b16 %v9428
        %v10837 = vunpack.c.h.b16 %v9428
        %v10838 = vunpack.c.l.b16 %v9429
        %v10839 = vunpack.c.h.b16 %v9429
        %v10840 = vunpack.c.l.b16 %v9430
        %v10841 = vunpack.c.h.b16 %v9430
        %v10842 = vunpack.c.l.b16 %v9431
        %v10843 = vunpack.c.h.b16 %v9431
        %v10844 = vunpack.c.l.b16 %v9432
        %v10845 = vunpack.c.h.b16 %v9432
        %v10846 = vunpack.c.l.b16 %v9433
        %v10847 = vunpack.c.h.b16 %v9433
        %v10848 = vunpack.c.l.b16 %v9434
        %v10849 = vunpack.c.h.b16 %v9434
        %v10850 = vunpack.c.l.b16 %v9435
        %v10851 = vunpack.c.h.b16 %v9435
        %v10852 = vunpack.c.l.b16 %v9436
        %v10853 = vunpack.c.h.b16 %v9436
        %v10854 = vunpack.c.l.b16 %v9437
        %v10855 = vunpack.c.h.b16 %v9437
        %v10856 = vunpack.c.l.b16 %v9438
        %v10857 = vunpack.c.h.b16 %v9438
        %v10858 = vunpack.c.l.b16 %v9439
        %v10859 = vunpack.c.h.b16 %v9439
        %v10860 = vunpack.c.l.b16 %v9440
        %v10861 = vunpack.c.h.b16 %v9440
        %v10862 = vunpack.c.l.b16 %v9441
        %v10863 = vunpack.c.h.b16 %v9441
        %v10864 = vunpack.c.l.b16 %v9442
        %v10865 = vunpack.c.h.b16 %v9442
        %v10866 = vunpack.c.l.b16 %v9443
        %v10867 = vunpack.c.h.b16 %v9443
        %v10868 = vunpack.c.l.b16 %v9444
        %v10869 = vunpack.c.h.b16 %v9444
        %v10870 = vunpack.c.l.b16 %v9445
        %v10871 = vunpack.c.h.b16 %v9445
        %v10872 = vunpack.c.l.b16 %v9446
        %v10873 = vunpack.c.h.b16 %v9446
        %v10874 = vunpack.c.l.b16 %v9447
        %v10875 = vunpack.c.h.b16 %v9447
        %v10876 = vunpack.c.l.b16 %v9448
        %v10877 = vunpack.c.h.b16 %v9448
        %v10878 = vunpack.c.l.b16 %v9449
        %v10879 = vunpack.c.h.b16 %v9449
        %v10880 = vunpack.c.l.b16 %v9450
        %v10881 = vunpack.c.h.b16 %v9450
        %v10882 = vunpack.c.l.b16 %v9451
        %v10883 = vunpack.c.h.b16 %v9451
        %v10884 = vunpack.c.l.b16 %v9452
        %v10885 = vunpack.c.h.b16 %v9452
        %v10886 = vunpack.c.l.b16 %v9453
        %v10887 = vunpack.c.h.b16 %v9453
        %v10888 = vunpack.c.l.b16 %v9454
        %v10889 = vunpack.c.h.b16 %v9454
        %v10890 = vunpack.c.l.b16 %v9455
        %v10891 = vunpack.c.h.b16 %v9455
        %v10892 = vunpack.c.l.b16 %v9456
        %v10893 = vunpack.c.h.b16 %v9456
        %v10894 = vunpack.c.l.b16 %v9457
        %v10895 = vunpack.c.h.b16 %v9457
        %v10896 = vunpack.c.l.b16 %v9458
        %v10897 = vunpack.c.h.b16 %v9458
        %v10898 = vunpack.c.l.b16 %v9459
        %v10899 = vunpack.c.h.b16 %v9459
        %v10900 = vunpack.c.l.b16 %v9460
        %v10901 = vunpack.c.h.b16 %v9460
        %v10902 = vunpack.c.l.b16 %v9461
        %v10903 = vunpack.c.h.b16 %v9461
        %v10904 = vunpack.c.l.b16 %v9462
        %v10905 = vunpack.c.h.b16 %v9462
        %v10906 = vunpack.c.l.b16 %v9463
        %v10907 = vunpack.c.h.b16 %v9463
        %v10908 = vunpack.c.l.b16 %v9464
        %v10909 = vunpack.c.h.b16 %v9464
        %v10910 = vunpack.c.l.b16 %v9465
        %v10911 = vunpack.c.h.b16 %v9465
        %v10912 = vunpack.c.l.b16 %v9466
        %v10913 = vunpack.c.h.b16 %v9466
        %v10914 = vunpack.c.l.b16 %v9467
        %v10915 = vunpack.c.h.b16 %v9467
        %v10916 = vunpack.c.l.b16 %v9468
        %v10917 = vunpack.c.h.b16 %v9468
        %v10918 = vunpack.c.l.b16 %v9469
        %v10919 = vunpack.c.h.b16 %v9469
        %v10920 = vunpack.c.l.b16 %v9470
        %v10921 = vunpack.c.h.b16 %v9470
        %v10922 = vunpack.c.l.b16 %v9471
        %v10923 = vunpack.c.h.b16 %v9471
        %v10924 = vunpack.c.l.b16 %v9472
        %v10925 = vunpack.c.h.b16 %v9472
        %v10926 = vunpack.c.l.b16 %v9473
        %v10927 = vunpack.c.h.b16 %v9473
        %v10928 = vunpack.c.l.b16 %v9474
        %v10929 = vunpack.c.h.b16 %v9474
        %v10930 = vunpack.c.l.b16 %v9475
        %v10931 = vunpack.c.h.b16 %v9475
        %v10932 = vunpack.c.l.b16 %v9476
        %v10933 = vunpack.c.h.b16 %v9476
        %v10934 = vunpack.c.l.b16 %v9477
        %v10935 = vunpack.c.h.b16 %v9477
        %v10936 = vunpack.c.l.b16 %v9478
        %v10937 = vunpack.c.h.b16 %v9478
        %v10938 = vunpack.c.l.b16 %v9479
        %v10939 = vunpack.c.h.b16 %v9479
        %v10940 = vunpack.c.l.b16 %v9480
        %v10941 = vunpack.c.h.b16 %v9480
        %v10942 = vunpack.c.l.b16 %v9481
        %v10943 = vunpack.c.h.b16 %v9481
        %v10944 = vunpack.c.l.b16 %v9482
        %v10945 = vunpack.c.h.b16 %v9482
        %v10946 = vunpack.c.l.b16 %v9483
        %v10947 = vunpack.c.h.b16 %v9483
        %v10948 = vunpack.c.l.b16 %v9484
        %v10949 = vunpack.c.h.b16 %v9484
        %v10950 = vunpack.c.l.b16 %v9485
        %v10951 = vunpack.c.h.b16 %v9485
        %v10952 = vunpack.c.l.b16 %v9486
        %v10953 = vunpack.c.h.b16 %v9486
        %v10954 = vunpack.c.l.b16 %v9487
        %v10955 = vunpack.c.h.b16 %v9487
        %v10956 = vunpack.c.l.b16 %v9488
        %v10957 = vunpack.c.h.b16 %v9488
        %v10958 = vunpack.c.l.b16 %v9489
        %v10959 = vunpack.c.h.b16 %v9489
        %v10960 = vunpack.c.l.b16 %v9490
        %v10961 = vunpack.c.h.b16 %v9490
        %v10962 = vunpack.c.l.b16 %v9491
        %v10963 = vunpack.c.h.b16 %v9491
        %v10964 = vunpack.c.l.b16 %v9492
        %v10965 = vunpack.c.h.b16 %v9492
        %v10966 = vunpack.c.l.b16 %v9493
        %v10967 = vunpack.c.h.b16 %v9493
        %v10968 = vunpack.c.l.b16 %v9494
        %v10969 = vunpack.c.h.b16 %v9494
        %v10970 = vunpack.c.l.b16 %v9495
        %v10971 = vunpack.c.h.b16 %v9495
        %v10972 = vunpack.c.l.b16 %v9496
        %v10973 = vunpack.c.h.b16 %v9496
        %v10974 = vunpack.c.l.b16 %v9497
        %v10975 = vunpack.c.h.b16 %v9497
        %v10976 = vunpack.c.l.b16 %v9498
        %v10977 = vunpack.c.h.b16 %v9498
        %v10978 = vunpack.c.l.b16 %v9499
        %v10979 = vunpack.c.h.b16 %v9499
        %v10980 = vunpack.c.l.b16 %v9500
        %v10981 = vunpack.c.h.b16 %v9500
        %v10982 = vunpack.c.l.b16 %v9501
        %v10983 = vunpack.c.h.b16 %v9501
        %v10984 = vunpack.c.l.b16 %v9502
        %v10985 = vunpack.c.h.b16 %v9502
        %v10986 = vunpack.c.l.b16 %v9503
        %v10987 = vunpack.c.h.b16 %v9503
        %v10988 = vunpack.c.l.b16 %v9504
        %v10989 = vunpack.c.h.b16 %v9504
        %v10990 = vunpack.c.l.b16 %v9505
        %v10991 = vunpack.c.h.b16 %v9505
        %v10992 = vunpack.c.l.b16 %v9506
        %v10993 = vunpack.c.h.b16 %v9506
        %v10994 = vunpack.c.l.b16 %v9507
        %v10995 = vunpack.c.h.b16 %v9507
        %v10996 = vunpack.c.l.b16 %v9508
        %v10997 = vunpack.c.h.b16 %v9508
        %v10998 = vunpack.c.l.b16 %v9509
        %v10999 = vunpack.c.h.b16 %v9509
        %v11000 = vunpack.c.l.b16 %v9510
        %v11001 = vunpack.c.h.b16 %v9510
        %v11002 = vunpack.c.l.b16 %v9511
        %v11003 = vunpack.c.h.b16 %v9511
        %v11004 = vunpack.c.l.b16 %v9512
        %v11005 = vunpack.c.h.b16 %v9512
        %v11006 = vunpack.c.l.b16 %v9513
        %v11007 = vunpack.c.h.b16 %v9513
        %v11008 = vunpack.c.l.b16 %v9514
        %v11009 = vunpack.c.h.b16 %v9514
        %v11010 = vunpack.c.l.b16 %v9515
        %v11011 = vunpack.c.h.b16 %v9515
        %v11012 = vunpack.c.l.b16 %v9516
        %v11013 = vunpack.c.h.b16 %v9516
        %v11014 = vunpack.c.l.b16 %v9517
        %v11015 = vunpack.c.h.b16 %v9517
        %v11016 = vunpack.c.l.b16 %v9518
        %v11017 = vunpack.c.h.b16 %v9518
        %v11018 = vunpack.c.l.b16 %v9519
        %v11019 = vunpack.c.h.b16 %v9519
        %v11020 = vunpack.c.l.b16 %v9520
        %v11021 = vunpack.c.h.b16 %v9520
        %v11022 = vunpack.c.l.b16 %v9521
        %v11023 = vunpack.c.h.b16 %v9521
        %v11024 = vunpack.c.l.b16 %v9522
        %v11025 = vunpack.c.h.b16 %v9522
        %v11026 = vunpack.c.l.b16 %v9523
        %v11027 = vunpack.c.h.b16 %v9523
        %v11028 = vunpack.c.l.b16 %v9524
        %v11029 = vunpack.c.h.b16 %v9524
        %v11030 = vunpack.c.l.b16 %v9525
        %v11031 = vunpack.c.h.b16 %v9525
        %v11032 = vunpack.c.l.b16 %v9526
        %v11033 = vunpack.c.h.b16 %v9526
        %v11034 = vunpack.c.l.b16 %v9527
        %v11035 = vunpack.c.h.b16 %v9527
        %v11036 = vunpack.c.l.b16 %v9528
        %v11037 = vunpack.c.h.b16 %v9528
        %v11038 = vunpack.c.l.b16 %v9529
        %v11039 = vunpack.c.h.b16 %v9529
        %v11040 = vunpack.c.l.b16 %v9530
        %v11041 = vunpack.c.h.b16 %v9530
        %v11042 = vunpack.c.l.b16 %v9531
        %v11043 = vunpack.c.h.b16 %v9531
        %v11044 = vunpack.c.l.b16 %v9532
        %v11045 = vunpack.c.h.b16 %v9532
        %v11046 = vunpack.c.l.b16 %v9533
        %v11047 = vunpack.c.h.b16 %v9533
        %v11048 = vunpack.c.l.b16 %v9534
        %v11049 = vunpack.c.h.b16 %v9534
        %v11050 = vunpack.c.l.b16 %v9535
        %v11051 = vunpack.c.h.b16 %v9535
        %v11052 = vunpack.c.l.b16 %v9536
        %v11053 = vunpack.c.h.b16 %v9536
        %v11054 = vunpack.c.l.b16 %v9537
        %v11055 = vunpack.c.h.b16 %v9537
        %v11056 = vunpack.c.l.b16 %v9538
        %v11057 = vunpack.c.h.b16 %v9538
        %v11058 = vunpack.c.l.b16 %v9539
        %v11059 = vunpack.c.h.b16 %v9539
        %v11060 = vunpack.c.l.b16 %v9540
        %v11061 = vunpack.c.h.b16 %v9540
        %v11062 = vunpack.c.l.b16 %v9541
        %v11063 = vunpack.c.h.b16 %v9541
        %v11064 = vunpack.c.l.b16 %v9542
        %v11065 = vunpack.c.h.b16 %v9542
        %v11066 = vunpack.c.l.b16 %v9543
        %v11067 = vunpack.c.h.b16 %v9543
        %v11068 = vunpack.c.l.b16 %v9544
        %v11069 = vunpack.c.h.b16 %v9544
        %v11070 = vunpack.c.l.b16 %v9545
        %v11071 = vunpack.c.h.b16 %v9545
        %v11072 = vunpack.c.l.b16 %v9546
        %v11073 = vunpack.c.h.b16 %v9546
        %v11074 = vunpack.c.l.b16 %v9547
        %v11075 = vunpack.c.h.b16 %v9547
        %v11076 = vunpack.c.l.b16 %v9548
        %v11077 = vunpack.c.h.b16 %v9548
        %v11078 = vunpack.c.l.b16 %v9549
        %v11079 = vunpack.c.h.b16 %v9549
        %v11080 = vunpack.c.l.b16 %v9550
        %v11081 = vunpack.c.h.b16 %v9550
        %v11082 = vunpack.c.l.b16 %v9551
        %v11083 = vunpack.c.h.b16 %v9551
        %v11084 = vunpack.c.l.b16 %v9552
        %v11085 = vunpack.c.h.b16 %v9552
        %v11086 = vunpack.c.l.b16 %v9553
        %v11087 = vunpack.c.h.b16 %v9553
        %v11088 = vunpack.c.l.b16 %v9554
        %v11089 = vunpack.c.h.b16 %v9554
        %v11090 = vunpack.c.l.b16 %v9555
        %v11091 = vunpack.c.h.b16 %v9555
        %v11092 = vunpack.c.l.b16 %v9556
        %v11093 = vunpack.c.h.b16 %v9556
        %v11094 = vunpack.c.l.b16 %v9557
        %v11095 = vunpack.c.h.b16 %v9557
        %v11096 = vunpack.c.l.b16 %v9558
        %v11097 = vunpack.c.h.b16 %v9558
        %v11098 = vunpack.c.l.b16 %v9559
        %v11099 = vunpack.c.h.b16 %v9559
        %v11100 = vunpack.c.l.b16 %v9560
        %v11101 = vunpack.c.h.b16 %v9560
        %v11102 = vunpack.c.l.b16 %v9561
        %v11103 = vunpack.c.h.b16 %v9561
        %v11104 = vunpack.c.l.b16 %v9562
        %v11105 = vunpack.c.h.b16 %v9562
        %v11106 = vunpack.c.l.b16 %v9563
        %v11107 = vunpack.c.h.b16 %v9563
        %v11108 = vunpack.c.l.b16 %v9564
        %v11109 = vunpack.c.h.b16 %v9564
        %v11110 = vunpack.c.l.b16 %v9565
        %v11111 = vunpack.c.h.b16 %v9565
        %v11112 = vunpack.c.l.b16 %v9566
        %v11113 = vunpack.c.h.b16 %v9566
        %v11114 = vunpack.c.l.b16 %v9567
        %v11115 = vunpack.c.h.b16 %v9567
        %v11116 = vunpack.c.l.b16 %v9568
        %v11117 = vunpack.c.h.b16 %v9568
        %v11118 = vunpack.c.l.b16 %v9569
        %v11119 = vunpack.c.h.b16 %v9569
        %v11120 = vunpack.c.l.b16 %v9570
        %v11121 = vunpack.c.h.b16 %v9570
        %v11122 = vunpack.c.l.b16 %v9571
        %v11123 = vunpack.c.h.b16 %v9571
        %v11124 = vunpack.c.l.b16 %v9572
        %v11125 = vunpack.c.h.b16 %v9572
        %v11126 = vunpack.c.l.b16 %v9573
        %v11127 = vunpack.c.h.b16 %v9573
        %v11128 = vunpack.c.l.b16 %v9574
        %v11129 = vunpack.c.h.b16 %v9574
        %v11130 = vunpack.c.l.b16 %v9575
        %v11131 = vunpack.c.h.b16 %v9575
        %v11132 = vunpack.c.l.b16 %v9576
        %v11133 = vunpack.c.h.b16 %v9576
        %v11134 = vunpack.c.l.b16 %v9577
        %v11135 = vunpack.c.h.b16 %v9577
        %v11136 = vunpack.c.l.b16 %v9578
        %v11137 = vunpack.c.h.b16 %v9578
        %v11138 = vunpack.c.l.b16 %v9579
        %v11139 = vunpack.c.h.b16 %v9579
        %v11140 = vunpack.c.l.b16 %v9580
        %v11141 = vunpack.c.h.b16 %v9580
        %v11142 = vunpack.c.l.b16 %v9581
        %v11143 = vunpack.c.h.b16 %v9581
        %v11144 = vunpack.c.l.b16 %v9582
        %v11145 = vunpack.c.h.b16 %v9582
        %v11146 = vunpack.c.l.b16 %v9583
        %v11147 = vunpack.c.h.b16 %v9583
        %v11148 = vunpack.c.l.b16 %v9584
        %v11149 = vunpack.c.h.b16 %v9584
        %v11150 = vunpack.c.l.b16 %v9585
        %v11151 = vunpack.c.h.b16 %v9585
        %v11152 = vunpack.c.l.b16 %v9586
        %v11153 = vunpack.c.h.b16 %v9586
        %v11154 = vunpack.c.l.b16 %v9587
        %v11155 = vunpack.c.h.b16 %v9587
        %v11156 = vunpack.c.l.b16 %v9588
        %v11157 = vunpack.c.h.b16 %v9588
        %v11158 = vunpack.c.l.b16 %v9589
        %v11159 = vunpack.c.h.b16 %v9589
        %v11160 = vunpack.c.l.b16 %v9590
        %v11161 = vunpack.c.h.b16 %v9590
        %v11162 = vunpack.c.l.b16 %v9591
        %v11163 = vunpack.c.h.b16 %v9591
        %v11164 = vunpack.c.l.b16 %v9592
        %v11165 = vunpack.c.h.b16 %v9592
        %v11166 = vunpack.c.l.b16 %v9593
        %v11167 = vunpack.c.h.b16 %v9593
        %v11168 = vunpack.c.l.b16 %v9594
        %v11169 = vunpack.c.h.b16 %v9594
        %v11170 = vunpack.c.l.b16 %v9595
        %v11171 = vunpack.c.h.b16 %v9595
        %v11172 = vunpack.c.l.b16 %v9596
        %v11173 = vunpack.c.h.b16 %v9596
        %v11174 = vunpack.c.l.b16 %v9597
        %v11175 = vunpack.c.h.b16 %v9597
        %v11176 = vunpack.c.l.b16 %v9598
        %v11177 = vunpack.c.h.b16 %v9598
        %v11178 = vunpack.c.l.b16 %v9599
        %v11179 = vunpack.c.h.b16 %v9599
        %v11180 = vunpack.c.l.b16 %v9600
        %v11181 = vunpack.c.h.b16 %v9600
        %v11182 = vunpack.c.l.b16 %v9601
        %v11183 = vunpack.c.h.b16 %v9601
        %v11184 = vunpack.c.l.b16 %v9602
        %v11185 = vunpack.c.h.b16 %v9602
        %v11186 = vunpack.c.l.b16 %v9603
        %v11187 = vunpack.c.h.b16 %v9603
        %v11188 = vunpack.c.l.b16 %v9604
        %v11189 = vunpack.c.h.b16 %v9604
        %v11190 = vunpack.c.l.b16 %v9605
        %v11191 = vunpack.c.h.b16 %v9605
        %v11192 = vunpack.c.l.b16 %v9606
        %v11193 = vunpack.c.h.b16 %v9606
        %v11194 = vunpack.c.l.b16 %v9607
        %v11195 = vunpack.c.h.b16 %v9607
        %v11196 = vunpack.c.l.b16 %v9608
        %v11197 = vunpack.c.h.b16 %v9608
        %v11198 = vunpack.c.l.b16 %v9609
        %v11199 = vunpack.c.h.b16 %v9609
        %v11200 = vunpack.c.l.b16 %v9610
        %v11201 = vunpack.c.h.b16 %v9610
        %v11202 = vunpack.c.l.b16 %v9611
        %v11203 = vunpack.c.h.b16 %v9611
        %v11204 = vunpack.c.l.b16 %v9612
        %v11205 = vunpack.c.h.b16 %v9612
        %v11206 = vunpack.c.l.b16 %v9613
        %v11207 = vunpack.c.h.b16 %v9613
        %v11208 = vunpack.c.l.b16 %v9614
        %v11209 = vunpack.c.h.b16 %v9614
        %v11210 = vunpack.c.l.b16 %v9615
        %v11211 = vunpack.c.h.b16 %v9615
        %v11212 = vunpack.c.l.b16 %v9616
        %v11213 = vunpack.c.h.b16 %v9616
        %v11214 = vunpack.c.l.b16 %v9617
        %v11215 = vunpack.c.h.b16 %v9617
        %v11216 = vunpack.c.l.b16 %v9618
        %v11217 = vunpack.c.h.b16 %v9618
        %v11218 = vunpack.c.l.b16 %v9619
        %v11219 = vunpack.c.h.b16 %v9619
        %v11220 = vunpack.c.l.b16 %v9620
        %v11221 = vunpack.c.h.b16 %v9620
        %v11222 = vunpack.c.l.b16 %v9621
        %v11223 = vunpack.c.h.b16 %v9621
        %v11224 = vunpack.c.l.b16 %v9622
        %v11225 = vunpack.c.h.b16 %v9622
        %v11226 = vunpack.c.l.b16 %v9623
        %v11227 = vunpack.c.h.b16 %v9623
        %v11228 = vunpack.c.l.b16 %v9624
        %v11229 = vunpack.c.h.b16 %v9624
        %v11230 = vunpack.c.l.b16 %v9625
        %v11231 = vunpack.c.h.b16 %v9625
        %v11232 = vunpack.c.l.b16 %v9626
        %v11233 = vunpack.c.h.b16 %v9626
        %v11234 = vunpack.c.l.b16 %v9627
        %v11235 = vunpack.c.h.b16 %v9627
        %v11236 = vunpack.c.l.b16 %v9628
        %v11237 = vunpack.c.h.b16 %v9628
        %v11238 = vunpack.c.l.b16 %v9629
        %v11239 = vunpack.c.h.b16 %v9629
        %v11240 = vunpack.c.l.b16 %v9630
        %v11241 = vunpack.c.h.b16 %v9630
        %v11242 = vunpack.c.l.b16 %v9631
        %v11243 = vunpack.c.h.b16 %v9631
        %v11244 = vunpack.c.l.b16 %v9632
        %v11245 = vunpack.c.h.b16 %v9632
        %v11246 = vunpack.c.l.b16 %v9633
        %v11247 = vunpack.c.h.b16 %v9633
        %v11248 = vunpack.c.l.b16 %v9634
        %v11249 = vunpack.c.h.b16 %v9634
        %v11250 = vunpack.c.l.b16 %v9635
        %v11251 = vunpack.c.h.b16 %v9635
        %v11252 = vunpack.c.l.b16 %v9636
        %v11253 = vunpack.c.h.b16 %v9636
        %v11254 = vunpack.c.l.b16 %v9637
        %v11255 = vunpack.c.h.b16 %v9637
        %v11256 = vunpack.c.l.b16 %v9638
        %v11257 = vunpack.c.h.b16 %v9638
        %v11258 = vunpack.c.l.b16 %v9639
        %v11259 = vunpack.c.h.b16 %v9639
        %v11260 = vunpack.c.l.b16 %v9640
        %v11261 = vunpack.c.h.b16 %v9640
        %v11262 = vunpack.c.l.b16 %v9641
        %v11263 = vunpack.c.h.b16 %v9641
        %v11264 = vunpack.c.l.b16 %v9642
        %v11265 = vunpack.c.h.b16 %v9642
        %v11266 = vunpack.c.l.b16 %v9643
        %v11267 = vunpack.c.h.b16 %v9643
        %v11268 = vunpack.c.l.b16 %v9644
        %v11269 = vunpack.c.h.b16 %v9644
        %v11270 = vunpack.c.l.b16 %v9645
        %v11271 = vunpack.c.h.b16 %v9645
        %v11272 = vunpack.c.l.b16 %v9646
        %v11273 = vunpack.c.h.b16 %v9646
        %v11274 = vunpack.c.l.b16 %v9647
        %v11275 = vunpack.c.h.b16 %v9647
        %v11276 = vunpack.c.l.b16 %v9648
        %v11277 = vunpack.c.h.b16 %v9648
        %v11278 = vunpack.c.l.b16 %v9649
        %v11279 = vunpack.c.h.b16 %v9649
        %v11280 = vunpack.c.l.b16 %v9650
        %v11281 = vunpack.c.h.b16 %v9650
        %v11282 = vunpack.c.l.b16 %v9651
        %v11283 = vunpack.c.h.b16 %v9651
        %v11284 = vunpack.c.l.b16 %v9652
        %v11285 = vunpack.c.h.b16 %v9652
        %v11286 = vunpack.c.l.b16 %v9653
        %v11287 = vunpack.c.h.b16 %v9653
        %v11288 = vunpack.c.l.b16 %v9654
        %v11289 = vunpack.c.h.b16 %v9654
        %v11290 = vunpack.c.l.b16 %v9655
        %v11291 = vunpack.c.h.b16 %v9655
        %v11292 = vunpack.c.l.b16 %v9656
        %v11293 = vunpack.c.h.b16 %v9656
        %v11294 = vunpack.c.l.b16 %v9657
        %v11295 = vunpack.c.h.b16 %v9657
        %v11296 = vunpack.c.l.b16 %v9658
        %v11297 = vunpack.c.h.b16 %v9658
        %v11298 = vunpack.c.l.b16 %v9659
        %v11299 = vunpack.c.h.b16 %v9659
        %v11300 = vunpack.c.l.b16 %v9660
        %v11301 = vunpack.c.h.b16 %v9660
        %v11302 = vpack.c.b16 %v10286, %v10278
        %v11303 = vpack.c.b16 %v10287, %v10279
        %v11304 = vpack.c.b16 %v10288, %v10280
        %v11305 = vpack.c.b16 %v10289, %v10281
        %v11306 = vpack.c.b16 %v10290, %v10282
        %v11307 = vpack.c.b16 %v10291, %v10283
        %v11308 = vpack.c.b16 %v10292, %v10284
        %v11309 = vpack.c.b16 %v10293, %v10285
        %v11310 = vpack.c.b16 %v10302, %v10294
        %v11311 = vpack.c.b16 %v10303, %v10295
        %v11312 = vpack.c.b16 %v10304, %v10296
        %v11313 = vpack.c.b16 %v10305, %v10297
        %v11314 = vpack.c.b16 %v10306, %v10298
        %v11315 = vpack.c.b16 %v10307, %v10299
        %v11316 = vpack.c.b16 %v10308, %v10300
        %v11317 = vpack.c.b16 %v10309, %v10301
        %v11318 = vpack.c.b16 %v10318, %v10310
        %v11319 = vpack.c.b16 %v10319, %v10311
        %v11320 = vpack.c.b16 %v10320, %v10312
        %v11321 = vpack.c.b16 %v10321, %v10313
        %v11322 = vpack.c.b16 %v10322, %v10314
        %v11323 = vpack.c.b16 %v10323, %v10315
        %v11324 = vpack.c.b16 %v10324, %v10316
        %v11325 = vpack.c.b16 %v10325, %v10317
        %v11326 = vpack.c.b16 %v10334, %v10326
        %v11327 = vpack.c.b16 %v10335, %v10327
        %v11328 = vpack.c.b16 %v10336, %v10328
        %v11329 = vpack.c.b16 %v10337, %v10329
        %v11330 = vpack.c.b16 %v10338, %v10330
        %v11331 = vpack.c.b16 %v10339, %v10331
        %v11332 = vpack.c.b16 %v10340, %v10332
        %v11333 = vpack.c.b16 %v10341, %v10333
        %v11334 = vpack.c.b16 %v10350, %v10342
        %v11335 = vpack.c.b16 %v10351, %v10343
        %v11336 = vpack.c.b16 %v10352, %v10344
        %v11337 = vpack.c.b16 %v10353, %v10345
        %v11338 = vpack.c.b16 %v10354, %v10346
        %v11339 = vpack.c.b16 %v10355, %v10347
        %v11340 = vpack.c.b16 %v10356, %v10348
        %v11341 = vpack.c.b16 %v10357, %v10349
        %v11342 = vpack.c.b16 %v10366, %v10358
        %v11343 = vpack.c.b16 %v10367, %v10359
        %v11344 = vpack.c.b16 %v10368, %v10360
        %v11345 = vpack.c.b16 %v10369, %v10361
        %v11346 = vpack.c.b16 %v10370, %v10362
        %v11347 = vpack.c.b16 %v10371, %v10363
        %v11348 = vpack.c.b16 %v10372, %v10364
        %v11349 = vpack.c.b16 %v10373, %v10365
        %v11350 = vpack.c.b16 %v10382, %v10374
        %v11351 = vpack.c.b16 %v10383, %v10375
        %v11352 = vpack.c.b16 %v10384, %v10376
        %v11353 = vpack.c.b16 %v10385, %v10377
        %v11354 = vpack.c.b16 %v10386, %v10378
        %v11355 = vpack.c.b16 %v10387, %v10379
        %v11356 = vpack.c.b16 %v10388, %v10380
        %v11357 = vpack.c.b16 %v10389, %v10381
        %v11358 = vpack.c.b16 %v10398, %v10390
        %v11359 = vpack.c.b16 %v10399, %v10391
        %v11360 = vpack.c.b16 %v10400, %v10392
        %v11361 = vpack.c.b16 %v10401, %v10393
        %v11362 = vpack.c.b16 %v10402, %v10394
        %v11363 = vpack.c.b16 %v10403, %v10395
        %v11364 = vpack.c.b16 %v10404, %v10396
        %v11365 = vpack.c.b16 %v10405, %v10397
        %v11366 = vpack.c.b16 %v10414, %v10406
        %v11367 = vpack.c.b16 %v10415, %v10407
        %v11368 = vpack.c.b16 %v10416, %v10408
        %v11369 = vpack.c.b16 %v10417, %v10409
        %v11370 = vpack.c.b16 %v10418, %v10410
        %v11371 = vpack.c.b16 %v10419, %v10411
        %v11372 = vpack.c.b16 %v10420, %v10412
        %v11373 = vpack.c.b16 %v10421, %v10413
        %v11374 = vpack.c.b16 %v10430, %v10422
        %v11375 = vpack.c.b16 %v10431, %v10423
        %v11376 = vpack.c.b16 %v10432, %v10424
        %v11377 = vpack.c.b16 %v10433, %v10425
        %v11378 = vpack.c.b16 %v10434, %v10426
        %v11379 = vpack.c.b16 %v10435, %v10427
        %v11380 = vpack.c.b16 %v10436, %v10428
        %v11381 = vpack.c.b16 %v10437, %v10429
        %v11382 = vpack.c.b16 %v10446, %v10438
        %v11383 = vpack.c.b16 %v10447, %v10439
        %v11384 = vpack.c.b16 %v10448, %v10440
        %v11385 = vpack.c.b16 %v10449, %v10441
        %v11386 = vpack.c.b16 %v10450, %v10442
        %v11387 = vpack.c.b16 %v10451, %v10443
        %v11388 = vpack.c.b16 %v10452, %v10444
        %v11389 = vpack.c.b16 %v10453, %v10445
        %v11390 = vpack.c.b16 %v10462, %v10454
        %v11391 = vpack.c.b16 %v10463, %v10455
        %v11392 = vpack.c.b16 %v10464, %v10456
        %v11393 = vpack.c.b16 %v10465, %v10457
        %v11394 = vpack.c.b16 %v10466, %v10458
        %v11395 = vpack.c.b16 %v10467, %v10459
        %v11396 = vpack.c.b16 %v10468, %v10460
        %v11397 = vpack.c.b16 %v10469, %v10461
        %v11398 = vpack.c.b16 %v10478, %v10470
        %v11399 = vpack.c.b16 %v10479, %v10471
        %v11400 = vpack.c.b16 %v10480, %v10472
        %v11401 = vpack.c.b16 %v10481, %v10473
        %v11402 = vpack.c.b16 %v10482, %v10474
        %v11403 = vpack.c.b16 %v10483, %v10475
        %v11404 = vpack.c.b16 %v10484, %v10476
        %v11405 = vpack.c.b16 %v10485, %v10477
        %v11406 = vpack.c.b16 %v10494, %v10486
        %v11407 = vpack.c.b16 %v10495, %v10487
        %v11408 = vpack.c.b16 %v10496, %v10488
        %v11409 = vpack.c.b16 %v10497, %v10489
        %v11410 = vpack.c.b16 %v10498, %v10490
        %v11411 = vpack.c.b16 %v10499, %v10491
        %v11412 = vpack.c.b16 %v10500, %v10492
        %v11413 = vpack.c.b16 %v10501, %v10493
        %v11414 = vpack.c.b16 %v10510, %v10502
        %v11415 = vpack.c.b16 %v10511, %v10503
        %v11416 = vpack.c.b16 %v10512, %v10504
        %v11417 = vpack.c.b16 %v10513, %v10505
        %v11418 = vpack.c.b16 %v10514, %v10506
        %v11419 = vpack.c.b16 %v10515, %v10507
        %v11420 = vpack.c.b16 %v10516, %v10508
        %v11421 = vpack.c.b16 %v10517, %v10509
        %v11422 = vpack.c.b16 %v10526, %v10518
        %v11423 = vpack.c.b16 %v10527, %v10519
        %v11424 = vpack.c.b16 %v10528, %v10520
        %v11425 = vpack.c.b16 %v10529, %v10521
        %v11426 = vpack.c.b16 %v10530, %v10522
        %v11427 = vpack.c.b16 %v10531, %v10523
        %v11428 = vpack.c.b16 %v10532, %v10524
        %v11429 = vpack.c.b16 %v10533, %v10525
        %v11430 = vpack.c.b16 %v10542, %v10534
        %v11431 = vpack.c.b16 %v10543, %v10535
        %v11432 = vpack.c.b16 %v10544, %v10536
        %v11433 = vpack.c.b16 %v10545, %v10537
        %v11434 = vpack.c.b16 %v10546, %v10538
        %v11435 = vpack.c.b16 %v10547, %v10539
        %v11436 = vpack.c.b16 %v10548, %v10540
        %v11437 = vpack.c.b16 %v10549, %v10541
        %v11438 = vpack.c.b16 %v10558, %v10550
        %v11439 = vpack.c.b16 %v10559, %v10551
        %v11440 = vpack.c.b16 %v10560, %v10552
        %v11441 = vpack.c.b16 %v10561, %v10553
        %v11442 = vpack.c.b16 %v10562, %v10554
        %v11443 = vpack.c.b16 %v10563, %v10555
        %v11444 = vpack.c.b16 %v10564, %v10556
        %v11445 = vpack.c.b16 %v10565, %v10557
        %v11446 = vpack.c.b16 %v10574, %v10566
        %v11447 = vpack.c.b16 %v10575, %v10567
        %v11448 = vpack.c.b16 %v10576, %v10568
        %v11449 = vpack.c.b16 %v10577, %v10569
        %v11450 = vpack.c.b16 %v10578, %v10570
        %v11451 = vpack.c.b16 %v10579, %v10571
        %v11452 = vpack.c.b16 %v10580, %v10572
        %v11453 = vpack.c.b16 %v10581, %v10573
        %v11454 = vpack.c.b16 %v10590, %v10582
        %v11455 = vpack.c.b16 %v10591, %v10583
        %v11456 = vpack.c.b16 %v10592, %v10584
        %v11457 = vpack.c.b16 %v10593, %v10585
        %v11458 = vpack.c.b16 %v10594, %v10586
        %v11459 = vpack.c.b16 %v10595, %v10587
        %v11460 = vpack.c.b16 %v10596, %v10588
        %v11461 = vpack.c.b16 %v10597, %v10589
        %v11462 = vpack.c.b16 %v10606, %v10598
        %v11463 = vpack.c.b16 %v10607, %v10599
        %v11464 = vpack.c.b16 %v10608, %v10600
        %v11465 = vpack.c.b16 %v10609, %v10601
        %v11466 = vpack.c.b16 %v10610, %v10602
        %v11467 = vpack.c.b16 %v10611, %v10603
        %v11468 = vpack.c.b16 %v10612, %v10604
        %v11469 = vpack.c.b16 %v10613, %v10605
        %v11470 = vpack.c.b16 %v10622, %v10614
        %v11471 = vpack.c.b16 %v10623, %v10615
        %v11472 = vpack.c.b16 %v10624, %v10616
        %v11473 = vpack.c.b16 %v10625, %v10617
        %v11474 = vpack.c.b16 %v10626, %v10618
        %v11475 = vpack.c.b16 %v10627, %v10619
        %v11476 = vpack.c.b16 %v10628, %v10620
        %v11477 = vpack.c.b16 %v10629, %v10621
        %v11478 = vpack.c.b16 %v10638, %v10630
        %v11479 = vpack.c.b16 %v10639, %v10631
        %v11480 = vpack.c.b16 %v10640, %v10632
        %v11481 = vpack.c.b16 %v10641, %v10633
        %v11482 = vpack.c.b16 %v10642, %v10634
        %v11483 = vpack.c.b16 %v10643, %v10635
        %v11484 = vpack.c.b16 %v10644, %v10636
        %v11485 = vpack.c.b16 %v10645, %v10637
        %v11486 = vpack.c.b16 %v10654, %v10646
        %v11487 = vpack.c.b16 %v10655, %v10647
        %v11488 = vpack.c.b16 %v10656, %v10648
        %v11489 = vpack.c.b16 %v10657, %v10649
        %v11490 = vpack.c.b16 %v10658, %v10650
        %v11491 = vpack.c.b16 %v10659, %v10651
        %v11492 = vpack.c.b16 %v10660, %v10652
        %v11493 = vpack.c.b16 %v10661, %v10653
        %v11494 = vpack.c.b16 %v10670, %v10662
        %v11495 = vpack.c.b16 %v10671, %v10663
        %v11496 = vpack.c.b16 %v10672, %v10664
        %v11497 = vpack.c.b16 %v10673, %v10665
        %v11498 = vpack.c.b16 %v10674, %v10666
        %v11499 = vpack.c.b16 %v10675, %v10667
        %v11500 = vpack.c.b16 %v10676, %v10668
        %v11501 = vpack.c.b16 %v10677, %v10669
        %v11502 = vpack.c.b16 %v10686, %v10678
        %v11503 = vpack.c.b16 %v10687, %v10679
        %v11504 = vpack.c.b16 %v10688, %v10680
        %v11505 = vpack.c.b16 %v10689, %v10681
        %v11506 = vpack.c.b16 %v10690, %v10682
        %v11507 = vpack.c.b16 %v10691, %v10683
        %v11508 = vpack.c.b16 %v10692, %v10684
        %v11509 = vpack.c.b16 %v10693, %v10685
        %v11510 = vpack.c.b16 %v10702, %v10694
        %v11511 = vpack.c.b16 %v10703, %v10695
        %v11512 = vpack.c.b16 %v10704, %v10696
        %v11513 = vpack.c.b16 %v10705, %v10697
        %v11514 = vpack.c.b16 %v10706, %v10698
        %v11515 = vpack.c.b16 %v10707, %v10699
        %v11516 = vpack.c.b16 %v10708, %v10700
        %v11517 = vpack.c.b16 %v10709, %v10701
        %v11518 = vpack.c.b16 %v10718, %v10710
        %v11519 = vpack.c.b16 %v10719, %v10711
        %v11520 = vpack.c.b16 %v10720, %v10712
        %v11521 = vpack.c.b16 %v10721, %v10713
        %v11522 = vpack.c.b16 %v10722, %v10714
        %v11523 = vpack.c.b16 %v10723, %v10715
        %v11524 = vpack.c.b16 %v10724, %v10716
        %v11525 = vpack.c.b16 %v10725, %v10717
        %v11526 = vpack.c.b16 %v10734, %v10726
        %v11527 = vpack.c.b16 %v10735, %v10727
        %v11528 = vpack.c.b16 %v10736, %v10728
        %v11529 = vpack.c.b16 %v10737, %v10729
        %v11530 = vpack.c.b16 %v10738, %v10730
        %v11531 = vpack.c.b16 %v10739, %v10731
        %v11532 = vpack.c.b16 %v10740, %v10732
        %v11533 = vpack.c.b16 %v10741, %v10733
        %v11534 = vpack.c.b16 %v10750, %v10742
        %v11535 = vpack.c.b16 %v10751, %v10743
        %v11536 = vpack.c.b16 %v10752, %v10744
        %v11537 = vpack.c.b16 %v10753, %v10745
        %v11538 = vpack.c.b16 %v10754, %v10746
        %v11539 = vpack.c.b16 %v10755, %v10747
        %v11540 = vpack.c.b16 %v10756, %v10748
        %v11541 = vpack.c.b16 %v10757, %v10749
        %v11542 = vpack.c.b16 %v10766, %v10758
        %v11543 = vpack.c.b16 %v10767, %v10759
        %v11544 = vpack.c.b16 %v10768, %v10760
        %v11545 = vpack.c.b16 %v10769, %v10761
        %v11546 = vpack.c.b16 %v10770, %v10762
        %v11547 = vpack.c.b16 %v10771, %v10763
        %v11548 = vpack.c.b16 %v10772, %v10764
        %v11549 = vpack.c.b16 %v10773, %v10765
        %v11550 = vpack.c.b16 %v10782, %v10774
        %v11551 = vpack.c.b16 %v10783, %v10775
        %v11552 = vpack.c.b16 %v10784, %v10776
        %v11553 = vpack.c.b16 %v10785, %v10777
        %v11554 = vpack.c.b16 %v10786, %v10778
        %v11555 = vpack.c.b16 %v10787, %v10779
        %v11556 = vpack.c.b16 %v10788, %v10780
        %v11557 = vpack.c.b16 %v10789, %v10781
        %v11558 = vpack.c.b16 %v10798, %v10790
        %v11559 = vpack.c.b16 %v10799, %v10791
        %v11560 = vpack.c.b16 %v10800, %v10792
        %v11561 = vpack.c.b16 %v10801, %v10793
        %v11562 = vpack.c.b16 %v10802, %v10794
        %v11563 = vpack.c.b16 %v10803, %v10795
        %v11564 = vpack.c.b16 %v10804, %v10796
        %v11565 = vpack.c.b16 %v10805, %v10797
        %v11566 = vpack.c.b16 %v10814, %v10806
        %v11567 = vpack.c.b16 %v10815, %v10807
        %v11568 = vpack.c.b16 %v10816, %v10808
        %v11569 = vpack.c.b16 %v10817, %v10809
        %v11570 = vpack.c.b16 %v10818, %v10810
        %v11571 = vpack.c.b16 %v10819, %v10811
        %v11572 = vpack.c.b16 %v10820, %v10812
        %v11573 = vpack.c.b16 %v10821, %v10813
        %v11574 = vpack.c.b16 %v10830, %v10822
        %v11575 = vpack.c.b16 %v10831, %v10823
        %v11576 = vpack.c.b16 %v10832, %v10824
        %v11577 = vpack.c.b16 %v10833, %v10825
        %v11578 = vpack.c.b16 %v10834, %v10826
        %v11579 = vpack.c.b16 %v10835, %v10827
        %v11580 = vpack.c.b16 %v10836, %v10828
        %v11581 = vpack.c.b16 %v10837, %v10829
        %v11582 = vpack.c.b16 %v10846, %v10838
        %v11583 = vpack.c.b16 %v10847, %v10839
        %v11584 = vpack.c.b16 %v10848, %v10840
        %v11585 = vpack.c.b16 %v10849, %v10841
        %v11586 = vpack.c.b16 %v10850, %v10842
        %v11587 = vpack.c.b16 %v10851, %v10843
        %v11588 = vpack.c.b16 %v10852, %v10844
        %v11589 = vpack.c.b16 %v10853, %v10845
        %v11590 = vpack.c.b16 %v10862, %v10854
        %v11591 = vpack.c.b16 %v10863, %v10855
        %v11592 = vpack.c.b16 %v10864, %v10856
        %v11593 = vpack.c.b16 %v10865, %v10857
        %v11594 = vpack.c.b16 %v10866, %v10858
        %v11595 = vpack.c.b16 %v10867, %v10859
        %v11596 = vpack.c.b16 %v10868, %v10860
        %v11597 = vpack.c.b16 %v10869, %v10861
        %v11598 = vpack.c.b16 %v10878, %v10870
        %v11599 = vpack.c.b16 %v10879, %v10871
        %v11600 = vpack.c.b16 %v10880, %v10872
        %v11601 = vpack.c.b16 %v10881, %v10873
        %v11602 = vpack.c.b16 %v10882, %v10874
        %v11603 = vpack.c.b16 %v10883, %v10875
        %v11604 = vpack.c.b16 %v10884, %v10876
        %v11605 = vpack.c.b16 %v10885, %v10877
        %v11606 = vpack.c.b16 %v10894, %v10886
        %v11607 = vpack.c.b16 %v10895, %v10887
        %v11608 = vpack.c.b16 %v10896, %v10888
        %v11609 = vpack.c.b16 %v10897, %v10889
        %v11610 = vpack.c.b16 %v10898, %v10890
        %v11611 = vpack.c.b16 %v10899, %v10891
        %v11612 = vpack.c.b16 %v10900, %v10892
        %v11613 = vpack.c.b16 %v10901, %v10893
        %v11614 = vpack.c.b16 %v10910, %v10902
        %v11615 = vpack.c.b16 %v10911, %v10903
        %v11616 = vpack.c.b16 %v10912, %v10904
        %v11617 = vpack.c.b16 %v10913, %v10905
        %v11618 = vpack.c.b16 %v10914, %v10906
        %v11619 = vpack.c.b16 %v10915, %v10907
        %v11620 = vpack.c.b16 %v10916, %v10908
        %v11621 = vpack.c.b16 %v10917, %v10909
        %v11622 = vpack.c.b16 %v10926, %v10918
        %v11623 = vpack.c.b16 %v10927, %v10919
        %v11624 = vpack.c.b16 %v10928, %v10920
        %v11625 = vpack.c.b16 %v10929, %v10921
        %v11626 = vpack.c.b16 %v10930, %v10922
        %v11627 = vpack.c.b16 %v10931, %v10923
        %v11628 = vpack.c.b16 %v10932, %v10924
        %v11629 = vpack.c.b16 %v10933, %v10925
        %v11630 = vpack.c.b16 %v10942, %v10934
        %v11631 = vpack.c.b16 %v10943, %v10935
        %v11632 = vpack.c.b16 %v10944, %v10936
        %v11633 = vpack.c.b16 %v10945, %v10937
        %v11634 = vpack.c.b16 %v10946, %v10938
        %v11635 = vpack.c.b16 %v10947, %v10939
        %v11636 = vpack.c.b16 %v10948, %v10940
        %v11637 = vpack.c.b16 %v10949, %v10941
        %v11638 = vpack.c.b16 %v10958, %v10950
        %v11639 = vpack.c.b16 %v10959, %v10951
        %v11640 = vpack.c.b16 %v10960, %v10952
        %v11641 = vpack.c.b16 %v10961, %v10953
        %v11642 = vpack.c.b16 %v10962, %v10954
        %v11643 = vpack.c.b16 %v10963, %v10955
        %v11644 = vpack.c.b16 %v10964, %v10956
        %v11645 = vpack.c.b16 %v10965, %v10957
        %v11646 = vpack.c.b16 %v10974, %v10966
        %v11647 = vpack.c.b16 %v10975, %v10967
        %v11648 = vpack.c.b16 %v10976, %v10968
        %v11649 = vpack.c.b16 %v10977, %v10969
        %v11650 = vpack.c.b16 %v10978, %v10970
        %v11651 = vpack.c.b16 %v10979, %v10971
        %v11652 = vpack.c.b16 %v10980, %v10972
        %v11653 = vpack.c.b16 %v10981, %v10973
        %v11654 = vpack.c.b16 %v10990, %v10982
        %v11655 = vpack.c.b16 %v10991, %v10983
        %v11656 = vpack.c.b16 %v10992, %v10984
        %v11657 = vpack.c.b16 %v10993, %v10985
        %v11658 = vpack.c.b16 %v10994, %v10986
        %v11659 = vpack.c.b16 %v10995, %v10987
        %v11660 = vpack.c.b16 %v10996, %v10988
        %v11661 = vpack.c.b16 %v10997, %v10989
        %v11662 = vpack.c.b16 %v11006, %v10998
        %v11663 = vpack.c.b16 %v11007, %v10999
        %v11664 = vpack.c.b16 %v11008, %v11000
        %v11665 = vpack.c.b16 %v11009, %v11001
        %v11666 = vpack.c.b16 %v11010, %v11002
        %v11667 = vpack.c.b16 %v11011, %v11003
        %v11668 = vpack.c.b16 %v11012, %v11004
        %v11669 = vpack.c.b16 %v11013, %v11005
        %v11670 = vpack.c.b16 %v11022, %v11014
        %v11671 = vpack.c.b16 %v11023, %v11015
        %v11672 = vpack.c.b16 %v11024, %v11016
        %v11673 = vpack.c.b16 %v11025, %v11017
        %v11674 = vpack.c.b16 %v11026, %v11018
        %v11675 = vpack.c.b16 %v11027, %v11019
        %v11676 = vpack.c.b16 %v11028, %v11020
        %v11677 = vpack.c.b16 %v11029, %v11021
        %v11678 = vpack.c.b16 %v11038, %v11030
        %v11679 = vpack.c.b16 %v11039, %v11031
        %v11680 = vpack.c.b16 %v11040, %v11032
        %v11681 = vpack.c.b16 %v11041, %v11033
        %v11682 = vpack.c.b16 %v11042, %v11034
        %v11683 = vpack.c.b16 %v11043, %v11035
        %v11684 = vpack.c.b16 %v11044, %v11036
        %v11685 = vpack.c.b16 %v11045, %v11037
        %v11686 = vpack.c.b16 %v11054, %v11046
        %v11687 = vpack.c.b16 %v11055, %v11047
        %v11688 = vpack.c.b16 %v11056, %v11048
        %v11689 = vpack.c.b16 %v11057, %v11049
        %v11690 = vpack.c.b16 %v11058, %v11050
        %v11691 = vpack.c.b16 %v11059, %v11051
        %v11692 = vpack.c.b16 %v11060, %v11052
        %v11693 = vpack.c.b16 %v11061, %v11053
        %v11694 = vpack.c.b16 %v11070, %v11062
        %v11695 = vpack.c.b16 %v11071, %v11063
        %v11696 = vpack.c.b16 %v11072, %v11064
        %v11697 = vpack.c.b16 %v11073, %v11065
        %v11698 = vpack.c.b16 %v11074, %v11066
        %v11699 = vpack.c.b16 %v11075, %v11067
        %v11700 = vpack.c.b16 %v11076, %v11068
        %v11701 = vpack.c.b16 %v11077, %v11069
        %v11702 = vpack.c.b16 %v11086, %v11078
        %v11703 = vpack.c.b16 %v11087, %v11079
        %v11704 = vpack.c.b16 %v11088, %v11080
        %v11705 = vpack.c.b16 %v11089, %v11081
        %v11706 = vpack.c.b16 %v11090, %v11082
        %v11707 = vpack.c.b16 %v11091, %v11083
        %v11708 = vpack.c.b16 %v11092, %v11084
        %v11709 = vpack.c.b16 %v11093, %v11085
        %v11710 = vpack.c.b16 %v11102, %v11094
        %v11711 = vpack.c.b16 %v11103, %v11095
        %v11712 = vpack.c.b16 %v11104, %v11096
        %v11713 = vpack.c.b16 %v11105, %v11097
        %v11714 = vpack.c.b16 %v11106, %v11098
        %v11715 = vpack.c.b16 %v11107, %v11099
        %v11716 = vpack.c.b16 %v11108, %v11100
        %v11717 = vpack.c.b16 %v11109, %v11101
        %v11718 = vpack.c.b16 %v11118, %v11110
        %v11719 = vpack.c.b16 %v11119, %v11111
        %v11720 = vpack.c.b16 %v11120, %v11112
        %v11721 = vpack.c.b16 %v11121, %v11113
        %v11722 = vpack.c.b16 %v11122, %v11114
        %v11723 = vpack.c.b16 %v11123, %v11115
        %v11724 = vpack.c.b16 %v11124, %v11116
        %v11725 = vpack.c.b16 %v11125, %v11117
        %v11726 = vpack.c.b16 %v11134, %v11126
        %v11727 = vpack.c.b16 %v11135, %v11127
        %v11728 = vpack.c.b16 %v11136, %v11128
        %v11729 = vpack.c.b16 %v11137, %v11129
        %v11730 = vpack.c.b16 %v11138, %v11130
        %v11731 = vpack.c.b16 %v11139, %v11131
        %v11732 = vpack.c.b16 %v11140, %v11132
        %v11733 = vpack.c.b16 %v11141, %v11133
        %v11734 = vpack.c.b16 %v11150, %v11142
        %v11735 = vpack.c.b16 %v11151, %v11143
        %v11736 = vpack.c.b16 %v11152, %v11144
        %v11737 = vpack.c.b16 %v11153, %v11145
        %v11738 = vpack.c.b16 %v11154, %v11146
        %v11739 = vpack.c.b16 %v11155, %v11147
        %v11740 = vpack.c.b16 %v11156, %v11148
        %v11741 = vpack.c.b16 %v11157, %v11149
        %v11742 = vpack.c.b16 %v11166, %v11158
        %v11743 = vpack.c.b16 %v11167, %v11159
        %v11744 = vpack.c.b16 %v11168, %v11160
        %v11745 = vpack.c.b16 %v11169, %v11161
        %v11746 = vpack.c.b16 %v11170, %v11162
        %v11747 = vpack.c.b16 %v11171, %v11163
        %v11748 = vpack.c.b16 %v11172, %v11164
        %v11749 = vpack.c.b16 %v11173, %v11165
        %v11750 = vpack.c.b16 %v11182, %v11174
        %v11751 = vpack.c.b16 %v11183, %v11175
        %v11752 = vpack.c.b16 %v11184, %v11176
        %v11753 = vpack.c.b16 %v11185, %v11177
        %v11754 = vpack.c.b16 %v11186, %v11178
        %v11755 = vpack.c.b16 %v11187, %v11179
        %v11756 = vpack.c.b16 %v11188, %v11180
        %v11757 = vpack.c.b16 %v11189, %v11181
        %v11758 = vpack.c.b16 %v11198, %v11190
        %v11759 = vpack.c.b16 %v11199, %v11191
        %v11760 = vpack.c.b16 %v11200, %v11192
        %v11761 = vpack.c.b16 %v11201, %v11193
        %v11762 = vpack.c.b16 %v11202, %v11194
        %v11763 = vpack.c.b16 %v11203, %v11195
        %v11764 = vpack.c.b16 %v11204, %v11196
        %v11765 = vpack.c.b16 %v11205, %v11197
        %v11766 = vpack.c.b16 %v11214, %v11206
        %v11767 = vpack.c.b16 %v11215, %v11207
        %v11768 = vpack.c.b16 %v11216, %v11208
        %v11769 = vpack.c.b16 %v11217, %v11209
        %v11770 = vpack.c.b16 %v11218, %v11210
        %v11771 = vpack.c.b16 %v11219, %v11211
        %v11772 = vpack.c.b16 %v11220, %v11212
        %v11773 = vpack.c.b16 %v11221, %v11213
        %v11774 = vpack.c.b16 %v11230, %v11222
        %v11775 = vpack.c.b16 %v11231, %v11223
        %v11776 = vpack.c.b16 %v11232, %v11224
        %v11777 = vpack.c.b16 %v11233, %v11225
        %v11778 = vpack.c.b16 %v11234, %v11226
        %v11779 = vpack.c.b16 %v11235, %v11227
        %v11780 = vpack.c.b16 %v11236, %v11228
        %v11781 = vpack.c.b16 %v11237, %v11229
        %v11782 = vpack.c.b16 %v11246, %v11238
        %v11783 = vpack.c.b16 %v11247, %v11239
        %v11784 = vpack.c.b16 %v11248, %v11240
        %v11785 = vpack.c.b16 %v11249, %v11241
        %v11786 = vpack.c.b16 %v11250, %v11242
        %v11787 = vpack.c.b16 %v11251, %v11243
        %v11788 = vpack.c.b16 %v11252, %v11244
        %v11789 = vpack.c.b16 %v11253, %v11245
        %v11790 = vpack.c.b16 %v11262, %v11254
        %v11791 = vpack.c.b16 %v11263, %v11255
        %v11792 = vpack.c.b16 %v11264, %v11256
        %v11793 = vpack.c.b16 %v11265, %v11257
        %v11794 = vpack.c.b16 %v11266, %v11258
        %v11795 = vpack.c.b16 %v11267, %v11259
        %v11796 = vpack.c.b16 %v11268, %v11260
        %v11797 = vpack.c.b16 %v11269, %v11261
        %v11798 = vpack.c.b16 %v11278, %v11270
        %v11799 = vpack.c.b16 %v11279, %v11271
        %v11800 = vpack.c.b16 %v11280, %v11272
        %v11801 = vpack.c.b16 %v11281, %v11273
        %v11802 = vpack.c.b16 %v11282, %v11274
        %v11803 = vpack.c.b16 %v11283, %v11275
        %v11804 = vpack.c.b16 %v11284, %v11276
        %v11805 = vpack.c.b16 %v11285, %v11277
        %v11806 = vpack.c.b16 %v11294, %v11286
        %v11807 = vpack.c.b16 %v11295, %v11287
        %v11808 = vpack.c.b16 %v11296, %v11288
        %v11809 = vpack.c.b16 %v11297, %v11289
        %v11810 = vpack.c.b16 %v11298, %v11290
        %v11811 = vpack.c.b16 %v11299, %v11291
        %v11812 = vpack.c.b16 %v11300, %v11292
        %v11813 = vpack.c.b16 %v11301, %v11293
        %12326 = vmatpush.bf16.msra.mxu0 %v11358
        %12327 = vmatpush.bf16.msra.mxu0 %v11350
        %12328 = vmatpush.bf16.msra.mxu0 %v11342
        %12329 = vmatpush.bf16.msra.mxu0 %v11334
        %12330 = vmatpush.bf16.msra.mxu0 %v11326
        %12331 = vmatpush.bf16.msra.mxu0 %v11318
        %12332 = vmatpush.bf16.msra.mxu0 %v11310
        %12333 = vmatpush.bf16.msra.mxu0 %v11302
        %12334 = vmatmul.bf16.gmra.mxu0 %v9673
        %v12335 = vpop.f32.mrf.mxu0
        %v12336 = vadd.f32 0.0, %v12335
        %v12337 = vpop.f32.mrf.mxu0
        %v12338 = vadd.f32 0.0, %v12337
        %12339 = vdwg.mxu0
        %12340 = vmatpush.bf16.msra.mxu0 %v11422
        %12341 = vmatpush.bf16.msra.mxu0 %v11414
        %12342 = vmatpush.bf16.msra.mxu0 %v11406
        %12343 = vmatpush.bf16.msra.mxu0 %v11398
        %12344 = vmatpush.bf16.msra.mxu0 %v11390
        %12345 = vmatpush.bf16.msra.mxu0 %v11382
        %12346 = vmatpush.bf16.msra.mxu0 %v11374
        %12347 = vmatpush.bf16.msra.mxu0 %v11366
        %12348 = vmatmul.bf16.gmra.mxu0 %v9685
        %v12349 = vpop.f32.mrf.mxu0
        %v12350 = vadd.f32 %v12336, %v12349
        %v12351 = vpop.f32.mrf.mxu0
        %v12352 = vadd.f32 %v12338, %v12351
        %12353 = vdwg.mxu0
        %12354 = vmatpush.bf16.msra.mxu0 %v11486
        %12355 = vmatpush.bf16.msra.mxu0 %v11478
        %12356 = vmatpush.bf16.msra.mxu0 %v11470
        %12357 = vmatpush.bf16.msra.mxu0 %v11462
        %12358 = vmatpush.bf16.msra.mxu0 %v11454
        %12359 = vmatpush.bf16.msra.mxu0 %v11446
        %12360 = vmatpush.bf16.msra.mxu0 %v11438
        %12361 = vmatpush.bf16.msra.mxu0 %v11430
        %12362 = vmatmul.bf16.gmra.mxu0 %v9697
        %v12363 = vpop.f32.mrf.mxu0
        %v12364 = vadd.f32 %v12350, %v12363
        %v12365 = vpop.f32.mrf.mxu0
        %v12366 = vadd.f32 %v12352, %v12365
        %12367 = vdwg.mxu0
        %12368 = vmatpush.bf16.msra.mxu0 %v11550
        %12369 = vmatpush.bf16.msra.mxu0 %v11542
        %12370 = vmatpush.bf16.msra.mxu0 %v11534
        %12371 = vmatpush.bf16.msra.mxu0 %v11526
        %12372 = vmatpush.bf16.msra.mxu0 %v11518
        %12373 = vmatpush.bf16.msra.mxu0 %v11510
        %12374 = vmatpush.bf16.msra.mxu0 %v11502
        %12375 = vmatpush.bf16.msra.mxu0 %v11494
        %12376 = vmatmul.bf16.gmra.mxu0 %v9709
        %v12377 = vpop.f32.mrf.mxu0
        %v12378 = vadd.f32 %v12364, %v12377
        %v12379 = vpop.f32.mrf.mxu0
        %v12380 = vadd.f32 %v12366, %v12379
        %12381 = vdwg.mxu0
        %12382 = vmatpush.bf16.msra.mxu0 %v11614
        %12383 = vmatpush.bf16.msra.mxu0 %v11606
        %12384 = vmatpush.bf16.msra.mxu0 %v11598
        %12385 = vmatpush.bf16.msra.mxu0 %v11590
        %12386 = vmatpush.bf16.msra.mxu0 %v11582
        %12387 = vmatpush.bf16.msra.mxu0 %v11574
        %12388 = vmatpush.bf16.msra.mxu0 %v11566
        %12389 = vmatpush.bf16.msra.mxu0 %v11558
        %12390 = vmatmul.bf16.gmra.mxu0 %v9721
        %v12391 = vpop.f32.mrf.mxu0
        %v12392 = vadd.f32 %v12378, %v12391
        %v12393 = vpop.f32.mrf.mxu0
        %v12394 = vadd.f32 %v12380, %v12393
        %12395 = vdwg.mxu0
        %12396 = vmatpush.bf16.msra.mxu0 %v11678
        %12397 = vmatpush.bf16.msra.mxu0 %v11670
        %12398 = vmatpush.bf16.msra.mxu0 %v11662
        %12399 = vmatpush.bf16.msra.mxu0 %v11654
        %12400 = vmatpush.bf16.msra.mxu0 %v11646
        %12401 = vmatpush.bf16.msra.mxu0 %v11638
        %12402 = vmatpush.bf16.msra.mxu0 %v11630
        %12403 = vmatpush.bf16.msra.mxu0 %v11622
        %12404 = vmatmul.bf16.gmra.mxu0 %v9733
        %v12405 = vpop.f32.mrf.mxu0
        %v12406 = vadd.f32 %v12392, %v12405
        %v12407 = vpop.f32.mrf.mxu0
        %v12408 = vadd.f32 %v12394, %v12407
        %12409 = vdwg.mxu0
        %12410 = vmatpush.bf16.msra.mxu0 %v11742
        %12411 = vmatpush.bf16.msra.mxu0 %v11734
        %12412 = vmatpush.bf16.msra.mxu0 %v11726
        %12413 = vmatpush.bf16.msra.mxu0 %v11718
        %12414 = vmatpush.bf16.msra.mxu0 %v11710
        %12415 = vmatpush.bf16.msra.mxu0 %v11702
        %12416 = vmatpush.bf16.msra.mxu0 %v11694
        %12417 = vmatpush.bf16.msra.mxu0 %v11686
        %12418 = vmatmul.bf16.gmra.mxu0 %v9745
        %v12419 = vpop.f32.mrf.mxu0
        %v12420 = vadd.f32 %v12406, %v12419
        %v12421 = vpop.f32.mrf.mxu0
        %v12422 = vadd.f32 %v12408, %v12421
        %12423 = vdwg.mxu0
        %12424 = vmatpush.bf16.msra.mxu0 %v11806
        %12425 = vmatpush.bf16.msra.mxu0 %v11798
        %12426 = vmatpush.bf16.msra.mxu0 %v11790
        %12427 = vmatpush.bf16.msra.mxu0 %v11782
        %12428 = vmatpush.bf16.msra.mxu0 %v11774
        %12429 = vmatpush.bf16.msra.mxu0 %v11766
        %12430 = vmatpush.bf16.msra.mxu0 %v11758
        %12431 = vmatpush.bf16.msra.mxu0 %v11750
        %12432 = vmatmul.bf16.gmra.mxu0 %v9757
        %v12433 = vpop.f32.mrf.mxu0
        %v12434 = vadd.f32 %v12420, %v12433
        %v12435 = vpop.f32.mrf.mxu0
        %v12436 = vadd.f32 %v12422, %v12435
        %12437 = vdwg.mxu0
        %12438 = vmatpush.bf16.msra.mxu0 %v11359
        %12439 = vmatpush.bf16.msra.mxu0 %v11351
        %12440 = vmatpush.bf16.msra.mxu0 %v11343
        %12441 = vmatpush.bf16.msra.mxu0 %v11335
        %12442 = vmatpush.bf16.msra.mxu0 %v11327
        %12443 = vmatpush.bf16.msra.mxu0 %v11319
        %12444 = vmatpush.bf16.msra.mxu0 %v11311
        %12445 = vmatpush.bf16.msra.mxu0 %v11303
        %12446 = vmatmul.bf16.gmra.mxu0 %v9673
        %v12447 = vpop.f32.mrf.mxu0
        %v12448 = vadd.f32 0.0, %v12447
        %v12449 = vpop.f32.mrf.mxu0
        %v12450 = vadd.f32 0.0, %v12449
        %12451 = vdwg.mxu0
        %12452 = vmatpush.bf16.msra.mxu0 %v11423
        %12453 = vmatpush.bf16.msra.mxu0 %v11415
        %12454 = vmatpush.bf16.msra.mxu0 %v11407
        %12455 = vmatpush.bf16.msra.mxu0 %v11399
        %12456 = vmatpush.bf16.msra.mxu0 %v11391
        %12457 = vmatpush.bf16.msra.mxu0 %v11383
        %12458 = vmatpush.bf16.msra.mxu0 %v11375
        %12459 = vmatpush.bf16.msra.mxu0 %v11367
        %12460 = vmatmul.bf16.gmra.mxu0 %v9685
        %v12461 = vpop.f32.mrf.mxu0
        %v12462 = vadd.f32 %v12448, %v12461
        %v12463 = vpop.f32.mrf.mxu0
        %v12464 = vadd.f32 %v12450, %v12463
        %12465 = vdwg.mxu0
        %12466 = vmatpush.bf16.msra.mxu0 %v11487
        %12467 = vmatpush.bf16.msra.mxu0 %v11479
        %12468 = vmatpush.bf16.msra.mxu0 %v11471
        %12469 = vmatpush.bf16.msra.mxu0 %v11463
        %12470 = vmatpush.bf16.msra.mxu0 %v11455
        %12471 = vmatpush.bf16.msra.mxu0 %v11447
        %12472 = vmatpush.bf16.msra.mxu0 %v11439
        %12473 = vmatpush.bf16.msra.mxu0 %v11431
        %12474 = vmatmul.bf16.gmra.mxu0 %v9697
        %v12475 = vpop.f32.mrf.mxu0
        %v12476 = vadd.f32 %v12462, %v12475
        %v12477 = vpop.f32.mrf.mxu0
        %v12478 = vadd.f32 %v12464, %v12477
        %12479 = vdwg.mxu0
        %12480 = vmatpush.bf16.msra.mxu0 %v11551
        %12481 = vmatpush.bf16.msra.mxu0 %v11543
        %12482 = vmatpush.bf16.msra.mxu0 %v11535
        %12483 = vmatpush.bf16.msra.mxu0 %v11527
        %12484 = vmatpush.bf16.msra.mxu0 %v11519
        %12485 = vmatpush.bf16.msra.mxu0 %v11511
        %12486 = vmatpush.bf16.msra.mxu0 %v11503
        %12487 = vmatpush.bf16.msra.mxu0 %v11495
        %12488 = vmatmul.bf16.gmra.mxu0 %v9709
        %v12489 = vpop.f32.mrf.mxu0
        %v12490 = vadd.f32 %v12476, %v12489
        %v12491 = vpop.f32.mrf.mxu0
        %v12492 = vadd.f32 %v12478, %v12491
        %12493 = vdwg.mxu0
        %12494 = vmatpush.bf16.msra.mxu0 %v11615
        %12495 = vmatpush.bf16.msra.mxu0 %v11607
        %12496 = vmatpush.bf16.msra.mxu0 %v11599
        %12497 = vmatpush.bf16.msra.mxu0 %v11591
        %12498 = vmatpush.bf16.msra.mxu0 %v11583
        %12499 = vmatpush.bf16.msra.mxu0 %v11575
        %12500 = vmatpush.bf16.msra.mxu0 %v11567
        %12501 = vmatpush.bf16.msra.mxu0 %v11559
        %12502 = vmatmul.bf16.gmra.mxu0 %v9721
        %v12503 = vpop.f32.mrf.mxu0
        %v12504 = vadd.f32 %v12490, %v12503
        %v12505 = vpop.f32.mrf.mxu0
        %v12506 = vadd.f32 %v12492, %v12505
        %12507 = vdwg.mxu0
        %12508 = vmatpush.bf16.msra.mxu0 %v11679
        %12509 = vmatpush.bf16.msra.mxu0 %v11671
        %12510 = vmatpush.bf16.msra.mxu0 %v11663
        %12511 = vmatpush.bf16.msra.mxu0 %v11655
        %12512 = vmatpush.bf16.msra.mxu0 %v11647
        %12513 = vmatpush.bf16.msra.mxu0 %v11639
        %12514 = vmatpush.bf16.msra.mxu0 %v11631
        %12515 = vmatpush.bf16.msra.mxu0 %v11623
        %12516 = vmatmul.bf16.gmra.mxu0 %v9733
        %v12517 = vpop.f32.mrf.mxu0
        %v12518 = vadd.f32 %v12504, %v12517
        %v12519 = vpop.f32.mrf.mxu0
        %v12520 = vadd.f32 %v12506, %v12519
        %12521 = vdwg.mxu0
        %12522 = vmatpush.bf16.msra.mxu0 %v11743
        %12523 = vmatpush.bf16.msra.mxu0 %v11735
        %12524 = vmatpush.bf16.msra.mxu0 %v11727
        %12525 = vmatpush.bf16.msra.mxu0 %v11719
        %12526 = vmatpush.bf16.msra.mxu0 %v11711
        %12527 = vmatpush.bf16.msra.mxu0 %v11703
        %12528 = vmatpush.bf16.msra.mxu0 %v11695
        %12529 = vmatpush.bf16.msra.mxu0 %v11687
        %12530 = vmatmul.bf16.gmra.mxu0 %v9745
        %v12531 = vpop.f32.mrf.mxu0
        %v12532 = vadd.f32 %v12518, %v12531
        %v12533 = vpop.f32.mrf.mxu0
        %v12534 = vadd.f32 %v12520, %v12533
        %12535 = vdwg.mxu0
        %12536 = vmatpush.bf16.msra.mxu0 %v11807
        %12537 = vmatpush.bf16.msra.mxu0 %v11799
        %12538 = vmatpush.bf16.msra.mxu0 %v11791
        %12539 = vmatpush.bf16.msra.mxu0 %v11783
        %12540 = vmatpush.bf16.msra.mxu0 %v11775
        %12541 = vmatpush.bf16.msra.mxu0 %v11767
        %12542 = vmatpush.bf16.msra.mxu0 %v11759
        %12543 = vmatpush.bf16.msra.mxu0 %v11751
        %12544 = vmatmul.bf16.gmra.mxu0 %v9757
        %v12545 = vpop.f32.mrf.mxu0
        %v12546 = vadd.f32 %v12532, %v12545
        %v12547 = vpop.f32.mrf.mxu0
        %v12548 = vadd.f32 %v12534, %v12547
        %12549 = vdwg.mxu0
        %12550 = vmatpush.bf16.msra.mxu0 %v11360
        %12551 = vmatpush.bf16.msra.mxu0 %v11352
        %12552 = vmatpush.bf16.msra.mxu0 %v11344
        %12553 = vmatpush.bf16.msra.mxu0 %v11336
        %12554 = vmatpush.bf16.msra.mxu0 %v11328
        %12555 = vmatpush.bf16.msra.mxu0 %v11320
        %12556 = vmatpush.bf16.msra.mxu0 %v11312
        %12557 = vmatpush.bf16.msra.mxu0 %v11304
        %12558 = vmatmul.bf16.gmra.mxu0 %v9673
        %v12559 = vpop.f32.mrf.mxu0
        %v12560 = vadd.f32 0.0, %v12559
        %v12561 = vpop.f32.mrf.mxu0
        %v12562 = vadd.f32 0.0, %v12561
        %12563 = vdwg.mxu0
        %12564 = vmatpush.bf16.msra.mxu0 %v11424
        %12565 = vmatpush.bf16.msra.mxu0 %v11416
        %12566 = vmatpush.bf16.msra.mxu0 %v11408
        %12567 = vmatpush.bf16.msra.mxu0 %v11400
        %12568 = vmatpush.bf16.msra.mxu0 %v11392
        %12569 = vmatpush.bf16.msra.mxu0 %v11384
        %12570 = vmatpush.bf16.msra.mxu0 %v11376
        %12571 = vmatpush.bf16.msra.mxu0 %v11368
        %12572 = vmatmul.bf16.gmra.mxu0 %v9685
        %v12573 = vpop.f32.mrf.mxu0
        %v12574 = vadd.f32 %v12560, %v12573
        %v12575 = vpop.f32.mrf.mxu0
        %v12576 = vadd.f32 %v12562, %v12575
        %12577 = vdwg.mxu0
        %12578 = vmatpush.bf16.msra.mxu0 %v11488
        %12579 = vmatpush.bf16.msra.mxu0 %v11480
        %12580 = vmatpush.bf16.msra.mxu0 %v11472
        %12581 = vmatpush.bf16.msra.mxu0 %v11464
        %12582 = vmatpush.bf16.msra.mxu0 %v11456
        %12583 = vmatpush.bf16.msra.mxu0 %v11448
        %12584 = vmatpush.bf16.msra.mxu0 %v11440
        %12585 = vmatpush.bf16.msra.mxu0 %v11432
        %12586 = vmatmul.bf16.gmra.mxu0 %v9697
        %v12587 = vpop.f32.mrf.mxu0
        %v12588 = vadd.f32 %v12574, %v12587
        %v12589 = vpop.f32.mrf.mxu0
        %v12590 = vadd.f32 %v12576, %v12589
        %12591 = vdwg.mxu0
        %12592 = vmatpush.bf16.msra.mxu0 %v11552
        %12593 = vmatpush.bf16.msra.mxu0 %v11544
        %12594 = vmatpush.bf16.msra.mxu0 %v11536
        %12595 = vmatpush.bf16.msra.mxu0 %v11528
        %12596 = vmatpush.bf16.msra.mxu0 %v11520
        %12597 = vmatpush.bf16.msra.mxu0 %v11512
        %12598 = vmatpush.bf16.msra.mxu0 %v11504
        %12599 = vmatpush.bf16.msra.mxu0 %v11496
        %12600 = vmatmul.bf16.gmra.mxu0 %v9709
        %v12601 = vpop.f32.mrf.mxu0
        %v12602 = vadd.f32 %v12588, %v12601
        %v12603 = vpop.f32.mrf.mxu0
        %v12604 = vadd.f32 %v12590, %v12603
        %12605 = vdwg.mxu0
        %12606 = vmatpush.bf16.msra.mxu0 %v11616
        %12607 = vmatpush.bf16.msra.mxu0 %v11608
        %12608 = vmatpush.bf16.msra.mxu0 %v11600
        %12609 = vmatpush.bf16.msra.mxu0 %v11592
        %12610 = vmatpush.bf16.msra.mxu0 %v11584
        %12611 = vmatpush.bf16.msra.mxu0 %v11576
        %12612 = vmatpush.bf16.msra.mxu0 %v11568
        %12613 = vmatpush.bf16.msra.mxu0 %v11560
        %12614 = vmatmul.bf16.gmra.mxu0 %v9721
        %v12615 = vpop.f32.mrf.mxu0
        %v12616 = vadd.f32 %v12602, %v12615
        %v12617 = vpop.f32.mrf.mxu0
        %v12618 = vadd.f32 %v12604, %v12617
        %12619 = vdwg.mxu0
        %12620 = vmatpush.bf16.msra.mxu0 %v11680
        %12621 = vmatpush.bf16.msra.mxu0 %v11672
        %12622 = vmatpush.bf16.msra.mxu0 %v11664
        %12623 = vmatpush.bf16.msra.mxu0 %v11656
        %12624 = vmatpush.bf16.msra.mxu0 %v11648
        %12625 = vmatpush.bf16.msra.mxu0 %v11640
        %12626 = vmatpush.bf16.msra.mxu0 %v11632
        %12627 = vmatpush.bf16.msra.mxu0 %v11624
        %12628 = vmatmul.bf16.gmra.mxu0 %v9733
        %v12629 = vpop.f32.mrf.mxu0
        %v12630 = vadd.f32 %v12616, %v12629
        %v12631 = vpop.f32.mrf.mxu0
        %v12632 = vadd.f32 %v12618, %v12631
        %12633 = vdwg.mxu0
        %12634 = vmatpush.bf16.msra.mxu0 %v11744
        %12635 = vmatpush.bf16.msra.mxu0 %v11736
        %12636 = vmatpush.bf16.msra.mxu0 %v11728
        %12637 = vmatpush.bf16.msra.mxu0 %v11720
        %12638 = vmatpush.bf16.msra.mxu0 %v11712
        %12639 = vmatpush.bf16.msra.mxu0 %v11704
        %12640 = vmatpush.bf16.msra.mxu0 %v11696
        %12641 = vmatpush.bf16.msra.mxu0 %v11688
        %12642 = vmatmul.bf16.gmra.mxu0 %v9745
        %v12643 = vpop.f32.mrf.mxu0
        %v12644 = vadd.f32 %v12630, %v12643
        %v12645 = vpop.f32.mrf.mxu0
        %v12646 = vadd.f32 %v12632, %v12645
        %12647 = vdwg.mxu0
        %12648 = vmatpush.bf16.msra.mxu0 %v11808
        %12649 = vmatpush.bf16.msra.mxu0 %v11800
        %12650 = vmatpush.bf16.msra.mxu0 %v11792
        %12651 = vmatpush.bf16.msra.mxu0 %v11784
        %12652 = vmatpush.bf16.msra.mxu0 %v11776
        %12653 = vmatpush.bf16.msra.mxu0 %v11768
        %12654 = vmatpush.bf16.msra.mxu0 %v11760
        %12655 = vmatpush.bf16.msra.mxu0 %v11752
        %12656 = vmatmul.bf16.gmra.mxu0 %v9757
        %v12657 = vpop.f32.mrf.mxu0
        %v12658 = vadd.f32 %v12644, %v12657
        %v12659 = vpop.f32.mrf.mxu0
        %v12660 = vadd.f32 %v12646, %v12659
        %12661 = vdwg.mxu0
        %12662 = vmatpush.bf16.msra.mxu0 %v11361
        %12663 = vmatpush.bf16.msra.mxu0 %v11353
        %12664 = vmatpush.bf16.msra.mxu0 %v11345
        %12665 = vmatpush.bf16.msra.mxu0 %v11337
        %12666 = vmatpush.bf16.msra.mxu0 %v11329
        %12667 = vmatpush.bf16.msra.mxu0 %v11321
        %12668 = vmatpush.bf16.msra.mxu0 %v11313
        %12669 = vmatpush.bf16.msra.mxu0 %v11305
        %12670 = vmatmul.bf16.gmra.mxu0 %v9673
        %v12671 = vpop.f32.mrf.mxu0
        %v12672 = vadd.f32 0.0, %v12671
        %v12673 = vpop.f32.mrf.mxu0
        %v12674 = vadd.f32 0.0, %v12673
        %12675 = vdwg.mxu0
        %12676 = vmatpush.bf16.msra.mxu0 %v11425
        %12677 = vmatpush.bf16.msra.mxu0 %v11417
        %12678 = vmatpush.bf16.msra.mxu0 %v11409
        %12679 = vmatpush.bf16.msra.mxu0 %v11401
        %12680 = vmatpush.bf16.msra.mxu0 %v11393
        %12681 = vmatpush.bf16.msra.mxu0 %v11385
        %12682 = vmatpush.bf16.msra.mxu0 %v11377
        %12683 = vmatpush.bf16.msra.mxu0 %v11369
        %12684 = vmatmul.bf16.gmra.mxu0 %v9685
        %v12685 = vpop.f32.mrf.mxu0
        %v12686 = vadd.f32 %v12672, %v12685
        %v12687 = vpop.f32.mrf.mxu0
        %v12688 = vadd.f32 %v12674, %v12687
        %12689 = vdwg.mxu0
        %12690 = vmatpush.bf16.msra.mxu0 %v11489
        %12691 = vmatpush.bf16.msra.mxu0 %v11481
        %12692 = vmatpush.bf16.msra.mxu0 %v11473
        %12693 = vmatpush.bf16.msra.mxu0 %v11465
        %12694 = vmatpush.bf16.msra.mxu0 %v11457
        %12695 = vmatpush.bf16.msra.mxu0 %v11449
        %12696 = vmatpush.bf16.msra.mxu0 %v11441
        %12697 = vmatpush.bf16.msra.mxu0 %v11433
        %12698 = vmatmul.bf16.gmra.mxu0 %v9697
        %v12699 = vpop.f32.mrf.mxu0
        %v12700 = vadd.f32 %v12686, %v12699
        %v12701 = vpop.f32.mrf.mxu0
        %v12702 = vadd.f32 %v12688, %v12701
        %12703 = vdwg.mxu0
        %12704 = vmatpush.bf16.msra.mxu0 %v11553
        %12705 = vmatpush.bf16.msra.mxu0 %v11545
        %12706 = vmatpush.bf16.msra.mxu0 %v11537
        %12707 = vmatpush.bf16.msra.mxu0 %v11529
        %12708 = vmatpush.bf16.msra.mxu0 %v11521
        %12709 = vmatpush.bf16.msra.mxu0 %v11513
        %12710 = vmatpush.bf16.msra.mxu0 %v11505
        %12711 = vmatpush.bf16.msra.mxu0 %v11497
        %12712 = vmatmul.bf16.gmra.mxu0 %v9709
        %v12713 = vpop.f32.mrf.mxu0
        %v12714 = vadd.f32 %v12700, %v12713
        %v12715 = vpop.f32.mrf.mxu0
        %v12716 = vadd.f32 %v12702, %v12715
        %12717 = vdwg.mxu0
        %12718 = vmatpush.bf16.msra.mxu0 %v11617
        %12719 = vmatpush.bf16.msra.mxu0 %v11609
        %12720 = vmatpush.bf16.msra.mxu0 %v11601
        %12721 = vmatpush.bf16.msra.mxu0 %v11593
        %12722 = vmatpush.bf16.msra.mxu0 %v11585
        %12723 = vmatpush.bf16.msra.mxu0 %v11577
        %12724 = vmatpush.bf16.msra.mxu0 %v11569
        %12725 = vmatpush.bf16.msra.mxu0 %v11561
        %12726 = vmatmul.bf16.gmra.mxu0 %v9721
        %v12727 = vpop.f32.mrf.mxu0
        %v12728 = vadd.f32 %v12714, %v12727
        %v12729 = vpop.f32.mrf.mxu0
        %v12730 = vadd.f32 %v12716, %v12729
        %12731 = vdwg.mxu0
        %12732 = vmatpush.bf16.msra.mxu0 %v11681
        %12733 = vmatpush.bf16.msra.mxu0 %v11673
        %12734 = vmatpush.bf16.msra.mxu0 %v11665
        %12735 = vmatpush.bf16.msra.mxu0 %v11657
        %12736 = vmatpush.bf16.msra.mxu0 %v11649
        %12737 = vmatpush.bf16.msra.mxu0 %v11641
        %12738 = vmatpush.bf16.msra.mxu0 %v11633
        %12739 = vmatpush.bf16.msra.mxu0 %v11625
        %12740 = vmatmul.bf16.gmra.mxu0 %v9733
        %v12741 = vpop.f32.mrf.mxu0
        %v12742 = vadd.f32 %v12728, %v12741
        %v12743 = vpop.f32.mrf.mxu0
        %v12744 = vadd.f32 %v12730, %v12743
        %12745 = vdwg.mxu0
        %12746 = vmatpush.bf16.msra.mxu0 %v11745
        %12747 = vmatpush.bf16.msra.mxu0 %v11737
        %12748 = vmatpush.bf16.msra.mxu0 %v11729
        %12749 = vmatpush.bf16.msra.mxu0 %v11721
        %12750 = vmatpush.bf16.msra.mxu0 %v11713
        %12751 = vmatpush.bf16.msra.mxu0 %v11705
        %12752 = vmatpush.bf16.msra.mxu0 %v11697
        %12753 = vmatpush.bf16.msra.mxu0 %v11689
        %12754 = vmatmul.bf16.gmra.mxu0 %v9745
        %v12755 = vpop.f32.mrf.mxu0
        %v12756 = vadd.f32 %v12742, %v12755
        %v12757 = vpop.f32.mrf.mxu0
        %v12758 = vadd.f32 %v12744, %v12757
        %12759 = vdwg.mxu0
        %12760 = vmatpush.bf16.msra.mxu0 %v11809
        %12761 = vmatpush.bf16.msra.mxu0 %v11801
        %12762 = vmatpush.bf16.msra.mxu0 %v11793
        %12763 = vmatpush.bf16.msra.mxu0 %v11785
        %12764 = vmatpush.bf16.msra.mxu0 %v11777
        %12765 = vmatpush.bf16.msra.mxu0 %v11769
        %12766 = vmatpush.bf16.msra.mxu0 %v11761
        %12767 = vmatpush.bf16.msra.mxu0 %v11753
        %12768 = vmatmul.bf16.gmra.mxu0 %v9757
        %v12769 = vpop.f32.mrf.mxu0
        %v12770 = vadd.f32 %v12756, %v12769
        %v12771 = vpop.f32.mrf.mxu0
        %v12772 = vadd.f32 %v12758, %v12771
        %12773 = vdwg.mxu0
        %12774 = vmatpush.bf16.msra.mxu0 %v11362
        %12775 = vmatpush.bf16.msra.mxu0 %v11354
        %12776 = vmatpush.bf16.msra.mxu0 %v11346
        %12777 = vmatpush.bf16.msra.mxu0 %v11338
        %12778 = vmatpush.bf16.msra.mxu0 %v11330
        %12779 = vmatpush.bf16.msra.mxu0 %v11322
        %12780 = vmatpush.bf16.msra.mxu0 %v11314
        %12781 = vmatpush.bf16.msra.mxu0 %v11306
        %12782 = vmatmul.bf16.gmra.mxu0 %v9673
        %v12783 = vpop.f32.mrf.mxu0
        %v12784 = vadd.f32 0.0, %v12783
        %v12785 = vpop.f32.mrf.mxu0
        %v12786 = vadd.f32 0.0, %v12785
        %12787 = vdwg.mxu0
        %12788 = vmatpush.bf16.msra.mxu0 %v11426
        %12789 = vmatpush.bf16.msra.mxu0 %v11418
        %12790 = vmatpush.bf16.msra.mxu0 %v11410
        %12791 = vmatpush.bf16.msra.mxu0 %v11402
        %12792 = vmatpush.bf16.msra.mxu0 %v11394
        %12793 = vmatpush.bf16.msra.mxu0 %v11386
        %12794 = vmatpush.bf16.msra.mxu0 %v11378
        %12795 = vmatpush.bf16.msra.mxu0 %v11370
        %12796 = vmatmul.bf16.gmra.mxu0 %v9685
        %v12797 = vpop.f32.mrf.mxu0
        %v12798 = vadd.f32 %v12784, %v12797
        %v12799 = vpop.f32.mrf.mxu0
        %v12800 = vadd.f32 %v12786, %v12799
        %12801 = vdwg.mxu0
        %12802 = vmatpush.bf16.msra.mxu0 %v11490
        %12803 = vmatpush.bf16.msra.mxu0 %v11482
        %12804 = vmatpush.bf16.msra.mxu0 %v11474
        %12805 = vmatpush.bf16.msra.mxu0 %v11466
        %12806 = vmatpush.bf16.msra.mxu0 %v11458
        %12807 = vmatpush.bf16.msra.mxu0 %v11450
        %12808 = vmatpush.bf16.msra.mxu0 %v11442
        %12809 = vmatpush.bf16.msra.mxu0 %v11434
        %12810 = vmatmul.bf16.gmra.mxu0 %v9697
        %v12811 = vpop.f32.mrf.mxu0
        %v12812 = vadd.f32 %v12798, %v12811
        %v12813 = vpop.f32.mrf.mxu0
        %v12814 = vadd.f32 %v12800, %v12813
        %12815 = vdwg.mxu0
        %12816 = vmatpush.bf16.msra.mxu0 %v11554
        %12817 = vmatpush.bf16.msra.mxu0 %v11546
        %12818 = vmatpush.bf16.msra.mxu0 %v11538
        %12819 = vmatpush.bf16.msra.mxu0 %v11530
        %12820 = vmatpush.bf16.msra.mxu0 %v11522
        %12821 = vmatpush.bf16.msra.mxu0 %v11514
        %12822 = vmatpush.bf16.msra.mxu0 %v11506
        %12823 = vmatpush.bf16.msra.mxu0 %v11498
        %12824 = vmatmul.bf16.gmra.mxu0 %v9709
        %v12825 = vpop.f32.mrf.mxu0
        %v12826 = vadd.f32 %v12812, %v12825
        %v12827 = vpop.f32.mrf.mxu0
        %v12828 = vadd.f32 %v12814, %v12827
        %12829 = vdwg.mxu0
        %12830 = vmatpush.bf16.msra.mxu0 %v11618
        %12831 = vmatpush.bf16.msra.mxu0 %v11610
        %12832 = vmatpush.bf16.msra.mxu0 %v11602
        %12833 = vmatpush.bf16.msra.mxu0 %v11594
        %12834 = vmatpush.bf16.msra.mxu0 %v11586
        %12835 = vmatpush.bf16.msra.mxu0 %v11578
        %12836 = vmatpush.bf16.msra.mxu0 %v11570
        %12837 = vmatpush.bf16.msra.mxu0 %v11562
        %12838 = vmatmul.bf16.gmra.mxu0 %v9721
        %v12839 = vpop.f32.mrf.mxu0
        %v12840 = vadd.f32 %v12826, %v12839
        %v12841 = vpop.f32.mrf.mxu0
        %v12842 = vadd.f32 %v12828, %v12841
        %12843 = vdwg.mxu0
        %12844 = vmatpush.bf16.msra.mxu0 %v11682
        %12845 = vmatpush.bf16.msra.mxu0 %v11674
        %12846 = vmatpush.bf16.msra.mxu0 %v11666
        %12847 = vmatpush.bf16.msra.mxu0 %v11658
        %12848 = vmatpush.bf16.msra.mxu0 %v11650
        %12849 = vmatpush.bf16.msra.mxu0 %v11642
        %12850 = vmatpush.bf16.msra.mxu0 %v11634
        %12851 = vmatpush.bf16.msra.mxu0 %v11626
        %12852 = vmatmul.bf16.gmra.mxu0 %v9733
        %v12853 = vpop.f32.mrf.mxu0
        %v12854 = vadd.f32 %v12840, %v12853
        %v12855 = vpop.f32.mrf.mxu0
        %v12856 = vadd.f32 %v12842, %v12855
        %12857 = vdwg.mxu0
        %12858 = vmatpush.bf16.msra.mxu0 %v11746
        %12859 = vmatpush.bf16.msra.mxu0 %v11738
        %12860 = vmatpush.bf16.msra.mxu0 %v11730
        %12861 = vmatpush.bf16.msra.mxu0 %v11722
        %12862 = vmatpush.bf16.msra.mxu0 %v11714
        %12863 = vmatpush.bf16.msra.mxu0 %v11706
        %12864 = vmatpush.bf16.msra.mxu0 %v11698
        %12865 = vmatpush.bf16.msra.mxu0 %v11690
        %12866 = vmatmul.bf16.gmra.mxu0 %v9745
        %v12867 = vpop.f32.mrf.mxu0
        %v12868 = vadd.f32 %v12854, %v12867
        %v12869 = vpop.f32.mrf.mxu0
        %v12870 = vadd.f32 %v12856, %v12869
        %12871 = vdwg.mxu0
        %12872 = vmatpush.bf16.msra.mxu0 %v11810
        %12873 = vmatpush.bf16.msra.mxu0 %v11802
        %12874 = vmatpush.bf16.msra.mxu0 %v11794
        %12875 = vmatpush.bf16.msra.mxu0 %v11786
        %12876 = vmatpush.bf16.msra.mxu0 %v11778
        %12877 = vmatpush.bf16.msra.mxu0 %v11770
        %12878 = vmatpush.bf16.msra.mxu0 %v11762
        %12879 = vmatpush.bf16.msra.mxu0 %v11754
        %12880 = vmatmul.bf16.gmra.mxu0 %v9757
        %v12881 = vpop.f32.mrf.mxu0
        %v12882 = vadd.f32 %v12868, %v12881
        %v12883 = vpop.f32.mrf.mxu0
        %v12884 = vadd.f32 %v12870, %v12883
        %12885 = vdwg.mxu0
        %12886 = vmatpush.bf16.msra.mxu0 %v11363
        %12887 = vmatpush.bf16.msra.mxu0 %v11355
        %12888 = vmatpush.bf16.msra.mxu0 %v11347
        %12889 = vmatpush.bf16.msra.mxu0 %v11339
        %12890 = vmatpush.bf16.msra.mxu0 %v11331
        %12891 = vmatpush.bf16.msra.mxu0 %v11323
        %12892 = vmatpush.bf16.msra.mxu0 %v11315
        %12893 = vmatpush.bf16.msra.mxu0 %v11307
        %12894 = vmatmul.bf16.gmra.mxu0 %v9673
        %v12895 = vpop.f32.mrf.mxu0
        %v12896 = vadd.f32 0.0, %v12895
        %v12897 = vpop.f32.mrf.mxu0
        %v12898 = vadd.f32 0.0, %v12897
        %12899 = vdwg.mxu0
        %12900 = vmatpush.bf16.msra.mxu0 %v11427
        %12901 = vmatpush.bf16.msra.mxu0 %v11419
        %12902 = vmatpush.bf16.msra.mxu0 %v11411
        %12903 = vmatpush.bf16.msra.mxu0 %v11403
        %12904 = vmatpush.bf16.msra.mxu0 %v11395
        %12905 = vmatpush.bf16.msra.mxu0 %v11387
        %12906 = vmatpush.bf16.msra.mxu0 %v11379
        %12907 = vmatpush.bf16.msra.mxu0 %v11371
        %12908 = vmatmul.bf16.gmra.mxu0 %v9685
        %v12909 = vpop.f32.mrf.mxu0
        %v12910 = vadd.f32 %v12896, %v12909
        %v12911 = vpop.f32.mrf.mxu0
        %v12912 = vadd.f32 %v12898, %v12911
        %12913 = vdwg.mxu0
        %12914 = vmatpush.bf16.msra.mxu0 %v11491
        %12915 = vmatpush.bf16.msra.mxu0 %v11483
        %12916 = vmatpush.bf16.msra.mxu0 %v11475
        %12917 = vmatpush.bf16.msra.mxu0 %v11467
        %12918 = vmatpush.bf16.msra.mxu0 %v11459
        %12919 = vmatpush.bf16.msra.mxu0 %v11451
        %12920 = vmatpush.bf16.msra.mxu0 %v11443
        %12921 = vmatpush.bf16.msra.mxu0 %v11435
        %12922 = vmatmul.bf16.gmra.mxu0 %v9697
        %v12923 = vpop.f32.mrf.mxu0
        %v12924 = vadd.f32 %v12910, %v12923
        %v12925 = vpop.f32.mrf.mxu0
        %v12926 = vadd.f32 %v12912, %v12925
        %12927 = vdwg.mxu0
        %12928 = vmatpush.bf16.msra.mxu0 %v11555
        %12929 = vmatpush.bf16.msra.mxu0 %v11547
        %12930 = vmatpush.bf16.msra.mxu0 %v11539
        %12931 = vmatpush.bf16.msra.mxu0 %v11531
        %12932 = vmatpush.bf16.msra.mxu0 %v11523
        %12933 = vmatpush.bf16.msra.mxu0 %v11515
        %12934 = vmatpush.bf16.msra.mxu0 %v11507
        %12935 = vmatpush.bf16.msra.mxu0 %v11499
        %12936 = vmatmul.bf16.gmra.mxu0 %v9709
        %v12937 = vpop.f32.mrf.mxu0
        %v12938 = vadd.f32 %v12924, %v12937
        %v12939 = vpop.f32.mrf.mxu0
        %v12940 = vadd.f32 %v12926, %v12939
        %12941 = vdwg.mxu0
        %12942 = vmatpush.bf16.msra.mxu0 %v11619
        %12943 = vmatpush.bf16.msra.mxu0 %v11611
        %12944 = vmatpush.bf16.msra.mxu0 %v11603
        %12945 = vmatpush.bf16.msra.mxu0 %v11595
        %12946 = vmatpush.bf16.msra.mxu0 %v11587
        %12947 = vmatpush.bf16.msra.mxu0 %v11579
        %12948 = vmatpush.bf16.msra.mxu0 %v11571
        %12949 = vmatpush.bf16.msra.mxu0 %v11563
        %12950 = vmatmul.bf16.gmra.mxu0 %v9721
        %v12951 = vpop.f32.mrf.mxu0
        %v12952 = vadd.f32 %v12938, %v12951
        %v12953 = vpop.f32.mrf.mxu0
        %v12954 = vadd.f32 %v12940, %v12953
        %12955 = vdwg.mxu0
        %12956 = vmatpush.bf16.msra.mxu0 %v11683
        %12957 = vmatpush.bf16.msra.mxu0 %v11675
        %12958 = vmatpush.bf16.msra.mxu0 %v11667
        %12959 = vmatpush.bf16.msra.mxu0 %v11659
        %12960 = vmatpush.bf16.msra.mxu0 %v11651
        %12961 = vmatpush.bf16.msra.mxu0 %v11643
        %12962 = vmatpush.bf16.msra.mxu0 %v11635
        %12963 = vmatpush.bf16.msra.mxu0 %v11627
        %12964 = vmatmul.bf16.gmra.mxu0 %v9733
        %v12965 = vpop.f32.mrf.mxu0
        %v12966 = vadd.f32 %v12952, %v12965
        %v12967 = vpop.f32.mrf.mxu0
        %v12968 = vadd.f32 %v12954, %v12967
        %12969 = vdwg.mxu0
        %12970 = vmatpush.bf16.msra.mxu0 %v11747
        %12971 = vmatpush.bf16.msra.mxu0 %v11739
        %12972 = vmatpush.bf16.msra.mxu0 %v11731
        %12973 = vmatpush.bf16.msra.mxu0 %v11723
        %12974 = vmatpush.bf16.msra.mxu0 %v11715
        %12975 = vmatpush.bf16.msra.mxu0 %v11707
        %12976 = vmatpush.bf16.msra.mxu0 %v11699
        %12977 = vmatpush.bf16.msra.mxu0 %v11691
        %12978 = vmatmul.bf16.gmra.mxu0 %v9745
        %v12979 = vpop.f32.mrf.mxu0
        %v12980 = vadd.f32 %v12966, %v12979
        %v12981 = vpop.f32.mrf.mxu0
        %v12982 = vadd.f32 %v12968, %v12981
        %12983 = vdwg.mxu0
        %12984 = vmatpush.bf16.msra.mxu0 %v11811
        %12985 = vmatpush.bf16.msra.mxu0 %v11803
        %12986 = vmatpush.bf16.msra.mxu0 %v11795
        %12987 = vmatpush.bf16.msra.mxu0 %v11787
        %12988 = vmatpush.bf16.msra.mxu0 %v11779
        %12989 = vmatpush.bf16.msra.mxu0 %v11771
        %12990 = vmatpush.bf16.msra.mxu0 %v11763
        %12991 = vmatpush.bf16.msra.mxu0 %v11755
        %12992 = vmatmul.bf16.gmra.mxu0 %v9757
        %v12993 = vpop.f32.mrf.mxu0
        %v12994 = vadd.f32 %v12980, %v12993
        %v12995 = vpop.f32.mrf.mxu0
        %v12996 = vadd.f32 %v12982, %v12995
        %12997 = vdwg.mxu0
        %12998 = vmatpush.bf16.msra.mxu0 %v11364
        %12999 = vmatpush.bf16.msra.mxu0 %v11356
        %13000 = vmatpush.bf16.msra.mxu0 %v11348
        %13001 = vmatpush.bf16.msra.mxu0 %v11340
        %13002 = vmatpush.bf16.msra.mxu0 %v11332
        %13003 = vmatpush.bf16.msra.mxu0 %v11324
        %13004 = vmatpush.bf16.msra.mxu0 %v11316
        %13005 = vmatpush.bf16.msra.mxu0 %v11308
        %13006 = vmatmul.bf16.gmra.mxu0 %v9673
        %v13007 = vpop.f32.mrf.mxu0
        %v13008 = vadd.f32 0.0, %v13007
        %v13009 = vpop.f32.mrf.mxu0
        %v13010 = vadd.f32 0.0, %v13009
        %13011 = vdwg.mxu0
        %13012 = vmatpush.bf16.msra.mxu0 %v11428
        %13013 = vmatpush.bf16.msra.mxu0 %v11420
        %13014 = vmatpush.bf16.msra.mxu0 %v11412
        %13015 = vmatpush.bf16.msra.mxu0 %v11404
        %13016 = vmatpush.bf16.msra.mxu0 %v11396
        %13017 = vmatpush.bf16.msra.mxu0 %v11388
        %13018 = vmatpush.bf16.msra.mxu0 %v11380
        %13019 = vmatpush.bf16.msra.mxu0 %v11372
        %13020 = vmatmul.bf16.gmra.mxu0 %v9685
        %v13021 = vpop.f32.mrf.mxu0
        %v13022 = vadd.f32 %v13008, %v13021
        %v13023 = vpop.f32.mrf.mxu0
        %v13024 = vadd.f32 %v13010, %v13023
        %13025 = vdwg.mxu0
        %13026 = vmatpush.bf16.msra.mxu0 %v11492
        %13027 = vmatpush.bf16.msra.mxu0 %v11484
        %13028 = vmatpush.bf16.msra.mxu0 %v11476
        %13029 = vmatpush.bf16.msra.mxu0 %v11468
        %13030 = vmatpush.bf16.msra.mxu0 %v11460
        %13031 = vmatpush.bf16.msra.mxu0 %v11452
        %13032 = vmatpush.bf16.msra.mxu0 %v11444
        %13033 = vmatpush.bf16.msra.mxu0 %v11436
        %13034 = vmatmul.bf16.gmra.mxu0 %v9697
        %v13035 = vpop.f32.mrf.mxu0
        %v13036 = vadd.f32 %v13022, %v13035
        %v13037 = vpop.f32.mrf.mxu0
        %v13038 = vadd.f32 %v13024, %v13037
        %13039 = vdwg.mxu0
        %13040 = vmatpush.bf16.msra.mxu0 %v11556
        %13041 = vmatpush.bf16.msra.mxu0 %v11548
        %13042 = vmatpush.bf16.msra.mxu0 %v11540
        %13043 = vmatpush.bf16.msra.mxu0 %v11532
        %13044 = vmatpush.bf16.msra.mxu0 %v11524
        %13045 = vmatpush.bf16.msra.mxu0 %v11516
        %13046 = vmatpush.bf16.msra.mxu0 %v11508
        %13047 = vmatpush.bf16.msra.mxu0 %v11500
        %13048 = vmatmul.bf16.gmra.mxu0 %v9709
        %v13049 = vpop.f32.mrf.mxu0
        %v13050 = vadd.f32 %v13036, %v13049
        %v13051 = vpop.f32.mrf.mxu0
        %v13052 = vadd.f32 %v13038, %v13051
        %13053 = vdwg.mxu0
        %13054 = vmatpush.bf16.msra.mxu0 %v11620
        %13055 = vmatpush.bf16.msra.mxu0 %v11612
        %13056 = vmatpush.bf16.msra.mxu0 %v11604
        %13057 = vmatpush.bf16.msra.mxu0 %v11596
        %13058 = vmatpush.bf16.msra.mxu0 %v11588
        %13059 = vmatpush.bf16.msra.mxu0 %v11580
        %13060 = vmatpush.bf16.msra.mxu0 %v11572
        %13061 = vmatpush.bf16.msra.mxu0 %v11564
        %13062 = vmatmul.bf16.gmra.mxu0 %v9721
        %v13063 = vpop.f32.mrf.mxu0
        %v13064 = vadd.f32 %v13050, %v13063
        %v13065 = vpop.f32.mrf.mxu0
        %v13066 = vadd.f32 %v13052, %v13065
        %13067 = vdwg.mxu0
        %13068 = vmatpush.bf16.msra.mxu0 %v11684
        %13069 = vmatpush.bf16.msra.mxu0 %v11676
        %13070 = vmatpush.bf16.msra.mxu0 %v11668
        %13071 = vmatpush.bf16.msra.mxu0 %v11660
        %13072 = vmatpush.bf16.msra.mxu0 %v11652
        %13073 = vmatpush.bf16.msra.mxu0 %v11644
        %13074 = vmatpush.bf16.msra.mxu0 %v11636
        %13075 = vmatpush.bf16.msra.mxu0 %v11628
        %13076 = vmatmul.bf16.gmra.mxu0 %v9733
        %v13077 = vpop.f32.mrf.mxu0
        %v13078 = vadd.f32 %v13064, %v13077
        %v13079 = vpop.f32.mrf.mxu0
        %v13080 = vadd.f32 %v13066, %v13079
        %13081 = vdwg.mxu0
        %13082 = vmatpush.bf16.msra.mxu0 %v11748
        %13083 = vmatpush.bf16.msra.mxu0 %v11740
        %13084 = vmatpush.bf16.msra.mxu0 %v11732
        %13085 = vmatpush.bf16.msra.mxu0 %v11724
        %13086 = vmatpush.bf16.msra.mxu0 %v11716
        %13087 = vmatpush.bf16.msra.mxu0 %v11708
        %13088 = vmatpush.bf16.msra.mxu0 %v11700
        %13089 = vmatpush.bf16.msra.mxu0 %v11692
        %13090 = vmatmul.bf16.gmra.mxu0 %v9745
        %v13091 = vpop.f32.mrf.mxu0
        %v13092 = vadd.f32 %v13078, %v13091
        %v13093 = vpop.f32.mrf.mxu0
        %v13094 = vadd.f32 %v13080, %v13093
        %13095 = vdwg.mxu0
        %13096 = vmatpush.bf16.msra.mxu0 %v11812
        %13097 = vmatpush.bf16.msra.mxu0 %v11804
        %13098 = vmatpush.bf16.msra.mxu0 %v11796
        %13099 = vmatpush.bf16.msra.mxu0 %v11788
        %13100 = vmatpush.bf16.msra.mxu0 %v11780
        %13101 = vmatpush.bf16.msra.mxu0 %v11772
        %13102 = vmatpush.bf16.msra.mxu0 %v11764
        %13103 = vmatpush.bf16.msra.mxu0 %v11756
        %13104 = vmatmul.bf16.gmra.mxu0 %v9757
        %v13105 = vpop.f32.mrf.mxu0
        %v13106 = vadd.f32 %v13092, %v13105
        %v13107 = vpop.f32.mrf.mxu0
        %v13108 = vadd.f32 %v13094, %v13107
        %13109 = vdwg.mxu0
        %13110 = vmatpush.bf16.msra.mxu0 %v11365
        %13111 = vmatpush.bf16.msra.mxu0 %v11357
        %13112 = vmatpush.bf16.msra.mxu0 %v11349
        %13113 = vmatpush.bf16.msra.mxu0 %v11341
        %13114 = vmatpush.bf16.msra.mxu0 %v11333
        %13115 = vmatpush.bf16.msra.mxu0 %v11325
        %13116 = vmatpush.bf16.msra.mxu0 %v11317
        %13117 = vmatpush.bf16.msra.mxu0 %v11309
        %13118 = vmatmul.bf16.gmra.mxu0 %v9673
        %v13119 = vpop.f32.mrf.mxu0
        %v13120 = vadd.f32 0.0, %v13119
        %v13121 = vpop.f32.mrf.mxu0
        %v13122 = vadd.f32 0.0, %v13121
        %13123 = vdwg.mxu0
        %13124 = vmatpush.bf16.msra.mxu0 %v11429
        %13125 = vmatpush.bf16.msra.mxu0 %v11421
        %13126 = vmatpush.bf16.msra.mxu0 %v11413
        %13127 = vmatpush.bf16.msra.mxu0 %v11405
        %13128 = vmatpush.bf16.msra.mxu0 %v11397
        %13129 = vmatpush.bf16.msra.mxu0 %v11389
        %13130 = vmatpush.bf16.msra.mxu0 %v11381
        %13131 = vmatpush.bf16.msra.mxu0 %v11373
        %13132 = vmatmul.bf16.gmra.mxu0 %v9685
        %v13133 = vpop.f32.mrf.mxu0
        %v13134 = vadd.f32 %v13120, %v13133
        %v13135 = vpop.f32.mrf.mxu0
        %v13136 = vadd.f32 %v13122, %v13135
        %13137 = vdwg.mxu0
        %13138 = vmatpush.bf16.msra.mxu0 %v11493
        %13139 = vmatpush.bf16.msra.mxu0 %v11485
        %13140 = vmatpush.bf16.msra.mxu0 %v11477
        %13141 = vmatpush.bf16.msra.mxu0 %v11469
        %13142 = vmatpush.bf16.msra.mxu0 %v11461
        %13143 = vmatpush.bf16.msra.mxu0 %v11453
        %13144 = vmatpush.bf16.msra.mxu0 %v11445
        %13145 = vmatpush.bf16.msra.mxu0 %v11437
        %13146 = vmatmul.bf16.gmra.mxu0 %v9697
        %v13147 = vpop.f32.mrf.mxu0
        %v13148 = vadd.f32 %v13134, %v13147
        %v13149 = vpop.f32.mrf.mxu0
        %v13150 = vadd.f32 %v13136, %v13149
        %13151 = vdwg.mxu0
        %13152 = vmatpush.bf16.msra.mxu0 %v11557
        %13153 = vmatpush.bf16.msra.mxu0 %v11549
        %13154 = vmatpush.bf16.msra.mxu0 %v11541
        %13155 = vmatpush.bf16.msra.mxu0 %v11533
        %13156 = vmatpush.bf16.msra.mxu0 %v11525
        %13157 = vmatpush.bf16.msra.mxu0 %v11517
        %13158 = vmatpush.bf16.msra.mxu0 %v11509
        %13159 = vmatpush.bf16.msra.mxu0 %v11501
        %13160 = vmatmul.bf16.gmra.mxu0 %v9709
        %v13161 = vpop.f32.mrf.mxu0
        %v13162 = vadd.f32 %v13148, %v13161
        %v13163 = vpop.f32.mrf.mxu0
        %v13164 = vadd.f32 %v13150, %v13163
        %13165 = vdwg.mxu0
        %13166 = vmatpush.bf16.msra.mxu0 %v11621
        %13167 = vmatpush.bf16.msra.mxu0 %v11613
        %13168 = vmatpush.bf16.msra.mxu0 %v11605
        %13169 = vmatpush.bf16.msra.mxu0 %v11597
        %13170 = vmatpush.bf16.msra.mxu0 %v11589
        %13171 = vmatpush.bf16.msra.mxu0 %v11581
        %13172 = vmatpush.bf16.msra.mxu0 %v11573
        %13173 = vmatpush.bf16.msra.mxu0 %v11565
        %13174 = vmatmul.bf16.gmra.mxu0 %v9721
        %v13175 = vpop.f32.mrf.mxu0
        %v13176 = vadd.f32 %v13162, %v13175
        %v13177 = vpop.f32.mrf.mxu0
        %v13178 = vadd.f32 %v13164, %v13177
        %13179 = vdwg.mxu0
        %13180 = vmatpush.bf16.msra.mxu0 %v11685
        %13181 = vmatpush.bf16.msra.mxu0 %v11677
        %13182 = vmatpush.bf16.msra.mxu0 %v11669
        %13183 = vmatpush.bf16.msra.mxu0 %v11661
        %13184 = vmatpush.bf16.msra.mxu0 %v11653
        %13185 = vmatpush.bf16.msra.mxu0 %v11645
        %13186 = vmatpush.bf16.msra.mxu0 %v11637
        %13187 = vmatpush.bf16.msra.mxu0 %v11629
        %13188 = vmatmul.bf16.gmra.mxu0 %v9733
        %v13189 = vpop.f32.mrf.mxu0
        %v13190 = vadd.f32 %v13176, %v13189
        %v13191 = vpop.f32.mrf.mxu0
        %v13192 = vadd.f32 %v13178, %v13191
        %13193 = vdwg.mxu0
        %13194 = vmatpush.bf16.msra.mxu0 %v11749
        %13195 = vmatpush.bf16.msra.mxu0 %v11741
        %13196 = vmatpush.bf16.msra.mxu0 %v11733
        %13197 = vmatpush.bf16.msra.mxu0 %v11725
        %13198 = vmatpush.bf16.msra.mxu0 %v11717
        %13199 = vmatpush.bf16.msra.mxu0 %v11709
        %13200 = vmatpush.bf16.msra.mxu0 %v11701
        %13201 = vmatpush.bf16.msra.mxu0 %v11693
        %13202 = vmatmul.bf16.gmra.mxu0 %v9745
        %v13203 = vpop.f32.mrf.mxu0
        %v13204 = vadd.f32 %v13190, %v13203
        %v13205 = vpop.f32.mrf.mxu0
        %v13206 = vadd.f32 %v13192, %v13205
        %13207 = vdwg.mxu0
        %13208 = vmatpush.bf16.msra.mxu0 %v11813
        %13209 = vmatpush.bf16.msra.mxu0 %v11805
        %13210 = vmatpush.bf16.msra.mxu0 %v11797
        %13211 = vmatpush.bf16.msra.mxu0 %v11789
        %13212 = vmatpush.bf16.msra.mxu0 %v11781
        %13213 = vmatpush.bf16.msra.mxu0 %v11773
        %13214 = vmatpush.bf16.msra.mxu0 %v11765
        %13215 = vmatpush.bf16.msra.mxu0 %v11757
        %13216 = vmatmul.bf16.gmra.mxu0 %v9757
        %v13217 = vpop.f32.mrf.mxu0
        %v13218 = vadd.f32 %v13204, %v13217
        %v13219 = vpop.f32.mrf.mxu0
        %v13220 = vadd.f32 %v13206, %v13219
        %13221 = vdwg.mxu0
        %v13222 = vadd.f32 %v9092, %v12434
        %v13223 = vadd.f32 %v9093, %v12546
        %v13224 = vadd.f32 %v9094, %v12658
        %v13225 = vadd.f32 %v9095, %v12770
        %v13226 = vadd.f32 %v9096, %v12882
        %v13227 = vadd.f32 %v9097, %v12994
        %v13228 = vadd.f32 %v9098, %v13106
        %v13229 = vadd.f32 %v9099, %v13218
        %v13230 = vadd.f32 %v9100, %v12436
        %v13231 = vadd.f32 %v9101, %v12548
        %v13232 = vadd.f32 %v9102, %v12660
        %v13233 = vadd.f32 %v9103, %v12772
        %v13234 = vadd.f32 %v9104, %v12884
        %v13235 = vadd.f32 %v9105, %v12996
        %v13236 = vadd.f32 %v9106, %v13108
        %v13237 = vadd.f32 %v9107, %v13220
        %v13238 = vmax.f32 %v13222, 0.0
        %v13239 = vmax.f32 %v13223, 0.0
        %v13240 = vmax.f32 %v13224, 0.0
        %v13241 = vmax.f32 %v13225, 0.0
        %v13242 = vmax.f32 %v13226, 0.0
        %v13243 = vmax.f32 %v13227, 0.0
        %v13244 = vmax.f32 %v13228, 0.0
        %v13245 = vmax.f32 %v13229, 0.0
        %v13246 = vmax.f32 %v13230, 0.0
        %v13247 = vmax.f32 %v13231, 0.0
        %v13248 = vmax.f32 %v13232, 0.0
        %v13249 = vmax.f32 %v13233, 0.0
        %v13250 = vmax.f32 %v13234, 0.0
        %v13251 = vmax.f32 %v13235, 0.0
        %v13252 = vmax.f32 %v13236, 0.0
        %v13253 = vmax.f32 %v13237, 0.0
        %13254 = vst [vmem:[%s306] sm:$0xff] %v13238
        %13255 = vst [vmem:[%s306 + $0x8] sm:$0xff] %v13239
        %13256 = vst [vmem:[%s306 + $0x10] sm:$0xff] %v13240
        %13257 = vst [vmem:[%s306 + $0x18] sm:$0xff] %v13241
        %13258 = vst [vmem:[%s306 + $0x20] sm:$0xff] %v13242
        %13259 = vst [vmem:[%s306 + $0x28] sm:$0xff] %v13243
        %13260 = vst [vmem:[%s306 + $0x30] sm:$0xff] %v13244
        %13261 = vst [vmem:[%s306 + $0x38] sm:$0xff] %v13245
        %13262 = vst [vmem:[%s306 + $0x40] sm:$0xff] %v13246
        %13263 = vst [vmem:[%s306 + $0x48] sm:$0xff] %v13247
        %13264 = vst [vmem:[%s306 + $0x50] sm:$0xff] %v13248
        %13265 = vst [vmem:[%s306 + $0x58] sm:$0xff] %v13249
        %13266 = vst [vmem:[%s306 + $0x60] sm:$0xff] %v13250
        %13267 = vst [vmem:[%s306 + $0x68] sm:$0xff] %v13251
        %13268 = vst [vmem:[%s306 + $0x70] sm:$0xff] %v13252
        %13269 = vst [vmem:[%s306 + $0x78] sm:$0xff] %v13253
        %s13270 = sand.u32 %s142, 1
        %s13271 = scalar_lea.sflag [#allocation6], %s13270
        %s13272 = sand.u32 %s142, 1
        %s13273 = smul.addr %s13272, 128
        %s13274 = scalar_lea.vmem [#allocation13], %s13273
        // Predicated region
        $region61: #{tpu_custom_call.1} parent=39 // pred_check
          %p13275 = pneg %p152
        $region62: #{tpu_custom_call.1} parent=39 // pred_check_branch
          %13277 = sbr.rel (%p13275) target = $region64
        $region63: #{tpu_custom_call.1} parent=39 // pred_region
          %13279 = vsyncadd %s13271, 0
          %s13280 = smul.addr %s24, 16
          %s13281 = smul.addr %s13280, 8
          %s13282 = scalar_lea.hbm %s5, %s13281
          %s13283 = sshll.u32 %s13274, 4
          %s13284 = int_to_ptr.vmem [resolvable:$true] %s13283
          %s13285 = sshll.u32 %s13282, 4
          %s13286 = int_to_ptr.hbm [resolvable:$true] %s13285
          %13291 = dma.vmem_to_hbm [thread:$0]  %s13284, 2048, %s13286, %s13271, 1024, 1024, 64
        $region64: #{tpu_custom_call.1} parent=39 // pred_fallthru
          _
      $region40: #{tpu_custom_call.1} parent=5 // pred_fallthru
        _
      %p13292 = scmp.le.s32.totalorder 2, %s19
      // Predicated region
      $region65: #{tpu_custom_call.1} parent=5 // pred_check
        %p13293 = pneg %p13292
      $region66: #{tpu_custom_call.1} parent=5 // pred_check_branch
        %13295 = sbr.rel (%p13293) target = $region68
      $region67: #{tpu_custom_call.1} parent=5 // pred_region
        %s13296 = ssub.s32 %s19, 2
        // Predicated region
        $region69: #{tpu_custom_call.1} parent=67 // pred_check
          %p13297 = pneg %p158
        $region70: #{tpu_custom_call.1} parent=67 // pred_check_branch
          %13299 = sbr.rel (%p13297) target = $region72
        $region71: #{tpu_custom_call.1} parent=67 // pred_region
          %s13300 = sand.u32 %s143, 1
          %s13301 = scalar_lea.sflag [#allocation6], %s13300
          %s13302 = sand.u32 %s143, 1
          %s13303 = smul.addr %s13302, 128
          %s13304 = scalar_lea.vmem [#allocation13], %s13303
          %13306 = dma.done %s13301, 2048
        $region72: #{tpu_custom_call.1} parent=67 // pred_fallthru
          _
      $region68: #{tpu_custom_call.1} parent=5 // pred_fallthru
        _
    $region6: #{tpu_custom_call.1} parent=1 // loop_footer
      %s23 = sadd.s32 1, %s19
    $region7: #{tpu_custom_call.1} parent=1 // loop_footer_branch
      %18 = sbr.rel target = $region3
    $region8: #{tpu_custom_call.1} parent=1 // loop_exit
      _
    %13307 = vsyncpa [#allocation5], 1
    %s13308 = scalar_lea.sflag [#allocation5], 1
    %13309 = vsyncpa %s13308, 1
    %13310 = vsyncpa [#allocation8], 1
    %13311 = vsyncpa [#allocation11], 1
    %13312 = vsyncpa [#allocation6], 1
    %s13313 = scalar_lea.sflag [#allocation6], 1
    %13314 = vsyncpa %s13313, 1

</llo_original>
